<compile_context>
chip_gen: v5e
topology: v5e:2x2
jax: 0.10.0
libtpu: 0.0.40
codegen_flags: <defaults>
</compile_context>

<pallas_src>
import functools

import jax
import jax.numpy as jnp
from jax.experimental import pallas as pl
from jax.experimental.pallas import tpu as pltpu


# ----------------------------- kernel helpers -------------------------------

def _layernorm(x, g, b, eps):
    mean = jnp.mean(x, axis=-1, keepdims=True)
    c = x - mean
    var = jnp.mean(c * c, axis=-1, keepdims=True)
    return c * jax.lax.rsqrt(var + eps) * g + b


# ---------------- kernel 1: patch embedding + positional enc ----------------

def _patch_embed_kernel(xp_ref, w_ref, b_ref, pos_ref, o_ref):
    # (S, Cpp) @ (Cpp, E) + bias + positional encodings, fused.
    o_ref[0] = (jnp.dot(xp_ref[0], w_ref[...], preferred_element_type=jnp.float32)
                + b_ref[...] + pos_ref[...]).astype(o_ref.dtype)


def patch_embed(xp, w, b, pos):
    N, S, K = xp.shape
    E = w.shape[1]
    return pl.pallas_call(
        _patch_embed_kernel,
        out_shape=jax.ShapeDtypeStruct((N, S, E), jnp.float32),
        grid=(N,),
        in_specs=[
            pl.BlockSpec((1, S, K), lambda n: (n, 0, 0)),
            pl.BlockSpec((K, E), lambda n: (0, 0)),
            pl.BlockSpec((1, E), lambda n: (0, 0)),
            pl.BlockSpec((S, E), lambda n: (0, 0)),
        ],
        out_specs=pl.BlockSpec((1, S, E), lambda n: (n, 0, 0)),
        compiler_params=pltpu.CompilerParams(dimension_semantics=("parallel",)),
    )(xp, w, b, pos)


# -------------- kernel 2: fused 4-layer transformer encoder -----------------

def _encoder_stack_kernel(emb_ref, wq_ref, wk_ref, wv_ref, bq_ref, bk_ref, bv_ref,
                          wo_ref, bo_ref, ln1g_ref, ln1b_ref,
                          wf1_ref, bf1_ref, wf2_ref, bf2_ref,
                          ln2g_ref, ln2b_ref, out_ref, *, num_heads, eps):
    # grid = (batch, layer); layer params are indexed by the layer grid axis.
    # The token block for batch n is initialised from the embeddings at l == 0
    # and then kept resident in the output VMEM buffer across all layers.
    @pl.when(pl.program_id(1) == 0)
    def _():
        out_ref[...] = emb_ref[...]

    x = out_ref[0]                                     # (S, E) running tokens
    d = wq_ref.shape[-1]
    scale = 1.0 / (float(d) ** 0.5)

    # ---- multi-head self-attention (per-head pre-split weights; all math in
    # ---- vregs -> no HBM layout shuffle, no lane-slice / concat ops) --------
    attn = None
    for h in range(num_heads):
        qh = jnp.dot(x, wq_ref[0, h], preferred_element_type=jnp.float32) + bq_ref[0, h]
        kh = jnp.dot(x, wk_ref[0, h], preferred_element_type=jnp.float32) + bk_ref[0, h]
        vh = jnp.dot(x, wv_ref[0, h], preferred_element_type=jnp.float32) + bv_ref[0, h]
        s = jax.lax.dot_general(qh, kh, (((1,), (1,)), ((), ())),
                                preferred_element_type=jnp.float32) * scale
        s = s - jnp.max(s, axis=-1, keepdims=True)
        e = jnp.exp(s)
        p = e * pl.reciprocal(jnp.sum(e, axis=-1, keepdims=True), approx=True)
        oh = jnp.dot(p, vh, preferred_element_type=jnp.float32)           # (S, d)
        contrib = jnp.dot(oh, wo_ref[0, h], preferred_element_type=jnp.float32)
        attn = contrib if attn is None else attn + contrib
    attn = attn + bo_ref[0]

    x1 = _layernorm(x + attn, ln1g_ref[0], ln1b_ref[0], eps)              # norm1

    # ---- feed-forward: bf16 weights, f32 accumulation on the MXU ----------
    h1 = jnp.dot(x1.astype(jnp.bfloat16), wf1_ref[0],
                 preferred_element_type=jnp.float32) + bf1_ref[0]
    h1 = jnp.maximum(h1, 0.0)                                             # ReLU
    h2 = jnp.dot(h1.astype(jnp.bfloat16), wf2_ref[0],
                 preferred_element_type=jnp.float32) + bf2_ref[0]

    out_ref[0] = _layernorm(x1 + h2, ln2g_ref[0], ln2b_ref[0], eps)       # norm2


_ENC_ORDER = ("wq", "wk", "wv", "bq", "bk", "bv", "wo", "bo",
              "ln1g", "ln1b", "wf1", "bf1", "wf2", "bf2", "ln2g", "ln2b")


def transformer_encoder(emb, enc, num_heads):
    N, S, E = emb.shape
    L = enc["wq"].shape[0]

    def lspec(a):
        shape = tuple(a.shape[1:])
        nd = len(shape)
        return pl.BlockSpec((1,) + shape, lambda n, l: (l,) + (0,) * nd)

    tok_in = pl.BlockSpec((1, S, E), lambda n, l: (n, 0, 0))
    tok_out = pl.BlockSpec((1, S, E), lambda n, l: (n, 0, 0))
    return pl.pallas_call(
        functools.partial(_encoder_stack_kernel, num_heads=num_heads, eps=1e-5),
        out_shape=jax.ShapeDtypeStruct((N, S, E), jnp.float32),
        grid=(N, L),
        in_specs=[tok_in] + [lspec(enc[k]) for k in _ENC_ORDER],
        out_specs=tok_out,
        compiler_params=pltpu.CompilerParams(
            dimension_semantics=("parallel", "arbitrary")),
    )(emb, *[enc[k] for k in _ENC_ORDER])


# ------------------- kernel 3: fused 3-layer regressor MLP ------------------

def _regressor_kernel(x_ref, w1_ref, b1_ref, w2_ref, b2_ref, w3_ref, b3_ref, o_ref):
    def leaky(t):  # nn.LeakyReLU default slope
        return jnp.where(t >= 0.0, t, 0.01 * t)

    h = leaky(jnp.dot(x_ref[...], w1_ref[...],
                      preferred_element_type=jnp.float32) + b1_ref[...])
    h = leaky(jnp.dot(h, w2_ref[...],
                      preferred_element_type=jnp.float32) + b2_ref[...])
    o_ref[...] = (jnp.dot(h, w3_ref[...],
                          preferred_element_type=jnp.float32) + b3_ref[...]
                  ).astype(o_ref.dtype)


def regressor_mlp(x, w1, b1, w2, b2, w3, b3):
    N, E = x.shape
    H1, H2, nb = w1.shape[1], w2.shape[1], w3.shape[1]
    return pl.pallas_call(
        _regressor_kernel,
        out_shape=jax.ShapeDtypeStruct((N, nb), jnp.float32),
        grid=(1,),
        in_specs=[
            pl.BlockSpec((N, E), lambda i: (0, 0)),
            pl.BlockSpec((E, H1), lambda i: (0, 0)),
            pl.BlockSpec((1, H1), lambda i: (0, 0)),
            pl.BlockSpec((H1, H2), lambda i: (0, 0)),
            pl.BlockSpec((1, H2), lambda i: (0, 0)),
            pl.BlockSpec((H2, nb), lambda i: (0, 0)),
            pl.BlockSpec((1, nb), lambda i: (0, 0)),
        ],
        out_specs=pl.BlockSpec((N, nb), lambda i: (0, 0)),
        compiler_params=pltpu.CompilerParams(dimension_semantics=("arbitrary",)),
    )(x, w1, b1, w2, b2, w3, b3)


# --- kernel 4: conv3x3 + PixelWiseDotProduct + conv_out + softmax + centers --

def _depth_tail_kernel(p_ref, w3_ref, b3_ref, q_ref, wout_ref, bout_ref,
                       c_ref, o_ref):
    # Transposed (feature, HW) layout: HW (=256) rides the lane axis everywhere,
    # so all matmuls/stores are lane-dense and no (HW, nq) tensor hits HBM.
    featT = jnp.dot(w3_ref[...], p_ref[0],
                    preferred_element_type=jnp.float32) + b3_ref[...]   # (E, HW)
    ramT = jnp.dot(q_ref[0], featT,
                   preferred_element_type=jnp.float32)                  # (nq, HW)
    logitsT = jnp.dot(wout_ref[...], ramT,
                      preferred_element_type=jnp.float32) + bout_ref[...]  # (nb, HW)
    z = logitsT - jnp.max(logitsT, axis=0, keepdims=True)
    e = jnp.exp(z)
    p = e * pl.reciprocal(jnp.sum(e, axis=0, keepdims=True), approx=True)
    o_ref[0] = jnp.sum(p * c_ref[0], axis=0, keepdims=True)             # (1, HW)


def depth_tail(patchesT, w3T, b3, queries, wout, bout, centers):
    N, C9, HW = patchesT.shape
    E = w3T.shape[0]
    nq = queries.shape[1]
    nb = wout.shape[0]
    return pl.pallas_call(
        _depth_tail_kernel,
        out_shape=jax.ShapeDtypeStruct((N, 1, HW), jnp.float32),
        grid=(N,),
        in_specs=[
            pl.BlockSpec((1, C9, HW), lambda n: (n, 0, 0)),
            pl.BlockSpec((E, C9), lambda n: (0, 0)),
            pl.BlockSpec((E, 1), lambda n: (0, 0)),
            pl.BlockSpec((1, nq, E), lambda n: (n, 0, 0)),
            pl.BlockSpec((nb, nq), lambda n: (0, 0)),
            pl.BlockSpec((nb, 1), lambda n: (0, 0)),
            pl.BlockSpec((1, nb, 1), lambda n: (n, 0, 0)),
        ],
        out_specs=pl.BlockSpec((1, 1, HW), lambda n: (n, 0, 0)),
        compiler_params=pltpu.CompilerParams(dimension_semantics=("parallel",)),
    )(patchesT, w3T, b3, queries, wout, bout, centers)


# --------------------------------- forward ----------------------------------

def adabins_forward(x, pp, cfg):
    N, C, H, W = x.shape
    patch = cfg["patch_size"]
    nq = cfg["n_query_channels"]
    min_val, max_val = cfg["min_val"], cfg["max_val"]
    Hp, Wp = H // patch, W // patch
    S = Hp * Wp

    # ---- PatchTransformerEncoder ----
    xp = x.reshape(N, C, Hp, patch, Wp, patch).transpose(0, 2, 4, 1, 3, 5)
    xp = xp.reshape(N, S, C * patch * patch)
    emb = patch_embed(xp, pp["patch_w"], pp["patch_b"], pp["pos_enc"][:S])
    tgt = transformer_encoder(emb, pp["enc"], cfg["num_heads"])          # (N,S,E)

    regression_head = tgt[:, 0, :]                                       # (N,E)
    queries = tgt[:, 1:nq + 1, :]                                        # (N,nq,E)

    # ---- regressor MLP + bin-edge bookkeeping ----
    y = regressor_mlp(regression_head, pp["r1_w"], pp["r1_b"],
                      pp["r2_w"], pp["r2_b"], pp["r3_w"], pp["r3_b"])    # (N,nb)
    # TODO(synk): bin-width relu/normalize/pad/cumsum kept in plain JAX (tiny
    # (N, n_bins) bookkeeping, not a hot path).
    y = jnp.maximum(y, 0.0) + 0.1                                        # 'linear'
    widths_normed = y / jnp.sum(y, axis=1, keepdims=True)
    bin_widths = (max_val - min_val) * widths_normed
    bin_widths = jnp.pad(bin_widths, ((0, 0), (1, 0)), constant_values=min_val)
    bin_edges = jnp.cumsum(bin_widths, axis=1)                           # (N,nb+1)
    centers = 0.5 * (bin_edges[:, :-1] + bin_edges[:, 1:])               # (N,nb)

    # ---- conv3x3 + PixelWiseDotProduct + conv_out + softmax + center-sum ----
    # TODO(synk): at real resolutions replace this JAX-level im2col with
    # in-kernel accumulation of 9 shifted matmuls (avoids the 9x HBM expansion)
    # and tile the HW axis so the per-step block stays within v7x's 64 MiB VMEM.
    xpad = jnp.pad(x, ((0, 0), (0, 0), (1, 1), (1, 1)))
    cols = [xpad[:, :, dy:dy + H, dx:dx + W] for dy in range(3) for dx in range(3)]
    patchesT = jnp.stack(cols, axis=2).reshape(N, C * 9, H * W)          # (N,C9,HW)
    pred = depth_tail(patchesT, pp["conv3_w"], pp["conv3_b"], queries,
                      pp["out_w"], pp["out_b"], centers[:, :, None])     # (N,1,HW)
    pred = pred.reshape(N, 1, H, W)
    return bin_edges, pred


# ------------------------ parameter init & packing --------------------------

def _uniform(key, shape, fan_in):
    bound = 1.0 / (float(fan_in) ** 0.5)
    return jax.random.uniform(key, shape, jnp.float32, -bound, bound)


def init_params(key, cfg):
    """PyTorch-layout parameters (as nn.Module state_dict would hold them)."""
    C = cfg["in_channels"]
    E = cfg["embedding_dim"]
    p = cfg["patch_size"]
    FF = cfg["dim_feedforward"]
    nb = cfg["n_bins"]
    nq = cfg["n_query_channels"]
    keys = iter(jax.random.split(key, 80))

    def u(shape, fan_in):
        return _uniform(next(keys), shape, fan_in)

    params = {
        "patch_w": u((E, C, p, p), C * p * p),
        "patch_b": u((E,), C * p * p),
        "pos_enc": jax.random.uniform(next(keys), (500, E), jnp.float32),
        "conv3_w": u((E, C, 3, 3), C * 9),
        "conv3_b": u((E,), C * 9),
        "r1_w": u((256, E), E), "r1_b": u((256,), E),
        "r2_w": u((256, 256), 256), "r2_b": u((256,), 256),
        "r3_w": u((nb, 256), 256), "r3_b": u((nb,), 256),
        "out_w": u((nb, nq, 1, 1), nq), "out_b": u((nb,), nq),
        "layers": [],
    }
    for _ in range(4):
        params["layers"].append({
            "in_proj_w": u((3 * E, E), E),
            "in_proj_b": jnp.zeros((3 * E,), jnp.float32),
            "out_proj_w": u((E, E), E),
            "out_proj_b": jnp.zeros((E,), jnp.float32),
            "ln1_g": jnp.ones((E,), jnp.float32),
            "ln1_b": jnp.zeros((E,), jnp.float32),
            "ff1_w": u((FF, E), E), "ff1_b": u((FF,), E),
            "ff2_w": u((E, FF), FF), "ff2_b": u((E,), FF),
            "ln2_g": jnp.ones((E,), jnp.float32),
            "ln2_b": jnp.zeros((E,), jnp.float32),
        })
    return params


def pack_params(params, cfg):
    """One-time repack: pre-transpose, pre-reshape biases, split attention
    heads, stack the 4 layers on a leading axis, cast FFN weights to bf16."""
    E = cfg["embedding_dim"]
    H = cfg["num_heads"]
    d = E // H
    nb = cfg["n_bins"]
    nq = cfg["n_query_channels"]

    acc = {k: [] for k in _ENC_ORDER}
    for lp in params["layers"]:
        win, bin_ = lp["in_proj_w"], lp["in_proj_b"]
        for name, which in (("q", 0), ("k", 1), ("v", 2)):
            w = win[which * E:(which + 1) * E]                       # (E, E)
            b = bin_[which * E:(which + 1) * E]                      # (E,)
            acc["w" + name].append(
                jnp.stack([w[h * d:(h + 1) * d, :].T for h in range(H)]))  # (H,E,d)
            acc["b" + name].append(b.reshape(H, 1, d))
        acc["wo"].append(
            jnp.stack([lp["out_proj_w"][:, h * d:(h + 1) * d].T
                       for h in range(H)]))                          # (H,d,E)
        acc["bo"].append(lp["out_proj_b"].reshape(1, E))
        acc["ln1g"].append(lp["ln1_g"].reshape(1, E))
        acc["ln1b"].append(lp["ln1_b"].reshape(1, E))
        acc["wf1"].append(lp["ff1_w"].T.astype(jnp.bfloat16))        # (E, FF)
        acc["bf1"].append(lp["ff1_b"].reshape(1, -1))
        acc["wf2"].append(lp["ff2_w"].T.astype(jnp.bfloat16))        # (FF, E)
        acc["bf2"].append(lp["ff2_b"].reshape(1, E))
        acc["ln2g"].append(lp["ln2_g"].reshape(1, E))
        acc["ln2b"].append(lp["ln2_b"].reshape(1, E))
    enc = {k: jnp.stack(v) for k, v in acc.items()}

    return {
        "enc": enc,
        "patch_w": params["patch_w"].reshape(E, -1).T,               # (C*p*p, E)
        "patch_b": params["patch_b"].reshape(1, E),
        "pos_enc": params["pos_enc"],                                # (500, E)
        "conv3_w": params["conv3_w"].reshape(E, -1),                 # (E, C*9)
        "conv3_b": params["conv3_b"].reshape(E, 1),
        "r1_w": params["r1_w"].T, "r1_b": params["r1_b"].reshape(1, -1),
        "r2_w": params["r2_w"].T, "r2_b": params["r2_b"].reshape(1, -1),
        "r3_w": params["r3_w"].T, "r3_b": params["r3_b"].reshape(1, -1),
        "out_w": params["out_w"].reshape(nb, nq),                    # conv_out 1x1
        "out_b": params["out_b"].reshape(nb, 1),
    }


# ----------------------------------- main ------------------------------------

if __name__ == "__main__":
    cfg = dict(
        in_channels=8,
        n_query_channels=8,
        patch_size=2,
        embedding_dim=32,
        num_heads=4,
        dim_feedforward=1024,   # fixed by PatchTransformerEncoder
        n_bins=16,
        min_val=0.1,
        max_val=10.0,
    )
    N, H, W = 2, 16, 16

    key = jax.random.PRNGKey(0)
    pkey, xkey = jax.random.split(key)
    raw_params = init_params(pkey, cfg)
    packed = pack_params(raw_params, cfg)          # one-time weight repack
    x = jax.random.normal(xkey, (N, cfg["in_channels"], H, W), jnp.float32)

    fwd = jax.jit(functools.partial(adabins_forward, cfg=cfg))
    bin_edges, pred = fwd(x, packed)
    jax.block_until_ready((bin_edges, pred))

    assert bin_edges.shape == (N, cfg["n_bins"] + 1), bin_edges.shape
    assert pred.shape == (N, 1, H, W), pred.shape
    assert bool(jnp.all(jnp.isfinite(bin_edges))) and bool(jnp.all(jnp.isfinite(pred)))
    print("KERNEL_OK")
</pallas_src>

<mosaic_0001>
module attributes {stable_mosaic.version = 11 : i64} {
  func.func @_patch_embed_kernel(%arg0: i32, %arg1: memref<1x64x32xf32, #tpu.memory_space<vmem>>, %arg2: memref<32x32xf32, #tpu.memory_space<vmem>>, %arg3: memref<1x32xf32, #tpu.memory_space<vmem>>, %arg4: memref<64x32xf32, #tpu.memory_space<vmem>>, %arg5: memref<1x64x32xf32, #tpu.memory_space<vmem>>) attributes {dimension_semantics = [#tpu.dimension_semantics<parallel>], iteration_bounds = array<i64: 2>, scalar_prefetch = 0 : i64, scratch_operands = 0 : i64, tpu.core_type = #tpu.core_type<tc>, window_params = [{transform_indices = @transform_0, window_bounds = array<i64: 1, 64, 32>}, {pipeline_mode = #tpu.pipeline_mode<synchronous>, transform_indices = @transform_1, window_bounds = array<i64: 32, 32>}, {pipeline_mode = #tpu.pipeline_mode<synchronous>, transform_indices = @transform_2, window_bounds = array<i64: 1, 32>}, {pipeline_mode = #tpu.pipeline_mode<synchronous>, transform_indices = @transform_3, window_bounds = array<i64: 64, 32>}, {transform_indices = @transform_4, window_bounds = array<i64: 1, 64, 32>}]} {
    %c0 = arith.constant 0 : index
    %c0_0 = arith.constant 0 : index
    %c0_1 = arith.constant 0 : index
    %0 = vector.load %arg1[%c0, %c0_0, %c0_1] : memref<1x64x32xf32, #tpu.memory_space<vmem>>, vector<1x64x32xf32>
    %1 = vector.shape_cast %0 : vector<1x64x32xf32> to vector<64x32xf32>
    %c0_2 = arith.constant 0 : index
    %c0_3 = arith.constant 0 : index
    %2 = vector.load %arg2[%c0_2, %c0_3] : memref<32x32xf32, #tpu.memory_space<vmem>>, vector<32x32xf32>
    %cst = arith.constant dense<0.000000e+00> : vector<64x32xf32>
    %3 = tpu.matmul %1, %2, %cst {dimension_numbers = #tpu.dot_dimension_numbers<[1], [0], [0], [1], [0, 0, 1, 1], [], []>} : vector<64x32xf32>, vector<32x32xf32>, vector<64x32xf32> -> vector<64x32xf32>
    %c0_4 = arith.constant 0 : index
    %c0_5 = arith.constant 0 : index
    %4 = vector.load %arg3[%c0_4, %c0_5] : memref<1x32xf32, #tpu.memory_space<vmem>>, vector<1x32xf32>
    %5 = vector.broadcast %4 : vector<1x32xf32> to vector<64x32xf32>
    %6 = arith.addf %3, %5 : vector<64x32xf32>
    %c0_6 = arith.constant 0 : index
    %c0_7 = arith.constant 0 : index
    %7 = vector.load %arg4[%c0_6, %c0_7] : memref<64x32xf32, #tpu.memory_space<vmem>>, vector<64x32xf32>
    %8 = arith.addf %6, %7 : vector<64x32xf32>
    %c0_8 = arith.constant 0 : index
    %c0_9 = arith.constant 0 : index
    %c0_10 = arith.constant 0 : index
    %9 = vector.load %arg5[%c0_8, %c0_9, %c0_10] : memref<1x64x32xf32, #tpu.memory_space<vmem>>, vector<1x64x32xf32>
    %10 = vector.shape_cast %9 : vector<1x64x32xf32> to vector<64x32xf32>
    %11 = vector.shape_cast %8 : vector<64x32xf32> to vector<1x64x32xf32>
    tpu.vector_store %arg5[%c0_8, %c0_9, %c0_10], %11 {strides = array<i32>} : memref<1x64x32xf32, #tpu.memory_space<vmem>>, vector<1x64x32xf32>,
    return
  }
  func.func @transform_0(%arg0: i32) -> (i32, i32, i32) {
    %c0_i32 = arith.constant 0 : i32
    %c0_i32_0 = arith.constant 0 : i32
    %c0_i32_1 = arith.constant 0 : i32
    return %arg0, %c0_i32, %c0_i32_0 : i32, i32, i32
  }
  func.func @transform_1(%arg0: i32) -> (i32, i32) {
    %c0_i32 = arith.constant 0 : i32
    %c0_i32_0 = arith.constant 0 : i32
    %c0_i32_1 = arith.constant 0 : i32
    return %c0_i32, %c0_i32_0 : i32, i32
  }
  func.func @transform_2(%arg0: i32) -> (i32, i32) {
    %c0_i32 = arith.constant 0 : i32
    %c0_i32_0 = arith.constant 0 : i32
    %c0_i32_1 = arith.constant 0 : i32
    return %c0_i32, %c0_i32_0 : i32, i32
  }
  func.func @transform_3(%arg0: i32) -> (i32, i32) {
    %c0_i32 = arith.constant 0 : i32
    %c0_i32_0 = arith.constant 0 : i32
    %c0_i32_1 = arith.constant 0 : i32
    return %c0_i32, %c0_i32_0 : i32, i32
  }
  func.func @transform_4(%arg0: i32) -> (i32, i32, i32) {
    %c0_i32 = arith.constant 0 : i32
    %c0_i32_0 = arith.constant 0 : i32
    %c0_i32_1 = arith.constant 0 : i32
    return %arg0, %c0_i32, %c0_i32_0 : i32, i32, i32
  }
}

module attributes {stable_mosaic.version = 11 : i64} {
  func.func @_regressor_kernel(%arg0: i32, %arg1: memref<2x32xf32, #tpu.memory_space<vmem>>, %arg2: memref<32x256xf32, #tpu.memory_space<vmem>>, %arg3: memref<1x256xf32, #tpu.memory_space<vmem>>, %arg4: memref<256x256xf32, #tpu.memory_space<vmem>>, %arg5: memref<1x256xf32, #tpu.memory_space<vmem>>, %arg6: memref<256x16xf32, #tpu.memory_space<vmem>>, %arg7: memref<1x16xf32, #tpu.memory_space<vmem>>, %arg8: memref<2x16xf32, #tpu.memory_space<vmem>>) attributes {dimension_semantics = [#tpu.dimension_semantics<arbitrary>], iteration_bounds = array<i64: 1>, scalar_prefetch = 0 : i64, scratch_operands = 0 : i64, tpu.core_type = #tpu.core_type<tc>, window_params = [{pipeline_mode = #tpu.pipeline_mode<synchronous>, transform_indices = @transform_0, window_bounds = array<i64: 2, 32>}, {pipeline_mode = #tpu.pipeline_mode<synchronous>, transform_indices = @transform_1, window_bounds = array<i64: 32, 256>}, {pipeline_mode = #tpu.pipeline_mode<synchronous>, transform_indices = @transform_2, window_bounds = array<i64: 1, 256>}, {pipeline_mode = #tpu.pipeline_mode<synchronous>, transform_indices = @transform_3, window_bounds = array<i64: 256, 256>}, {pipeline_mode = #tpu.pipeline_mode<synchronous>, transform_indices = @transform_4, window_bounds = array<i64: 1, 256>}, {pipeline_mode = #tpu.pipeline_mode<synchronous>, transform_indices = @transform_5, window_bounds = array<i64: 256, 16>}, {pipeline_mode = #tpu.pipeline_mode<synchronous>, transform_indices = @transform_6, window_bounds = array<i64: 1, 16>}, {pipeline_mode = #tpu.pipeline_mode<synchronous>, transform_indices = @transform_7, window_bounds = array<i64: 2, 16>}]} {
    %c0 = arith.constant 0 : index
    %c0_0 = arith.constant 0 : index
    %0 = vector.load %arg1[%c0, %c0_0] : memref<2x32xf32, #tpu.memory_space<vmem>>, vector<2x32xf32>
    %c0_1 = arith.constant 0 : index
    %c0_2 = arith.constant 0 : index
    %1 = vector.load %arg2[%c0_1, %c0_2] : memref<32x256xf32, #tpu.memory_space<vmem>>, vector<32x256xf32>
    %cst = arith.constant dense<0.000000e+00> : vector<2x256xf32>
    %2 = tpu.matmul %0, %1, %cst {dimension_numbers = #tpu.dot_dimension_numbers<[1], [0], [0], [1], [0, 0, 1, 1], [], []>} : vector<2x32xf32>, vector<32x256xf32>, vector<2x256xf32> -> vector<2x256xf32>
    %c0_3 = arith.constant 0 : index
    %c0_4 = arith.constant 0 : index
    %3 = vector.load %arg3[%c0_3, %c0_4] : memref<1x256xf32, #tpu.memory_space<vmem>>, vector<1x256xf32>
    %4 = vector.broadcast %3 : vector<1x256xf32> to vector<2x256xf32>
    %5 = arith.addf %2, %4 : vector<2x256xf32>
    %cst_5 = arith.constant 0.000000e+00 : f32
    %6 = vector.broadcast %cst_5 : f32 to vector<2x256xf32>
    %7 = arith.cmpf oge, %5, %6 : vector<2x256xf32>
    %cst_6 = arith.constant 0.00999999977 : f32
    %8 = vector.broadcast %cst_6 : f32 to vector<2x256xf32>
    %9 = arith.mulf %8, %5 : vector<2x256xf32>
    %10 = arith.select %7, %5, %9 : vector<2x256xi1>, vector<2x256xf32>
    %c0_7 = arith.constant 0 : index
    %c0_8 = arith.constant 0 : index
    %11 = vector.load %arg4[%c0_7, %c0_8] : memref<256x256xf32, #tpu.memory_space<vmem>>, vector<256x256xf32>
    %cst_9 = arith.constant dense<0.000000e+00> : vector<2x256xf32>
    %12 = tpu.matmul %10, %11, %cst_9 {dimension_numbers = #tpu.dot_dimension_numbers<[1], [0], [0], [1], [0, 0, 1, 1], [], []>} : vector<2x256xf32>, vector<256x256xf32>, vector<2x256xf32> -> vector<2x256xf32>
    %c0_10 = arith.constant 0 : index
    %c0_11 = arith.constant 0 : index
    %13 = vector.load %arg5[%c0_10, %c0_11] : memref<1x256xf32, #tpu.memory_space<vmem>>, vector<1x256xf32>
    %14 = vector.broadcast %13 : vector<1x256xf32> to vector<2x256xf32>
    %15 = arith.addf %12, %14 : vector<2x256xf32>
    %cst_12 = arith.constant 0.000000e+00 : f32
    %16 = vector.broadcast %cst_12 : f32 to vector<2x256xf32>
    %17 = arith.cmpf oge, %15, %16 : vector<2x256xf32>
    %cst_13 = arith.constant 0.00999999977 : f32
    %18 = vector.broadcast %cst_13 : f32 to vector<2x256xf32>
    %19 = arith.mulf %18, %15 : vector<2x256xf32>
    %20 = arith.select %17, %15, %19 : vector<2x256xi1>, vector<2x256xf32>
    %c0_14 = arith.constant 0 : index
    %c0_15 = arith.constant 0 : index
    %21 = vector.load %arg6[%c0_14, %c0_15] : memref<256x16xf32, #tpu.memory_space<vmem>>, vector<256x16xf32>
    %cst_16 = arith.constant dense<0.000000e+00> : vector<2x16xf32>
    %22 = tpu.matmul %20, %21, %cst_16 {dimension_numbers = #tpu.dot_dimension_numbers<[1], [0], [0], [1], [0, 0, 1, 1], [], []>} : vector<2x256xf32>, vector<256x16xf32>, vector<2x16xf32> -> vector<2x16xf32>
    %c0_17 = arith.constant 0 : index
    %c0_18 = arith.constant 0 : index
    %23 = vector.load %arg7[%c0_17, %c0_18] : memref<1x16xf32, #tpu.memory_space<vmem>>, vector<1x16xf32>
    %24 = vector.broadcast %23 : vector<1x16xf32> to vector<2x16xf32>
    %25 = arith.addf %22, %24 : vector<2x16xf32>
    %c0_19 = arith.constant 0 : index
    %c0_20 = arith.constant 0 : index
    %26 = vector.load %arg8[%c0_19, %c0_20] : memref<2x16xf32, #tpu.memory_space<vmem>>, vector<2x16xf32>
    tpu.vector_store %arg8[%c0_19, %c0_20], %25 {strides = array<i32>} : memref<2x16xf32, #tpu.memory_space<vmem>>, vector<2x16xf32>,
    return
  }
  func.func @transform_0(%arg0: i32) -> (i32, i32) {
    %c0_i32 = arith.constant 0 : i32
    %c0_i32_0 = arith.constant 0 : i32
    %c0_i32_1 = arith.constant 0 : i32
    return %c0_i32, %c0_i32_0 : i32, i32
  }
  func.func @transform_1(%arg0: i32) -> (i32, i32) {
    %c0_i32 = arith.constant 0 : i32
    %c0_i32_0 = arith.constant 0 : i32
    %c0_i32_1 = arith.constant 0 : i32
    return %c0_i32, %c0_i32_0 : i32, i32
  }
  func.func @transform_2(%arg0: i32) -> (i32, i32) {
    %c0_i32 = arith.constant 0 : i32
    %c0_i32_0 = arith.constant 0 : i32
    %c0_i32_1 = arith.constant 0 : i32
    return %c0_i32, %c0_i32_0 : i32, i32
  }
  func.func @transform_3(%arg0: i32) -> (i32, i32) {
    %c0_i32 = arith.constant 0 : i32
    %c0_i32_0 = arith.constant 0 : i32
    %c0_i32_1 = arith.constant 0 : i32
    return %c0_i32, %c0_i32_0 : i32, i32
  }
  func.func @transform_4(%arg0: i32) -> (i32, i32) {
    %c0_i32 = arith.constant 0 : i32
    %c0_i32_0 = arith.constant 0 : i32
    %c0_i32_1 = arith.constant 0 : i32
    return %c0_i32, %c0_i32_0 : i32, i32
  }
  func.func @transform_5(%arg0: i32) -> (i32, i32) {
    %c0_i32 = arith.constant 0 : i32
    %c0_i32_0 = arith.constant 0 : i32
    %c0_i32_1 = arith.constant 0 : i32
    return %c0_i32, %c0_i32_0 : i32, i32
  }
  func.func @transform_6(%arg0: i32) -> (i32, i32) {
    %c0_i32 = arith.constant 0 : i32
    %c0_i32_0 = arith.constant 0 : i32
    %c0_i32_1 = arith.constant 0 : i32
    return %c0_i32, %c0_i32_0 : i32, i32
  }
  func.func @transform_7(%arg0: i32) -> (i32, i32) {
    %c0_i32 = arith.constant 0 : i32
    %c0_i32_0 = arith.constant 0 : i32
    %c0_i32_1 = arith.constant 0 : i32
    return %c0_i32, %c0_i32_0 : i32, i32
  }
}

module attributes {stable_mosaic.version = 11 : i64} {
  func.func @_encoder_stack_kernel(%arg0: i32, %arg1: i32, %arg2: memref<1x64x32xf32, #tpu.memory_space<vmem>>, %arg3: memref<1x4x32x8xf32, #tpu.memory_space<vmem>>, %arg4: memref<1x4x32x8xf32, #tpu.memory_space<vmem>>, %arg5: memref<1x4x32x8xf32, #tpu.memory_space<vmem>>, %arg6: memref<1x4x1x8xf32, #tpu.memory_space<vmem>>, %arg7: memref<1x4x1x8xf32, #tpu.memory_space<vmem>>, %arg8: memref<1x4x1x8xf32, #tpu.memory_space<vmem>>, %arg9: memref<1x4x8x32xf32, #tpu.memory_space<vmem>>, %arg10: memref<1x1x32xf32, #tpu.memory_space<vmem>>, %arg11: memref<1x1x32xf32, #tpu.memory_space<vmem>>, %arg12: memref<1x1x32xf32, #tpu.memory_space<vmem>>, %arg13: memref<1x32x1024xbf16, #tpu.memory_space<vmem>>, %arg14: memref<1x1x1024xf32, #tpu.memory_space<vmem>>, %arg15: memref<1x1024x32xbf16, #tpu.memory_space<vmem>>, %arg16: memref<1x1x32xf32, #tpu.memory_space<vmem>>, %arg17: memref<1x1x32xf32, #tpu.memory_space<vmem>>, %arg18: memref<1x1x32xf32, #tpu.memory_space<vmem>>, %arg19: memref<1x64x32xf32, #tpu.memory_space<vmem>>) attributes {dimension_semantics = [#tpu.dimension_semantics<parallel>, #tpu.dimension_semantics<arbitrary>], iteration_bounds = array<i64: 2, 4>, scalar_prefetch = 0 : i64, scratch_operands = 0 : i64, tpu.core_type = #tpu.core_type<tc>, window_params = [{transform_indices = @transform_0, window_bounds = array<i64: 1, 64, 32>}, {transform_indices = @transform_1, window_bounds = array<i64: 1, 4, 32, 8>}, {transform_indices = @transform_2, window_bounds = array<i64: 1, 4, 32, 8>}, {transform_indices = @transform_3, window_bounds = array<i64: 1, 4, 32, 8>}, {transform_indices = @transform_4, window_bounds = array<i64: 1, 4, 1, 8>}, {transform_indices = @transform_5, window_bounds = array<i64: 1, 4, 1, 8>}, {transform_indices = @transform_6, window_bounds = array<i64: 1, 4, 1, 8>}, {transform_indices = @transform_7, window_bounds = array<i64: 1, 4, 8, 32>}, {transform_indices = @transform_8, window_bounds = array<i64: 1, 1, 32>}, {transform_indices = @transform_9, window_bounds = array<i64: 1, 1, 32>}, {transform_indices = @transform_10, window_bounds = array<i64: 1, 1, 32>}, {transform_indices = @transform_11, window_bounds = array<i64: 1, 32, 1024>}, {transform_indices = @transform_12, window_bounds = array<i64: 1, 1, 1024>}, {transform_indices = @transform_13, window_bounds = array<i64: 1, 1024, 32>}, {transform_indices = @transform_14, window_bounds = array<i64: 1, 1, 32>}, {transform_indices = @transform_15, window_bounds = array<i64: 1, 1, 32>}, {transform_indices = @transform_16, window_bounds = array<i64: 1, 1, 32>}, {transform_indices = @transform_17, window_bounds = array<i64: 1, 64, 32>}]} {
    %c0_i32 = arith.constant 0 : i32
    %0 = arith.cmpi eq, %arg1, %c0_i32 : i32
    %1 = arith.extui %0 : i1 to i32
    %c0_i32_0 = arith.constant 0 : i32
    %2 = arith.cmpi ne, %1, %c0_i32_0 : i32
    scf.if %2 {
      %c0_190 = arith.constant 0 : index
      %c0_191 = arith.constant 0 : index
      %c0_192 = arith.constant 0 : index
      %235 = vector.load %arg2[%c0_190, %c0_191, %c0_192] : memref<1x64x32xf32, #tpu.memory_space<vmem>>, vector<1x64x32xf32>
      %c0_193 = arith.constant 0 : index
      %c0_194 = arith.constant 0 : index
      %c0_195 = arith.constant 0 : index
      %236 = vector.load %arg19[%c0_193, %c0_194, %c0_195] : memref<1x64x32xf32, #tpu.memory_space<vmem>>, vector<1x64x32xf32>
      tpu.vector_store %arg19[%c0_193, %c0_194, %c0_195], %235 {strides = array<i32>} : memref<1x64x32xf32, #tpu.memory_space<vmem>>, vector<1x64x32xf32>,
    } else {
    }
    %c0 = arith.constant 0 : index
    %c0_1 = arith.constant 0 : index
    %c0_2 = arith.constant 0 : index
    %3 = vector.load %arg19[%c0, %c0_1, %c0_2] : memref<1x64x32xf32, #tpu.memory_space<vmem>>, vector<1x64x32xf32>
    %4 = vector.shape_cast %3 : vector<1x64x32xf32> to vector<64x32xf32>
    %c0_3 = arith.constant 0 : index
    %c0_4 = arith.constant 0 : index
    %c0_5 = arith.constant 0 : index
    %c0_6 = arith.constant 0 : index
    %5 = vector.load %arg3[%c0_3, %c0_4, %c0_5, %c0_6] : memref<1x4x32x8xf32, #tpu.memory_space<vmem>>, vector<1x1x32x8xf32>
    %6 = vector.shape_cast %5 : vector<1x1x32x8xf32> to vector<32x8xf32>
    %cst = arith.constant dense<0.000000e+00> : vector<64x8xf32>
    %7 = tpu.matmul %4, %6, %cst {dimension_numbers = #tpu.dot_dimension_numbers<[1], [0], [0], [1], [0, 0, 1, 1], [], []>} : vector<64x32xf32>, vector<32x8xf32>, vector<64x8xf32> -> vector<64x8xf32>
    %c0_7 = arith.constant 0 : index
    %c0_8 = arith.constant 0 : index
    %c0_9 = arith.constant 0 : index
    %c0_10 = arith.constant 0 : index
    %8 = vector.load %arg6[%c0_7, %c0_8, %c0_9, %c0_10] : memref<1x4x1x8xf32, #tpu.memory_space<vmem>>, vector<1x1x1x8xf32>
    %9 = vector.shape_cast %8 : vector<1x1x1x8xf32> to vector<1x8xf32>
    %10 = vector.broadcast %9 : vector<1x8xf32> to vector<64x8xf32>
    %11 = arith.addf %7, %10 : vector<64x8xf32>
    %c0_11 = arith.constant 0 : index
    %c0_12 = arith.constant 0 : index
    %c0_13 = arith.constant 0 : index
    %c0_14 = arith.constant 0 : index
    %12 = vector.load %arg4[%c0_11, %c0_12, %c0_13, %c0_14] : memref<1x4x32x8xf32, #tpu.memory_space<vmem>>, vector<1x1x32x8xf32>
    %13 = vector.shape_cast %12 : vector<1x1x32x8xf32> to vector<32x8xf32>
    %cst_15 = arith.constant dense<0.000000e+00> : vector<64x8xf32>
    %14 = tpu.matmul %4, %13, %cst_15 {dimension_numbers = #tpu.dot_dimension_numbers<[1], [0], [0], [1], [0, 0, 1, 1], [], []>} : vector<64x32xf32>, vector<32x8xf32>, vector<64x8xf32> -> vector<64x8xf32>
    %c0_16 = arith.constant 0 : index
    %c0_17 = arith.constant 0 : index
    %c0_18 = arith.constant 0 : index
    %c0_19 = arith.constant 0 : index
    %15 = vector.load %arg7[%c0_16, %c0_17, %c0_18, %c0_19] : memref<1x4x1x8xf32, #tpu.memory_space<vmem>>, vector<1x1x1x8xf32>
    %16 = vector.shape_cast %15 : vector<1x1x1x8xf32> to vector<1x8xf32>
    %17 = vector.broadcast %16 : vector<1x8xf32> to vector<64x8xf32>
    %18 = arith.addf %14, %17 : vector<64x8xf32>
    %c0_20 = arith.constant 0 : index
    %c0_21 = arith.constant 0 : index
    %c0_22 = arith.constant 0 : index
    %c0_23 = arith.constant 0 : index
    %19 = vector.load %arg5[%c0_20, %c0_21, %c0_22, %c0_23] : memref<1x4x32x8xf32, #tpu.memory_space<vmem>>, vector<1x1x32x8xf32>
    %20 = vector.shape_cast %19 : vector<1x1x32x8xf32> to vector<32x8xf32>
    %cst_24 = arith.constant dense<0.000000e+00> : vector<64x8xf32>
    %21 = tpu.matmul %4, %20, %cst_24 {dimension_numbers = #tpu.dot_dimension_numbers<[1], [0], [0], [1], [0, 0, 1, 1], [], []>} : vector<64x32xf32>, vector<32x8xf32>, vector<64x8xf32> -> vector<64x8xf32>
    %c0_25 = arith.constant 0 : index
    %c0_26 = arith.constant 0 : index
    %c0_27 = arith.constant 0 : index
    %c0_28 = arith.constant 0 : index
    %22 = vector.load %arg8[%c0_25, %c0_26, %c0_27, %c0_28] : memref<1x4x1x8xf32, #tpu.memory_space<vmem>>, vector<1x1x1x8xf32>
    %23 = vector.shape_cast %22 : vector<1x1x1x8xf32> to vector<1x8xf32>
    %24 = vector.broadcast %23 : vector<1x8xf32> to vector<64x8xf32>
    %25 = arith.addf %21, %24 : vector<64x8xf32>
    %cst_29 = arith.constant dense<0.000000e+00> : vector<64x64xf32>
    %26 = tpu.matmul %11, %18, %cst_29 {dimension_numbers = #tpu.dot_dimension_numbers<[1], [1], [0], [0], [0, 0, 1, 0], [], []>} : vector<64x8xf32>, vector<64x8xf32>, vector<64x64xf32> -> vector<64x64xf32>
    %cst_30 = arith.constant 0.353553385 : f32
    %27 = vector.broadcast %cst_30 : f32 to vector<64x64xf32>
    %28 = arith.mulf %26, %27 : vector<64x64xf32>
    %cst_31 = arith.constant dense<0xFF800000> : vector<64xf32>
    %29 = vector.multi_reduction <maximumf>, %28, %cst_31 [1] : vector<64x64xf32> to vector<64xf32>
    %30 = vector.shape_cast %29 : vector<64xf32> to vector<64x1xf32>
    %31 = vector.broadcast %30 : vector<64x1xf32> to vector<64x64xf32>
    %32 = arith.subf %28, %31 : vector<64x64xf32>
    %33 = math.exp %32 : vector<64x64xf32>
    %cst_32 = arith.constant dense<0.000000e+00> : vector<64xf32>
    %34 = vector.multi_reduction <add>, %33, %cst_32 [1] : vector<64x64xf32> to vector<64xf32>
    %35 = vector.shape_cast %34 : vector<64xf32> to vector<64x1xf32>
    %36 = tpu.reciprocal %35 {approx = true} : vector<64x1xf32> -> vector<64x1xf32>
    %37 = vector.broadcast %36 : vector<64x1xf32> to vector<64x64xf32>
    %38 = arith.mulf %33, %37 : vector<64x64xf32>
    %cst_33 = arith.constant dense<0.000000e+00> : vector<64x8xf32>
    %39 = tpu.matmul %38, %25, %cst_33 {dimension_numbers = #tpu.dot_dimension_numbers<[1], [0], [0], [1], [0, 0, 1, 1], [], []>} : vector<64x64xf32>, vector<64x8xf32>, vector<64x8xf32> -> vector<64x8xf32>
    %c0_34 = arith.constant 0 : index
    %c0_35 = arith.constant 0 : index
    %c0_36 = arith.constant 0 : index
    %c0_37 = arith.constant 0 : index
    %40 = vector.load %arg9[%c0_34, %c0_35, %c0_36, %c0_37] : memref<1x4x8x32xf32, #tpu.memory_space<vmem>>, vector<1x1x8x32xf32>
    %41 = vector.shape_cast %40 : vector<1x1x8x32xf32> to vector<8x32xf32>
    %cst_38 = arith.constant dense<0.000000e+00> : vector<64x32xf32>
    %42 = tpu.matmul %39, %41, %cst_38 {dimension_numbers = #tpu.dot_dimension_numbers<[1], [0], [0], [1], [0, 0, 1, 1], [], []>} : vector<64x8xf32>, vector<8x32xf32>, vector<64x32xf32> -> vector<64x32xf32>
    %c0_39 = arith.constant 0 : index
    %c1 = arith.constant 1 : index
    %c0_40 = arith.constant 0 : index
    %c0_41 = arith.constant 0 : index
    %43 = vector.load %arg3[%c0_39, %c1, %c0_40, %c0_41] : memref<1x4x32x8xf32, #tpu.memory_space<vmem>>, vector<1x1x32x8xf32>
    %44 = vector.shape_cast %43 : vector<1x1x32x8xf32> to vector<32x8xf32>
    %cst_42 = arith.constant dense<0.000000e+00> : vector<64x8xf32>
    %45 = tpu.matmul %4, %44, %cst_42 {dimension_numbers = #tpu.dot_dimension_numbers<[1], [0], [0], [1], [0, 0, 1, 1], [], []>} : vector<64x32xf32>, vector<32x8xf32>, vector<64x8xf32> -> vector<64x8xf32>
    %c0_43 = arith.constant 0 : index
    %c1_44 = arith.constant 1 : index
    %c0_45 = arith.constant 0 : index
    %c0_46 = arith.constant 0 : index
    %46 = vector.load %arg6[%c0_43, %c1_44, %c0_45, %c0_46] : memref<1x4x1x8xf32, #tpu.memory_space<vmem>>, vector<1x1x1x8xf32>
    %47 = vector.shape_cast %46 : vector<1x1x1x8xf32> to vector<1x8xf32>
    %48 = vector.broadcast %47 : vector<1x8xf32> to vector<64x8xf32>
    %49 = arith.addf %45, %48 : vector<64x8xf32>
    %c0_47 = arith.constant 0 : index
    %c1_48 = arith.constant 1 : index
    %c0_49 = arith.constant 0 : index
    %c0_50 = arith.constant 0 : index
    %50 = vector.load %arg4[%c0_47, %c1_48, %c0_49, %c0_50] : memref<1x4x32x8xf32, #tpu.memory_space<vmem>>, vector<1x1x32x8xf32>
    %51 = vector.shape_cast %50 : vector<1x1x32x8xf32> to vector<32x8xf32>
    %cst_51 = arith.constant dense<0.000000e+00> : vector<64x8xf32>
    %52 = tpu.matmul %4, %51, %cst_51 {dimension_numbers = #tpu.dot_dimension_numbers<[1], [0], [0], [1], [0, 0, 1, 1], [], []>} : vector<64x32xf32>, vector<32x8xf32>, vector<64x8xf32> -> vector<64x8xf32>
    %c0_52 = arith.constant 0 : index
    %c1_53 = arith.constant 1 : index
    %c0_54 = arith.constant 0 : index
    %c0_55 = arith.constant 0 : index
    %53 = vector.load %arg7[%c0_52, %c1_53, %c0_54, %c0_55] : memref<1x4x1x8xf32, #tpu.memory_space<vmem>>, vector<1x1x1x8xf32>
    %54 = vector.shape_cast %53 : vector<1x1x1x8xf32> to vector<1x8xf32>
    %55 = vector.broadcast %54 : vector<1x8xf32> to vector<64x8xf32>
    %56 = arith.addf %52, %55 : vector<64x8xf32>
    %c0_56 = arith.constant 0 : index
    %c1_57 = arith.constant 1 : index
    %c0_58 = arith.constant 0 : index
    %c0_59 = arith.constant 0 : index
    %57 = vector.load %arg5[%c0_56, %c1_57, %c0_58, %c0_59] : memref<1x4x32x8xf32, #tpu.memory_space<vmem>>, vector<1x1x32x8xf32>
    %58 = vector.shape_cast %57 : vector<1x1x32x8xf32> to vector<32x8xf32>
    %cst_60 = arith.constant dense<0.000000e+00> : vector<64x8xf32>
    %59 = tpu.matmul %4, %58, %cst_60 {dimension_numbers = #tpu.dot_dimension_numbers<[1], [0], [0], [1], [0, 0, 1, 1], [], []>} : vector<64x32xf32>, vector<32x8xf32>, vector<64x8xf32> -> vector<64x8xf32>
    %c0_61 = arith.constant 0 : index
    %c1_62 = arith.constant 1 : index
    %c0_63 = arith.constant 0 : index
    %c0_64 = arith.constant 0 : index
    %60 = vector.load %arg8[%c0_61, %c1_62, %c0_63, %c0_64] : memref<1x4x1x8xf32, #tpu.memory_space<vmem>>, vector<1x1x1x8xf32>
    %61 = vector.shape_cast %60 : vector<1x1x1x8xf32> to vector<1x8xf32>
    %62 = vector.broadcast %61 : vector<1x8xf32> to vector<64x8xf32>
    %63 = arith.addf %59, %62 : vector<64x8xf32>
    %cst_65 = arith.constant dense<0.000000e+00> : vector<64x64xf32>
    %64 = tpu.matmul %49, %56, %cst_65 {dimension_numbers = #tpu.dot_dimension_numbers<[1], [1], [0], [0], [0, 0, 1, 0], [], []>} : vector<64x8xf32>, vector<64x8xf32>, vector<64x64xf32> -> vector<64x64xf32>
    %cst_66 = arith.constant 0.353553385 : f32
    %65 = vector.broadcast %cst_66 : f32 to vector<64x64xf32>
    %66 = arith.mulf %64, %65 : vector<64x64xf32>
    %cst_67 = arith.constant dense<0xFF800000> : vector<64xf32>
    %67 = vector.multi_reduction <maximumf>, %66, %cst_67 [1] : vector<64x64xf32> to vector<64xf32>
    %68 = vector.shape_cast %67 : vector<64xf32> to vector<64x1xf32>
    %69 = vector.broadcast %68 : vector<64x1xf32> to vector<64x64xf32>
    %70 = arith.subf %66, %69 : vector<64x64xf32>
    %71 = math.exp %70 : vector<64x64xf32>
    %cst_68 = arith.constant dense<0.000000e+00> : vector<64xf32>
    %72 = vector.multi_reduction <add>, %71, %cst_68 [1] : vector<64x64xf32> to vector<64xf32>
    %73 = vector.shape_cast %72 : vector<64xf32> to vector<64x1xf32>
    %74 = tpu.reciprocal %73 {approx = true} : vector<64x1xf32> -> vector<64x1xf32>
    %75 = vector.broadcast %74 : vector<64x1xf32> to vector<64x64xf32>
    %76 = arith.mulf %71, %75 : vector<64x64xf32>
    %cst_69 = arith.constant dense<0.000000e+00> : vector<64x8xf32>
    %77 = tpu.matmul %76, %63, %cst_69 {dimension_numbers = #tpu.dot_dimension_numbers<[1], [0], [0], [1], [0, 0, 1, 1], [], []>} : vector<64x64xf32>, vector<64x8xf32>, vector<64x8xf32> -> vector<64x8xf32>
    %c0_70 = arith.constant 0 : index
    %c1_71 = arith.constant 1 : index
    %c0_72 = arith.constant 0 : index
    %c0_73 = arith.constant 0 : index
    %78 = vector.load %arg9[%c0_70, %c1_71, %c0_72, %c0_73] : memref<1x4x8x32xf32, #tpu.memory_space<vmem>>, vector<1x1x8x32xf32>
    %79 = vector.shape_cast %78 : vector<1x1x8x32xf32> to vector<8x32xf32>
    %cst_74 = arith.constant dense<0.000000e+00> : vector<64x32xf32>
    %80 = tpu.matmul %77, %79, %cst_74 {dimension_numbers = #tpu.dot_dimension_numbers<[1], [0], [0], [1], [0, 0, 1, 1], [], []>} : vector<64x8xf32>, vector<8x32xf32>, vector<64x32xf32> -> vector<64x32xf32>
    %81 = arith.addf %42, %80 : vector<64x32xf32>
    %c0_75 = arith.constant 0 : index
    %c2 = arith.constant 2 : index
    %c0_76 = arith.constant 0 : index
    %c0_77 = arith.constant 0 : index
    %82 = vector.load %arg3[%c0_75, %c2, %c0_76, %c0_77] : memref<1x4x32x8xf32, #tpu.memory_space<vmem>>, vector<1x1x32x8xf32>
    %83 = vector.shape_cast %82 : vector<1x1x32x8xf32> to vector<32x8xf32>
    %cst_78 = arith.constant dense<0.000000e+00> : vector<64x8xf32>
    %84 = tpu.matmul %4, %83, %cst_78 {dimension_numbers = #tpu.dot_dimension_numbers<[1], [0], [0], [1], [0, 0, 1, 1], [], []>} : vector<64x32xf32>, vector<32x8xf32>, vector<64x8xf32> -> vector<64x8xf32>
    %c0_79 = arith.constant 0 : index
    %c2_80 = arith.constant 2 : index
    %c0_81 = arith.constant 0 : index
    %c0_82 = arith.constant 0 : index
    %85 = vector.load %arg6[%c0_79, %c2_80, %c0_81, %c0_82] : memref<1x4x1x8xf32, #tpu.memory_space<vmem>>, vector<1x1x1x8xf32>
    %86 = vector.shape_cast %85 : vector<1x1x1x8xf32> to vector<1x8xf32>
    %87 = vector.broadcast %86 : vector<1x8xf32> to vector<64x8xf32>
    %88 = arith.addf %84, %87 : vector<64x8xf32>
    %c0_83 = arith.constant 0 : index
    %c2_84 = arith.constant 2 : index
    %c0_85 = arith.constant 0 : index
    %c0_86 = arith.constant 0 : index
    %89 = vector.load %arg4[%c0_83, %c2_84, %c0_85, %c0_86] : memref<1x4x32x8xf32, #tpu.memory_space<vmem>>, vector<1x1x32x8xf32>
    %90 = vector.shape_cast %89 : vector<1x1x32x8xf32> to vector<32x8xf32>
    %cst_87 = arith.constant dense<0.000000e+00> : vector<64x8xf32>
    %91 = tpu.matmul %4, %90, %cst_87 {dimension_numbers = #tpu.dot_dimension_numbers<[1], [0], [0], [1], [0, 0, 1, 1], [], []>} : vector<64x32xf32>, vector<32x8xf32>, vector<64x8xf32> -> vector<64x8xf32>
    %c0_88 = arith.constant 0 : index
    %c2_89 = arith.constant 2 : index
    %c0_90 = arith.constant 0 : index
    %c0_91 = arith.constant 0 : index
    %92 = vector.load %arg7[%c0_88, %c2_89, %c0_90, %c0_91] : memref<1x4x1x8xf32, #tpu.memory_space<vmem>>, vector<1x1x1x8xf32>
    %93 = vector.shape_cast %92 : vector<1x1x1x8xf32> to vector<1x8xf32>
    %94 = vector.broadcast %93 : vector<1x8xf32> to vector<64x8xf32>
    %95 = arith.addf %91, %94 : vector<64x8xf32>
    %c0_92 = arith.constant 0 : index
    %c2_93 = arith.constant 2 : index
    %c0_94 = arith.constant 0 : index
    %c0_95 = arith.constant 0 : index
    %96 = vector.load %arg5[%c0_92, %c2_93, %c0_94, %c0_95] : memref<1x4x32x8xf32, #tpu.memory_space<vmem>>, vector<1x1x32x8xf32>
    %97 = vector.shape_cast %96 : vector<1x1x32x8xf32> to vector<32x8xf32>
    %cst_96 = arith.constant dense<0.000000e+00> : vector<64x8xf32>
    %98 = tpu.matmul %4, %97, %cst_96 {dimension_numbers = #tpu.dot_dimension_numbers<[1], [0], [0], [1], [0, 0, 1, 1], [], []>} : vector<64x32xf32>, vector<32x8xf32>, vector<64x8xf32> -> vector<64x8xf32>
    %c0_97 = arith.constant 0 : index
    %c2_98 = arith.constant 2 : index
    %c0_99 = arith.constant 0 : index
    %c0_100 = arith.constant 0 : index
    %99 = vector.load %arg8[%c0_97, %c2_98, %c0_99, %c0_100] : memref<1x4x1x8xf32, #tpu.memory_space<vmem>>, vector<1x1x1x8xf32>
    %100 = vector.shape_cast %99 : vector<1x1x1x8xf32> to vector<1x8xf32>
    %101 = vector.broadcast %100 : vector<1x8xf32> to vector<64x8xf32>
    %102 = arith.addf %98, %101 : vector<64x8xf32>
    %cst_101 = arith.constant dense<0.000000e+00> : vector<64x64xf32>
    %103 = tpu.matmul %88, %95, %cst_101 {dimension_numbers = #tpu.dot_dimension_numbers<[1], [1], [0], [0], [0, 0, 1, 0], [], []>} : vector<64x8xf32>, vector<64x8xf32>, vector<64x64xf32> -> vector<64x64xf32>
    %cst_102 = arith.constant 0.353553385 : f32
    %104 = vector.broadcast %cst_102 : f32 to vector<64x64xf32>
    %105 = arith.mulf %103, %104 : vector<64x64xf32>
    %cst_103 = arith.constant dense<0xFF800000> : vector<64xf32>
    %106 = vector.multi_reduction <maximumf>, %105, %cst_103 [1] : vector<64x64xf32> to vector<64xf32>
    %107 = vector.shape_cast %106 : vector<64xf32> to vector<64x1xf32>
    %108 = vector.broadcast %107 : vector<64x1xf32> to vector<64x64xf32>
    %109 = arith.subf %105, %108 : vector<64x64xf32>
    %110 = math.exp %109 : vector<64x64xf32>
    %cst_104 = arith.constant dense<0.000000e+00> : vector<64xf32>
    %111 = vector.multi_reduction <add>, %110, %cst_104 [1] : vector<64x64xf32> to vector<64xf32>
    %112 = vector.shape_cast %111 : vector<64xf32> to vector<64x1xf32>
    %113 = tpu.reciprocal %112 {approx = true} : vector<64x1xf32> -> vector<64x1xf32>
    %114 = vector.broadcast %113 : vector<64x1xf32> to vector<64x64xf32>
    %115 = arith.mulf %110, %114 : vector<64x64xf32>
    %cst_105 = arith.constant dense<0.000000e+00> : vector<64x8xf32>
    %116 = tpu.matmul %115, %102, %cst_105 {dimension_numbers = #tpu.dot_dimension_numbers<[1], [0], [0], [1], [0, 0, 1, 1], [], []>} : vector<64x64xf32>, vector<64x8xf32>, vector<64x8xf32> -> vector<64x8xf32>
    %c0_106 = arith.constant 0 : index
    %c2_107 = arith.constant 2 : index
    %c0_108 = arith.constant 0 : index
    %c0_109 = arith.constant 0 : index
    %117 = vector.load %arg9[%c0_106, %c2_107, %c0_108, %c0_109] : memref<1x4x8x32xf32, #tpu.memory_space<vmem>>, vector<1x1x8x32xf32>
    %118 = vector.shape_cast %117 : vector<1x1x8x32xf32> to vector<8x32xf32>
    %cst_110 = arith.constant dense<0.000000e+00> : vector<64x32xf32>
    %119 = tpu.matmul %116, %118, %cst_110 {dimension_numbers = #tpu.dot_dimension_numbers<[1], [0], [0], [1], [0, 0, 1, 1], [], []>} : vector<64x8xf32>, vector<8x32xf32>, vector<64x32xf32> -> vector<64x32xf32>
    %120 = arith.addf %81, %119 : vector<64x32xf32>
    %c0_111 = arith.constant 0 : index
    %c3 = arith.constant 3 : index
    %c0_112 = arith.constant 0 : index
    %c0_113 = arith.constant 0 : index
    %121 = vector.load %arg3[%c0_111, %c3, %c0_112, %c0_113] : memref<1x4x32x8xf32, #tpu.memory_space<vmem>>, vector<1x1x32x8xf32>
    %122 = vector.shape_cast %121 : vector<1x1x32x8xf32> to vector<32x8xf32>
    %cst_114 = arith.constant dense<0.000000e+00> : vector<64x8xf32>
    %123 = tpu.matmul %4, %122, %cst_114 {dimension_numbers = #tpu.dot_dimension_numbers<[1], [0], [0], [1], [0, 0, 1, 1], [], []>} : vector<64x32xf32>, vector<32x8xf32>, vector<64x8xf32> -> vector<64x8xf32>
    %c0_115 = arith.constant 0 : index
    %c3_116 = arith.constant 3 : index
    %c0_117 = arith.constant 0 : index
    %c0_118 = arith.constant 0 : index
    %124 = vector.load %arg6[%c0_115, %c3_116, %c0_117, %c0_118] : memref<1x4x1x8xf32, #tpu.memory_space<vmem>>, vector<1x1x1x8xf32>
    %125 = vector.shape_cast %124 : vector<1x1x1x8xf32> to vector<1x8xf32>
    %126 = vector.broadcast %125 : vector<1x8xf32> to vector<64x8xf32>
    %127 = arith.addf %123, %126 : vector<64x8xf32>
    %c0_119 = arith.constant 0 : index
    %c3_120 = arith.constant 3 : index
    %c0_121 = arith.constant 0 : index
    %c0_122 = arith.constant 0 : index
    %128 = vector.load %arg4[%c0_119, %c3_120, %c0_121, %c0_122] : memref<1x4x32x8xf32, #tpu.memory_space<vmem>>, vector<1x1x32x8xf32>
    %129 = vector.shape_cast %128 : vector<1x1x32x8xf32> to vector<32x8xf32>
    %cst_123 = arith.constant dense<0.000000e+00> : vector<64x8xf32>
    %130 = tpu.matmul %4, %129, %cst_123 {dimension_numbers = #tpu.dot_dimension_numbers<[1], [0], [0], [1], [0, 0, 1, 1], [], []>} : vector<64x32xf32>, vector<32x8xf32>, vector<64x8xf32> -> vector<64x8xf32>
    %c0_124 = arith.constant 0 : index
    %c3_125 = arith.constant 3 : index
    %c0_126 = arith.constant 0 : index
    %c0_127 = arith.constant 0 : index
    %131 = vector.load %arg7[%c0_124, %c3_125, %c0_126, %c0_127] : memref<1x4x1x8xf32, #tpu.memory_space<vmem>>, vector<1x1x1x8xf32>
    %132 = vector.shape_cast %131 : vector<1x1x1x8xf32> to vector<1x8xf32>
    %133 = vector.broadcast %132 : vector<1x8xf32> to vector<64x8xf32>
    %134 = arith.addf %130, %133 : vector<64x8xf32>
    %c0_128 = arith.constant 0 : index
    %c3_129 = arith.constant 3 : index
    %c0_130 = arith.constant 0 : index
    %c0_131 = arith.constant 0 : index
    %135 = vector.load %arg5[%c0_128, %c3_129, %c0_130, %c0_131] : memref<1x4x32x8xf32, #tpu.memory_space<vmem>>, vector<1x1x32x8xf32>
    %136 = vector.shape_cast %135 : vector<1x1x32x8xf32> to vector<32x8xf32>
    %cst_132 = arith.constant dense<0.000000e+00> : vector<64x8xf32>
    %137 = tpu.matmul %4, %136, %cst_132 {dimension_numbers = #tpu.dot_dimension_numbers<[1], [0], [0], [1], [0, 0, 1, 1], [], []>} : vector<64x32xf32>, vector<32x8xf32>, vector<64x8xf32> -> vector<64x8xf32>
    %c0_133 = arith.constant 0 : index
    %c3_134 = arith.constant 3 : index
    %c0_135 = arith.constant 0 : index
    %c0_136 = arith.constant 0 : index
    %138 = vector.load %arg8[%c0_133, %c3_134, %c0_135, %c0_136] : memref<1x4x1x8xf32, #tpu.memory_space<vmem>>, vector<1x1x1x8xf32>
    %139 = vector.shape_cast %138 : vector<1x1x1x8xf32> to vector<1x8xf32>
    %140 = vector.broadcast %139 : vector<1x8xf32> to vector<64x8xf32>
    %141 = arith.addf %137, %140 : vector<64x8xf32>
    %cst_137 = arith.constant dense<0.000000e+00> : vector<64x64xf32>
    %142 = tpu.matmul %127, %134, %cst_137 {dimension_numbers = #tpu.dot_dimension_numbers<[1], [1], [0], [0], [0, 0, 1, 0], [], []>} : vector<64x8xf32>, vector<64x8xf32>, vector<64x64xf32> -> vector<64x64xf32>
    %cst_138 = arith.constant 0.353553385 : f32
    %143 = vector.broadcast %cst_138 : f32 to vector<64x64xf32>
    %144 = arith.mulf %142, %143 : vector<64x64xf32>
    %cst_139 = arith.constant dense<0xFF800000> : vector<64xf32>
    %145 = vector.multi_reduction <maximumf>, %144, %cst_139 [1] : vector<64x64xf32> to vector<64xf32>
    %146 = vector.shape_cast %145 : vector<64xf32> to vector<64x1xf32>
    %147 = vector.broadcast %146 : vector<64x1xf32> to vector<64x64xf32>
    %148 = arith.subf %144, %147 : vector<64x64xf32>
    %149 = math.exp %148 : vector<64x64xf32>
    %cst_140 = arith.constant dense<0.000000e+00> : vector<64xf32>
    %150 = vector.multi_reduction <add>, %149, %cst_140 [1] : vector<64x64xf32> to vector<64xf32>
    %151 = vector.shape_cast %150 : vector<64xf32> to vector<64x1xf32>
    %152 = tpu.reciprocal %151 {approx = true} : vector<64x1xf32> -> vector<64x1xf32>
    %153 = vector.broadcast %152 : vector<64x1xf32> to vector<64x64xf32>
    %154 = arith.mulf %149, %153 : vector<64x64xf32>
    %cst_141 = arith.constant dense<0.000000e+00> : vector<64x8xf32>
    %155 = tpu.matmul %154, %141, %cst_141 {dimension_numbers = #tpu.dot_dimension_numbers<[1], [0], [0], [1], [0, 0, 1, 1], [], []>} : vector<64x64xf32>, vector<64x8xf32>, vector<64x8xf32> -> vector<64x8xf32>
    %c0_142 = arith.constant 0 : index
    %c3_143 = arith.constant 3 : index
    %c0_144 = arith.constant 0 : index
    %c0_145 = arith.constant 0 : index
    %156 = vector.load %arg9[%c0_142, %c3_143, %c0_144, %c0_145] : memref<1x4x8x32xf32, #tpu.memory_space<vmem>>, vector<1x1x8x32xf32>
    %157 = vector.shape_cast %156 : vector<1x1x8x32xf32> to vector<8x32xf32>
    %cst_146 = arith.constant dense<0.000000e+00> : vector<64x32xf32>
    %158 = tpu.matmul %155, %157, %cst_146 {dimension_numbers = #tpu.dot_dimension_numbers<[1], [0], [0], [1], [0, 0, 1, 1], [], []>} : vector<64x8xf32>, vector<8x32xf32>, vector<64x32xf32> -> vector<64x32xf32>
    %159 = arith.addf %120, %158 : vector<64x32xf32>
    %c0_147 = arith.constant 0 : index
    %c0_148 = arith.constant 0 : index
    %c0_149 = arith.constant 0 : index
    %160 = vector.load %arg10[%c0_147, %c0_148, %c0_149] : memref<1x1x32xf32, #tpu.memory_space<vmem>>, vector<1x1x32xf32>
    %161 = vector.shape_cast %160 : vector<1x1x32xf32> to vector<1x32xf32>
    %162 = vector.broadcast %161 : vector<1x32xf32> to vector<64x32xf32>
    %163 = arith.addf %159, %162 : vector<64x32xf32>
    %164 = arith.addf %4, %163 : vector<64x32xf32>
    %c0_150 = arith.constant 0 : index
    %c0_151 = arith.constant 0 : index
    %c0_152 = arith.constant 0 : index
    %165 = vector.load %arg11[%c0_150, %c0_151, %c0_152] : memref<1x1x32xf32, #tpu.memory_space<vmem>>, vector<1x1x32xf32>
    %166 = vector.shape_cast %165 : vector<1x1x32xf32> to vector<1x32xf32>
    %c0_153 = arith.constant 0 : index
    %c0_154 = arith.constant 0 : index
    %c0_155 = arith.constant 0 : index
    %167 = vector.load %arg12[%c0_153, %c0_154, %c0_155] : memref<1x1x32xf32, #tpu.memory_space<vmem>>, vector<1x1x32xf32>
    %168 = vector.shape_cast %167 : vector<1x1x32xf32> to vector<1x32xf32>
    %cst_156 = arith.constant dense<0.000000e+00> : vector<64xf32>
    %169 = vector.multi_reduction <add>, %164, %cst_156 [1] : vector<64x32xf32> to vector<64xf32>
    %170 = vector.shape_cast %169 : vector<64xf32> to vector<64x1xf32>
    %cst_157 = arith.constant 3.200000e+01 : f32
    %171 = vector.broadcast %cst_157 : f32 to vector<64x1xf32>
    %172 = arith.divf %170, %171 : vector<64x1xf32>
    %173 = vector.broadcast %172 : vector<64x1xf32> to vector<64x32xf32>
    %174 = arith.subf %164, %173 : vector<64x32xf32>
    %175 = arith.mulf %174, %174 : vector<64x32xf32>
    %cst_158 = arith.constant dense<0.000000e+00> : vector<64xf32>
    %176 = vector.multi_reduction <add>, %175, %cst_158 [1] : vector<64x32xf32> to vector<64xf32>
    %177 = vector.shape_cast %176 : vector<64xf32> to vector<64x1xf32>
    %cst_159 = arith.constant 3.200000e+01 : f32
    %178 = vector.broadcast %cst_159 : f32 to vector<64x1xf32>
    %179 = arith.divf %177, %178 : vector<64x1xf32>
    %cst_160 = arith.constant 9.99999974E-6 : f32
    %180 = vector.broadcast %cst_160 : f32 to vector<64x1xf32>
    %181 = arith.addf %179, %180 : vector<64x1xf32>
    %182 = math.rsqrt %181 : vector<64x1xf32>
    %183 = vector.broadcast %182 : vector<64x1xf32> to vector<64x32xf32>
    %184 = arith.mulf %174, %183 : vector<64x32xf32>
    %185 = vector.broadcast %166 : vector<1x32xf32> to vector<64x32xf32>
    %186 = arith.mulf %184, %185 : vector<64x32xf32>
    %187 = vector.broadcast %168 : vector<1x32xf32> to vector<64x32xf32>
    %188 = arith.addf %186, %187 : vector<64x32xf32>
    %189 = arith.truncf %188 : vector<64x32xf32> to vector<64x32xbf16>
    %c0_161 = arith.constant 0 : index
    %c0_162 = arith.constant 0 : index
    %c0_163 = arith.constant 0 : index
    %190 = vector.load %arg13[%c0_161, %c0_162, %c0_163] : memref<1x32x1024xbf16, #tpu.memory_space<vmem>>, vector<1x32x1024xbf16>
    %191 = vector.shape_cast %190 : vector<1x32x1024xbf16> to vector<32x1024xbf16>
    %cst_164 = arith.constant dense<0.000000e+00> : vector<64x1024xf32>
    %192 = tpu.matmul %189, %191, %cst_164 {dimension_numbers = #tpu.dot_dimension_numbers<[1], [0], [0], [1], [0, 0, 1, 1], [], []>} : vector<64x32xbf16>, vector<32x1024xbf16>, vector<64x1024xf32> -> vector<64x1024xf32>
    %c0_165 = arith.constant 0 : index
    %c0_166 = arith.constant 0 : index
    %c0_167 = arith.constant 0 : index
    %193 = vector.load %arg14[%c0_165, %c0_166, %c0_167] : memref<1x1x1024xf32, #tpu.memory_space<vmem>>, vector<1x1x1024xf32>
    %194 = vector.shape_cast %193 : vector<1x1x1024xf32> to vector<1x1024xf32>
    %195 = vector.broadcast %194 : vector<1x1024xf32> to vector<64x1024xf32>
    %196 = arith.addf %192, %195 : vector<64x1024xf32>
    %cst_168 = arith.constant 0.000000e+00 : f32
    %197 = vector.broadcast %cst_168 : f32 to vector<64x1024xf32>
    %198 = arith.maximumf %196, %197 : vector<64x1024xf32>
    %199 = arith.truncf %198 : vector<64x1024xf32> to vector<64x1024xbf16>
    %c0_169 = arith.constant 0 : index
    %c0_170 = arith.constant 0 : index
    %c0_171 = arith.constant 0 : index
    %200 = vector.load %arg15[%c0_169, %c0_170, %c0_171] : memref<1x1024x32xbf16, #tpu.memory_space<vmem>>, vector<1x1024x32xbf16>
    %201 = vector.shape_cast %200 : vector<1x1024x32xbf16> to vector<1024x32xbf16>
    %cst_172 = arith.constant dense<0.000000e+00> : vector<64x32xf32>
    %202 = tpu.matmul %199, %201, %cst_172 {dimension_numbers = #tpu.dot_dimension_numbers<[1], [0], [0], [1], [0, 0, 1, 1], [], []>} : vector<64x1024xbf16>, vector<1024x32xbf16>, vector<64x32xf32> -> vector<64x32xf32>
    %c0_173 = arith.constant 0 : index
    %c0_174 = arith.constant 0 : index
    %c0_175 = arith.constant 0 : index
    %203 = vector.load %arg16[%c0_173, %c0_174, %c0_175] : memref<1x1x32xf32, #tpu.memory_space<vmem>>, vector<1x1x32xf32>
    %204 = vector.shape_cast %203 : vector<1x1x32xf32> to vector<1x32xf32>
    %205 = vector.broadcast %204 : vector<1x32xf32> to vector<64x32xf32>
    %206 = arith.addf %202, %205 : vector<64x32xf32>
    %207 = arith.addf %188, %206 : vector<64x32xf32>
    %c0_176 = arith.constant 0 : index
    %c0_177 = arith.constant 0 : index
    %c0_178 = arith.constant 0 : index
    %208 = vector.load %arg17[%c0_176, %c0_177, %c0_178] : memref<1x1x32xf32, #tpu.memory_space<vmem>>, vector<1x1x32xf32>
    %209 = vector.shape_cast %208 : vector<1x1x32xf32> to vector<1x32xf32>
    %c0_179 = arith.constant 0 : index
    %c0_180 = arith.constant 0 : index
    %c0_181 = arith.constant 0 : index
    %210 = vector.load %arg18[%c0_179, %c0_180, %c0_181] : memref<1x1x32xf32, #tpu.memory_space<vmem>>, vector<1x1x32xf32>
    %211 = vector.shape_cast %210 : vector<1x1x32xf32> to vector<1x32xf32>
    %cst_182 = arith.constant dense<0.000000e+00> : vector<64xf32>
    %212 = vector.multi_reduction <add>, %207, %cst_182 [1] : vector<64x32xf32> to vector<64xf32>
    %213 = vector.shape_cast %212 : vector<64xf32> to vector<64x1xf32>
    %cst_183 = arith.constant 3.200000e+01 : f32
    %214 = vector.broadcast %cst_183 : f32 to vector<64x1xf32>
    %215 = arith.divf %213, %214 : vector<64x1xf32>
    %216 = vector.broadcast %215 : vector<64x1xf32> to vector<64x32xf32>
    %217 = arith.subf %207, %216 : vector<64x32xf32>
    %218 = arith.mulf %217, %217 : vector<64x32xf32>
    %cst_184 = arith.constant dense<0.000000e+00> : vector<64xf32>
    %219 = vector.multi_reduction <add>, %218, %cst_184 [1] : vector<64x32xf32> to vector<64xf32>
    %220 = vector.shape_cast %219 : vector<64xf32> to vector<64x1xf32>
    %cst_185 = arith.constant 3.200000e+01 : f32
    %221 = vector.broadcast %cst_185 : f32 to vector<64x1xf32>
    %222 = arith.divf %220, %221 : vector<64x1xf32>
    %cst_186 = arith.constant 9.99999974E-6 : f32
    %223 = vector.broadcast %cst_186 : f32 to vector<64x1xf32>
    %224 = arith.addf %222, %223 : vector<64x1xf32>
    %225 = math.rsqrt %224 : vector<64x1xf32>
    %226 = vector.broadcast %225 : vector<64x1xf32> to vector<64x32xf32>
    %227 = arith.mulf %217, %226 : vector<64x32xf32>
    %228 = vector.broadcast %209 : vector<1x32xf32> to vector<64x32xf32>
    %229 = arith.mulf %227, %228 : vector<64x32xf32>
    %230 = vector.broadcast %211 : vector<1x32xf32> to vector<64x32xf32>
    %231 = arith.addf %229, %230 : vector<64x32xf32>
    %c0_187 = arith.constant 0 : index
    %c0_188 = arith.constant 0 : index
    %c0_189 = arith.constant 0 : index
    %232 = vector.load %arg19[%c0_187, %c0_188, %c0_189] : memref<1x64x32xf32, #tpu.memory_space<vmem>>, vector<1x64x32xf32>
    %233 = vector.shape_cast %232 : vector<1x64x32xf32> to vector<64x32xf32>
    %234 = vector.shape_cast %231 : vector<64x32xf32> to vector<1x64x32xf32>
    tpu.vector_store %arg19[%c0_187, %c0_188, %c0_189], %234 {strides = array<i32>} : memref<1x64x32xf32, #tpu.memory_space<vmem>>, vector<1x64x32xf32>,
    return
  }
  func.func @transform_0(%arg0: i32, %arg1: i32) -> (i32, i32, i32) {
    %c0_i32 = arith.constant 0 : i32
    %c0_i32_0 = arith.constant 0 : i32
    %c0_i32_1 = arith.constant 0 : i32
    return %arg0, %c0_i32, %c0_i32_0 : i32, i32, i32
  }
  func.func @transform_1(%arg0: i32, %arg1: i32) -> (i32, i32, i32, i32) {
    %c0_i32 = arith.constant 0 : i32
    %c0_i32_0 = arith.constant 0 : i32
    %c0_i32_1 = arith.constant 0 : i32
    %c0_i32_2 = arith.constant 0 : i32
    return %arg1, %c0_i32, %c0_i32_0, %c0_i32_1 : i32, i32, i32, i32
  }
  func.func @transform_2(%arg0: i32, %arg1: i32) -> (i32, i32, i32, i32) {
    %c0_i32 = arith.constant 0 : i32
    %c0_i32_0 = arith.constant 0 : i32
    %c0_i32_1 = arith.constant 0 : i32
    %c0_i32_2 = arith.constant 0 : i32
    return %arg1, %c0_i32, %c0_i32_0, %c0_i32_1 : i32, i32, i32, i32
  }
  func.func @transform_3(%arg0: i32, %arg1: i32) -> (i32, i32, i32, i32) {
    %c0_i32 = arith.constant 0 : i32
    %c0_i32_0 = arith.constant 0 : i32
    %c0_i32_1 = arith.constant 0 : i32
    %c0_i32_2 = arith.constant 0 : i32
    return %arg1, %c0_i32, %c0_i32_0, %c0_i32_1 : i32, i32, i32, i32
  }
  func.func @transform_4(%arg0: i32, %arg1: i32) -> (i32, i32, i32, i32) {
    %c0_i32 = arith.constant 0 : i32
    %c0_i32_0 = arith.constant 0 : i32
    %c0_i32_1 = arith.constant 0 : i32
    %c0_i32_2 = arith.constant 0 : i32
    return %arg1, %c0_i32, %c0_i32_0, %c0_i32_1 : i32, i32, i32, i32
  }
  func.func @transform_5(%arg0: i32, %arg1: i32) -> (i32, i32, i32, i32) {
    %c0_i32 = arith.constant 0 : i32
    %c0_i32_0 = arith.constant 0 : i32
    %c0_i32_1 = arith.constant 0 : i32
    %c0_i32_2 = arith.constant 0 : i32
    return %arg1, %c0_i32, %c0_i32_0, %c0_i32_1 : i32, i32, i32, i32
  }
  func.func @transform_6(%arg0: i32, %arg1: i32) -> (i32, i32, i32, i32) {
    %c0_i32 = arith.constant 0 : i32
    %c0_i32_0 = arith.constant 0 : i32
    %c0_i32_1 = arith.constant 0 : i32
    %c0_i32_2 = arith.constant 0 : i32
    return %arg1, %c0_i32, %c0_i32_0, %c0_i32_1 : i32, i32, i32, i32
  }
  func.func @transform_7(%arg0: i32, %arg1: i32) -> (i32, i32, i32, i32) {
    %c0_i32 = arith.constant 0 : i32
    %c0_i32_0 = arith.constant 0 : i32
    %c0_i32_1 = arith.constant 0 : i32
    %c0_i32_2 = arith.constant 0 : i32
    return %arg1, %c0_i32, %c0_i32_0, %c0_i32_1 : i32, i32, i32, i32
  }
  func.func @transform_8(%arg0: i32, %arg1: i32) -> (i32, i32, i32) {
    %c0_i32 = arith.constant 0 : i32
    %c0_i32_0 = arith.constant 0 : i32
    %c0_i32_1 = arith.constant 0 : i32
    return %arg1, %c0_i32, %c0_i32_0 : i32, i32, i32
  }
  func.func @transform_9(%arg0: i32, %arg1: i32) -> (i32, i32, i32) {
    %c0_i32 = arith.constant 0 : i32
    %c0_i32_0 = arith.constant 0 : i32
    %c0_i32_1 = arith.constant 0 : i32
    return %arg1, %c0_i32, %c0_i32_0 : i32, i32, i32
  }
  func.func @transform_10(%arg0: i32, %arg1: i32) -> (i32, i32, i32) {
    %c0_i32 = arith.constant 0 : i32
    %c0_i32_0 = arith.constant 0 : i32
    %c0_i32_1 = arith.constant 0 : i32
    return %arg1, %c0_i32, %c0_i32_0 : i32, i32, i32
  }
  func.func @transform_11(%arg0: i32, %arg1: i32) -> (i32, i32, i32) {
    %c0_i32 = arith.constant 0 : i32
    %c0_i32_0 = arith.constant 0 : i32
    %c0_i32_1 = arith.constant 0 : i32
    return %arg1, %c0_i32, %c0_i32_0 : i32, i32, i32
  }
  func.func @transform_12(%arg0: i32, %arg1: i32) -> (i32, i32, i32) {
    %c0_i32 = arith.constant 0 : i32
    %c0_i32_0 = arith.constant 0 : i32
    %c0_i32_1 = arith.constant 0 : i32
    return %arg1, %c0_i32, %c0_i32_0 : i32, i32, i32
  }
  func.func @transform_13(%arg0: i32, %arg1: i32) -> (i32, i32, i32) {
    %c0_i32 = arith.constant 0 : i32
    %c0_i32_0 = arith.constant 0 : i32
    %c0_i32_1 = arith.constant 0 : i32
    return %arg1, %c0_i32, %c0_i32_0 : i32, i32, i32
  }
  func.func @transform_14(%arg0: i32, %arg1: i32) -> (i32, i32, i32) {
    %c0_i32 = arith.constant 0 : i32
    %c0_i32_0 = arith.constant 0 : i32
    %c0_i32_1 = arith.constant 0 : i32
    return %arg1, %c0_i32, %c0_i32_0 : i32, i32, i32
  }
  func.func @transform_15(%arg0: i32, %arg1: i32) -> (i32, i32, i32) {
    %c0_i32 = arith.constant 0 : i32
    %c0_i32_0 = arith.constant 0 : i32
    %c0_i32_1 = arith.constant 0 : i32
    return %arg1, %c0_i32, %c0_i32_0 : i32, i32, i32
  }
  func.func @transform_16(%arg0: i32, %arg1: i32) -> (i32, i32, i32) {
    %c0_i32 = arith.constant 0 : i32
    %c0_i32_0 = arith.constant 0 : i32
    %c0_i32_1 = arith.constant 0 : i32
    return %arg1, %c0_i32, %c0_i32_0 : i32, i32, i32
  }
  func.func @transform_17(%arg0: i32, %arg1: i32) -> (i32, i32, i32) {
    %c0_i32 = arith.constant 0 : i32
    %c0_i32_0 = arith.constant 0 : i32
    %c0_i32_1 = arith.constant 0 : i32
    return %arg0, %c0_i32, %c0_i32_0 : i32, i32, i32
  }
}

module attributes {stable_mosaic.version = 11 : i64} {
  func.func @_depth_tail_kernel(%arg0: i32, %arg1: memref<1x72x256xf32, #tpu.memory_space<vmem>>, %arg2: memref<32x72xf32, #tpu.memory_space<vmem>>, %arg3: memref<32x1xf32, #tpu.memory_space<vmem>>, %arg4: memref<1x8x32xf32, #tpu.memory_space<vmem>>, %arg5: memref<16x8xf32, #tpu.memory_space<vmem>>, %arg6: memref<16x1xf32, #tpu.memory_space<vmem>>, %arg7: memref<1x16x1xf32, #tpu.memory_space<vmem>>, %arg8: memref<1x1x256xf32, #tpu.memory_space<vmem>>) attributes {dimension_semantics = [#tpu.dimension_semantics<parallel>], iteration_bounds = array<i64: 2>, scalar_prefetch = 0 : i64, scratch_operands = 0 : i64, tpu.core_type = #tpu.core_type<tc>, window_params = [{transform_indices = @transform_0, window_bounds = array<i64: 1, 72, 256>}, {pipeline_mode = #tpu.pipeline_mode<synchronous>, transform_indices = @transform_1, window_bounds = array<i64: 32, 72>}, {pipeline_mode = #tpu.pipeline_mode<synchronous>, transform_indices = @transform_2, window_bounds = array<i64: 32, 1>}, {transform_indices = @transform_3, window_bounds = array<i64: 1, 8, 32>}, {pipeline_mode = #tpu.pipeline_mode<synchronous>, transform_indices = @transform_4, window_bounds = array<i64: 16, 8>}, {pipeline_mode = #tpu.pipeline_mode<synchronous>, transform_indices = @transform_5, window_bounds = array<i64: 16, 1>}, {transform_indices = @transform_6, window_bounds = array<i64: 1, 16, 1>}, {transform_indices = @transform_7, window_bounds = array<i64: 1, 1, 256>}]} {
    %c0 = arith.constant 0 : index
    %c0_0 = arith.constant 0 : index
    %0 = vector.load %arg2[%c0, %c0_0] : memref<32x72xf32, #tpu.memory_space<vmem>>, vector<32x72xf32>
    %c0_1 = arith.constant 0 : index
    %c0_2 = arith.constant 0 : index
    %c0_3 = arith.constant 0 : index
    %1 = vector.load %arg1[%c0_1, %c0_2, %c0_3] : memref<1x72x256xf32, #tpu.memory_space<vmem>>, vector<1x72x256xf32>
    %2 = vector.shape_cast %1 : vector<1x72x256xf32> to vector<72x256xf32>
    %cst = arith.constant dense<0.000000e+00> : vector<32x256xf32>
    %3 = tpu.matmul %0, %2, %cst {dimension_numbers = #tpu.dot_dimension_numbers<[1], [0], [0], [1], [0, 0, 1, 1], [], []>} : vector<32x72xf32>, vector<72x256xf32>, vector<32x256xf32> -> vector<32x256xf32>
    %c0_4 = arith.constant 0 : index
    %c0_5 = arith.constant 0 : index
    %4 = vector.load %arg3[%c0_4, %c0_5] : memref<32x1xf32, #tpu.memory_space<vmem>>, vector<32x1xf32>
    %5 = vector.broadcast %4 : vector<32x1xf32> to vector<32x256xf32>
    %6 = arith.addf %3, %5 : vector<32x256xf32>
    %c0_6 = arith.constant 0 : index
    %c0_7 = arith.constant 0 : index
    %c0_8 = arith.constant 0 : index
    %7 = vector.load %arg4[%c0_6, %c0_7, %c0_8] : memref<1x8x32xf32, #tpu.memory_space<vmem>>, vector<1x8x32xf32>
    %8 = vector.shape_cast %7 : vector<1x8x32xf32> to vector<8x32xf32>
    %cst_9 = arith.constant dense<0.000000e+00> : vector<8x256xf32>
    %9 = tpu.matmul %8, %6, %cst_9 {dimension_numbers = #tpu.dot_dimension_numbers<[1], [0], [0], [1], [0, 0, 1, 1], [], []>} : vector<8x32xf32>, vector<32x256xf32>, vector<8x256xf32> -> vector<8x256xf32>
    %c0_10 = arith.constant 0 : index
    %c0_11 = arith.constant 0 : index
    %10 = vector.load %arg5[%c0_10, %c0_11] : memref<16x8xf32, #tpu.memory_space<vmem>>, vector<16x8xf32>
    %cst_12 = arith.constant dense<0.000000e+00> : vector<16x256xf32>
    %11 = tpu.matmul %10, %9, %cst_12 {dimension_numbers = #tpu.dot_dimension_numbers<[1], [0], [0], [1], [0, 0, 1, 1], [], []>} : vector<16x8xf32>, vector<8x256xf32>, vector<16x256xf32> -> vector<16x256xf32>
    %c0_13 = arith.constant 0 : index
    %c0_14 = arith.constant 0 : index
    %12 = vector.load %arg6[%c0_13, %c0_14] : memref<16x1xf32, #tpu.memory_space<vmem>>, vector<16x1xf32>
    %13 = vector.broadcast %12 : vector<16x1xf32> to vector<16x256xf32>
    %14 = arith.addf %11, %13 : vector<16x256xf32>
    %cst_15 = arith.constant dense<0xFF800000> : vector<256xf32>
    %15 = vector.multi_reduction <maximumf>, %14, %cst_15 [0] : vector<16x256xf32> to vector<256xf32>
    %16 = vector.shape_cast %15 : vector<256xf32> to vector<1x256xf32>
    %17 = vector.broadcast %16 : vector<1x256xf32> to vector<16x256xf32>
    %18 = arith.subf %14, %17 : vector<16x256xf32>
    %19 = math.exp %18 : vector<16x256xf32>
    %cst_16 = arith.constant dense<0.000000e+00> : vector<256xf32>
    %20 = vector.multi_reduction <add>, %19, %cst_16 [0] : vector<16x256xf32> to vector<256xf32>
    %21 = vector.shape_cast %20 : vector<256xf32> to vector<1x256xf32>
    %22 = tpu.reciprocal %21 {approx = true} : vector<1x256xf32> -> vector<1x256xf32>
    %23 = vector.broadcast %22 : vector<1x256xf32> to vector<16x256xf32>
    %24 = arith.mulf %19, %23 : vector<16x256xf32>
    %c0_17 = arith.constant 0 : index
    %c0_18 = arith.constant 0 : index
    %c0_19 = arith.constant 0 : index
    %25 = vector.load %arg7[%c0_17, %c0_18, %c0_19] : memref<1x16x1xf32, #tpu.memory_space<vmem>>, vector<1x16x1xf32>
    %26 = vector.shape_cast %25 : vector<1x16x1xf32> to vector<16x1xf32>
    %27 = vector.broadcast %26 : vector<16x1xf32> to vector<16x256xf32>
    %28 = arith.mulf %24, %27 : vector<16x256xf32>
    %cst_20 = arith.constant dense<0.000000e+00> : vector<256xf32>
    %29 = vector.multi_reduction <add>, %28, %cst_20 [0] : vector<16x256xf32> to vector<256xf32>
    %30 = vector.shape_cast %29 : vector<256xf32> to vector<1x256xf32>
    %c0_21 = arith.constant 0 : index
    %c0_22 = arith.constant 0 : index
    %c0_23 = arith.constant 0 : index
    %31 = vector.load %arg8[%c0_21, %c0_22, %c0_23] : memref<1x1x256xf32, #tpu.memory_space<vmem>>, vector<1x1x256xf32>
    %32 = vector.shape_cast %31 : vector<1x1x256xf32> to vector<1x256xf32>
    %33 = vector.shape_cast %30 : vector<1x256xf32> to vector<1x1x256xf32>
    tpu.vector_store %arg8[%c0_21, %c0_22, %c0_23], %33 {strides = array<i32>} : memref<1x1x256xf32, #tpu.memory_space<vmem>>, vector<1x1x256xf32>,
    return
  }
  func.func @transform_0(%arg0: i32) -> (i32, i32, i32) {
    %c0_i32 = arith.constant 0 : i32
    %c0_i32_0 = arith.constant 0 : i32
    %c0_i32_1 = arith.constant 0 : i32
    return %arg0, %c0_i32, %c0_i32_0 : i32, i32, i32
  }
  func.func @transform_1(%arg0: i32) -> (i32, i32) {
    %c0_i32 = arith.constant 0 : i32
    %c0_i32_0 = arith.constant 0 : i32
    %c0_i32_1 = arith.constant 0 : i32
    return %c0_i32, %c0_i32_0 : i32, i32
  }
  func.func @transform_2(%arg0: i32) -> (i32, i32) {
    %c0_i32 = arith.constant 0 : i32
    %c0_i32_0 = arith.constant 0 : i32
    %c0_i32_1 = arith.constant 0 : i32
    return %c0_i32, %c0_i32_0 : i32, i32
  }
  func.func @transform_3(%arg0: i32) -> (i32, i32, i32) {
    %c0_i32 = arith.constant 0 : i32
    %c0_i32_0 = arith.constant 0 : i32
    %c0_i32_1 = arith.constant 0 : i32
    return %arg0, %c0_i32, %c0_i32_0 : i32, i32, i32
  }
  func.func @transform_4(%arg0: i32) -> (i32, i32) {
    %c0_i32 = arith.constant 0 : i32
    %c0_i32_0 = arith.constant 0 : i32
    %c0_i32_1 = arith.constant 0 : i32
    return %c0_i32, %c0_i32_0 : i32, i32
  }
  func.func @transform_5(%arg0: i32) -> (i32, i32) {
    %c0_i32 = arith.constant 0 : i32
    %c0_i32_0 = arith.constant 0 : i32
    %c0_i32_1 = arith.constant 0 : i32
    return %c0_i32, %c0_i32_0 : i32, i32
  }
  func.func @transform_6(%arg0: i32) -> (i32, i32, i32) {
    %c0_i32 = arith.constant 0 : i32
    %c0_i32_0 = arith.constant 0 : i32
    %c0_i32_1 = arith.constant 0 : i32
    return %arg0, %c0_i32, %c0_i32_0 : i32, i32, i32
  }
  func.func @transform_7(%arg0: i32) -> (i32, i32, i32) {
    %c0_i32 = arith.constant 0 : i32
    %c0_i32_0 = arith.constant 0 : i32
    %c0_i32_1 = arith.constant 0 : i32
    return %arg0, %c0_i32, %c0_i32_0 : i32, i32, i32
  }
}

</mosaic_0001>

<llo_original>
// kernel: adabins_forward.4
$region0: #{adabins_forward.4}
  #allocation0 [shape = 'u32[]', space=smem, size = 0x4, offset = 0x4, fixed_abs, tag = 'smem constant byte address 0x4 - core index']
  #allocation1 [shape = 'u32[72,128]{1,0:T(1,128)}', space=vmem, size = 0x9000, scoped, tag = 'internal scratch']
  %s0 = inlined_call_operand.vmem [shape: f32[2,64,32], index: 0, kind: input, shape index: {}]
  %s1 = inlined_call_operand.vmem [shape: f32[32,32], index: 1, kind: input, shape index: {}]
  %s2 = inlined_call_operand.vmem [shape: f32[1,32], index: 2, kind: input, shape index: {}]
  %s3 = inlined_call_operand.vmem [shape: f32[64,32], index: 3, kind: input, shape index: {}]
  %s4 = inlined_call_operand.vmem [shape: f32[2,64,32], index: 4, kind: output, shape index: {}]
  %s5 = sld [smem:[#allocation0]]
  $region49: #{adabins_forward.4} parent=0
    _
  %s7 = ssub.s32 1, %s5
  %s8 = scalar_select 0, %s7, %s5
  loop: start=0, step=1, limit=4
  $region2: #{adabins_forward.4} parent=0 // loop_pre_header
    _
  $region3: #{adabins_forward.4} parent=0 // loop_header
    %s10 = sphi 0, %s14
    %p11 = scmp.ge.s32.totalorder %s10, 4
    %s20 = sphi 0, %s22
    %s23 = sphi 0, %s20
    %s24 = sphi 0, %s23
    %s40 = sphi 0, %s24
    %s44 = sphi 0, %s44
    %s46 = sphi 0, %s44
    %s47 = sphi 0, %s46
    %s61 = sphi 0, %s47
    %s65 = sphi 0, %s65
    %s67 = sphi 0, %s65
    %s68 = sphi 0, %s67
    %s82 = sphi 0, %s68
    %s86 = sphi 0, %s86
    %s88 = sphi 0, %s86
    %s89 = sphi 0, %s88
    %s103 = sphi 0, %s89
    %s109 = sphi 0, %s111
    %s112 = sphi 0, %s109
    %s113 = sphi 0, %s112
    %s129 = sphi 0, %s113
  $region4: #{adabins_forward.4} parent=0 // loop_header_branch
    %13 = sbr.rel (%p11) target = $region8
  $region5: #{adabins_forward.4} parent=0 // loop_body
    %s15 = ssub.s32 %s10, 1
    %s16 = ssub.s32 %s10, 2
    %s17 = sadd.s32 %s10, 1
    %s18 = ssub.s32 %s10, %s17
    %p19 = scmp.eq.s32.totalorder %s18, 0
    %s21 = sadd.s32 %s20, 1
    %s22 = scalar_select %p19, %s20, %s21
    %p25 = pneg %p19
    %p26 = scmp.eq.s32.totalorder %s10, 1
    %p27 = por %p25, %p26
    %p28 = scmp.ne.s32.totalorder %s20, %s23
    %p29 = scmp.eq.s32.totalorder %s10, 0
    %p30 = por %p28, %p29
    %p31 = scmp.ne.s32.totalorder %s20, %s23
    %p32 = scmp.eq.s32.totalorder %s15, 1
    %p33 = por %p31, %p32
    %p34 = scmp.ne.s32.totalorder %s23, %s24
    %p35 = scmp.eq.s32.totalorder %s15, 0
    %p36 = por %p34, %p35
    %p37 = scmp.ne.s32.totalorder %s23, %s24
    %p38 = scmp.eq.s32.totalorder %s16, 1
    %p39 = por %p37, %p38
    %p41 = scmp.ne.s32.totalorder %s24, %s40
    %p42 = scmp.eq.s32.totalorder %s16, 0
    %p43 = por %p41, %p42
    %s45 = sadd.s32 %s44, 1
    %p48 = scmp.eq.s32.totalorder %s10, 1
    %p49 = scmp.ne.s32.totalorder %s44, %s46
    %p50 = scmp.eq.s32.totalorder %s10, 0
    %p51 = por %p49, %p50
    %p52 = scmp.ne.s32.totalorder %s44, %s46
    %p53 = scmp.eq.s32.totalorder %s15, 1
    %p54 = por %p52, %p53
    %p55 = scmp.ne.s32.totalorder %s46, %s47
    %p56 = scmp.eq.s32.totalorder %s15, 0
    %p57 = por %p55, %p56
    %p58 = scmp.ne.s32.totalorder %s46, %s47
    %p59 = scmp.eq.s32.totalorder %s16, 1
    %p60 = por %p58, %p59
    %p62 = scmp.ne.s32.totalorder %s47, %s61
    %p63 = scmp.eq.s32.totalorder %s16, 0
    %p64 = por %p62, %p63
    %s66 = sadd.s32 %s65, 1
    %p69 = scmp.eq.s32.totalorder %s10, 1
    %p70 = scmp.ne.s32.totalorder %s65, %s67
    %p71 = scmp.eq.s32.totalorder %s10, 0
    %p72 = por %p70, %p71
    %p73 = scmp.ne.s32.totalorder %s65, %s67
    %p74 = scmp.eq.s32.totalorder %s15, 1
    %p75 = por %p73, %p74
    %p76 = scmp.ne.s32.totalorder %s67, %s68
    %p77 = scmp.eq.s32.totalorder %s15, 0
    %p78 = por %p76, %p77
    %p79 = scmp.ne.s32.totalorder %s67, %s68
    %p80 = scmp.eq.s32.totalorder %s16, 1
    %p81 = por %p79, %p80
    %p83 = scmp.ne.s32.totalorder %s68, %s82
    %p84 = scmp.eq.s32.totalorder %s16, 0
    %p85 = por %p83, %p84
    %s87 = sadd.s32 %s86, 1
    %p90 = scmp.eq.s32.totalorder %s10, 1
    %p91 = scmp.ne.s32.totalorder %s86, %s88
    %p92 = scmp.eq.s32.totalorder %s10, 0
    %p93 = por %p91, %p92
    %p94 = scmp.ne.s32.totalorder %s86, %s88
    %p95 = scmp.eq.s32.totalorder %s15, 1
    %p96 = por %p94, %p95
    %p97 = scmp.ne.s32.totalorder %s88, %s89
    %p98 = scmp.eq.s32.totalorder %s15, 0
    %p99 = por %p97, %p98
    %p100 = scmp.ne.s32.totalorder %s88, %s89
    %p101 = scmp.eq.s32.totalorder %s16, 1
    %p102 = por %p100, %p101
    %p104 = scmp.ne.s32.totalorder %s89, %s103
    %p105 = scmp.eq.s32.totalorder %s16, 0
    %p106 = por %p104, %p105
    %s107 = ssub.s32 %s10, %s17
    %p108 = scmp.eq.s32.totalorder %s107, 0
    %s110 = sadd.s32 %s109, 1
    %s111 = scalar_select %p108, %s109, %s110
    %p114 = pneg %p108
    %p115 = scmp.eq.s32.totalorder %s10, 1
    %p116 = por %p114, %p115
    %p117 = scmp.ne.s32.totalorder %s109, %s112
    %p118 = scmp.eq.s32.totalorder %s10, 0
    %p119 = por %p117, %p118
    %p120 = scmp.ne.s32.totalorder %s109, %s112
    %p121 = scmp.eq.s32.totalorder %s15, 1
    %p122 = por %p120, %p121
    %p123 = scmp.ne.s32.totalorder %s112, %s113
    %p124 = scmp.eq.s32.totalorder %s15, 0
    %p125 = por %p123, %p124
    %p126 = scmp.ne.s32.totalorder %s112, %s113
    %p127 = scmp.eq.s32.totalorder %s16, 1
    %p128 = por %p126, %p127
    %p130 = scmp.ne.s32.totalorder %s113, %s129
    %p131 = scmp.eq.s32.totalorder %s16, 0
    %p132 = por %p130, %p131
    %p133 = scmp.le.s32.totalorder 1, %s10
    %p134 = scmp.lt.s32.totalorder %s10, 3
    %p135 = pnand %p133, %p134
    %p136 = pneg %p135
    // Predicated region
    $region9: #{adabins_forward.4} parent=5 // pred_check
      _
    $region10: #{adabins_forward.4} parent=5 // pred_check_branch
      %138 = sbr.rel (%p135) target = $region12
    $region11: #{adabins_forward.4} parent=5 // pred_region
      %s139 = ssub.s32 %s10, 1
      // Predicated region
      $region13: #{adabins_forward.4} parent=11 // pred_check
        %p140 = pneg %p57
      $region14: #{adabins_forward.4} parent=11 // pred_check_branch
        %142 = sbr.rel (%p140) target = $region16
      $region15: #{adabins_forward.4} parent=11 // pred_region
        _
      $region16: #{adabins_forward.4} parent=11 // pred_fallthru
        _
      // Predicated region
      $region17: #{adabins_forward.4} parent=11 // pred_check
        %p143 = pneg %p78
      $region18: #{adabins_forward.4} parent=11 // pred_check_branch
        %145 = sbr.rel (%p143) target = $region20
      $region19: #{adabins_forward.4} parent=11 // pred_region
        _
      $region20: #{adabins_forward.4} parent=11 // pred_fallthru
        _
      // Predicated region
      $region21: #{adabins_forward.4} parent=11 // pred_check
        %p146 = pneg %p99
      $region22: #{adabins_forward.4} parent=11 // pred_check_branch
        %148 = sbr.rel (%p146) target = $region24
      $region23: #{adabins_forward.4} parent=11 // pred_region
        _
      $region24: #{adabins_forward.4} parent=11 // pred_fallthru
        _
    $region12: #{adabins_forward.4} parent=5 // pred_fallthru
      _
    %p149 = scmp.lt.s32.totalorder %s10, 2
    // Predicated region
    $region25: #{adabins_forward.4} parent=5 // pred_check
      %p150 = pneg %p149
    $region26: #{adabins_forward.4} parent=5 // pred_check_branch
      %152 = sbr.rel (%p150) target = $region28
    $region27: #{adabins_forward.4} parent=5 // pred_region
      // Predicated region
      $region29: #{adabins_forward.4} parent=27 // pred_check
        %p153 = pneg %p30
      $region30: #{adabins_forward.4} parent=27 // pred_check_branch
        %155 = sbr.rel (%p153) target = $region32
      $region31: #{adabins_forward.4} parent=27 // pred_region
        %p156 = scmp.lt.s32.totalorder %s10, 1
        %s157 = scalar_select %p156, %s10, 1
        %s158 = smul.addr %s157, 8
        %s159 = smul.addr %s158, 8
        %s160 = scalar_lea.vmem %s0, %s159
      $region32: #{adabins_forward.4} parent=27 // pred_fallthru
        _
    $region28: #{adabins_forward.4} parent=5 // pred_fallthru
      _
    %p161 = scmp.le.s32.totalorder 1, %s10
    %p162 = scmp.lt.s32.totalorder %s10, 3
    %p163 = pnand %p161, %p162
    %p164 = pneg %p163
    // Predicated region
    $region33: #{adabins_forward.4} parent=5 // pred_check
      _
    $region34: #{adabins_forward.4} parent=5 // pred_check_branch
      %166 = sbr.rel (%p163) target = $region36
    $region35: #{adabins_forward.4} parent=5 // pred_region
      %s167 = ssub.s32 %s10, 1
      %p168 = scmp.lt.s32.totalorder %s15, 1
      %s169 = scalar_select %p168, %s15, 1
      %s170 = smul.addr %s169, 8
      %s171 = smul.addr %s170, 8
      %s172 = scalar_lea.vmem %s0, %s171
      %p173 = pneg %p36
      %p174 = pneg %p33
      %p175 = pneg %p57
      %p176 = pneg %p54
      %p177 = pneg %p78
      %p178 = pneg %p75
      %p179 = pneg %p99
      %p180 = pneg %p96
      %p181 = pneg %p125
      %p182 = pneg %p122
      %p183 = scmp.lt.s32.totalorder %s15, 1
      %s184 = scalar_select %p183, %s15, 1
      %s185 = smul.addr %s184, 8
      %s186 = smul.addr %s185, 8
      %s187 = scalar_lea.vmem %s4, %s186
      %p188 = scmp.lt.s32.totalorder %s15, 1
      %s189 = scalar_select %p188, %s15, 1
      %s190 = smul.addr %s189, 8
      %s191 = smul.addr %s190, 8
      %s192 = scalar_lea.vmem %s0, %s191
      %p193 = scmp.lt.s32.totalorder %s15, 1
      %s194 = scalar_select %p193, %s15, 1
      %s195 = smul.addr %s194, 8
      %s196 = smul.addr %s195, 8
      %s197 = scalar_lea.vmem %s4, %s196
      %v198 = vld [vmem:[%s192] sm:$0xff]
      %v199 = vld [vmem:[%s192 + $0x8] sm:$0xff]
      %v200 = vld [vmem:[%s192 + $0x10] sm:$0xff]
      %v201 = vld [vmem:[%s192 + $0x18] sm:$0xff]
      %v202 = vld [vmem:[%s192 + $0x20] sm:$0xff]
      %v203 = vld [vmem:[%s192 + $0x28] sm:$0xff]
      %v204 = vld [vmem:[%s192 + $0x30] sm:$0xff]
      %v205 = vld [vmem:[%s192 + $0x38] sm:$0xff]
      %v206 = vld [vmem:[%s1] sm:$0xff]
      %v207 = vld [vmem:[%s1 + $0x8] sm:$0xff]
      %v208 = vld [vmem:[%s1 + $0x10] sm:$0xff]
      %v209 = vld [vmem:[%s1 + $0x18] sm:$0xff]
      %v210 = vld [vmem:[%s2] sm:$0x1]
      %v212 = vperm.slane %v210, 0
      %vm214 = vcmask 261120
      %v216 = vsel %vm214, %v198, 0
      %v219 = vsel %vm214, %v199, 0
      %v222 = vsel %vm214, %v200, 0
      %v225 = vsel %vm214, %v201, 0
      %v228 = vsel %vm214, %v202, 0
      %v231 = vsel %vm214, %v203, 0
      %v234 = vsel %vm214, %v204, 0
      %v237 = vsel %vm214, %v205, 0
      %239 = vmatpush.msra.mxu0 0.0
      %240 = vmatpush.msra.mxu0 0.0
      %241 = vmatpush.msra.mxu0 0.0
      %242 = vmatpush.msra.mxu0 0.0
      %243 = vmatpush.msra.mxu0 0.0
      %244 = vmatpush.msra.mxu0 0.0
      %245 = vmatpush.msra.mxu0 0.0
      %246 = vmatpush.msra.mxu0 0.0
      %247 = vmatpush.msra.mxu0 0.0
      %248 = vmatpush.msra.mxu0 0.0
      %249 = vmatpush.msra.mxu0 0.0
      %250 = vmatpush.msra.mxu0 0.0
      %251 = vmatpush.msra.mxu0 %v209
      %252 = vmatpush.msra.mxu0 %v208
      %253 = vmatpush.msra.mxu0 %v207
      %254 = vmatpush.msra.mxu0 %v206
      %255 = vmatmul.f32.gmra.mxu0 %v216
      %v256 = vpop.f32.mrf.mxu0
      %v257 = vadd.f32 %v212, %v256
      %258 = vmatmul.f32.gmra.mxu0 %v219
      %v259 = vpop.f32.mrf.mxu0
      %v260 = vadd.f32 %v212, %v259
      %261 = vmatmul.f32.gmra.mxu0 %v222
      %v262 = vpop.f32.mrf.mxu0
      %v263 = vadd.f32 %v212, %v262
      %264 = vmatmul.f32.gmra.mxu0 %v225
      %v265 = vpop.f32.mrf.mxu0
      %v266 = vadd.f32 %v212, %v265
      %267 = vmatmul.f32.gmra.mxu0 %v228
      %v268 = vpop.f32.mrf.mxu0
      %v269 = vadd.f32 %v212, %v268
      %270 = vmatmul.f32.gmra.mxu0 %v231
      %v271 = vpop.f32.mrf.mxu0
      %v272 = vadd.f32 %v212, %v271
      %273 = vmatmul.f32.gmra.mxu0 %v234
      %v274 = vpop.f32.mrf.mxu0
      %v275 = vadd.f32 %v212, %v274
      %276 = vmatmul.f32.gmra.mxu0 %v237
      %v277 = vpop.f32.mrf.mxu0
      %v278 = vadd.f32 %v212, %v277
      %279 = vdwg.mxu0
      %v280 = vld [vmem:[%s3] sm:$0xff]
      %v281 = vld [vmem:[%s3 + $0x8] sm:$0xff]
      %v282 = vld [vmem:[%s3 + $0x10] sm:$0xff]
      %v283 = vld [vmem:[%s3 + $0x18] sm:$0xff]
      %v284 = vld [vmem:[%s3 + $0x20] sm:$0xff]
      %v285 = vld [vmem:[%s3 + $0x28] sm:$0xff]
      %v286 = vld [vmem:[%s3 + $0x30] sm:$0xff]
      %v287 = vld [vmem:[%s3 + $0x38] sm:$0xff]
      %v288 = vadd.f32 %v257, %v280
      %v289 = vadd.f32 %v260, %v281
      %v290 = vadd.f32 %v263, %v282
      %v291 = vadd.f32 %v266, %v283
      %v292 = vadd.f32 %v269, %v284
      %v293 = vadd.f32 %v272, %v285
      %v294 = vadd.f32 %v275, %v286
      %v295 = vadd.f32 %v278, %v287
      %296 = vst.msk [vmem:[%s197] sm:$0xff] %vm214, %v288
      %297 = vst.msk [vmem:[%s197 + $0x8] sm:$0xff] %vm214, %v289
      %298 = vst.msk [vmem:[%s197 + $0x10] sm:$0xff] %vm214, %v290
      %299 = vst.msk [vmem:[%s197 + $0x18] sm:$0xff] %vm214, %v291
      %300 = vst.msk [vmem:[%s197 + $0x20] sm:$0xff] %vm214, %v292
      %301 = vst.msk [vmem:[%s197 + $0x28] sm:$0xff] %vm214, %v293
      %302 = vst.msk [vmem:[%s197 + $0x30] sm:$0xff] %vm214, %v294
      %303 = vst.msk [vmem:[%s197 + $0x38] sm:$0xff] %vm214, %v295
      %p304 = scmp.lt.s32.totalorder %s15, 1
      %s305 = scalar_select %p304, %s15, 1
      %s306 = smul.addr %s305, 8
      %s307 = smul.addr %s306, 8
      %s308 = scalar_lea.vmem %s4, %s307
      // Predicated region
      $region37: #{adabins_forward.4} parent=35 // pred_check
        %p309 = pneg %p122
      $region38: #{adabins_forward.4} parent=35 // pred_check_branch
        %311 = sbr.rel (%p309) target = $region40
      $region39: #{adabins_forward.4} parent=35 // pred_region
        _
      $region40: #{adabins_forward.4} parent=35 // pred_fallthru
        _
    $region36: #{adabins_forward.4} parent=5 // pred_fallthru
      _
    %p312 = scmp.le.s32.totalorder 2, %s10
    // Predicated region
    $region41: #{adabins_forward.4} parent=5 // pred_check
      %p313 = pneg %p312
    $region42: #{adabins_forward.4} parent=5 // pred_check_branch
      %315 = sbr.rel (%p313) target = $region44
    $region43: #{adabins_forward.4} parent=5 // pred_region
      %s316 = ssub.s32 %s10, 2
      // Predicated region
      $region45: #{adabins_forward.4} parent=43 // pred_check
        %p317 = pneg %p128
      $region46: #{adabins_forward.4} parent=43 // pred_check_branch
        %319 = sbr.rel (%p317) target = $region48
      $region47: #{adabins_forward.4} parent=43 // pred_region
        %p320 = scmp.lt.s32.totalorder %s16, 1
        %s321 = scalar_select %p320, %s16, 1
        %s322 = smul.addr %s321, 8
        %s323 = smul.addr %s322, 8
        %s324 = scalar_lea.vmem %s4, %s323
      $region48: #{adabins_forward.4} parent=43 // pred_fallthru
        _
    $region44: #{adabins_forward.4} parent=5 // pred_fallthru
      _
  $region6: #{adabins_forward.4} parent=0 // loop_footer
    %s14 = sadd.s32 1, %s10
  $region7: #{adabins_forward.4} parent=0 // loop_footer_branch
    %9 = sbr.rel target = $region3
  $region8: #{adabins_forward.4} parent=0 // loop_exit
    _

// kernel: adabins_forward.6
$region0: #{adabins_forward.6}
  #allocation0 [shape = 'u32[]', space=smem, size = 0x4, offset = 0x4, fixed_abs, tag = 'smem constant byte address 0x4 - core index']
  #allocation1 [shape = 'u32[72,128]{1,0:T(1,128)}', space=vmem, size = 0x9000, scoped, tag = 'internal scratch']
  %s0 = inlined_call_operand.vmem [shape: f32[2,32], index: 0, kind: input, shape index: {}]
  %s1 = inlined_call_operand.vmem [shape: f32[32,256], index: 1, kind: input, shape index: {}]
  %s2 = inlined_call_operand.vmem [shape: f32[1,256], index: 2, kind: input, shape index: {}]
  %s3 = inlined_call_operand.vmem [shape: f32[256,256], index: 3, kind: input, shape index: {}]
  %s4 = inlined_call_operand.vmem [shape: f32[1,256], index: 4, kind: input, shape index: {}]
  %s5 = inlined_call_operand.vmem [shape: f32[256,16], index: 5, kind: input, shape index: {}]
  %s6 = inlined_call_operand.vmem [shape: f32[1,16], index: 6, kind: input, shape index: {}]
  %s7 = inlined_call_operand.vmem [shape: f32[2,16], index: 7, kind: output, shape index: {}]
  %s8 = sld [smem:[#allocation0]]
  $region38: #{adabins_forward.6} parent=0
    _
  %s10 = ssub.s32 1, %s8
  %s11 = scalar_select 0, %s10, %s8
  // Predicated region
  $region2: #{adabins_forward.6} parent=0 // pred_check
    _
  $region3: #{adabins_forward.6} parent=0 // pred_check_branch
    %13 = sbr.rel (0) target = $region5
  $region4: #{adabins_forward.6} parent=0 // pred_region
    _
  $region5: #{adabins_forward.6} parent=0 // pred_fallthru
    _
  // Predicated region
  $region6: #{adabins_forward.6} parent=0 // pred_check
    _
  $region7: #{adabins_forward.6} parent=0 // pred_check_branch
    %15 = sbr.rel (0) target = $region9
  $region8: #{adabins_forward.6} parent=0 // pred_region
    _
  $region9: #{adabins_forward.6} parent=0 // pred_fallthru
    _
  // Predicated region
  $region10: #{adabins_forward.6} parent=0 // pred_check
    _
  $region11: #{adabins_forward.6} parent=0 // pred_check_branch
    %17 = sbr.rel (0) target = $region13
  $region12: #{adabins_forward.6} parent=0 // pred_region
    _
  $region13: #{adabins_forward.6} parent=0 // pred_fallthru
    _
  // Predicated region
  $region14: #{adabins_forward.6} parent=0 // pred_check
    _
  $region15: #{adabins_forward.6} parent=0 // pred_check_branch
    %19 = sbr.rel (0) target = $region17
  $region16: #{adabins_forward.6} parent=0 // pred_region
    _
  $region17: #{adabins_forward.6} parent=0 // pred_fallthru
    _
  // Predicated region
  $region18: #{adabins_forward.6} parent=0 // pred_check
    _
  $region19: #{adabins_forward.6} parent=0 // pred_check_branch
    %21 = sbr.rel (0) target = $region21
  $region20: #{adabins_forward.6} parent=0 // pred_region
    _
  $region21: #{adabins_forward.6} parent=0 // pred_fallthru
    _
  // Predicated region
  $region22: #{adabins_forward.6} parent=0 // pred_check
    _
  $region23: #{adabins_forward.6} parent=0 // pred_check_branch
    %23 = sbr.rel (0) target = $region25
  $region24: #{adabins_forward.6} parent=0 // pred_region
    _
  $region25: #{adabins_forward.6} parent=0 // pred_fallthru
    _
  // Predicated region
  $region26: #{adabins_forward.6} parent=0 // pred_check
    _
  $region27: #{adabins_forward.6} parent=0 // pred_check_branch
    %25 = sbr.rel (0) target = $region29
  $region28: #{adabins_forward.6} parent=0 // pred_region
    _
  $region29: #{adabins_forward.6} parent=0 // pred_fallthru
    _
  %v26 = vld [vmem:[%s0] sm:$0x3]
  %v27 = vld [vmem:[%s1] sm:$0xff]
  %v28 = vld [vmem:[%s1 + $0x8] sm:$0xff]
  %v29 = vld [vmem:[%s1 + $0x10] sm:$0xff]
  %v30 = vld [vmem:[%s1 + $0x18] sm:$0xff]
  %v31 = vld [vmem:[%s1 + $0x20] sm:$0xff]
  %v32 = vld [vmem:[%s1 + $0x28] sm:$0xff]
  %v33 = vld [vmem:[%s1 + $0x30] sm:$0xff]
  %v34 = vld [vmem:[%s1 + $0x38] sm:$0xff]
  %v35 = vld [vmem:[%s2] sm:$0x3]
  %v37 = vperm.slane %v35, 0
  %v38 = vperm.slane %v35, 1
  %vm41 = vcmask 261120
  %v43 = vsel %vm41, %v26, 0
  %45 = vmatpush.msra.mxu0 0.0
  %46 = vmatpush.msra.mxu0 0.0
  %47 = vmatpush.msra.mxu0 0.0
  %48 = vmatpush.msra.mxu0 0.0
  %49 = vmatpush.msra.mxu0 0.0
  %50 = vmatpush.msra.mxu0 0.0
  %51 = vmatpush.msra.mxu0 0.0
  %52 = vmatpush.msra.mxu0 0.0
  %53 = vmatpush.msra.mxu0 0.0
  %54 = vmatpush.msra.mxu0 0.0
  %55 = vmatpush.msra.mxu0 0.0
  %56 = vmatpush.msra.mxu0 0.0
  %57 = vmatpush.msra.mxu0 %v33
  %58 = vmatpush.msra.mxu0 %v31
  %59 = vmatpush.msra.mxu0 %v29
  %60 = vmatpush.msra.mxu0 %v27
  %61 = vmatmul.f32.gmra.mxu0 %v43
  %v62 = vpop.f32.mrf.mxu0
  %v63 = vadd.f32 %v37, %v62
  %64 = vdwg.mxu0
  %65 = vmatpush.msra.mxu0 0.0
  %66 = vmatpush.msra.mxu0 0.0
  %67 = vmatpush.msra.mxu0 0.0
  %68 = vmatpush.msra.mxu0 0.0
  %69 = vmatpush.msra.mxu0 0.0
  %70 = vmatpush.msra.mxu0 0.0
  %71 = vmatpush.msra.mxu0 0.0
  %72 = vmatpush.msra.mxu0 0.0
  %73 = vmatpush.msra.mxu0 0.0
  %74 = vmatpush.msra.mxu0 0.0
  %75 = vmatpush.msra.mxu0 0.0
  %76 = vmatpush.msra.mxu0 0.0
  %77 = vmatpush.msra.mxu0 %v34
  %78 = vmatpush.msra.mxu0 %v32
  %79 = vmatpush.msra.mxu0 %v30
  %80 = vmatpush.msra.mxu0 %v28
  %81 = vmatmul.f32.gmra.mxu0 %v43
  %v82 = vpop.f32.mrf.mxu0
  %v83 = vadd.f32 %v38, %v82
  %84 = vdwg.mxu0
  %vm85 = vcmp.ge.f32.partialorder %v63, 0.0
  %vm86 = vcmp.ge.f32.partialorder %v83, 0.0
  %v87 = vmul.f32 %v63, 0.01
  %v88 = vmul.f32 %v83, 0.01
  %v89 = vsel %vm85, %v63, %v87
  %v90 = vsel %vm86, %v83, %v88
  %v91 = vld [vmem:[%s3] sm:$0xff]
  %v92 = vld [vmem:[%s3 + $0x8] sm:$0xff]
  %v93 = vld [vmem:[%s3 + $0x10] sm:$0xff]
  %v94 = vld [vmem:[%s3 + $0x18] sm:$0xff]
  %v95 = vld [vmem:[%s3 + $0x20] sm:$0xff]
  %v96 = vld [vmem:[%s3 + $0x28] sm:$0xff]
  %v97 = vld [vmem:[%s3 + $0x30] sm:$0xff]
  %v98 = vld [vmem:[%s3 + $0x38] sm:$0xff]
  %v99 = vld [vmem:[%s3 + $0x40] sm:$0xff]
  %v100 = vld [vmem:[%s3 + $0x48] sm:$0xff]
  %v101 = vld [vmem:[%s3 + $0x50] sm:$0xff]
  %v102 = vld [vmem:[%s3 + $0x58] sm:$0xff]
  %v103 = vld [vmem:[%s3 + $0x60] sm:$0xff]
  %v104 = vld [vmem:[%s3 + $0x68] sm:$0xff]
  %v105 = vld [vmem:[%s3 + $0x70] sm:$0xff]
  %v106 = vld [vmem:[%s3 + $0x78] sm:$0xff]
  %v107 = vld [vmem:[%s3 + $0x80] sm:$0xff]
  %v108 = vld [vmem:[%s3 + $0x88] sm:$0xff]
  %v109 = vld [vmem:[%s3 + $0x90] sm:$0xff]
  %v110 = vld [vmem:[%s3 + $0x98] sm:$0xff]
  %v111 = vld [vmem:[%s3 + $0xa0] sm:$0xff]
  %v112 = vld [vmem:[%s3 + $0xa8] sm:$0xff]
  %v113 = vld [vmem:[%s3 + $0xb0] sm:$0xff]
  %v114 = vld [vmem:[%s3 + $0xb8] sm:$0xff]
  %v115 = vld [vmem:[%s3 + $0xc0] sm:$0xff]
  %v116 = vld [vmem:[%s3 + $0xc8] sm:$0xff]
  %v117 = vld [vmem:[%s3 + $0xd0] sm:$0xff]
  %v118 = vld [vmem:[%s3 + $0xd8] sm:$0xff]
  %v119 = vld [vmem:[%s3 + $0xe0] sm:$0xff]
  %v120 = vld [vmem:[%s3 + $0xe8] sm:$0xff]
  %v121 = vld [vmem:[%s3 + $0xf0] sm:$0xff]
  %v122 = vld [vmem:[%s3 + $0xf8] sm:$0xff]
  %v123 = vld [vmem:[%s3 + $0x100] sm:$0xff]
  %v124 = vld [vmem:[%s3 + $0x108] sm:$0xff]
  %v125 = vld [vmem:[%s3 + $0x110] sm:$0xff]
  %v126 = vld [vmem:[%s3 + $0x118] sm:$0xff]
  %v127 = vld [vmem:[%s3 + $0x120] sm:$0xff]
  %v128 = vld [vmem:[%s3 + $0x128] sm:$0xff]
  %v129 = vld [vmem:[%s3 + $0x130] sm:$0xff]
  %v130 = vld [vmem:[%s3 + $0x138] sm:$0xff]
  %v131 = vld [vmem:[%s3 + $0x140] sm:$0xff]
  %v132 = vld [vmem:[%s3 + $0x148] sm:$0xff]
  %v133 = vld [vmem:[%s3 + $0x150] sm:$0xff]
  %v134 = vld [vmem:[%s3 + $0x158] sm:$0xff]
  %v135 = vld [vmem:[%s3 + $0x160] sm:$0xff]
  %v136 = vld [vmem:[%s3 + $0x168] sm:$0xff]
  %v137 = vld [vmem:[%s3 + $0x170] sm:$0xff]
  %v138 = vld [vmem:[%s3 + $0x178] sm:$0xff]
  %v139 = vld [vmem:[%s3 + $0x180] sm:$0xff]
  %v140 = vld [vmem:[%s3 + $0x188] sm:$0xff]
  %v141 = vld [vmem:[%s3 + $0x190] sm:$0xff]
  %v142 = vld [vmem:[%s3 + $0x198] sm:$0xff]
  %v143 = vld [vmem:[%s3 + $0x1a0] sm:$0xff]
  %v144 = vld [vmem:[%s3 + $0x1a8] sm:$0xff]
  %v145 = vld [vmem:[%s3 + $0x1b0] sm:$0xff]
  %v146 = vld [vmem:[%s3 + $0x1b8] sm:$0xff]
  %v147 = vld [vmem:[%s3 + $0x1c0] sm:$0xff]
  %v148 = vld [vmem:[%s3 + $0x1c8] sm:$0xff]
  %v149 = vld [vmem:[%s3 + $0x1d0] sm:$0xff]
  %v150 = vld [vmem:[%s3 + $0x1d8] sm:$0xff]
  %v151 = vld [vmem:[%s3 + $0x1e0] sm:$0xff]
  %v152 = vld [vmem:[%s3 + $0x1e8] sm:$0xff]
  %v153 = vld [vmem:[%s3 + $0x1f0] sm:$0xff]
  %v154 = vld [vmem:[%s3 + $0x1f8] sm:$0xff]
  %v155 = vld [vmem:[%s4] sm:$0x3]
  %v157 = vperm.slane %v155, 0
  %v158 = vperm.slane %v155, 1
  %161 = vmatpush.msra.mxu0 %v121
  %162 = vmatpush.msra.mxu0 %v119
  %163 = vmatpush.msra.mxu0 %v117
  %164 = vmatpush.msra.mxu0 %v115
  %165 = vmatpush.msra.mxu0 %v113
  %166 = vmatpush.msra.mxu0 %v111
  %167 = vmatpush.msra.mxu0 %v109
  %168 = vmatpush.msra.mxu0 %v107
  %169 = vmatpush.msra.mxu0 %v105
  %170 = vmatpush.msra.mxu0 %v103
  %171 = vmatpush.msra.mxu0 %v101
  %172 = vmatpush.msra.mxu0 %v99
  %173 = vmatpush.msra.mxu0 %v97
  %174 = vmatpush.msra.mxu0 %v95
  %175 = vmatpush.msra.mxu0 %v93
  %176 = vmatpush.msra.mxu0 %v91
  %177 = vmatmul.f32.gmra.mxu0 %v89
  %v178 = vpop.f32.mrf.mxu0
  %v179 = vadd.f32 %v157, %v178
  %180 = vdwg.mxu0
  %181 = vmatpush.msra.mxu0 %v153
  %182 = vmatpush.msra.mxu0 %v151
  %183 = vmatpush.msra.mxu0 %v149
  %184 = vmatpush.msra.mxu0 %v147
  %185 = vmatpush.msra.mxu0 %v145
  %186 = vmatpush.msra.mxu0 %v143
  %187 = vmatpush.msra.mxu0 %v141
  %188 = vmatpush.msra.mxu0 %v139
  %189 = vmatpush.msra.mxu0 %v137
  %190 = vmatpush.msra.mxu0 %v135
  %191 = vmatpush.msra.mxu0 %v133
  %192 = vmatpush.msra.mxu0 %v131
  %193 = vmatpush.msra.mxu0 %v129
  %194 = vmatpush.msra.mxu0 %v127
  %195 = vmatpush.msra.mxu0 %v125
  %196 = vmatpush.msra.mxu0 %v123
  %197 = vmatmul.f32.gmra.mxu0 %v90
  %v198 = vpop.f32.mrf.mxu0
  %v199 = vadd.f32 %v179, %v198
  %200 = vdwg.mxu0
  %201 = vmatpush.msra.mxu0 %v122
  %202 = vmatpush.msra.mxu0 %v120
  %203 = vmatpush.msra.mxu0 %v118
  %204 = vmatpush.msra.mxu0 %v116
  %205 = vmatpush.msra.mxu0 %v114
  %206 = vmatpush.msra.mxu0 %v112
  %207 = vmatpush.msra.mxu0 %v110
  %208 = vmatpush.msra.mxu0 %v108
  %209 = vmatpush.msra.mxu0 %v106
  %210 = vmatpush.msra.mxu0 %v104
  %211 = vmatpush.msra.mxu0 %v102
  %212 = vmatpush.msra.mxu0 %v100
  %213 = vmatpush.msra.mxu0 %v98
  %214 = vmatpush.msra.mxu0 %v96
  %215 = vmatpush.msra.mxu0 %v94
  %216 = vmatpush.msra.mxu0 %v92
  %217 = vmatmul.f32.gmra.mxu0 %v89
  %v218 = vpop.f32.mrf.mxu0
  %v219 = vadd.f32 %v158, %v218
  %220 = vdwg.mxu0
  %221 = vmatpush.msra.mxu0 %v154
  %222 = vmatpush.msra.mxu0 %v152
  %223 = vmatpush.msra.mxu0 %v150
  %224 = vmatpush.msra.mxu0 %v148
  %225 = vmatpush.msra.mxu0 %v146
  %226 = vmatpush.msra.mxu0 %v144
  %227 = vmatpush.msra.mxu0 %v142
  %228 = vmatpush.msra.mxu0 %v140
  %229 = vmatpush.msra.mxu0 %v138
  %230 = vmatpush.msra.mxu0 %v136
  %231 = vmatpush.msra.mxu0 %v134
  %232 = vmatpush.msra.mxu0 %v132
  %233 = vmatpush.msra.mxu0 %v130
  %234 = vmatpush.msra.mxu0 %v128
  %235 = vmatpush.msra.mxu0 %v126
  %236 = vmatpush.msra.mxu0 %v124
  %237 = vmatmul.f32.gmra.mxu0 %v90
  %v238 = vpop.f32.mrf.mxu0
  %v239 = vadd.f32 %v219, %v238
  %240 = vdwg.mxu0
  %vm241 = vcmp.ge.f32.partialorder %v199, 0.0
  %vm242 = vcmp.ge.f32.partialorder %v239, 0.0
  %v243 = vmul.f32 %v199, 0.01
  %v244 = vmul.f32 %v239, 0.01
  %v245 = vsel %vm241, %v199, %v243
  %v246 = vsel %vm242, %v239, %v244
  %v247 = vld [vmem:[%s5] sm:$0xff]
  %v248 = vld [vmem:[%s5 + $0x8] sm:$0xff]
  %v249 = vld [vmem:[%s5 + $0x10] sm:$0xff]
  %v250 = vld [vmem:[%s5 + $0x18] sm:$0xff]
  %v251 = vld [vmem:[%s5 + $0x20] sm:$0xff]
  %v252 = vld [vmem:[%s5 + $0x28] sm:$0xff]
  %v253 = vld [vmem:[%s5 + $0x30] sm:$0xff]
  %v254 = vld [vmem:[%s5 + $0x38] sm:$0xff]
  %v255 = vld [vmem:[%s5 + $0x40] sm:$0xff]
  %v256 = vld [vmem:[%s5 + $0x48] sm:$0xff]
  %v257 = vld [vmem:[%s5 + $0x50] sm:$0xff]
  %v258 = vld [vmem:[%s5 + $0x58] sm:$0xff]
  %v259 = vld [vmem:[%s5 + $0x60] sm:$0xff]
  %v260 = vld [vmem:[%s5 + $0x68] sm:$0xff]
  %v261 = vld [vmem:[%s5 + $0x70] sm:$0xff]
  %v262 = vld [vmem:[%s5 + $0x78] sm:$0xff]
  %v263 = vld [vmem:[%s5 + $0x80] sm:$0xff]
  %v264 = vld [vmem:[%s5 + $0x88] sm:$0xff]
  %v265 = vld [vmem:[%s5 + $0x90] sm:$0xff]
  %v266 = vld [vmem:[%s5 + $0x98] sm:$0xff]
  %v267 = vld [vmem:[%s5 + $0xa0] sm:$0xff]
  %v268 = vld [vmem:[%s5 + $0xa8] sm:$0xff]
  %v269 = vld [vmem:[%s5 + $0xb0] sm:$0xff]
  %v270 = vld [vmem:[%s5 + $0xb8] sm:$0xff]
  %v271 = vld [vmem:[%s5 + $0xc0] sm:$0xff]
  %v272 = vld [vmem:[%s5 + $0xc8] sm:$0xff]
  %v273 = vld [vmem:[%s5 + $0xd0] sm:$0xff]
  %v274 = vld [vmem:[%s5 + $0xd8] sm:$0xff]
  %v275 = vld [vmem:[%s5 + $0xe0] sm:$0xff]
  %v276 = vld [vmem:[%s5 + $0xe8] sm:$0xff]
  %v277 = vld [vmem:[%s5 + $0xf0] sm:$0xff]
  %v278 = vld [vmem:[%s5 + $0xf8] sm:$0xff]
  %v279 = vld [vmem:[%s6] sm:$0x1]
  %v281 = vperm.slane %v279, 0
  %283 = vmatpush.msra.mxu0 %v262
  %284 = vmatpush.msra.mxu0 %v261
  %285 = vmatpush.msra.mxu0 %v260
  %286 = vmatpush.msra.mxu0 %v259
  %287 = vmatpush.msra.mxu0 %v258
  %288 = vmatpush.msra.mxu0 %v257
  %289 = vmatpush.msra.mxu0 %v256
  %290 = vmatpush.msra.mxu0 %v255
  %291 = vmatpush.msra.mxu0 %v254
  %292 = vmatpush.msra.mxu0 %v253
  %293 = vmatpush.msra.mxu0 %v252
  %294 = vmatpush.msra.mxu0 %v251
  %295 = vmatpush.msra.mxu0 %v250
  %296 = vmatpush.msra.mxu0 %v249
  %297 = vmatpush.msra.mxu0 %v248
  %298 = vmatpush.msra.mxu0 %v247
  %299 = vmatmul.f32.gmra.mxu0 %v245
  %v300 = vpop.f32.mrf.mxu0
  %v301 = vadd.f32 %v281, %v300
  %302 = vdwg.mxu0
  %303 = vmatpush.msra.mxu0 %v278
  %304 = vmatpush.msra.mxu0 %v277
  %305 = vmatpush.msra.mxu0 %v276
  %306 = vmatpush.msra.mxu0 %v275
  %307 = vmatpush.msra.mxu0 %v274
  %308 = vmatpush.msra.mxu0 %v273
  %309 = vmatpush.msra.mxu0 %v272
  %310 = vmatpush.msra.mxu0 %v271
  %311 = vmatpush.msra.mxu0 %v270
  %312 = vmatpush.msra.mxu0 %v269
  %313 = vmatpush.msra.mxu0 %v268
  %314 = vmatpush.msra.mxu0 %v267
  %315 = vmatpush.msra.mxu0 %v266
  %316 = vmatpush.msra.mxu0 %v265
  %317 = vmatpush.msra.mxu0 %v264
  %318 = vmatpush.msra.mxu0 %v263
  %319 = vmatmul.f32.gmra.mxu0 %v246
  %v320 = vpop.f32.mrf.mxu0
  %v321 = vadd.f32 %v301, %v320
  %322 = vdwg.mxu0
  %vm323 = vcmask 123904
  %324 = vst.msk [vmem:[%s7] sm:$0x3] %vm323, %v321
  // Predicated region
  $region30: #{adabins_forward.6} parent=0 // pred_check
    _
  $region31: #{adabins_forward.6} parent=0 // pred_check_branch
    %326 = sbr.rel (0) target = $region33
  $region32: #{adabins_forward.6} parent=0 // pred_region
    _
  $region33: #{adabins_forward.6} parent=0 // pred_fallthru
    _
  // Predicated region
  $region34: #{adabins_forward.6} parent=0 // pred_check
    _
  $region35: #{adabins_forward.6} parent=0 // pred_check_branch
    %328 = sbr.rel (0) target = $region37
  $region36: #{adabins_forward.6} parent=0 // pred_region
    _
  $region37: #{adabins_forward.6} parent=0 // pred_fallthru
    _

// kernel: adabins_forward.5
$region0: #{adabins_forward.5}
  #allocation0 [shape = 'u32[]', space=smem, size = 0x4, offset = 0x4, fixed_abs, tag = 'smem constant byte address 0x4 - core index']
  #allocation1 [shape = 'u32[72,128]{1,0:T(1,128)}', space=vmem, size = 0x9000, scoped, tag = 'internal scratch']
  %s0 = inlined_call_operand.vmem [shape: f32[2,64,32], index: 0, kind: input, shape index: {}]
  %s1 = inlined_call_operand.vmem [shape: f32[4,4,32,8], index: 1, kind: input, shape index: {}]
  %s2 = inlined_call_operand.vmem [shape: f32[4,4,32,8], index: 2, kind: input, shape index: {}]
  %s3 = inlined_call_operand.vmem [shape: f32[4,4,32,8], index: 3, kind: input, shape index: {}]
  %s4 = inlined_call_operand.vmem [shape: f32[4,4,1,8], index: 4, kind: input, shape index: {}]
  %s5 = inlined_call_operand.vmem [shape: f32[4,4,1,8], index: 5, kind: input, shape index: {}]
  %s6 = inlined_call_operand.vmem [shape: f32[4,4,1,8], index: 6, kind: input, shape index: {}]
  %s7 = inlined_call_operand.vmem [shape: f32[4,4,8,32], index: 7, kind: input, shape index: {}]
  %s8 = inlined_call_operand.vmem [shape: f32[4,1,32], index: 8, kind: input, shape index: {}]
  %s9 = inlined_call_operand.vmem [shape: f32[4,1,32], index: 9, kind: input, shape index: {}]
  %s10 = inlined_call_operand.vmem [shape: f32[4,1,32], index: 10, kind: input, shape index: {}]
  %s11 = inlined_call_operand.vmem [shape: bf16[4,32,1024], index: 11, kind: input, shape index: {}]
  %s12 = inlined_call_operand.vmem [shape: f32[4,1,1024], index: 12, kind: input, shape index: {}]
  %s13 = inlined_call_operand.vmem [shape: bf16[4,1024,32], index: 13, kind: input, shape index: {}]
  %s14 = inlined_call_operand.vmem [shape: f32[4,1,32], index: 14, kind: input, shape index: {}]
  %s15 = inlined_call_operand.vmem [shape: f32[4,1,32], index: 15, kind: input, shape index: {}]
  %s16 = inlined_call_operand.vmem [shape: f32[4,1,32], index: 16, kind: input, shape index: {}]
  %s17 = inlined_call_operand.vmem [shape: f32[2,64,32], index: 17, kind: output, shape index: {}]
  %s18 = sld [smem:[#allocation0]]
  $region105: #{adabins_forward.5} parent=0
    _
  %s20 = ssub.s32 1, %s18
  %s21 = scalar_select 0, %s20, %s18
  loop: start=0, step=1, limit=10
  $region2: #{adabins_forward.5} parent=0 // loop_pre_header
    _
  $region3: #{adabins_forward.5} parent=0 // loop_header
    %s23 = sphi 0, %s27
    %p24 = scmp.ge.s32.totalorder %s23, 10
    %s30 = sphi 0, %s42
    %s31 = sphi 0, %s38
    %s32 = sphi 0, %s30
    %s33 = sphi 0, %s31
    %s34 = sphi 0, %s32
    %s35 = sphi 0, %s33
    %s45 = sphi 0, %s47
    %s48 = sphi 0, %s45
    %s49 = sphi 0, %s48
    %s65 = sphi 0, %s49
    %s71 = sphi 0, %s73
    %s74 = sphi 0, %s71
    %s75 = sphi 0, %s74
    %s91 = sphi 0, %s75
    %s97 = sphi 0, %s99
    %s100 = sphi 0, %s97
    %s101 = sphi 0, %s100
    %s117 = sphi 0, %s101
    %s123 = sphi 0, %s125
    %s126 = sphi 0, %s123
    %s127 = sphi 0, %s126
    %s143 = sphi 0, %s127
    %s149 = sphi 0, %s151
    %s152 = sphi 0, %s149
    %s153 = sphi 0, %s152
    %s169 = sphi 0, %s153
    %s175 = sphi 0, %s177
    %s178 = sphi 0, %s175
    %s179 = sphi 0, %s178
    %s195 = sphi 0, %s179
    %s201 = sphi 0, %s203
    %s204 = sphi 0, %s201
    %s205 = sphi 0, %s204
    %s221 = sphi 0, %s205
    %s227 = sphi 0, %s229
    %s230 = sphi 0, %s227
    %s231 = sphi 0, %s230
    %s247 = sphi 0, %s231
    %s253 = sphi 0, %s255
    %s256 = sphi 0, %s253
    %s257 = sphi 0, %s256
    %s273 = sphi 0, %s257
    %s279 = sphi 0, %s281
    %s282 = sphi 0, %s279
    %s283 = sphi 0, %s282
    %s299 = sphi 0, %s283
    %s305 = sphi 0, %s307
    %s308 = sphi 0, %s305
    %s309 = sphi 0, %s308
    %s325 = sphi 0, %s309
    %s331 = sphi 0, %s333
    %s334 = sphi 0, %s331
    %s335 = sphi 0, %s334
    %s351 = sphi 0, %s335
    %s357 = sphi 0, %s359
    %s360 = sphi 0, %s357
    %s361 = sphi 0, %s360
    %s377 = sphi 0, %s361
    %s383 = sphi 0, %s385
    %s386 = sphi 0, %s383
    %s387 = sphi 0, %s386
    %s403 = sphi 0, %s387
    %s409 = sphi 0, %s411
    %s412 = sphi 0, %s409
    %s413 = sphi 0, %s412
    %s429 = sphi 0, %s413
    %s435 = sphi 0, %s437
    %s438 = sphi 0, %s435
    %s439 = sphi 0, %s438
    %s455 = sphi 0, %s439
    %s461 = sphi 0, %s463
    %s464 = sphi 0, %s461
    %s465 = sphi 0, %s464
    %s481 = sphi 0, %s465
    %s487 = sphi 0, %s489
    %s490 = sphi 0, %s487
    %s491 = sphi 0, %s490
    %s507 = sphi 0, %s491
  $region4: #{adabins_forward.5} parent=0 // loop_header_branch
    %26 = sbr.rel (%p24) target = $region8
  $region5: #{adabins_forward.5} parent=0 // loop_body
    %s28 = ssub.s32 %s23, 1
    %s29 = ssub.s32 %s23, 2
    %s36 = sadd.s32 1, %s31
    %p37 = scmp.ge.s32.totalorder %s36, 4
    %s38 = scalar_select %p37, 0, %s36
    %s39 = sadd.s32 1, %s30
    %s40 = scalar_select %p37, %s39, %s30
    %p41 = scmp.ge.s32.totalorder %s40, 2
    %s42 = scalar_select %p41, 0, %s40
    %s43 = ssub.s32 %s30, %s42
    %p44 = scmp.eq.s32.totalorder %s43, 0
    %s46 = sadd.s32 %s45, 1
    %s47 = scalar_select %p44, %s45, %s46
    %p50 = pneg %p44
    %p51 = scmp.eq.s32.totalorder %s23, 7
    %p52 = por %p50, %p51
    %p53 = scmp.ne.s32.totalorder %s45, %s48
    %p54 = scmp.eq.s32.totalorder %s23, 0
    %p55 = por %p53, %p54
    %p56 = scmp.ne.s32.totalorder %s45, %s48
    %p57 = scmp.eq.s32.totalorder %s28, 7
    %p58 = por %p56, %p57
    %p59 = scmp.ne.s32.totalorder %s48, %s49
    %p60 = scmp.eq.s32.totalorder %s28, 0
    %p61 = por %p59, %p60
    %p62 = scmp.ne.s32.totalorder %s48, %s49
    %p63 = scmp.eq.s32.totalorder %s29, 7
    %p64 = por %p62, %p63
    %p66 = scmp.ne.s32.totalorder %s49, %s65
    %p67 = scmp.eq.s32.totalorder %s29, 0
    %p68 = por %p66, %p67
    %s69 = ssub.s32 %s31, %s38
    %p70 = scmp.eq.s32.totalorder %s69, 0
    %s72 = sadd.s32 %s71, 1
    %s73 = scalar_select %p70, %s71, %s72
    %p76 = pneg %p70
    %p77 = scmp.eq.s32.totalorder %s23, 7
    %p78 = por %p76, %p77
    %p79 = scmp.ne.s32.totalorder %s71, %s74
    %p80 = scmp.eq.s32.totalorder %s23, 0
    %p81 = por %p79, %p80
    %p82 = scmp.ne.s32.totalorder %s71, %s74
    %p83 = scmp.eq.s32.totalorder %s28, 7
    %p84 = por %p82, %p83
    %p85 = scmp.ne.s32.totalorder %s74, %s75
    %p86 = scmp.eq.s32.totalorder %s28, 0
    %p87 = por %p85, %p86
    %p88 = scmp.ne.s32.totalorder %s74, %s75
    %p89 = scmp.eq.s32.totalorder %s29, 7
    %p90 = por %p88, %p89
    %p92 = scmp.ne.s32.totalorder %s75, %s91
    %p93 = scmp.eq.s32.totalorder %s29, 0
    %p94 = por %p92, %p93
    %s95 = ssub.s32 %s31, %s38
    %p96 = scmp.eq.s32.totalorder %s95, 0
    %s98 = sadd.s32 %s97, 1
    %s99 = scalar_select %p96, %s97, %s98
    %p102 = pneg %p96
    %p103 = scmp.eq.s32.totalorder %s23, 7
    %p104 = por %p102, %p103
    %p105 = scmp.ne.s32.totalorder %s97, %s100
    %p106 = scmp.eq.s32.totalorder %s23, 0
    %p107 = por %p105, %p106
    %p108 = scmp.ne.s32.totalorder %s97, %s100
    %p109 = scmp.eq.s32.totalorder %s28, 7
    %p110 = por %p108, %p109
    %p111 = scmp.ne.s32.totalorder %s100, %s101
    %p112 = scmp.eq.s32.totalorder %s28, 0
    %p113 = por %p111, %p112
    %p114 = scmp.ne.s32.totalorder %s100, %s101
    %p115 = scmp.eq.s32.totalorder %s29, 7
    %p116 = por %p114, %p115
    %p118 = scmp.ne.s32.totalorder %s101, %s117
    %p119 = scmp.eq.s32.totalorder %s29, 0
    %p120 = por %p118, %p119
    %s121 = ssub.s32 %s31, %s38
    %p122 = scmp.eq.s32.totalorder %s121, 0
    %s124 = sadd.s32 %s123, 1
    %s125 = scalar_select %p122, %s123, %s124
    %p128 = pneg %p122
    %p129 = scmp.eq.s32.totalorder %s23, 7
    %p130 = por %p128, %p129
    %p131 = scmp.ne.s32.totalorder %s123, %s126
    %p132 = scmp.eq.s32.totalorder %s23, 0
    %p133 = por %p131, %p132
    %p134 = scmp.ne.s32.totalorder %s123, %s126
    %p135 = scmp.eq.s32.totalorder %s28, 7
    %p136 = por %p134, %p135
    %p137 = scmp.ne.s32.totalorder %s126, %s127
    %p138 = scmp.eq.s32.totalorder %s28, 0
    %p139 = por %p137, %p138
    %p140 = scmp.ne.s32.totalorder %s126, %s127
    %p141 = scmp.eq.s32.totalorder %s29, 7
    %p142 = por %p140, %p141
    %p144 = scmp.ne.s32.totalorder %s127, %s143
    %p145 = scmp.eq.s32.totalorder %s29, 0
    %p146 = por %p144, %p145
    %s147 = ssub.s32 %s31, %s38
    %p148 = scmp.eq.s32.totalorder %s147, 0
    %s150 = sadd.s32 %s149, 1
    %s151 = scalar_select %p148, %s149, %s150
    %p154 = pneg %p148
    %p155 = scmp.eq.s32.totalorder %s23, 7
    %p156 = por %p154, %p155
    %p157 = scmp.ne.s32.totalorder %s149, %s152
    %p158 = scmp.eq.s32.totalorder %s23, 0
    %p159 = por %p157, %p158
    %p160 = scmp.ne.s32.totalorder %s149, %s152
    %p161 = scmp.eq.s32.totalorder %s28, 7
    %p162 = por %p160, %p161
    %p163 = scmp.ne.s32.totalorder %s152, %s153
    %p164 = scmp.eq.s32.totalorder %s28, 0
    %p165 = por %p163, %p164
    %p166 = scmp.ne.s32.totalorder %s152, %s153
    %p167 = scmp.eq.s32.totalorder %s29, 7
    %p168 = por %p166, %p167
    %p170 = scmp.ne.s32.totalorder %s153, %s169
    %p171 = scmp.eq.s32.totalorder %s29, 0
    %p172 = por %p170, %p171
    %s173 = ssub.s32 %s31, %s38
    %p174 = scmp.eq.s32.totalorder %s173, 0
    %s176 = sadd.s32 %s175, 1
    %s177 = scalar_select %p174, %s175, %s176
    %p180 = pneg %p174
    %p181 = scmp.eq.s32.totalorder %s23, 7
    %p182 = por %p180, %p181
    %p183 = scmp.ne.s32.totalorder %s175, %s178
    %p184 = scmp.eq.s32.totalorder %s23, 0
    %p185 = por %p183, %p184
    %p186 = scmp.ne.s32.totalorder %s175, %s178
    %p187 = scmp.eq.s32.totalorder %s28, 7
    %p188 = por %p186, %p187
    %p189 = scmp.ne.s32.totalorder %s178, %s179
    %p190 = scmp.eq.s32.totalorder %s28, 0
    %p191 = por %p189, %p190
    %p192 = scmp.ne.s32.totalorder %s178, %s179
    %p193 = scmp.eq.s32.totalorder %s29, 7
    %p194 = por %p192, %p193
    %p196 = scmp.ne.s32.totalorder %s179, %s195
    %p197 = scmp.eq.s32.totalorder %s29, 0
    %p198 = por %p196, %p197
    %s199 = ssub.s32 %s31, %s38
    %p200 = scmp.eq.s32.totalorder %s199, 0
    %s202 = sadd.s32 %s201, 1
    %s203 = scalar_select %p200, %s201, %s202
    %p206 = pneg %p200
    %p207 = scmp.eq.s32.totalorder %s23, 7
    %p208 = por %p206, %p207
    %p209 = scmp.ne.s32.totalorder %s201, %s204
    %p210 = scmp.eq.s32.totalorder %s23, 0
    %p211 = por %p209, %p210
    %p212 = scmp.ne.s32.totalorder %s201, %s204
    %p213 = scmp.eq.s32.totalorder %s28, 7
    %p214 = por %p212, %p213
    %p215 = scmp.ne.s32.totalorder %s204, %s205
    %p216 = scmp.eq.s32.totalorder %s28, 0
    %p217 = por %p215, %p216
    %p218 = scmp.ne.s32.totalorder %s204, %s205
    %p219 = scmp.eq.s32.totalorder %s29, 7
    %p220 = por %p218, %p219
    %p222 = scmp.ne.s32.totalorder %s205, %s221
    %p223 = scmp.eq.s32.totalorder %s29, 0
    %p224 = por %p222, %p223
    %s225 = ssub.s32 %s31, %s38
    %p226 = scmp.eq.s32.totalorder %s225, 0
    %s228 = sadd.s32 %s227, 1
    %s229 = scalar_select %p226, %s227, %s228
    %p232 = pneg %p226
    %p233 = scmp.eq.s32.totalorder %s23, 7
    %p234 = por %p232, %p233
    %p235 = scmp.ne.s32.totalorder %s227, %s230
    %p236 = scmp.eq.s32.totalorder %s23, 0
    %p237 = por %p235, %p236
    %p238 = scmp.ne.s32.totalorder %s227, %s230
    %p239 = scmp.eq.s32.totalorder %s28, 7
    %p240 = por %p238, %p239
    %p241 = scmp.ne.s32.totalorder %s230, %s231
    %p242 = scmp.eq.s32.totalorder %s28, 0
    %p243 = por %p241, %p242
    %p244 = scmp.ne.s32.totalorder %s230, %s231
    %p245 = scmp.eq.s32.totalorder %s29, 7
    %p246 = por %p244, %p245
    %p248 = scmp.ne.s32.totalorder %s231, %s247
    %p249 = scmp.eq.s32.totalorder %s29, 0
    %p250 = por %p248, %p249
    %s251 = ssub.s32 %s31, %s38
    %p252 = scmp.eq.s32.totalorder %s251, 0
    %s254 = sadd.s32 %s253, 1
    %s255 = scalar_select %p252, %s253, %s254
    %p258 = pneg %p252
    %p259 = scmp.eq.s32.totalorder %s23, 7
    %p260 = por %p258, %p259
    %p261 = scmp.ne.s32.totalorder %s253, %s256
    %p262 = scmp.eq.s32.totalorder %s23, 0
    %p263 = por %p261, %p262
    %p264 = scmp.ne.s32.totalorder %s253, %s256
    %p265 = scmp.eq.s32.totalorder %s28, 7
    %p266 = por %p264, %p265
    %p267 = scmp.ne.s32.totalorder %s256, %s257
    %p268 = scmp.eq.s32.totalorder %s28, 0
    %p269 = por %p267, %p268
    %p270 = scmp.ne.s32.totalorder %s256, %s257
    %p271 = scmp.eq.s32.totalorder %s29, 7
    %p272 = por %p270, %p271
    %p274 = scmp.ne.s32.totalorder %s257, %s273
    %p275 = scmp.eq.s32.totalorder %s29, 0
    %p276 = por %p274, %p275
    %s277 = ssub.s32 %s31, %s38
    %p278 = scmp.eq.s32.totalorder %s277, 0
    %s280 = sadd.s32 %s279, 1
    %s281 = scalar_select %p278, %s279, %s280
    %p284 = pneg %p278
    %p285 = scmp.eq.s32.totalorder %s23, 7
    %p286 = por %p284, %p285
    %p287 = scmp.ne.s32.totalorder %s279, %s282
    %p288 = scmp.eq.s32.totalorder %s23, 0
    %p289 = por %p287, %p288
    %p290 = scmp.ne.s32.totalorder %s279, %s282
    %p291 = scmp.eq.s32.totalorder %s28, 7
    %p292 = por %p290, %p291
    %p293 = scmp.ne.s32.totalorder %s282, %s283
    %p294 = scmp.eq.s32.totalorder %s28, 0
    %p295 = por %p293, %p294
    %p296 = scmp.ne.s32.totalorder %s282, %s283
    %p297 = scmp.eq.s32.totalorder %s29, 7
    %p298 = por %p296, %p297
    %p300 = scmp.ne.s32.totalorder %s283, %s299
    %p301 = scmp.eq.s32.totalorder %s29, 0
    %p302 = por %p300, %p301
    %s303 = ssub.s32 %s31, %s38
    %p304 = scmp.eq.s32.totalorder %s303, 0
    %s306 = sadd.s32 %s305, 1
    %s307 = scalar_select %p304, %s305, %s306
    %p310 = pneg %p304
    %p311 = scmp.eq.s32.totalorder %s23, 7
    %p312 = por %p310, %p311
    %p313 = scmp.ne.s32.totalorder %s305, %s308
    %p314 = scmp.eq.s32.totalorder %s23, 0
    %p315 = por %p313, %p314
    %p316 = scmp.ne.s32.totalorder %s305, %s308
    %p317 = scmp.eq.s32.totalorder %s28, 7
    %p318 = por %p316, %p317
    %p319 = scmp.ne.s32.totalorder %s308, %s309
    %p320 = scmp.eq.s32.totalorder %s28, 0
    %p321 = por %p319, %p320
    %p322 = scmp.ne.s32.totalorder %s308, %s309
    %p323 = scmp.eq.s32.totalorder %s29, 7
    %p324 = por %p322, %p323
    %p326 = scmp.ne.s32.totalorder %s309, %s325
    %p327 = scmp.eq.s32.totalorder %s29, 0
    %p328 = por %p326, %p327
    %s329 = ssub.s32 %s31, %s38
    %p330 = scmp.eq.s32.totalorder %s329, 0
    %s332 = sadd.s32 %s331, 1
    %s333 = scalar_select %p330, %s331, %s332
    %p336 = pneg %p330
    %p337 = scmp.eq.s32.totalorder %s23, 7
    %p338 = por %p336, %p337
    %p339 = scmp.ne.s32.totalorder %s331, %s334
    %p340 = scmp.eq.s32.totalorder %s23, 0
    %p341 = por %p339, %p340
    %p342 = scmp.ne.s32.totalorder %s331, %s334
    %p343 = scmp.eq.s32.totalorder %s28, 7
    %p344 = por %p342, %p343
    %p345 = scmp.ne.s32.totalorder %s334, %s335
    %p346 = scmp.eq.s32.totalorder %s28, 0
    %p347 = por %p345, %p346
    %p348 = scmp.ne.s32.totalorder %s334, %s335
    %p349 = scmp.eq.s32.totalorder %s29, 7
    %p350 = por %p348, %p349
    %p352 = scmp.ne.s32.totalorder %s335, %s351
    %p353 = scmp.eq.s32.totalorder %s29, 0
    %p354 = por %p352, %p353
    %s355 = ssub.s32 %s31, %s38
    %p356 = scmp.eq.s32.totalorder %s355, 0
    %s358 = sadd.s32 %s357, 1
    %s359 = scalar_select %p356, %s357, %s358
    %p362 = pneg %p356
    %p363 = scmp.eq.s32.totalorder %s23, 7
    %p364 = por %p362, %p363
    %p365 = scmp.ne.s32.totalorder %s357, %s360
    %p366 = scmp.eq.s32.totalorder %s23, 0
    %p367 = por %p365, %p366
    %p368 = scmp.ne.s32.totalorder %s357, %s360
    %p369 = scmp.eq.s32.totalorder %s28, 7
    %p370 = por %p368, %p369
    %p371 = scmp.ne.s32.totalorder %s360, %s361
    %p372 = scmp.eq.s32.totalorder %s28, 0
    %p373 = por %p371, %p372
    %p374 = scmp.ne.s32.totalorder %s360, %s361
    %p375 = scmp.eq.s32.totalorder %s29, 7
    %p376 = por %p374, %p375
    %p378 = scmp.ne.s32.totalorder %s361, %s377
    %p379 = scmp.eq.s32.totalorder %s29, 0
    %p380 = por %p378, %p379
    %s381 = ssub.s32 %s31, %s38
    %p382 = scmp.eq.s32.totalorder %s381, 0
    %s384 = sadd.s32 %s383, 1
    %s385 = scalar_select %p382, %s383, %s384
    %p388 = pneg %p382
    %p389 = scmp.eq.s32.totalorder %s23, 7
    %p390 = por %p388, %p389
    %p391 = scmp.ne.s32.totalorder %s383, %s386
    %p392 = scmp.eq.s32.totalorder %s23, 0
    %p393 = por %p391, %p392
    %p394 = scmp.ne.s32.totalorder %s383, %s386
    %p395 = scmp.eq.s32.totalorder %s28, 7
    %p396 = por %p394, %p395
    %p397 = scmp.ne.s32.totalorder %s386, %s387
    %p398 = scmp.eq.s32.totalorder %s28, 0
    %p399 = por %p397, %p398
    %p400 = scmp.ne.s32.totalorder %s386, %s387
    %p401 = scmp.eq.s32.totalorder %s29, 7
    %p402 = por %p400, %p401
    %p404 = scmp.ne.s32.totalorder %s387, %s403
    %p405 = scmp.eq.s32.totalorder %s29, 0
    %p406 = por %p404, %p405
    %s407 = ssub.s32 %s31, %s38
    %p408 = scmp.eq.s32.totalorder %s407, 0
    %s410 = sadd.s32 %s409, 1
    %s411 = scalar_select %p408, %s409, %s410
    %p414 = pneg %p408
    %p415 = scmp.eq.s32.totalorder %s23, 7
    %p416 = por %p414, %p415
    %p417 = scmp.ne.s32.totalorder %s409, %s412
    %p418 = scmp.eq.s32.totalorder %s23, 0
    %p419 = por %p417, %p418
    %p420 = scmp.ne.s32.totalorder %s409, %s412
    %p421 = scmp.eq.s32.totalorder %s28, 7
    %p422 = por %p420, %p421
    %p423 = scmp.ne.s32.totalorder %s412, %s413
    %p424 = scmp.eq.s32.totalorder %s28, 0
    %p425 = por %p423, %p424
    %p426 = scmp.ne.s32.totalorder %s412, %s413
    %p427 = scmp.eq.s32.totalorder %s29, 7
    %p428 = por %p426, %p427
    %p430 = scmp.ne.s32.totalorder %s413, %s429
    %p431 = scmp.eq.s32.totalorder %s29, 0
    %p432 = por %p430, %p431
    %s433 = ssub.s32 %s31, %s38
    %p434 = scmp.eq.s32.totalorder %s433, 0
    %s436 = sadd.s32 %s435, 1
    %s437 = scalar_select %p434, %s435, %s436
    %p440 = pneg %p434
    %p441 = scmp.eq.s32.totalorder %s23, 7
    %p442 = por %p440, %p441
    %p443 = scmp.ne.s32.totalorder %s435, %s438
    %p444 = scmp.eq.s32.totalorder %s23, 0
    %p445 = por %p443, %p444
    %p446 = scmp.ne.s32.totalorder %s435, %s438
    %p447 = scmp.eq.s32.totalorder %s28, 7
    %p448 = por %p446, %p447
    %p449 = scmp.ne.s32.totalorder %s438, %s439
    %p450 = scmp.eq.s32.totalorder %s28, 0
    %p451 = por %p449, %p450
    %p452 = scmp.ne.s32.totalorder %s438, %s439
    %p453 = scmp.eq.s32.totalorder %s29, 7
    %p454 = por %p452, %p453
    %p456 = scmp.ne.s32.totalorder %s439, %s455
    %p457 = scmp.eq.s32.totalorder %s29, 0
    %p458 = por %p456, %p457
    %s459 = ssub.s32 %s31, %s38
    %p460 = scmp.eq.s32.totalorder %s459, 0
    %s462 = sadd.s32 %s461, 1
    %s463 = scalar_select %p460, %s461, %s462
    %p466 = pneg %p460
    %p467 = scmp.eq.s32.totalorder %s23, 7
    %p468 = por %p466, %p467
    %p469 = scmp.ne.s32.totalorder %s461, %s464
    %p470 = scmp.eq.s32.totalorder %s23, 0
    %p471 = por %p469, %p470
    %p472 = scmp.ne.s32.totalorder %s461, %s464
    %p473 = scmp.eq.s32.totalorder %s28, 7
    %p474 = por %p472, %p473
    %p475 = scmp.ne.s32.totalorder %s464, %s465
    %p476 = scmp.eq.s32.totalorder %s28, 0
    %p477 = por %p475, %p476
    %p478 = scmp.ne.s32.totalorder %s464, %s465
    %p479 = scmp.eq.s32.totalorder %s29, 7
    %p480 = por %p478, %p479
    %p482 = scmp.ne.s32.totalorder %s465, %s481
    %p483 = scmp.eq.s32.totalorder %s29, 0
    %p484 = por %p482, %p483
    %s485 = ssub.s32 %s30, %s42
    %p486 = scmp.eq.s32.totalorder %s485, 0
    %s488 = sadd.s32 %s487, 1
    %s489 = scalar_select %p486, %s487, %s488
    %p492 = pneg %p486
    %p493 = scmp.eq.s32.totalorder %s23, 7
    %p494 = por %p492, %p493
    %p495 = scmp.ne.s32.totalorder %s487, %s490
    %p496 = scmp.eq.s32.totalorder %s23, 0
    %p497 = por %p495, %p496
    %p498 = scmp.ne.s32.totalorder %s487, %s490
    %p499 = scmp.eq.s32.totalorder %s28, 7
    %p500 = por %p498, %p499
    %p501 = scmp.ne.s32.totalorder %s490, %s491
    %p502 = scmp.eq.s32.totalorder %s28, 0
    %p503 = por %p501, %p502
    %p504 = scmp.ne.s32.totalorder %s490, %s491
    %p505 = scmp.eq.s32.totalorder %s29, 7
    %p506 = por %p504, %p505
    %p508 = scmp.ne.s32.totalorder %s491, %s507
    %p509 = scmp.eq.s32.totalorder %s29, 0
    %p510 = por %p508, %p509
    %p511 = scmp.le.s32.totalorder 1, %s23
    %p512 = scmp.lt.s32.totalorder %s23, 9
    %p513 = pnand %p511, %p512
    %p514 = pneg %p513
    // Predicated region
    $region9: #{adabins_forward.5} parent=5 // pred_check
      _
    $region10: #{adabins_forward.5} parent=5 // pred_check_branch
      %516 = sbr.rel (%p513) target = $region12
    $region11: #{adabins_forward.5} parent=5 // pred_region
      %s517 = ssub.s32 %s23, 1
    $region12: #{adabins_forward.5} parent=5 // pred_fallthru
      _
    %p518 = scmp.lt.s32.totalorder %s23, 8
    // Predicated region
    $region13: #{adabins_forward.5} parent=5 // pred_check
      %p519 = pneg %p518
    $region14: #{adabins_forward.5} parent=5 // pred_check_branch
      %521 = sbr.rel (%p519) target = $region16
    $region15: #{adabins_forward.5} parent=5 // pred_region
      // Predicated region
      $region17: #{adabins_forward.5} parent=15 // pred_check
        %p522 = pneg %p55
      $region18: #{adabins_forward.5} parent=15 // pred_check_branch
        %524 = sbr.rel (%p522) target = $region20
      $region19: #{adabins_forward.5} parent=15 // pred_region
        %p525 = scmp.lt.s32.totalorder %s30, 1
        %s526 = scalar_select %p525, %s30, 1
        %s527 = smul.addr %s526, 8
        %s528 = smul.addr %s527, 8
        %s529 = scalar_lea.vmem %s0, %s528
      $region20: #{adabins_forward.5} parent=15 // pred_fallthru
        _
      // Predicated region
      $region21: #{adabins_forward.5} parent=15 // pred_check
        %p530 = pneg %p81
      $region22: #{adabins_forward.5} parent=15 // pred_check_branch
        %532 = sbr.rel (%p530) target = $region24
      $region23: #{adabins_forward.5} parent=15 // pred_region
        %p533 = scmp.lt.s32.totalorder %s31, 3
        %s534 = scalar_select %p533, %s31, 3
        %s535 = smul.addr %s534, 16
        %s536 = smul.addr %s535, 8
        %s537 = scalar_lea.vmem %s1, %s536
      $region24: #{adabins_forward.5} parent=15 // pred_fallthru
        _
      // Predicated region
      $region25: #{adabins_forward.5} parent=15 // pred_check
        %p538 = pneg %p107
      $region26: #{adabins_forward.5} parent=15 // pred_check_branch
        %540 = sbr.rel (%p538) target = $region28
      $region27: #{adabins_forward.5} parent=15 // pred_region
        %p541 = scmp.lt.s32.totalorder %s31, 3
        %s542 = scalar_select %p541, %s31, 3
        %s543 = smul.addr %s542, 16
        %s544 = smul.addr %s543, 8
        %s545 = scalar_lea.vmem %s2, %s544
      $region28: #{adabins_forward.5} parent=15 // pred_fallthru
        _
      // Predicated region
      $region29: #{adabins_forward.5} parent=15 // pred_check
        %p546 = pneg %p133
      $region30: #{adabins_forward.5} parent=15 // pred_check_branch
        %548 = sbr.rel (%p546) target = $region32
      $region31: #{adabins_forward.5} parent=15 // pred_region
        %p549 = scmp.lt.s32.totalorder %s31, 3
        %s550 = scalar_select %p549, %s31, 3
        %s551 = smul.addr %s550, 16
        %s552 = smul.addr %s551, 8
        %s553 = scalar_lea.vmem %s3, %s552
      $region32: #{adabins_forward.5} parent=15 // pred_fallthru
        _
      // Predicated region
      $region33: #{adabins_forward.5} parent=15 // pred_check
        %p554 = pneg %p159
      $region34: #{adabins_forward.5} parent=15 // pred_check_branch
        %556 = sbr.rel (%p554) target = $region36
      $region35: #{adabins_forward.5} parent=15 // pred_region
        %p557 = scmp.lt.s32.totalorder %s31, 3
        %s558 = scalar_select %p557, %s31, 3
        %s559 = smul.addr %s558, 4
        %s560 = scalar_lea.vmem %s4, %s559
      $region36: #{adabins_forward.5} parent=15 // pred_fallthru
        _
      // Predicated region
      $region37: #{adabins_forward.5} parent=15 // pred_check
        %p561 = pneg %p185
      $region38: #{adabins_forward.5} parent=15 // pred_check_branch
        %563 = sbr.rel (%p561) target = $region40
      $region39: #{adabins_forward.5} parent=15 // pred_region
        %p564 = scmp.lt.s32.totalorder %s31, 3
        %s565 = scalar_select %p564, %s31, 3
        %s566 = smul.addr %s565, 4
        %s567 = scalar_lea.vmem %s5, %s566
      $region40: #{adabins_forward.5} parent=15 // pred_fallthru
        _
      // Predicated region
      $region41: #{adabins_forward.5} parent=15 // pred_check
        %p568 = pneg %p211
      $region42: #{adabins_forward.5} parent=15 // pred_check_branch
        %570 = sbr.rel (%p568) target = $region44
      $region43: #{adabins_forward.5} parent=15 // pred_region
        %p571 = scmp.lt.s32.totalorder %s31, 3
        %s572 = scalar_select %p571, %s31, 3
        %s573 = smul.addr %s572, 4
        %s574 = scalar_lea.vmem %s6, %s573
      $region44: #{adabins_forward.5} parent=15 // pred_fallthru
        _
      // Predicated region
      $region45: #{adabins_forward.5} parent=15 // pred_check
        %p575 = pneg %p237
      $region46: #{adabins_forward.5} parent=15 // pred_check_branch
        %577 = sbr.rel (%p575) target = $region48
      $region47: #{adabins_forward.5} parent=15 // pred_region
        %p578 = scmp.lt.s32.totalorder %s31, 3
        %s579 = scalar_select %p578, %s31, 3
        %s580 = smul.addr %s579, 4
        %s581 = smul.addr %s580, 8
        %s582 = scalar_lea.vmem %s7, %s581
      $region48: #{adabins_forward.5} parent=15 // pred_fallthru
        _
      // Predicated region
      $region49: #{adabins_forward.5} parent=15 // pred_check
        %p583 = pneg %p263
      $region50: #{adabins_forward.5} parent=15 // pred_check_branch
        %585 = sbr.rel (%p583) target = $region52
      $region51: #{adabins_forward.5} parent=15 // pred_region
        %p586 = scmp.lt.s32.totalorder %s31, 3
        %s587 = scalar_select %p586, %s31, 3
        %s588 = scalar_lea.vmem %s8, %s587
      $region52: #{adabins_forward.5} parent=15 // pred_fallthru
        _
      // Predicated region
      $region53: #{adabins_forward.5} parent=15 // pred_check
        %p589 = pneg %p289
      $region54: #{adabins_forward.5} parent=15 // pred_check_branch
        %591 = sbr.rel (%p589) target = $region56
      $region55: #{adabins_forward.5} parent=15 // pred_region
        %p592 = scmp.lt.s32.totalorder %s31, 3
        %s593 = scalar_select %p592, %s31, 3
        %s594 = scalar_lea.vmem %s9, %s593
      $region56: #{adabins_forward.5} parent=15 // pred_fallthru
        _
      // Predicated region
      $region57: #{adabins_forward.5} parent=15 // pred_check
        %p595 = pneg %p315
      $region58: #{adabins_forward.5} parent=15 // pred_check_branch
        %597 = sbr.rel (%p595) target = $region60
      $region59: #{adabins_forward.5} parent=15 // pred_region
        %p598 = scmp.lt.s32.totalorder %s31, 3
        %s599 = scalar_select %p598, %s31, 3
        %s600 = scalar_lea.vmem %s10, %s599
      $region60: #{adabins_forward.5} parent=15 // pred_fallthru
        _
      // Predicated region
      $region61: #{adabins_forward.5} parent=15 // pred_check
        %p601 = pneg %p341
      $region62: #{adabins_forward.5} parent=15 // pred_check_branch
        %603 = sbr.rel (%p601) target = $region64
      $region63: #{adabins_forward.5} parent=15 // pred_region
        %p604 = scmp.lt.s32.totalorder %s31, 3
        %s605 = scalar_select %p604, %s31, 3
        %s606 = smul.addr %s605, 32
        %s607 = smul.addr %s606, 4
        %s608 = scalar_lea.vmem %s11, %s607
      $region64: #{adabins_forward.5} parent=15 // pred_fallthru
        _
      // Predicated region
      $region65: #{adabins_forward.5} parent=15 // pred_check
        %p609 = pneg %p367
      $region66: #{adabins_forward.5} parent=15 // pred_check_branch
        %611 = sbr.rel (%p609) target = $region68
      $region67: #{adabins_forward.5} parent=15 // pred_region
        %p612 = scmp.lt.s32.totalorder %s31, 3
        %s613 = scalar_select %p612, %s31, 3
        %s614 = smul.addr %s613, 8
        %s615 = scalar_lea.vmem %s12, %s614
      $region68: #{adabins_forward.5} parent=15 // pred_fallthru
        _
      // Predicated region
      $region69: #{adabins_forward.5} parent=15 // pred_check
        %p616 = pneg %p393
      $region70: #{adabins_forward.5} parent=15 // pred_check_branch
        %618 = sbr.rel (%p616) target = $region72
      $region71: #{adabins_forward.5} parent=15 // pred_region
        %p619 = scmp.lt.s32.totalorder %s31, 3
        %s620 = scalar_select %p619, %s31, 3
        %s621 = smul.addr %s620, 128
        %s622 = smul.addr %s621, 4
        %s623 = scalar_lea.vmem %s13, %s622
      $region72: #{adabins_forward.5} parent=15 // pred_fallthru
        _
      // Predicated region
      $region73: #{adabins_forward.5} parent=15 // pred_check
        %p624 = pneg %p419
      $region74: #{adabins_forward.5} parent=15 // pred_check_branch
        %626 = sbr.rel (%p624) target = $region76
      $region75: #{adabins_forward.5} parent=15 // pred_region
        %p627 = scmp.lt.s32.totalorder %s31, 3
        %s628 = scalar_select %p627, %s31, 3
        %s629 = scalar_lea.vmem %s14, %s628
      $region76: #{adabins_forward.5} parent=15 // pred_fallthru
        _
      // Predicated region
      $region77: #{adabins_forward.5} parent=15 // pred_check
        %p630 = pneg %p445
      $region78: #{adabins_forward.5} parent=15 // pred_check_branch
        %632 = sbr.rel (%p630) target = $region80
      $region79: #{adabins_forward.5} parent=15 // pred_region
        %p633 = scmp.lt.s32.totalorder %s31, 3
        %s634 = scalar_select %p633, %s31, 3
        %s635 = scalar_lea.vmem %s15, %s634
      $region80: #{adabins_forward.5} parent=15 // pred_fallthru
        _
      // Predicated region
      $region81: #{adabins_forward.5} parent=15 // pred_check
        %p636 = pneg %p471
      $region82: #{adabins_forward.5} parent=15 // pred_check_branch
        %638 = sbr.rel (%p636) target = $region84
      $region83: #{adabins_forward.5} parent=15 // pred_region
        %p639 = scmp.lt.s32.totalorder %s31, 3
        %s640 = scalar_select %p639, %s31, 3
        %s641 = scalar_lea.vmem %s16, %s640
      $region84: #{adabins_forward.5} parent=15 // pred_fallthru
        _
    $region16: #{adabins_forward.5} parent=5 // pred_fallthru
      _
    %p642 = scmp.le.s32.totalorder 1, %s23
    %p643 = scmp.lt.s32.totalorder %s23, 9
    %p644 = pnand %p642, %p643
    %p645 = pneg %p644
    // Predicated region
    $region85: #{adabins_forward.5} parent=5 // pred_check
      _
    $region86: #{adabins_forward.5} parent=5 // pred_check_branch
      %647 = sbr.rel (%p644) target = $region88
    $region87: #{adabins_forward.5} parent=5 // pred_region
      %s648 = ssub.s32 %s23, 1
      %p649 = scmp.lt.s32.totalorder %s32, 1
      %s650 = scalar_select %p649, %s32, 1
      %s651 = smul.addr %s650, 8
      %s652 = smul.addr %s651, 8
      %s653 = scalar_lea.vmem %s0, %s652
      %p654 = pneg %p61
      %p655 = pneg %p58
      %p656 = scmp.lt.s32.totalorder %s33, 3
      %s657 = scalar_select %p656, %s33, 3
      %s658 = smul.addr %s657, 16
      %s659 = smul.addr %s658, 8
      %s660 = scalar_lea.vmem %s1, %s659
      %p661 = pneg %p87
      %p662 = pneg %p84
      %p663 = scmp.lt.s32.totalorder %s33, 3
      %s664 = scalar_select %p663, %s33, 3
      %s665 = smul.addr %s664, 16
      %s666 = smul.addr %s665, 8
      %s667 = scalar_lea.vmem %s2, %s666
      %p668 = pneg %p113
      %p669 = pneg %p110
      %p670 = scmp.lt.s32.totalorder %s33, 3
      %s671 = scalar_select %p670, %s33, 3
      %s672 = smul.addr %s671, 16
      %s673 = smul.addr %s672, 8
      %s674 = scalar_lea.vmem %s3, %s673
      %p675 = pneg %p139
      %p676 = pneg %p136
      %p677 = scmp.lt.s32.totalorder %s33, 3
      %s678 = scalar_select %p677, %s33, 3
      %s679 = smul.addr %s678, 4
      %s680 = scalar_lea.vmem %s4, %s679
      %p681 = pneg %p165
      %p682 = pneg %p162
      %p683 = scmp.lt.s32.totalorder %s33, 3
      %s684 = scalar_select %p683, %s33, 3
      %s685 = smul.addr %s684, 4
      %s686 = scalar_lea.vmem %s5, %s685
      %p687 = pneg %p191
      %p688 = pneg %p188
      %p689 = scmp.lt.s32.totalorder %s33, 3
      %s690 = scalar_select %p689, %s33, 3
      %s691 = smul.addr %s690, 4
      %s692 = scalar_lea.vmem %s6, %s691
      %p693 = pneg %p217
      %p694 = pneg %p214
      %p695 = scmp.lt.s32.totalorder %s33, 3
      %s696 = scalar_select %p695, %s33, 3
      %s697 = smul.addr %s696, 4
      %s698 = smul.addr %s697, 8
      %s699 = scalar_lea.vmem %s7, %s698
      %p700 = pneg %p243
      %p701 = pneg %p240
      %p702 = scmp.lt.s32.totalorder %s33, 3
      %s703 = scalar_select %p702, %s33, 3
      %s704 = scalar_lea.vmem %s8, %s703
      %p705 = pneg %p269
      %p706 = pneg %p266
      %p707 = scmp.lt.s32.totalorder %s33, 3
      %s708 = scalar_select %p707, %s33, 3
      %s709 = scalar_lea.vmem %s9, %s708
      %p710 = pneg %p295
      %p711 = pneg %p292
      %p712 = scmp.lt.s32.totalorder %s33, 3
      %s713 = scalar_select %p712, %s33, 3
      %s714 = scalar_lea.vmem %s10, %s713
      %p715 = pneg %p321
      %p716 = pneg %p318
      %p717 = scmp.lt.s32.totalorder %s33, 3
      %s718 = scalar_select %p717, %s33, 3
      %s719 = smul.addr %s718, 32
      %s720 = smul.addr %s719, 4
      %s721 = scalar_lea.vmem %s11, %s720
      %p722 = pneg %p347
      %p723 = pneg %p344
      %p724 = scmp.lt.s32.totalorder %s33, 3
      %s725 = scalar_select %p724, %s33, 3
      %s726 = smul.addr %s725, 8
      %s727 = scalar_lea.vmem %s12, %s726
      %p728 = pneg %p373
      %p729 = pneg %p370
      %p730 = scmp.lt.s32.totalorder %s33, 3
      %s731 = scalar_select %p730, %s33, 3
      %s732 = smul.addr %s731, 128
      %s733 = smul.addr %s732, 4
      %s734 = scalar_lea.vmem %s13, %s733
      %p735 = pneg %p399
      %p736 = pneg %p396
      %p737 = scmp.lt.s32.totalorder %s33, 3
      %s738 = scalar_select %p737, %s33, 3
      %s739 = scalar_lea.vmem %s14, %s738
      %p740 = pneg %p425
      %p741 = pneg %p422
      %p742 = scmp.lt.s32.totalorder %s33, 3
      %s743 = scalar_select %p742, %s33, 3
      %s744 = scalar_lea.vmem %s15, %s743
      %p745 = pneg %p451
      %p746 = pneg %p448
      %p747 = scmp.lt.s32.totalorder %s33, 3
      %s748 = scalar_select %p747, %s33, 3
      %s749 = scalar_lea.vmem %s16, %s748
      %p750 = pneg %p477
      %p751 = pneg %p474
      %p752 = pneg %p503
      %p753 = pneg %p500
      %p754 = scmp.lt.s32.totalorder %s32, 1
      %s755 = scalar_select %p754, %s32, 1
      %s756 = smul.addr %s755, 8
      %s757 = smul.addr %s756, 8
      %s758 = scalar_lea.vmem %s17, %s757
      %p759 = scmp.lt.s32.totalorder %s32, 1
      %s760 = scalar_select %p759, %s32, 1
      %s761 = smul.addr %s760, 8
      %s762 = smul.addr %s761, 8
      %s763 = scalar_lea.vmem %s0, %s762
      %p764 = scmp.lt.s32.totalorder %s33, 3
      %s765 = scalar_select %p764, %s33, 3
      %s766 = smul.addr %s765, 16
      %s767 = smul.addr %s766, 8
      %s768 = scalar_lea.vmem %s1, %s767
      %p769 = scmp.lt.s32.totalorder %s33, 3
      %s770 = scalar_select %p769, %s33, 3
      %s771 = smul.addr %s770, 16
      %s772 = smul.addr %s771, 8
      %s773 = scalar_lea.vmem %s2, %s772
      %p774 = scmp.lt.s32.totalorder %s33, 3
      %s775 = scalar_select %p774, %s33, 3
      %s776 = smul.addr %s775, 16
      %s777 = smul.addr %s776, 8
      %s778 = scalar_lea.vmem %s3, %s777
      %p779 = scmp.lt.s32.totalorder %s33, 3
      %s780 = scalar_select %p779, %s33, 3
      %s781 = smul.addr %s780, 4
      %s782 = scalar_lea.vmem %s4, %s781
      %p783 = scmp.lt.s32.totalorder %s33, 3
      %s784 = scalar_select %p783, %s33, 3
      %s785 = smul.addr %s784, 4
      %s786 = scalar_lea.vmem %s5, %s785
      %p787 = scmp.lt.s32.totalorder %s33, 3
      %s788 = scalar_select %p787, %s33, 3
      %s789 = smul.addr %s788, 4
      %s790 = scalar_lea.vmem %s6, %s789
      %p791 = scmp.lt.s32.totalorder %s33, 3
      %s792 = scalar_select %p791, %s33, 3
      %s793 = smul.addr %s792, 4
      %s794 = smul.addr %s793, 8
      %s795 = scalar_lea.vmem %s7, %s794
      %p796 = scmp.lt.s32.totalorder %s33, 3
      %s797 = scalar_select %p796, %s33, 3
      %s798 = scalar_lea.vmem %s8, %s797
      %p799 = scmp.lt.s32.totalorder %s33, 3
      %s800 = scalar_select %p799, %s33, 3
      %s801 = scalar_lea.vmem %s9, %s800
      %p802 = scmp.lt.s32.totalorder %s33, 3
      %s803 = scalar_select %p802, %s33, 3
      %s804 = scalar_lea.vmem %s10, %s803
      %p805 = scmp.lt.s32.totalorder %s33, 3
      %s806 = scalar_select %p805, %s33, 3
      %s807 = smul.addr %s806, 32
      %s808 = smul.addr %s807, 4
      %s809 = scalar_lea.vmem %s11, %s808
      %p810 = scmp.lt.s32.totalorder %s33, 3
      %s811 = scalar_select %p810, %s33, 3
      %s812 = smul.addr %s811, 8
      %s813 = scalar_lea.vmem %s12, %s812
      %p814 = scmp.lt.s32.totalorder %s33, 3
      %s815 = scalar_select %p814, %s33, 3
      %s816 = smul.addr %s815, 128
      %s817 = smul.addr %s816, 4
      %s818 = scalar_lea.vmem %s13, %s817
      %p819 = scmp.lt.s32.totalorder %s33, 3
      %s820 = scalar_select %p819, %s33, 3
      %s821 = scalar_lea.vmem %s14, %s820
      %p822 = scmp.lt.s32.totalorder %s33, 3
      %s823 = scalar_select %p822, %s33, 3
      %s824 = scalar_lea.vmem %s15, %s823
      %p825 = scmp.lt.s32.totalorder %s33, 3
      %s826 = scalar_select %p825, %s33, 3
      %s827 = scalar_lea.vmem %s16, %s826
      %p828 = scmp.lt.s32.totalorder %s32, 1
      %s829 = scalar_select %p828, %s32, 1
      %s830 = smul.addr %s829, 8
      %s831 = smul.addr %s830, 8
      %s832 = scalar_lea.vmem %s17, %s831
      %p834 = scmp.eq.s32.totalorder %s33, 0
      // Predicated region
      $region89: #{adabins_forward.5} parent=87 // pred_check
        %p835 = pneg %p834
      $region90: #{adabins_forward.5} parent=87 // pred_check_branch
        %837 = sbr.rel (%p835) target = $region92
      $region91: #{adabins_forward.5} parent=87 // pred_region
        %v838 = vld [vmem:[%s763] sm:$0xff]
        %v839 = vld [vmem:[%s763 + $0x8] sm:$0xff]
        %v840 = vld [vmem:[%s763 + $0x10] sm:$0xff]
        %v841 = vld [vmem:[%s763 + $0x18] sm:$0xff]
        %v842 = vld [vmem:[%s763 + $0x20] sm:$0xff]
        %v843 = vld [vmem:[%s763 + $0x28] sm:$0xff]
        %v844 = vld [vmem:[%s763 + $0x30] sm:$0xff]
        %v845 = vld [vmem:[%s763 + $0x38] sm:$0xff]
        %vm846 = vcmask 261120
        %847 = vst.msk [vmem:[%s832] sm:$0xff] %vm846, %v838
        %848 = vst.msk [vmem:[%s832 + $0x8] sm:$0xff] %vm846, %v839
        %849 = vst.msk [vmem:[%s832 + $0x10] sm:$0xff] %vm846, %v840
        %850 = vst.msk [vmem:[%s832 + $0x18] sm:$0xff] %vm846, %v841
        %851 = vst.msk [vmem:[%s832 + $0x20] sm:$0xff] %vm846, %v842
        %852 = vst.msk [vmem:[%s832 + $0x28] sm:$0xff] %vm846, %v843
        %853 = vst.msk [vmem:[%s832 + $0x30] sm:$0xff] %vm846, %v844
        %854 = vst.msk [vmem:[%s832 + $0x38] sm:$0xff] %vm846, %v845
      $region92: #{adabins_forward.5} parent=87 // pred_fallthru
        _
      %v855 = vld [vmem:[%s832] sm:$0xff]
      %v856 = vld [vmem:[%s832 + $0x8] sm:$0xff]
      %v857 = vld [vmem:[%s832 + $0x10] sm:$0xff]
      %v858 = vld [vmem:[%s832 + $0x18] sm:$0xff]
      %v859 = vld [vmem:[%s832 + $0x20] sm:$0xff]
      %v860 = vld [vmem:[%s832 + $0x28] sm:$0xff]
      %v861 = vld [vmem:[%s832 + $0x30] sm:$0xff]
      %v862 = vld [vmem:[%s832 + $0x38] sm:$0xff]
      %v863 = vld [vmem:[%s768] sm:$0xff]
      %v864 = vld [vmem:[%s768 + $0x8] sm:$0xff]
      %v865 = vld [vmem:[%s768 + $0x10] sm:$0xff]
      %v866 = vld [vmem:[%s768 + $0x18] sm:$0xff]
      %v867 = vld [vmem:[%s782] sm:$0x1]
      %v869 = vperm.slane %v867, 0
      %vm871 = vcmask 261120
      %v873 = vsel %vm871, %v855, 0
      %v876 = vsel %vm871, %v856, 0
      %v879 = vsel %vm871, %v857, 0
      %v882 = vsel %vm871, %v858, 0
      %v885 = vsel %vm871, %v859, 0
      %v888 = vsel %vm871, %v860, 0
      %v891 = vsel %vm871, %v861, 0
      %v894 = vsel %vm871, %v862, 0
      %896 = vmatpush.msra.mxu0 0.0
      %897 = vmatpush.msra.mxu0 0.0
      %898 = vmatpush.msra.mxu0 0.0
      %899 = vmatpush.msra.mxu0 0.0
      %900 = vmatpush.msra.mxu0 0.0
      %901 = vmatpush.msra.mxu0 0.0
      %902 = vmatpush.msra.mxu0 0.0
      %903 = vmatpush.msra.mxu0 0.0
      %904 = vmatpush.msra.mxu0 0.0
      %905 = vmatpush.msra.mxu0 0.0
      %906 = vmatpush.msra.mxu0 0.0
      %907 = vmatpush.msra.mxu0 0.0
      %908 = vmatpush.msra.mxu0 %v866
      %909 = vmatpush.msra.mxu0 %v865
      %910 = vmatpush.msra.mxu0 %v864
      %911 = vmatpush.msra.mxu0 %v863
      %912 = vmatmul.f32.gmra.mxu0 %v873
      %v913 = vpop.f32.mrf.mxu0
      %v914 = vadd.f32 %v869, %v913
      %915 = vmatmul.f32.gmra.mxu0 %v876
      %v916 = vpop.f32.mrf.mxu0
      %v917 = vadd.f32 %v869, %v916
      %918 = vmatmul.f32.gmra.mxu0 %v879
      %v919 = vpop.f32.mrf.mxu0
      %v920 = vadd.f32 %v869, %v919
      %921 = vmatmul.f32.gmra.mxu0 %v882
      %v922 = vpop.f32.mrf.mxu0
      %v923 = vadd.f32 %v869, %v922
      %924 = vmatmul.f32.gmra.mxu0 %v885
      %v925 = vpop.f32.mrf.mxu0
      %v926 = vadd.f32 %v869, %v925
      %927 = vmatmul.f32.gmra.mxu0 %v888
      %v928 = vpop.f32.mrf.mxu0
      %v929 = vadd.f32 %v869, %v928
      %930 = vmatmul.f32.gmra.mxu0 %v891
      %v931 = vpop.f32.mrf.mxu0
      %v932 = vadd.f32 %v869, %v931
      %933 = vmatmul.f32.gmra.mxu0 %v894
      %v934 = vpop.f32.mrf.mxu0
      %v935 = vadd.f32 %v869, %v934
      %936 = vdwg.mxu0
      %v937 = vld [vmem:[%s773] sm:$0xff]
      %v938 = vld [vmem:[%s773 + $0x8] sm:$0xff]
      %v939 = vld [vmem:[%s773 + $0x10] sm:$0xff]
      %v940 = vld [vmem:[%s773 + $0x18] sm:$0xff]
      %v941 = vld [vmem:[%s786] sm:$0x1]
      %v943 = vperm.slane %v941, 0
      %945 = vmatpush.msra.mxu0 0.0
      %946 = vmatpush.msra.mxu0 0.0
      %947 = vmatpush.msra.mxu0 0.0
      %948 = vmatpush.msra.mxu0 0.0
      %949 = vmatpush.msra.mxu0 0.0
      %950 = vmatpush.msra.mxu0 0.0
      %951 = vmatpush.msra.mxu0 0.0
      %952 = vmatpush.msra.mxu0 0.0
      %953 = vmatpush.msra.mxu0 0.0
      %954 = vmatpush.msra.mxu0 0.0
      %955 = vmatpush.msra.mxu0 0.0
      %956 = vmatpush.msra.mxu0 0.0
      %957 = vmatpush.msra.mxu0 %v940
      %958 = vmatpush.msra.mxu0 %v939
      %959 = vmatpush.msra.mxu0 %v938
      %960 = vmatpush.msra.mxu0 %v937
      %961 = vmatmul.f32.gmra.mxu0 %v873
      %v962 = vpop.f32.mrf.mxu0
      %v963 = vadd.f32 %v943, %v962
      %964 = vmatmul.f32.gmra.mxu0 %v876
      %v965 = vpop.f32.mrf.mxu0
      %v966 = vadd.f32 %v943, %v965
      %967 = vmatmul.f32.gmra.mxu0 %v879
      %v968 = vpop.f32.mrf.mxu0
      %v969 = vadd.f32 %v943, %v968
      %970 = vmatmul.f32.gmra.mxu0 %v882
      %v971 = vpop.f32.mrf.mxu0
      %v972 = vadd.f32 %v943, %v971
      %973 = vmatmul.f32.gmra.mxu0 %v885
      %v974 = vpop.f32.mrf.mxu0
      %v975 = vadd.f32 %v943, %v974
      %976 = vmatmul.f32.gmra.mxu0 %v888
      %v977 = vpop.f32.mrf.mxu0
      %v978 = vadd.f32 %v943, %v977
      %979 = vmatmul.f32.gmra.mxu0 %v891
      %v980 = vpop.f32.mrf.mxu0
      %v981 = vadd.f32 %v943, %v980
      %982 = vmatmul.f32.gmra.mxu0 %v894
      %v983 = vpop.f32.mrf.mxu0
      %v984 = vadd.f32 %v943, %v983
      %985 = vdwg.mxu0
      %v986 = vld [vmem:[%s778] sm:$0xff]
      %v987 = vld [vmem:[%s778 + $0x8] sm:$0xff]
      %v988 = vld [vmem:[%s778 + $0x10] sm:$0xff]
      %v989 = vld [vmem:[%s778 + $0x18] sm:$0xff]
      %v990 = vld [vmem:[%s790] sm:$0x1]
      %v992 = vperm.slane %v990, 0
      %994 = vmatpush.msra.mxu0 0.0
      %995 = vmatpush.msra.mxu0 0.0
      %996 = vmatpush.msra.mxu0 0.0
      %997 = vmatpush.msra.mxu0 0.0
      %998 = vmatpush.msra.mxu0 0.0
      %999 = vmatpush.msra.mxu0 0.0
      %1000 = vmatpush.msra.mxu0 0.0
      %1001 = vmatpush.msra.mxu0 0.0
      %1002 = vmatpush.msra.mxu0 0.0
      %1003 = vmatpush.msra.mxu0 0.0
      %1004 = vmatpush.msra.mxu0 0.0
      %1005 = vmatpush.msra.mxu0 0.0
      %1006 = vmatpush.msra.mxu0 %v989
      %1007 = vmatpush.msra.mxu0 %v988
      %1008 = vmatpush.msra.mxu0 %v987
      %1009 = vmatpush.msra.mxu0 %v986
      %1010 = vmatmul.f32.gmra.mxu0 %v873
      %v1011 = vpop.f32.mrf.mxu0
      %v1012 = vadd.f32 %v992, %v1011
      %1013 = vmatmul.f32.gmra.mxu0 %v876
      %v1014 = vpop.f32.mrf.mxu0
      %v1015 = vadd.f32 %v992, %v1014
      %1016 = vmatmul.f32.gmra.mxu0 %v879
      %v1017 = vpop.f32.mrf.mxu0
      %v1018 = vadd.f32 %v992, %v1017
      %1019 = vmatmul.f32.gmra.mxu0 %v882
      %v1020 = vpop.f32.mrf.mxu0
      %v1021 = vadd.f32 %v992, %v1020
      %1022 = vmatmul.f32.gmra.mxu0 %v885
      %v1023 = vpop.f32.mrf.mxu0
      %v1024 = vadd.f32 %v992, %v1023
      %1025 = vmatmul.f32.gmra.mxu0 %v888
      %v1026 = vpop.f32.mrf.mxu0
      %v1027 = vadd.f32 %v992, %v1026
      %1028 = vmatmul.f32.gmra.mxu0 %v891
      %v1029 = vpop.f32.mrf.mxu0
      %v1030 = vadd.f32 %v992, %v1029
      %1031 = vmatmul.f32.gmra.mxu0 %v894
      %v1032 = vpop.f32.mrf.mxu0
      %v1033 = vadd.f32 %v992, %v1032
      %1034 = vdwg.mxu0
      %vm1035 = vcmask 64512
      %v1037 = vsel %vm1035, %v914, 0
      %v1040 = vsel %vm1035, %v917, 0
      %v1043 = vsel %vm1035, %v920, 0
      %v1046 = vsel %vm1035, %v923, 0
      %v1049 = vsel %vm1035, %v926, 0
      %v1052 = vsel %vm1035, %v929, 0
      %v1055 = vsel %vm1035, %v932, 0
      %v1058 = vsel %vm1035, %v935, 0
      %v1061 = vsel %vm1035, %v963, 0
      %v1064 = vsel %vm1035, %v966, 0
      %v1067 = vsel %vm1035, %v969, 0
      %v1070 = vsel %vm1035, %v972, 0
      %v1073 = vsel %vm1035, %v975, 0
      %v1076 = vsel %vm1035, %v978, 0
      %v1079 = vsel %vm1035, %v981, 0
      %v1082 = vsel %vm1035, %v984, 0
      %1084 = vmatpush.xpose.msra.mxu0 0.0
      %1085 = vmatpush.xpose.msra.mxu0 0.0
      %1086 = vmatpush.xpose.msra.mxu0 0.0
      %1087 = vmatpush.xpose.msra.mxu0 0.0
      %1088 = vmatpush.xpose.msra.mxu0 0.0
      %1089 = vmatpush.xpose.msra.mxu0 0.0
      %1090 = vmatpush.xpose.msra.mxu0 0.0
      %1091 = vmatpush.xpose.msra.mxu0 0.0
      %1092 = vmatpush.xpose.msra.mxu0 %v1082
      %1093 = vmatpush.xpose.msra.mxu0 %v1079
      %1094 = vmatpush.xpose.msra.mxu0 %v1076
      %1095 = vmatpush.xpose.msra.mxu0 %v1073
      %1096 = vmatpush.xpose.msra.mxu0 %v1070
      %1097 = vmatpush.xpose.msra.mxu0 %v1067
      %1098 = vmatpush.xpose.msra.mxu0 %v1064
      %1099 = vmatpush.xpose.msra.mxu0 %v1061
      %1100 = vmatmul.f32.gmra.mxu0 %v1037
      %v1101 = vpop.f32.mrf.mxu0
      %v1102 = vadd.f32 0.0, %v1101
      %1103 = vmatmul.f32.gmra.mxu0 %v1040
      %v1104 = vpop.f32.mrf.mxu0
      %v1105 = vadd.f32 0.0, %v1104
      %1106 = vmatmul.f32.gmra.mxu0 %v1043
      %v1107 = vpop.f32.mrf.mxu0
      %v1108 = vadd.f32 0.0, %v1107
      %1109 = vmatmul.f32.gmra.mxu0 %v1046
      %v1110 = vpop.f32.mrf.mxu0
      %v1111 = vadd.f32 0.0, %v1110
      %1112 = vmatmul.f32.gmra.mxu0 %v1049
      %v1113 = vpop.f32.mrf.mxu0
      %v1114 = vadd.f32 0.0, %v1113
      %1115 = vmatmul.f32.gmra.mxu0 %v1052
      %v1116 = vpop.f32.mrf.mxu0
      %v1117 = vadd.f32 0.0, %v1116
      %1118 = vmatmul.f32.gmra.mxu0 %v1055
      %v1119 = vpop.f32.mrf.mxu0
      %v1120 = vadd.f32 0.0, %v1119
      %1121 = vmatmul.f32.gmra.mxu0 %v1058
      %v1122 = vpop.f32.mrf.mxu0
      %v1123 = vadd.f32 0.0, %v1122
      %1124 = vdwg.mxu0
      %v1125 = vmul.f32 %v1102, 0.35355338
      %v1126 = vmul.f32 %v1105, 0.35355338
      %v1127 = vmul.f32 %v1108, 0.35355338
      %v1128 = vmul.f32 %v1111, 0.35355338
      %v1129 = vmul.f32 %v1114, 0.35355338
      %v1130 = vmul.f32 %v1117, 0.35355338
      %v1131 = vmul.f32 %v1120, 0.35355338
      %v1132 = vmul.f32 %v1123, 0.35355338
      %vm1133 = vcmask 523264
      %v1134 = vsel %vm1133, %v1125, -inf
      %1135 = vmax.xlane.f32.xlu0 %v1134
      %v1136 = vpop.xlane.xlu0 %1135
      %v1137 = vsel %vm1133, %v1126, -inf
      %1138 = vmax.xlane.f32.xlu0 %v1137
      %v1139 = vpop.xlane.xlu0 %1138
      %v1140 = vsel %vm1133, %v1127, -inf
      %1141 = vmax.xlane.f32.xlu0 %v1140
      %v1142 = vpop.xlane.xlu0 %1141
      %v1143 = vsel %vm1133, %v1128, -inf
      %1144 = vmax.xlane.f32.xlu0 %v1143
      %v1145 = vpop.xlane.xlu0 %1144
      %v1146 = vsel %vm1133, %v1129, -inf
      %1147 = vmax.xlane.f32.xlu0 %v1146
      %v1148 = vpop.xlane.xlu0 %1147
      %v1149 = vsel %vm1133, %v1130, -inf
      %1150 = vmax.xlane.f32.xlu0 %v1149
      %v1151 = vpop.xlane.xlu0 %1150
      %v1152 = vsel %vm1133, %v1131, -inf
      %1153 = vmax.xlane.f32.xlu0 %v1152
      %v1154 = vpop.xlane.xlu0 %1153
      %v1155 = vsel %vm1133, %v1132, -inf
      %1156 = vmax.xlane.f32.xlu0 %v1155
      %v1157 = vpop.xlane.xlu0 %1156
      %v1158 = vsub.f32 %v1125, %v1136
      %v1159 = vsub.f32 %v1126, %v1139
      %v1160 = vsub.f32 %v1127, %v1142
      %v1161 = vsub.f32 %v1128, %v1145
      %v1162 = vsub.f32 %v1129, %v1148
      %v1163 = vsub.f32 %v1130, %v1151
      %v1164 = vsub.f32 %v1131, %v1154
      %v1165 = vsub.f32 %v1132, %v1157
      %v1166 = vmul.f32 %v1158, 1.442695
      %v1167 = vpow.pop %v1166
      %v1168 = vmul.f32 %v1159, 1.442695
      %v1169 = vpow.pop %v1168
      %v1170 = vmul.f32 %v1160, 1.442695
      %v1171 = vpow.pop %v1170
      %v1172 = vmul.f32 %v1161, 1.442695
      %v1173 = vpow.pop %v1172
      %v1174 = vmul.f32 %v1162, 1.442695
      %v1175 = vpow.pop %v1174
      %v1176 = vmul.f32 %v1163, 1.442695
      %v1177 = vpow.pop %v1176
      %v1178 = vmul.f32 %v1164, 1.442695
      %v1179 = vpow.pop %v1178
      %v1180 = vmul.f32 %v1165, 1.442695
      %v1181 = vpow.pop %v1180
      %v1182 = vsel %vm1133, %v1167, 0.0
      %1183 = vadd.xlane.f32.xlu0 %v1182
      %v1184 = vpop.xlane.xlu0 %1183
      %v1185 = vsel %vm1133, %v1169, 0.0
      %1186 = vadd.xlane.f32.xlu0 %v1185
      %v1187 = vpop.xlane.xlu0 %1186
      %v1188 = vsel %vm1133, %v1171, 0.0
      %1189 = vadd.xlane.f32.xlu0 %v1188
      %v1190 = vpop.xlane.xlu0 %1189
      %v1191 = vsel %vm1133, %v1173, 0.0
      %1192 = vadd.xlane.f32.xlu0 %v1191
      %v1193 = vpop.xlane.xlu0 %1192
      %v1194 = vsel %vm1133, %v1175, 0.0
      %1195 = vadd.xlane.f32.xlu0 %v1194
      %v1196 = vpop.xlane.xlu0 %1195
      %v1197 = vsel %vm1133, %v1177, 0.0
      %1198 = vadd.xlane.f32.xlu0 %v1197
      %v1199 = vpop.xlane.xlu0 %1198
      %v1200 = vsel %vm1133, %v1179, 0.0
      %1201 = vadd.xlane.f32.xlu0 %v1200
      %v1202 = vpop.xlane.xlu0 %1201
      %v1203 = vsel %vm1133, %v1181, 0.0
      %1204 = vadd.xlane.f32.xlu0 %v1203
      %v1205 = vpop.xlane.xlu0 %1204
      %v1206 = vrcp.pop %v1184
      %v1207 = vrcp.pop %v1187
      %v1208 = vrcp.pop %v1190
      %v1209 = vrcp.pop %v1193
      %v1210 = vrcp.pop %v1196
      %v1211 = vrcp.pop %v1199
      %v1212 = vrcp.pop %v1202
      %v1213 = vrcp.pop %v1205
      %v1214 = vmul.f32 %v1167, %v1206
      %v1215 = vmul.f32 %v1169, %v1207
      %v1216 = vmul.f32 %v1171, %v1208
      %v1217 = vmul.f32 %v1173, %v1209
      %v1218 = vmul.f32 %v1175, %v1210
      %v1219 = vmul.f32 %v1177, %v1211
      %v1220 = vmul.f32 %v1179, %v1212
      %v1221 = vmul.f32 %v1181, %v1213
      %v1223 = vsel %vm1133, %v1214, 0
      %v1226 = vsel %vm1133, %v1215, 0
      %v1229 = vsel %vm1133, %v1216, 0
      %v1232 = vsel %vm1133, %v1217, 0
      %v1235 = vsel %vm1133, %v1218, 0
      %v1238 = vsel %vm1133, %v1219, 0
      %v1241 = vsel %vm1133, %v1220, 0
      %v1244 = vsel %vm1133, %v1221, 0
      %1246 = vmatpush.msra.mxu0 0.0
      %1247 = vmatpush.msra.mxu0 0.0
      %1248 = vmatpush.msra.mxu0 0.0
      %1249 = vmatpush.msra.mxu0 0.0
      %1250 = vmatpush.msra.mxu0 0.0
      %1251 = vmatpush.msra.mxu0 0.0
      %1252 = vmatpush.msra.mxu0 0.0
      %1253 = vmatpush.msra.mxu0 0.0
      %1254 = vmatpush.msra.mxu0 %v1033
      %1255 = vmatpush.msra.mxu0 %v1030
      %1256 = vmatpush.msra.mxu0 %v1027
      %1257 = vmatpush.msra.mxu0 %v1024
      %1258 = vmatpush.msra.mxu0 %v1021
      %1259 = vmatpush.msra.mxu0 %v1018
      %1260 = vmatpush.msra.mxu0 %v1015
      %1261 = vmatpush.msra.mxu0 %v1012
      %1262 = vmatmul.f32.gmra.mxu0 %v1223
      %v1263 = vpop.f32.mrf.mxu0
      %v1264 = vadd.f32 0.0, %v1263
      %1265 = vmatmul.f32.gmra.mxu0 %v1226
      %v1266 = vpop.f32.mrf.mxu0
      %v1267 = vadd.f32 0.0, %v1266
      %1268 = vmatmul.f32.gmra.mxu0 %v1229
      %v1269 = vpop.f32.mrf.mxu0
      %v1270 = vadd.f32 0.0, %v1269
      %1271 = vmatmul.f32.gmra.mxu0 %v1232
      %v1272 = vpop.f32.mrf.mxu0
      %v1273 = vadd.f32 0.0, %v1272
      %1274 = vmatmul.f32.gmra.mxu0 %v1235
      %v1275 = vpop.f32.mrf.mxu0
      %v1276 = vadd.f32 0.0, %v1275
      %1277 = vmatmul.f32.gmra.mxu0 %v1238
      %v1278 = vpop.f32.mrf.mxu0
      %v1279 = vadd.f32 0.0, %v1278
      %1280 = vmatmul.f32.gmra.mxu0 %v1241
      %v1281 = vpop.f32.mrf.mxu0
      %v1282 = vadd.f32 0.0, %v1281
      %1283 = vmatmul.f32.gmra.mxu0 %v1244
      %v1284 = vpop.f32.mrf.mxu0
      %v1285 = vadd.f32 0.0, %v1284
      %1286 = vdwg.mxu0
      %v1287 = vld [vmem:[%s795] sm:$0xff]
      %s1288 = scalar_lea.vmem %s768, 32
      %v1289 = vld [vmem:[%s1288] sm:$0xff]
      %v1290 = vld [vmem:[%s1288 + $0x8] sm:$0xff]
      %v1291 = vld [vmem:[%s1288 + $0x10] sm:$0xff]
      %v1292 = vld [vmem:[%s1288 + $0x18] sm:$0xff]
      %s1293 = scalar_lea.vmem %s782, 1
      %v1294 = vld [vmem:[%s1293] sm:$0x1]
      %v1296 = vperm.slane %v1294, 0
      %1298 = vmatpush.msra.mxu0 0.0
      %1299 = vmatpush.msra.mxu0 0.0
      %1300 = vmatpush.msra.mxu0 0.0
      %1301 = vmatpush.msra.mxu0 0.0
      %1302 = vmatpush.msra.mxu0 0.0
      %1303 = vmatpush.msra.mxu0 0.0
      %1304 = vmatpush.msra.mxu0 0.0
      %1305 = vmatpush.msra.mxu0 0.0
      %1306 = vmatpush.msra.mxu0 0.0
      %1307 = vmatpush.msra.mxu0 0.0
      %1308 = vmatpush.msra.mxu0 0.0
      %1309 = vmatpush.msra.mxu0 0.0
      %1310 = vmatpush.msra.mxu0 %v1292
      %1311 = vmatpush.msra.mxu0 %v1291
      %1312 = vmatpush.msra.mxu0 %v1290
      %1313 = vmatpush.msra.mxu0 %v1289
      %1314 = vmatmul.f32.gmra.mxu0 %v873
      %v1315 = vpop.f32.mrf.mxu0
      %v1316 = vadd.f32 %v1296, %v1315
      %1317 = vmatmul.f32.gmra.mxu0 %v876
      %v1318 = vpop.f32.mrf.mxu0
      %v1319 = vadd.f32 %v1296, %v1318
      %1320 = vmatmul.f32.gmra.mxu0 %v879
      %v1321 = vpop.f32.mrf.mxu0
      %v1322 = vadd.f32 %v1296, %v1321
      %1323 = vmatmul.f32.gmra.mxu0 %v882
      %v1324 = vpop.f32.mrf.mxu0
      %v1325 = vadd.f32 %v1296, %v1324
      %1326 = vmatmul.f32.gmra.mxu0 %v885
      %v1327 = vpop.f32.mrf.mxu0
      %v1328 = vadd.f32 %v1296, %v1327
      %1329 = vmatmul.f32.gmra.mxu0 %v888
      %v1330 = vpop.f32.mrf.mxu0
      %v1331 = vadd.f32 %v1296, %v1330
      %1332 = vmatmul.f32.gmra.mxu0 %v891
      %v1333 = vpop.f32.mrf.mxu0
      %v1334 = vadd.f32 %v1296, %v1333
      %1335 = vmatmul.f32.gmra.mxu0 %v894
      %v1336 = vpop.f32.mrf.mxu0
      %v1337 = vadd.f32 %v1296, %v1336
      %1338 = vdwg.mxu0
      %s1339 = scalar_lea.vmem %s773, 32
      %v1340 = vld [vmem:[%s1339] sm:$0xff]
      %v1341 = vld [vmem:[%s1339 + $0x8] sm:$0xff]
      %v1342 = vld [vmem:[%s1339 + $0x10] sm:$0xff]
      %v1343 = vld [vmem:[%s1339 + $0x18] sm:$0xff]
      %s1344 = scalar_lea.vmem %s786, 1
      %v1345 = vld [vmem:[%s1344] sm:$0x1]
      %v1347 = vperm.slane %v1345, 0
      %1349 = vmatpush.msra.mxu0 0.0
      %1350 = vmatpush.msra.mxu0 0.0
      %1351 = vmatpush.msra.mxu0 0.0
      %1352 = vmatpush.msra.mxu0 0.0
      %1353 = vmatpush.msra.mxu0 0.0
      %1354 = vmatpush.msra.mxu0 0.0
      %1355 = vmatpush.msra.mxu0 0.0
      %1356 = vmatpush.msra.mxu0 0.0
      %1357 = vmatpush.msra.mxu0 0.0
      %1358 = vmatpush.msra.mxu0 0.0
      %1359 = vmatpush.msra.mxu0 0.0
      %1360 = vmatpush.msra.mxu0 0.0
      %1361 = vmatpush.msra.mxu0 %v1343
      %1362 = vmatpush.msra.mxu0 %v1342
      %1363 = vmatpush.msra.mxu0 %v1341
      %1364 = vmatpush.msra.mxu0 %v1340
      %1365 = vmatmul.f32.gmra.mxu0 %v873
      %v1366 = vpop.f32.mrf.mxu0
      %v1367 = vadd.f32 %v1347, %v1366
      %1368 = vmatmul.f32.gmra.mxu0 %v876
      %v1369 = vpop.f32.mrf.mxu0
      %v1370 = vadd.f32 %v1347, %v1369
      %1371 = vmatmul.f32.gmra.mxu0 %v879
      %v1372 = vpop.f32.mrf.mxu0
      %v1373 = vadd.f32 %v1347, %v1372
      %1374 = vmatmul.f32.gmra.mxu0 %v882
      %v1375 = vpop.f32.mrf.mxu0
      %v1376 = vadd.f32 %v1347, %v1375
      %1377 = vmatmul.f32.gmra.mxu0 %v885
      %v1378 = vpop.f32.mrf.mxu0
      %v1379 = vadd.f32 %v1347, %v1378
      %1380 = vmatmul.f32.gmra.mxu0 %v888
      %v1381 = vpop.f32.mrf.mxu0
      %v1382 = vadd.f32 %v1347, %v1381
      %1383 = vmatmul.f32.gmra.mxu0 %v891
      %v1384 = vpop.f32.mrf.mxu0
      %v1385 = vadd.f32 %v1347, %v1384
      %1386 = vmatmul.f32.gmra.mxu0 %v894
      %v1387 = vpop.f32.mrf.mxu0
      %v1388 = vadd.f32 %v1347, %v1387
      %1389 = vdwg.mxu0
      %s1390 = scalar_lea.vmem %s778, 32
      %v1391 = vld [vmem:[%s1390] sm:$0xff]
      %v1392 = vld [vmem:[%s1390 + $0x8] sm:$0xff]
      %v1393 = vld [vmem:[%s1390 + $0x10] sm:$0xff]
      %v1394 = vld [vmem:[%s1390 + $0x18] sm:$0xff]
      %s1395 = scalar_lea.vmem %s790, 1
      %v1396 = vld [vmem:[%s1395] sm:$0x1]
      %v1398 = vperm.slane %v1396, 0
      %1400 = vmatpush.msra.mxu0 0.0
      %1401 = vmatpush.msra.mxu0 0.0
      %1402 = vmatpush.msra.mxu0 0.0
      %1403 = vmatpush.msra.mxu0 0.0
      %1404 = vmatpush.msra.mxu0 0.0
      %1405 = vmatpush.msra.mxu0 0.0
      %1406 = vmatpush.msra.mxu0 0.0
      %1407 = vmatpush.msra.mxu0 0.0
      %1408 = vmatpush.msra.mxu0 0.0
      %1409 = vmatpush.msra.mxu0 0.0
      %1410 = vmatpush.msra.mxu0 0.0
      %1411 = vmatpush.msra.mxu0 0.0
      %1412 = vmatpush.msra.mxu0 %v1394
      %1413 = vmatpush.msra.mxu0 %v1393
      %1414 = vmatpush.msra.mxu0 %v1392
      %1415 = vmatpush.msra.mxu0 %v1391
      %1416 = vmatmul.f32.gmra.mxu0 %v873
      %v1417 = vpop.f32.mrf.mxu0
      %v1418 = vadd.f32 %v1398, %v1417
      %1419 = vmatmul.f32.gmra.mxu0 %v876
      %v1420 = vpop.f32.mrf.mxu0
      %v1421 = vadd.f32 %v1398, %v1420
      %1422 = vmatmul.f32.gmra.mxu0 %v879
      %v1423 = vpop.f32.mrf.mxu0
      %v1424 = vadd.f32 %v1398, %v1423
      %1425 = vmatmul.f32.gmra.mxu0 %v882
      %v1426 = vpop.f32.mrf.mxu0
      %v1427 = vadd.f32 %v1398, %v1426
      %1428 = vmatmul.f32.gmra.mxu0 %v885
      %v1429 = vpop.f32.mrf.mxu0
      %v1430 = vadd.f32 %v1398, %v1429
      %1431 = vmatmul.f32.gmra.mxu0 %v888
      %v1432 = vpop.f32.mrf.mxu0
      %v1433 = vadd.f32 %v1398, %v1432
      %1434 = vmatmul.f32.gmra.mxu0 %v891
      %v1435 = vpop.f32.mrf.mxu0
      %v1436 = vadd.f32 %v1398, %v1435
      %1437 = vmatmul.f32.gmra.mxu0 %v894
      %v1438 = vpop.f32.mrf.mxu0
      %v1439 = vadd.f32 %v1398, %v1438
      %1440 = vdwg.mxu0
      %v1442 = vsel %vm1035, %v1316, 0
      %v1445 = vsel %vm1035, %v1319, 0
      %v1448 = vsel %vm1035, %v1322, 0
      %v1451 = vsel %vm1035, %v1325, 0
      %v1454 = vsel %vm1035, %v1328, 0
      %v1457 = vsel %vm1035, %v1331, 0
      %v1460 = vsel %vm1035, %v1334, 0
      %v1463 = vsel %vm1035, %v1337, 0
      %v1466 = vsel %vm1035, %v1367, 0
      %v1469 = vsel %vm1035, %v1370, 0
      %v1472 = vsel %vm1035, %v1373, 0
      %v1475 = vsel %vm1035, %v1376, 0
      %v1478 = vsel %vm1035, %v1379, 0
      %v1481 = vsel %vm1035, %v1382, 0
      %v1484 = vsel %vm1035, %v1385, 0
      %v1487 = vsel %vm1035, %v1388, 0
      %1489 = vmatpush.xpose.msra.mxu0 0.0
      %1490 = vmatpush.xpose.msra.mxu0 0.0
      %1491 = vmatpush.xpose.msra.mxu0 0.0
      %1492 = vmatpush.xpose.msra.mxu0 0.0
      %1493 = vmatpush.xpose.msra.mxu0 0.0
      %1494 = vmatpush.xpose.msra.mxu0 0.0
      %1495 = vmatpush.xpose.msra.mxu0 0.0
      %1496 = vmatpush.xpose.msra.mxu0 0.0
      %1497 = vmatpush.xpose.msra.mxu0 %v1487
      %1498 = vmatpush.xpose.msra.mxu0 %v1484
      %1499 = vmatpush.xpose.msra.mxu0 %v1481
      %1500 = vmatpush.xpose.msra.mxu0 %v1478
      %1501 = vmatpush.xpose.msra.mxu0 %v1475
      %1502 = vmatpush.xpose.msra.mxu0 %v1472
      %1503 = vmatpush.xpose.msra.mxu0 %v1469
      %1504 = vmatpush.xpose.msra.mxu0 %v1466
      %1505 = vmatmul.f32.gmra.mxu0 %v1442
      %v1506 = vpop.f32.mrf.mxu0
      %v1507 = vadd.f32 0.0, %v1506
      %1508 = vmatmul.f32.gmra.mxu0 %v1445
      %v1509 = vpop.f32.mrf.mxu0
      %v1510 = vadd.f32 0.0, %v1509
      %1511 = vmatmul.f32.gmra.mxu0 %v1448
      %v1512 = vpop.f32.mrf.mxu0
      %v1513 = vadd.f32 0.0, %v1512
      %1514 = vmatmul.f32.gmra.mxu0 %v1451
      %v1515 = vpop.f32.mrf.mxu0
      %v1516 = vadd.f32 0.0, %v1515
      %1517 = vmatmul.f32.gmra.mxu0 %v1454
      %v1518 = vpop.f32.mrf.mxu0
      %v1519 = vadd.f32 0.0, %v1518
      %1520 = vmatmul.f32.gmra.mxu0 %v1457
      %v1521 = vpop.f32.mrf.mxu0
      %v1522 = vadd.f32 0.0, %v1521
      %1523 = vmatmul.f32.gmra.mxu0 %v1460
      %v1524 = vpop.f32.mrf.mxu0
      %v1525 = vadd.f32 0.0, %v1524
      %1526 = vmatmul.f32.gmra.mxu0 %v1463
      %v1527 = vpop.f32.mrf.mxu0
      %v1528 = vadd.f32 0.0, %v1527
      %1529 = vdwg.mxu0
      %v1530 = vmul.f32 %v1507, 0.35355338
      %v1531 = vmul.f32 %v1510, 0.35355338
      %v1532 = vmul.f32 %v1513, 0.35355338
      %v1533 = vmul.f32 %v1516, 0.35355338
      %v1534 = vmul.f32 %v1519, 0.35355338
      %v1535 = vmul.f32 %v1522, 0.35355338
      %v1536 = vmul.f32 %v1525, 0.35355338
      %v1537 = vmul.f32 %v1528, 0.35355338
      %v1538 = vsel %vm1133, %v1530, -inf
      %1539 = vmax.xlane.f32.xlu0 %v1538
      %v1540 = vpop.xlane.xlu0 %1539
      %v1541 = vsel %vm1133, %v1531, -inf
      %1542 = vmax.xlane.f32.xlu0 %v1541
      %v1543 = vpop.xlane.xlu0 %1542
      %v1544 = vsel %vm1133, %v1532, -inf
      %1545 = vmax.xlane.f32.xlu0 %v1544
      %v1546 = vpop.xlane.xlu0 %1545
      %v1547 = vsel %vm1133, %v1533, -inf
      %1548 = vmax.xlane.f32.xlu0 %v1547
      %v1549 = vpop.xlane.xlu0 %1548
      %v1550 = vsel %vm1133, %v1534, -inf
      %1551 = vmax.xlane.f32.xlu0 %v1550
      %v1552 = vpop.xlane.xlu0 %1551
      %v1553 = vsel %vm1133, %v1535, -inf
      %1554 = vmax.xlane.f32.xlu0 %v1553
      %v1555 = vpop.xlane.xlu0 %1554
      %v1556 = vsel %vm1133, %v1536, -inf
      %1557 = vmax.xlane.f32.xlu0 %v1556
      %v1558 = vpop.xlane.xlu0 %1557
      %v1559 = vsel %vm1133, %v1537, -inf
      %1560 = vmax.xlane.f32.xlu0 %v1559
      %v1561 = vpop.xlane.xlu0 %1560
      %v1562 = vsub.f32 %v1530, %v1540
      %v1563 = vsub.f32 %v1531, %v1543
      %v1564 = vsub.f32 %v1532, %v1546
      %v1565 = vsub.f32 %v1533, %v1549
      %v1566 = vsub.f32 %v1534, %v1552
      %v1567 = vsub.f32 %v1535, %v1555
      %v1568 = vsub.f32 %v1536, %v1558
      %v1569 = vsub.f32 %v1537, %v1561
      %v1570 = vmul.f32 %v1562, 1.442695
      %v1571 = vpow.pop %v1570
      %v1572 = vmul.f32 %v1563, 1.442695
      %v1573 = vpow.pop %v1572
      %v1574 = vmul.f32 %v1564, 1.442695
      %v1575 = vpow.pop %v1574
      %v1576 = vmul.f32 %v1565, 1.442695
      %v1577 = vpow.pop %v1576
      %v1578 = vmul.f32 %v1566, 1.442695
      %v1579 = vpow.pop %v1578
      %v1580 = vmul.f32 %v1567, 1.442695
      %v1581 = vpow.pop %v1580
      %v1582 = vmul.f32 %v1568, 1.442695
      %v1583 = vpow.pop %v1582
      %v1584 = vmul.f32 %v1569, 1.442695
      %v1585 = vpow.pop %v1584
      %v1586 = vsel %vm1133, %v1571, 0.0
      %1587 = vadd.xlane.f32.xlu0 %v1586
      %v1588 = vpop.xlane.xlu0 %1587
      %v1589 = vsel %vm1133, %v1573, 0.0
      %1590 = vadd.xlane.f32.xlu0 %v1589
      %v1591 = vpop.xlane.xlu0 %1590
      %v1592 = vsel %vm1133, %v1575, 0.0
      %1593 = vadd.xlane.f32.xlu0 %v1592
      %v1594 = vpop.xlane.xlu0 %1593
      %v1595 = vsel %vm1133, %v1577, 0.0
      %1596 = vadd.xlane.f32.xlu0 %v1595
      %v1597 = vpop.xlane.xlu0 %1596
      %v1598 = vsel %vm1133, %v1579, 0.0
      %1599 = vadd.xlane.f32.xlu0 %v1598
      %v1600 = vpop.xlane.xlu0 %1599
      %v1601 = vsel %vm1133, %v1581, 0.0
      %1602 = vadd.xlane.f32.xlu0 %v1601
      %v1603 = vpop.xlane.xlu0 %1602
      %v1604 = vsel %vm1133, %v1583, 0.0
      %1605 = vadd.xlane.f32.xlu0 %v1604
      %v1606 = vpop.xlane.xlu0 %1605
      %v1607 = vsel %vm1133, %v1585, 0.0
      %1608 = vadd.xlane.f32.xlu0 %v1607
      %v1609 = vpop.xlane.xlu0 %1608
      %v1610 = vrcp.pop %v1588
      %v1611 = vrcp.pop %v1591
      %v1612 = vrcp.pop %v1594
      %v1613 = vrcp.pop %v1597
      %v1614 = vrcp.pop %v1600
      %v1615 = vrcp.pop %v1603
      %v1616 = vrcp.pop %v1606
      %v1617 = vrcp.pop %v1609
      %v1618 = vmul.f32 %v1571, %v1610
      %v1619 = vmul.f32 %v1573, %v1611
      %v1620 = vmul.f32 %v1575, %v1612
      %v1621 = vmul.f32 %v1577, %v1613
      %v1622 = vmul.f32 %v1579, %v1614
      %v1623 = vmul.f32 %v1581, %v1615
      %v1624 = vmul.f32 %v1583, %v1616
      %v1625 = vmul.f32 %v1585, %v1617
      %v1627 = vsel %vm1133, %v1618, 0
      %v1630 = vsel %vm1133, %v1619, 0
      %v1633 = vsel %vm1133, %v1620, 0
      %v1636 = vsel %vm1133, %v1621, 0
      %v1639 = vsel %vm1133, %v1622, 0
      %v1642 = vsel %vm1133, %v1623, 0
      %v1645 = vsel %vm1133, %v1624, 0
      %v1648 = vsel %vm1133, %v1625, 0
      %1650 = vmatpush.msra.mxu0 0.0
      %1651 = vmatpush.msra.mxu0 0.0
      %1652 = vmatpush.msra.mxu0 0.0
      %1653 = vmatpush.msra.mxu0 0.0
      %1654 = vmatpush.msra.mxu0 0.0
      %1655 = vmatpush.msra.mxu0 0.0
      %1656 = vmatpush.msra.mxu0 0.0
      %1657 = vmatpush.msra.mxu0 0.0
      %1658 = vmatpush.msra.mxu0 %v1439
      %1659 = vmatpush.msra.mxu0 %v1436
      %1660 = vmatpush.msra.mxu0 %v1433
      %1661 = vmatpush.msra.mxu0 %v1430
      %1662 = vmatpush.msra.mxu0 %v1427
      %1663 = vmatpush.msra.mxu0 %v1424
      %1664 = vmatpush.msra.mxu0 %v1421
      %1665 = vmatpush.msra.mxu0 %v1418
      %1666 = vmatmul.f32.gmra.mxu0 %v1627
      %v1667 = vpop.f32.mrf.mxu0
      %v1668 = vadd.f32 0.0, %v1667
      %1669 = vmatmul.f32.gmra.mxu0 %v1630
      %v1670 = vpop.f32.mrf.mxu0
      %v1671 = vadd.f32 0.0, %v1670
      %1672 = vmatmul.f32.gmra.mxu0 %v1633
      %v1673 = vpop.f32.mrf.mxu0
      %v1674 = vadd.f32 0.0, %v1673
      %1675 = vmatmul.f32.gmra.mxu0 %v1636
      %v1676 = vpop.f32.mrf.mxu0
      %v1677 = vadd.f32 0.0, %v1676
      %1678 = vmatmul.f32.gmra.mxu0 %v1639
      %v1679 = vpop.f32.mrf.mxu0
      %v1680 = vadd.f32 0.0, %v1679
      %1681 = vmatmul.f32.gmra.mxu0 %v1642
      %v1682 = vpop.f32.mrf.mxu0
      %v1683 = vadd.f32 0.0, %v1682
      %1684 = vmatmul.f32.gmra.mxu0 %v1645
      %v1685 = vpop.f32.mrf.mxu0
      %v1686 = vadd.f32 0.0, %v1685
      %1687 = vmatmul.f32.gmra.mxu0 %v1648
      %v1688 = vpop.f32.mrf.mxu0
      %v1689 = vadd.f32 0.0, %v1688
      %1690 = vdwg.mxu0
      %s1691 = scalar_lea.vmem %s795, 8
      %v1692 = vld [vmem:[%s1691] sm:$0xff]
      %v1694 = vsel %vm1035, %v1668, 0
      %v1697 = vsel %vm1035, %v1671, 0
      %v1700 = vsel %vm1035, %v1674, 0
      %v1703 = vsel %vm1035, %v1677, 0
      %v1706 = vsel %vm1035, %v1680, 0
      %v1709 = vsel %vm1035, %v1683, 0
      %v1712 = vsel %vm1035, %v1686, 0
      %v1715 = vsel %vm1035, %v1689, 0
      %1717 = vmatpush.msra.mxu0 0.0
      %1718 = vmatpush.msra.mxu0 0.0
      %1719 = vmatpush.msra.mxu0 0.0
      %1720 = vmatpush.msra.mxu0 0.0
      %1721 = vmatpush.msra.mxu0 0.0
      %1722 = vmatpush.msra.mxu0 0.0
      %1723 = vmatpush.msra.mxu0 0.0
      %1724 = vmatpush.msra.mxu0 0.0
      %1725 = vmatpush.msra.mxu0 0.0
      %1726 = vmatpush.msra.mxu0 0.0
      %1727 = vmatpush.msra.mxu0 0.0
      %1728 = vmatpush.msra.mxu0 0.0
      %1729 = vmatpush.msra.mxu0 0.0
      %1730 = vmatpush.msra.mxu0 0.0
      %1731 = vmatpush.msra.mxu0 0.0
      %1732 = vmatpush.msra.mxu0 %v1692
      %1733 = vmatmul.f32.gmra.mxu0 %v1694
      %v1734 = vpop.f32.mrf.mxu0
      %v1735 = vadd.f32 0.0, %v1734
      %1736 = vmatmul.f32.gmra.mxu0 %v1697
      %v1737 = vpop.f32.mrf.mxu0
      %v1738 = vadd.f32 0.0, %v1737
      %1739 = vmatmul.f32.gmra.mxu0 %v1700
      %v1740 = vpop.f32.mrf.mxu0
      %v1741 = vadd.f32 0.0, %v1740
      %1742 = vmatmul.f32.gmra.mxu0 %v1703
      %v1743 = vpop.f32.mrf.mxu0
      %v1744 = vadd.f32 0.0, %v1743
      %1745 = vmatmul.f32.gmra.mxu0 %v1706
      %v1746 = vpop.f32.mrf.mxu0
      %v1747 = vadd.f32 0.0, %v1746
      %1748 = vmatmul.f32.gmra.mxu0 %v1709
      %v1749 = vpop.f32.mrf.mxu0
      %v1750 = vadd.f32 0.0, %v1749
      %1751 = vmatmul.f32.gmra.mxu0 %v1712
      %v1752 = vpop.f32.mrf.mxu0
      %v1753 = vadd.f32 0.0, %v1752
      %1754 = vmatmul.f32.gmra.mxu0 %v1715
      %v1755 = vpop.f32.mrf.mxu0
      %v1756 = vadd.f32 0.0, %v1755
      %1757 = vdwg.mxu0
      %v1759 = vsel %vm1035, %v1264, 0
      %v1762 = vsel %vm1035, %v1267, 0
      %v1765 = vsel %vm1035, %v1270, 0
      %v1768 = vsel %vm1035, %v1273, 0
      %v1771 = vsel %vm1035, %v1276, 0
      %v1774 = vsel %vm1035, %v1279, 0
      %v1777 = vsel %vm1035, %v1282, 0
      %v1780 = vsel %vm1035, %v1285, 0
      %1782 = vmatpush.msra.mxu0 0.0
      %1783 = vmatpush.msra.mxu0 0.0
      %1784 = vmatpush.msra.mxu0 0.0
      %1785 = vmatpush.msra.mxu0 0.0
      %1786 = vmatpush.msra.mxu0 0.0
      %1787 = vmatpush.msra.mxu0 0.0
      %1788 = vmatpush.msra.mxu0 0.0
      %1789 = vmatpush.msra.mxu0 0.0
      %1790 = vmatpush.msra.mxu0 0.0
      %1791 = vmatpush.msra.mxu0 0.0
      %1792 = vmatpush.msra.mxu0 0.0
      %1793 = vmatpush.msra.mxu0 0.0
      %1794 = vmatpush.msra.mxu0 0.0
      %1795 = vmatpush.msra.mxu0 0.0
      %1796 = vmatpush.msra.mxu0 0.0
      %1797 = vmatpush.msra.mxu0 %v1287
      %1798 = vmatmul.f32.gmra.mxu0 %v1759
      %v1799 = vpop.f32.mrf.mxu0
      %v1800 = vadd.f32 %v1735, %v1799
      %1801 = vmatmul.f32.gmra.mxu0 %v1762
      %v1802 = vpop.f32.mrf.mxu0
      %v1803 = vadd.f32 %v1738, %v1802
      %1804 = vmatmul.f32.gmra.mxu0 %v1765
      %v1805 = vpop.f32.mrf.mxu0
      %v1806 = vadd.f32 %v1741, %v1805
      %1807 = vmatmul.f32.gmra.mxu0 %v1768
      %v1808 = vpop.f32.mrf.mxu0
      %v1809 = vadd.f32 %v1744, %v1808
      %1810 = vmatmul.f32.gmra.mxu0 %v1771
      %v1811 = vpop.f32.mrf.mxu0
      %v1812 = vadd.f32 %v1747, %v1811
      %1813 = vmatmul.f32.gmra.mxu0 %v1774
      %v1814 = vpop.f32.mrf.mxu0
      %v1815 = vadd.f32 %v1750, %v1814
      %1816 = vmatmul.f32.gmra.mxu0 %v1777
      %v1817 = vpop.f32.mrf.mxu0
      %v1818 = vadd.f32 %v1753, %v1817
      %1819 = vmatmul.f32.gmra.mxu0 %v1780
      %v1820 = vpop.f32.mrf.mxu0
      %v1821 = vadd.f32 %v1756, %v1820
      %1822 = vdwg.mxu0
      %s1823 = scalar_lea.vmem %s768, 64
      %v1824 = vld [vmem:[%s1823] sm:$0xff]
      %v1825 = vld [vmem:[%s1823 + $0x8] sm:$0xff]
      %v1826 = vld [vmem:[%s1823 + $0x10] sm:$0xff]
      %v1827 = vld [vmem:[%s1823 + $0x18] sm:$0xff]
      %s1828 = scalar_lea.vmem %s782, 2
      %v1829 = vld [vmem:[%s1828] sm:$0x1]
      %v1831 = vperm.slane %v1829, 0
      %1833 = vmatpush.msra.mxu0 0.0
      %1834 = vmatpush.msra.mxu0 0.0
      %1835 = vmatpush.msra.mxu0 0.0
      %1836 = vmatpush.msra.mxu0 0.0
      %1837 = vmatpush.msra.mxu0 0.0
      %1838 = vmatpush.msra.mxu0 0.0
      %1839 = vmatpush.msra.mxu0 0.0
      %1840 = vmatpush.msra.mxu0 0.0
      %1841 = vmatpush.msra.mxu0 0.0
      %1842 = vmatpush.msra.mxu0 0.0
      %1843 = vmatpush.msra.mxu0 0.0
      %1844 = vmatpush.msra.mxu0 0.0
      %1845 = vmatpush.msra.mxu0 %v1827
      %1846 = vmatpush.msra.mxu0 %v1826
      %1847 = vmatpush.msra.mxu0 %v1825
      %1848 = vmatpush.msra.mxu0 %v1824
      %1849 = vmatmul.f32.gmra.mxu0 %v873
      %v1850 = vpop.f32.mrf.mxu0
      %v1851 = vadd.f32 %v1831, %v1850
      %1852 = vmatmul.f32.gmra.mxu0 %v876
      %v1853 = vpop.f32.mrf.mxu0
      %v1854 = vadd.f32 %v1831, %v1853
      %1855 = vmatmul.f32.gmra.mxu0 %v879
      %v1856 = vpop.f32.mrf.mxu0
      %v1857 = vadd.f32 %v1831, %v1856
      %1858 = vmatmul.f32.gmra.mxu0 %v882
      %v1859 = vpop.f32.mrf.mxu0
      %v1860 = vadd.f32 %v1831, %v1859
      %1861 = vmatmul.f32.gmra.mxu0 %v885
      %v1862 = vpop.f32.mrf.mxu0
      %v1863 = vadd.f32 %v1831, %v1862
      %1864 = vmatmul.f32.gmra.mxu0 %v888
      %v1865 = vpop.f32.mrf.mxu0
      %v1866 = vadd.f32 %v1831, %v1865
      %1867 = vmatmul.f32.gmra.mxu0 %v891
      %v1868 = vpop.f32.mrf.mxu0
      %v1869 = vadd.f32 %v1831, %v1868
      %1870 = vmatmul.f32.gmra.mxu0 %v894
      %v1871 = vpop.f32.mrf.mxu0
      %v1872 = vadd.f32 %v1831, %v1871
      %1873 = vdwg.mxu0
      %s1874 = scalar_lea.vmem %s773, 64
      %v1875 = vld [vmem:[%s1874] sm:$0xff]
      %v1876 = vld [vmem:[%s1874 + $0x8] sm:$0xff]
      %v1877 = vld [vmem:[%s1874 + $0x10] sm:$0xff]
      %v1878 = vld [vmem:[%s1874 + $0x18] sm:$0xff]
      %s1879 = scalar_lea.vmem %s786, 2
      %v1880 = vld [vmem:[%s1879] sm:$0x1]
      %v1882 = vperm.slane %v1880, 0
      %1884 = vmatpush.msra.mxu0 0.0
      %1885 = vmatpush.msra.mxu0 0.0
      %1886 = vmatpush.msra.mxu0 0.0
      %1887 = vmatpush.msra.mxu0 0.0
      %1888 = vmatpush.msra.mxu0 0.0
      %1889 = vmatpush.msra.mxu0 0.0
      %1890 = vmatpush.msra.mxu0 0.0
      %1891 = vmatpush.msra.mxu0 0.0
      %1892 = vmatpush.msra.mxu0 0.0
      %1893 = vmatpush.msra.mxu0 0.0
      %1894 = vmatpush.msra.mxu0 0.0
      %1895 = vmatpush.msra.mxu0 0.0
      %1896 = vmatpush.msra.mxu0 %v1878
      %1897 = vmatpush.msra.mxu0 %v1877
      %1898 = vmatpush.msra.mxu0 %v1876
      %1899 = vmatpush.msra.mxu0 %v1875
      %1900 = vmatmul.f32.gmra.mxu0 %v873
      %v1901 = vpop.f32.mrf.mxu0
      %v1902 = vadd.f32 %v1882, %v1901
      %1903 = vmatmul.f32.gmra.mxu0 %v876
      %v1904 = vpop.f32.mrf.mxu0
      %v1905 = vadd.f32 %v1882, %v1904
      %1906 = vmatmul.f32.gmra.mxu0 %v879
      %v1907 = vpop.f32.mrf.mxu0
      %v1908 = vadd.f32 %v1882, %v1907
      %1909 = vmatmul.f32.gmra.mxu0 %v882
      %v1910 = vpop.f32.mrf.mxu0
      %v1911 = vadd.f32 %v1882, %v1910
      %1912 = vmatmul.f32.gmra.mxu0 %v885
      %v1913 = vpop.f32.mrf.mxu0
      %v1914 = vadd.f32 %v1882, %v1913
      %1915 = vmatmul.f32.gmra.mxu0 %v888
      %v1916 = vpop.f32.mrf.mxu0
      %v1917 = vadd.f32 %v1882, %v1916
      %1918 = vmatmul.f32.gmra.mxu0 %v891
      %v1919 = vpop.f32.mrf.mxu0
      %v1920 = vadd.f32 %v1882, %v1919
      %1921 = vmatmul.f32.gmra.mxu0 %v894
      %v1922 = vpop.f32.mrf.mxu0
      %v1923 = vadd.f32 %v1882, %v1922
      %1924 = vdwg.mxu0
      %s1925 = scalar_lea.vmem %s778, 64
      %v1926 = vld [vmem:[%s1925] sm:$0xff]
      %v1927 = vld [vmem:[%s1925 + $0x8] sm:$0xff]
      %v1928 = vld [vmem:[%s1925 + $0x10] sm:$0xff]
      %v1929 = vld [vmem:[%s1925 + $0x18] sm:$0xff]
      %s1930 = scalar_lea.vmem %s790, 2
      %v1931 = vld [vmem:[%s1930] sm:$0x1]
      %v1933 = vperm.slane %v1931, 0
      %1935 = vmatpush.msra.mxu0 0.0
      %1936 = vmatpush.msra.mxu0 0.0
      %1937 = vmatpush.msra.mxu0 0.0
      %1938 = vmatpush.msra.mxu0 0.0
      %1939 = vmatpush.msra.mxu0 0.0
      %1940 = vmatpush.msra.mxu0 0.0
      %1941 = vmatpush.msra.mxu0 0.0
      %1942 = vmatpush.msra.mxu0 0.0
      %1943 = vmatpush.msra.mxu0 0.0
      %1944 = vmatpush.msra.mxu0 0.0
      %1945 = vmatpush.msra.mxu0 0.0
      %1946 = vmatpush.msra.mxu0 0.0
      %1947 = vmatpush.msra.mxu0 %v1929
      %1948 = vmatpush.msra.mxu0 %v1928
      %1949 = vmatpush.msra.mxu0 %v1927
      %1950 = vmatpush.msra.mxu0 %v1926
      %1951 = vmatmul.f32.gmra.mxu0 %v873
      %v1952 = vpop.f32.mrf.mxu0
      %v1953 = vadd.f32 %v1933, %v1952
      %1954 = vmatmul.f32.gmra.mxu0 %v876
      %v1955 = vpop.f32.mrf.mxu0
      %v1956 = vadd.f32 %v1933, %v1955
      %1957 = vmatmul.f32.gmra.mxu0 %v879
      %v1958 = vpop.f32.mrf.mxu0
      %v1959 = vadd.f32 %v1933, %v1958
      %1960 = vmatmul.f32.gmra.mxu0 %v882
      %v1961 = vpop.f32.mrf.mxu0
      %v1962 = vadd.f32 %v1933, %v1961
      %1963 = vmatmul.f32.gmra.mxu0 %v885
      %v1964 = vpop.f32.mrf.mxu0
      %v1965 = vadd.f32 %v1933, %v1964
      %1966 = vmatmul.f32.gmra.mxu0 %v888
      %v1967 = vpop.f32.mrf.mxu0
      %v1968 = vadd.f32 %v1933, %v1967
      %1969 = vmatmul.f32.gmra.mxu0 %v891
      %v1970 = vpop.f32.mrf.mxu0
      %v1971 = vadd.f32 %v1933, %v1970
      %1972 = vmatmul.f32.gmra.mxu0 %v894
      %v1973 = vpop.f32.mrf.mxu0
      %v1974 = vadd.f32 %v1933, %v1973
      %1975 = vdwg.mxu0
      %v1977 = vsel %vm1035, %v1851, 0
      %v1980 = vsel %vm1035, %v1854, 0
      %v1983 = vsel %vm1035, %v1857, 0
      %v1986 = vsel %vm1035, %v1860, 0
      %v1989 = vsel %vm1035, %v1863, 0
      %v1992 = vsel %vm1035, %v1866, 0
      %v1995 = vsel %vm1035, %v1869, 0
      %v1998 = vsel %vm1035, %v1872, 0
      %v2001 = vsel %vm1035, %v1902, 0
      %v2004 = vsel %vm1035, %v1905, 0
      %v2007 = vsel %vm1035, %v1908, 0
      %v2010 = vsel %vm1035, %v1911, 0
      %v2013 = vsel %vm1035, %v1914, 0
      %v2016 = vsel %vm1035, %v1917, 0
      %v2019 = vsel %vm1035, %v1920, 0
      %v2022 = vsel %vm1035, %v1923, 0
      %2024 = vmatpush.xpose.msra.mxu0 0.0
      %2025 = vmatpush.xpose.msra.mxu0 0.0
      %2026 = vmatpush.xpose.msra.mxu0 0.0
      %2027 = vmatpush.xpose.msra.mxu0 0.0
      %2028 = vmatpush.xpose.msra.mxu0 0.0
      %2029 = vmatpush.xpose.msra.mxu0 0.0
      %2030 = vmatpush.xpose.msra.mxu0 0.0
      %2031 = vmatpush.xpose.msra.mxu0 0.0
      %2032 = vmatpush.xpose.msra.mxu0 %v2022
      %2033 = vmatpush.xpose.msra.mxu0 %v2019
      %2034 = vmatpush.xpose.msra.mxu0 %v2016
      %2035 = vmatpush.xpose.msra.mxu0 %v2013
      %2036 = vmatpush.xpose.msra.mxu0 %v2010
      %2037 = vmatpush.xpose.msra.mxu0 %v2007
      %2038 = vmatpush.xpose.msra.mxu0 %v2004
      %2039 = vmatpush.xpose.msra.mxu0 %v2001
      %2040 = vmatmul.f32.gmra.mxu0 %v1977
      %v2041 = vpop.f32.mrf.mxu0
      %v2042 = vadd.f32 0.0, %v2041
      %2043 = vmatmul.f32.gmra.mxu0 %v1980
      %v2044 = vpop.f32.mrf.mxu0
      %v2045 = vadd.f32 0.0, %v2044
      %2046 = vmatmul.f32.gmra.mxu0 %v1983
      %v2047 = vpop.f32.mrf.mxu0
      %v2048 = vadd.f32 0.0, %v2047
      %2049 = vmatmul.f32.gmra.mxu0 %v1986
      %v2050 = vpop.f32.mrf.mxu0
      %v2051 = vadd.f32 0.0, %v2050
      %2052 = vmatmul.f32.gmra.mxu0 %v1989
      %v2053 = vpop.f32.mrf.mxu0
      %v2054 = vadd.f32 0.0, %v2053
      %2055 = vmatmul.f32.gmra.mxu0 %v1992
      %v2056 = vpop.f32.mrf.mxu0
      %v2057 = vadd.f32 0.0, %v2056
      %2058 = vmatmul.f32.gmra.mxu0 %v1995
      %v2059 = vpop.f32.mrf.mxu0
      %v2060 = vadd.f32 0.0, %v2059
      %2061 = vmatmul.f32.gmra.mxu0 %v1998
      %v2062 = vpop.f32.mrf.mxu0
      %v2063 = vadd.f32 0.0, %v2062
      %2064 = vdwg.mxu0
      %v2065 = vmul.f32 %v2042, 0.35355338
      %v2066 = vmul.f32 %v2045, 0.35355338
      %v2067 = vmul.f32 %v2048, 0.35355338
      %v2068 = vmul.f32 %v2051, 0.35355338
      %v2069 = vmul.f32 %v2054, 0.35355338
      %v2070 = vmul.f32 %v2057, 0.35355338
      %v2071 = vmul.f32 %v2060, 0.35355338
      %v2072 = vmul.f32 %v2063, 0.35355338
      %v2073 = vsel %vm1133, %v2065, -inf
      %2074 = vmax.xlane.f32.xlu0 %v2073
      %v2075 = vpop.xlane.xlu0 %2074
      %v2076 = vsel %vm1133, %v2066, -inf
      %2077 = vmax.xlane.f32.xlu0 %v2076
      %v2078 = vpop.xlane.xlu0 %2077
      %v2079 = vsel %vm1133, %v2067, -inf
      %2080 = vmax.xlane.f32.xlu0 %v2079
      %v2081 = vpop.xlane.xlu0 %2080
      %v2082 = vsel %vm1133, %v2068, -inf
      %2083 = vmax.xlane.f32.xlu0 %v2082
      %v2084 = vpop.xlane.xlu0 %2083
      %v2085 = vsel %vm1133, %v2069, -inf
      %2086 = vmax.xlane.f32.xlu0 %v2085
      %v2087 = vpop.xlane.xlu0 %2086
      %v2088 = vsel %vm1133, %v2070, -inf
      %2089 = vmax.xlane.f32.xlu0 %v2088
      %v2090 = vpop.xlane.xlu0 %2089
      %v2091 = vsel %vm1133, %v2071, -inf
      %2092 = vmax.xlane.f32.xlu0 %v2091
      %v2093 = vpop.xlane.xlu0 %2092
      %v2094 = vsel %vm1133, %v2072, -inf
      %2095 = vmax.xlane.f32.xlu0 %v2094
      %v2096 = vpop.xlane.xlu0 %2095
      %v2097 = vsub.f32 %v2065, %v2075
      %v2098 = vsub.f32 %v2066, %v2078
      %v2099 = vsub.f32 %v2067, %v2081
      %v2100 = vsub.f32 %v2068, %v2084
      %v2101 = vsub.f32 %v2069, %v2087
      %v2102 = vsub.f32 %v2070, %v2090
      %v2103 = vsub.f32 %v2071, %v2093
      %v2104 = vsub.f32 %v2072, %v2096
      %v2105 = vmul.f32 %v2097, 1.442695
      %v2106 = vpow.pop %v2105
      %v2107 = vmul.f32 %v2098, 1.442695
      %v2108 = vpow.pop %v2107
      %v2109 = vmul.f32 %v2099, 1.442695
      %v2110 = vpow.pop %v2109
      %v2111 = vmul.f32 %v2100, 1.442695
      %v2112 = vpow.pop %v2111
      %v2113 = vmul.f32 %v2101, 1.442695
      %v2114 = vpow.pop %v2113
      %v2115 = vmul.f32 %v2102, 1.442695
      %v2116 = vpow.pop %v2115
      %v2117 = vmul.f32 %v2103, 1.442695
      %v2118 = vpow.pop %v2117
      %v2119 = vmul.f32 %v2104, 1.442695
      %v2120 = vpow.pop %v2119
      %v2121 = vsel %vm1133, %v2106, 0.0
      %2122 = vadd.xlane.f32.xlu0 %v2121
      %v2123 = vpop.xlane.xlu0 %2122
      %v2124 = vsel %vm1133, %v2108, 0.0
      %2125 = vadd.xlane.f32.xlu0 %v2124
      %v2126 = vpop.xlane.xlu0 %2125
      %v2127 = vsel %vm1133, %v2110, 0.0
      %2128 = vadd.xlane.f32.xlu0 %v2127
      %v2129 = vpop.xlane.xlu0 %2128
      %v2130 = vsel %vm1133, %v2112, 0.0
      %2131 = vadd.xlane.f32.xlu0 %v2130
      %v2132 = vpop.xlane.xlu0 %2131
      %v2133 = vsel %vm1133, %v2114, 0.0
      %2134 = vadd.xlane.f32.xlu0 %v2133
      %v2135 = vpop.xlane.xlu0 %2134
      %v2136 = vsel %vm1133, %v2116, 0.0
      %2137 = vadd.xlane.f32.xlu0 %v2136
      %v2138 = vpop.xlane.xlu0 %2137
      %v2139 = vsel %vm1133, %v2118, 0.0
      %2140 = vadd.xlane.f32.xlu0 %v2139
      %v2141 = vpop.xlane.xlu0 %2140
      %v2142 = vsel %vm1133, %v2120, 0.0
      %2143 = vadd.xlane.f32.xlu0 %v2142
      %v2144 = vpop.xlane.xlu0 %2143
      %v2145 = vrcp.pop %v2123
      %v2146 = vrcp.pop %v2126
      %v2147 = vrcp.pop %v2129
      %v2148 = vrcp.pop %v2132
      %v2149 = vrcp.pop %v2135
      %v2150 = vrcp.pop %v2138
      %v2151 = vrcp.pop %v2141
      %v2152 = vrcp.pop %v2144
      %v2153 = vmul.f32 %v2106, %v2145
      %v2154 = vmul.f32 %v2108, %v2146
      %v2155 = vmul.f32 %v2110, %v2147
      %v2156 = vmul.f32 %v2112, %v2148
      %v2157 = vmul.f32 %v2114, %v2149
      %v2158 = vmul.f32 %v2116, %v2150
      %v2159 = vmul.f32 %v2118, %v2151
      %v2160 = vmul.f32 %v2120, %v2152
      %v2162 = vsel %vm1133, %v2153, 0
      %v2165 = vsel %vm1133, %v2154, 0
      %v2168 = vsel %vm1133, %v2155, 0
      %v2171 = vsel %vm1133, %v2156, 0
      %v2174 = vsel %vm1133, %v2157, 0
      %v2177 = vsel %vm1133, %v2158, 0
      %v2180 = vsel %vm1133, %v2159, 0
      %v2183 = vsel %vm1133, %v2160, 0
      %2185 = vmatpush.msra.mxu0 0.0
      %2186 = vmatpush.msra.mxu0 0.0
      %2187 = vmatpush.msra.mxu0 0.0
      %2188 = vmatpush.msra.mxu0 0.0
      %2189 = vmatpush.msra.mxu0 0.0
      %2190 = vmatpush.msra.mxu0 0.0
      %2191 = vmatpush.msra.mxu0 0.0
      %2192 = vmatpush.msra.mxu0 0.0
      %2193 = vmatpush.msra.mxu0 %v1974
      %2194 = vmatpush.msra.mxu0 %v1971
      %2195 = vmatpush.msra.mxu0 %v1968
      %2196 = vmatpush.msra.mxu0 %v1965
      %2197 = vmatpush.msra.mxu0 %v1962
      %2198 = vmatpush.msra.mxu0 %v1959
      %2199 = vmatpush.msra.mxu0 %v1956
      %2200 = vmatpush.msra.mxu0 %v1953
      %2201 = vmatmul.f32.gmra.mxu0 %v2162
      %v2202 = vpop.f32.mrf.mxu0
      %v2203 = vadd.f32 0.0, %v2202
      %2204 = vmatmul.f32.gmra.mxu0 %v2165
      %v2205 = vpop.f32.mrf.mxu0
      %v2206 = vadd.f32 0.0, %v2205
      %2207 = vmatmul.f32.gmra.mxu0 %v2168
      %v2208 = vpop.f32.mrf.mxu0
      %v2209 = vadd.f32 0.0, %v2208
      %2210 = vmatmul.f32.gmra.mxu0 %v2171
      %v2211 = vpop.f32.mrf.mxu0
      %v2212 = vadd.f32 0.0, %v2211
      %2213 = vmatmul.f32.gmra.mxu0 %v2174
      %v2214 = vpop.f32.mrf.mxu0
      %v2215 = vadd.f32 0.0, %v2214
      %2216 = vmatmul.f32.gmra.mxu0 %v2177
      %v2217 = vpop.f32.mrf.mxu0
      %v2218 = vadd.f32 0.0, %v2217
      %2219 = vmatmul.f32.gmra.mxu0 %v2180
      %v2220 = vpop.f32.mrf.mxu0
      %v2221 = vadd.f32 0.0, %v2220
      %2222 = vmatmul.f32.gmra.mxu0 %v2183
      %v2223 = vpop.f32.mrf.mxu0
      %v2224 = vadd.f32 0.0, %v2223
      %2225 = vdwg.mxu0
      %s2226 = scalar_lea.vmem %s795, 16
      %v2227 = vld [vmem:[%s2226] sm:$0xff]
      %v2229 = vsel %vm1035, %v2203, 0
      %v2232 = vsel %vm1035, %v2206, 0
      %v2235 = vsel %vm1035, %v2209, 0
      %v2238 = vsel %vm1035, %v2212, 0
      %v2241 = vsel %vm1035, %v2215, 0
      %v2244 = vsel %vm1035, %v2218, 0
      %v2247 = vsel %vm1035, %v2221, 0
      %v2250 = vsel %vm1035, %v2224, 0
      %2252 = vmatpush.msra.mxu0 0.0
      %2253 = vmatpush.msra.mxu0 0.0
      %2254 = vmatpush.msra.mxu0 0.0
      %2255 = vmatpush.msra.mxu0 0.0
      %2256 = vmatpush.msra.mxu0 0.0
      %2257 = vmatpush.msra.mxu0 0.0
      %2258 = vmatpush.msra.mxu0 0.0
      %2259 = vmatpush.msra.mxu0 0.0
      %2260 = vmatpush.msra.mxu0 0.0
      %2261 = vmatpush.msra.mxu0 0.0
      %2262 = vmatpush.msra.mxu0 0.0
      %2263 = vmatpush.msra.mxu0 0.0
      %2264 = vmatpush.msra.mxu0 0.0
      %2265 = vmatpush.msra.mxu0 0.0
      %2266 = vmatpush.msra.mxu0 0.0
      %2267 = vmatpush.msra.mxu0 %v2227
      %2268 = vmatmul.f32.gmra.mxu0 %v2229
      %v2269 = vpop.f32.mrf.mxu0
      %v2270 = vadd.f32 0.0, %v2269
      %2271 = vmatmul.f32.gmra.mxu0 %v2232
      %v2272 = vpop.f32.mrf.mxu0
      %v2273 = vadd.f32 0.0, %v2272
      %2274 = vmatmul.f32.gmra.mxu0 %v2235
      %v2275 = vpop.f32.mrf.mxu0
      %v2276 = vadd.f32 0.0, %v2275
      %2277 = vmatmul.f32.gmra.mxu0 %v2238
      %v2278 = vpop.f32.mrf.mxu0
      %v2279 = vadd.f32 0.0, %v2278
      %2280 = vmatmul.f32.gmra.mxu0 %v2241
      %v2281 = vpop.f32.mrf.mxu0
      %v2282 = vadd.f32 0.0, %v2281
      %2283 = vmatmul.f32.gmra.mxu0 %v2244
      %v2284 = vpop.f32.mrf.mxu0
      %v2285 = vadd.f32 0.0, %v2284
      %2286 = vmatmul.f32.gmra.mxu0 %v2247
      %v2287 = vpop.f32.mrf.mxu0
      %v2288 = vadd.f32 0.0, %v2287
      %2289 = vmatmul.f32.gmra.mxu0 %v2250
      %v2290 = vpop.f32.mrf.mxu0
      %v2291 = vadd.f32 0.0, %v2290
      %2292 = vdwg.mxu0
      %v2293 = vadd.f32 %v1800, %v2270
      %v2294 = vadd.f32 %v1803, %v2273
      %v2295 = vadd.f32 %v1806, %v2276
      %v2296 = vadd.f32 %v1809, %v2279
      %v2297 = vadd.f32 %v1812, %v2282
      %v2298 = vadd.f32 %v1815, %v2285
      %v2299 = vadd.f32 %v1818, %v2288
      %v2300 = vadd.f32 %v1821, %v2291
      %s2301 = scalar_lea.vmem %s768, 96
      %v2302 = vld [vmem:[%s2301] sm:$0xff]
      %v2303 = vld [vmem:[%s2301 + $0x8] sm:$0xff]
      %v2304 = vld [vmem:[%s2301 + $0x10] sm:$0xff]
      %v2305 = vld [vmem:[%s2301 + $0x18] sm:$0xff]
      %s2306 = scalar_lea.vmem %s782, 3
      %v2307 = vld [vmem:[%s2306] sm:$0x1]
      %v2309 = vperm.slane %v2307, 0
      %2311 = vmatpush.msra.mxu0 0.0
      %2312 = vmatpush.msra.mxu0 0.0
      %2313 = vmatpush.msra.mxu0 0.0
      %2314 = vmatpush.msra.mxu0 0.0
      %2315 = vmatpush.msra.mxu0 0.0
      %2316 = vmatpush.msra.mxu0 0.0
      %2317 = vmatpush.msra.mxu0 0.0
      %2318 = vmatpush.msra.mxu0 0.0
      %2319 = vmatpush.msra.mxu0 0.0
      %2320 = vmatpush.msra.mxu0 0.0
      %2321 = vmatpush.msra.mxu0 0.0
      %2322 = vmatpush.msra.mxu0 0.0
      %2323 = vmatpush.msra.mxu0 %v2305
      %2324 = vmatpush.msra.mxu0 %v2304
      %2325 = vmatpush.msra.mxu0 %v2303
      %2326 = vmatpush.msra.mxu0 %v2302
      %2327 = vmatmul.f32.gmra.mxu0 %v873
      %v2328 = vpop.f32.mrf.mxu0
      %v2329 = vadd.f32 %v2309, %v2328
      %2330 = vmatmul.f32.gmra.mxu0 %v876
      %v2331 = vpop.f32.mrf.mxu0
      %v2332 = vadd.f32 %v2309, %v2331
      %2333 = vmatmul.f32.gmra.mxu0 %v879
      %v2334 = vpop.f32.mrf.mxu0
      %v2335 = vadd.f32 %v2309, %v2334
      %2336 = vmatmul.f32.gmra.mxu0 %v882
      %v2337 = vpop.f32.mrf.mxu0
      %v2338 = vadd.f32 %v2309, %v2337
      %2339 = vmatmul.f32.gmra.mxu0 %v885
      %v2340 = vpop.f32.mrf.mxu0
      %v2341 = vadd.f32 %v2309, %v2340
      %2342 = vmatmul.f32.gmra.mxu0 %v888
      %v2343 = vpop.f32.mrf.mxu0
      %v2344 = vadd.f32 %v2309, %v2343
      %2345 = vmatmul.f32.gmra.mxu0 %v891
      %v2346 = vpop.f32.mrf.mxu0
      %v2347 = vadd.f32 %v2309, %v2346
      %2348 = vmatmul.f32.gmra.mxu0 %v894
      %v2349 = vpop.f32.mrf.mxu0
      %v2350 = vadd.f32 %v2309, %v2349
      %2351 = vdwg.mxu0
      %s2352 = scalar_lea.vmem %s773, 96
      %v2353 = vld [vmem:[%s2352] sm:$0xff]
      %v2354 = vld [vmem:[%s2352 + $0x8] sm:$0xff]
      %v2355 = vld [vmem:[%s2352 + $0x10] sm:$0xff]
      %v2356 = vld [vmem:[%s2352 + $0x18] sm:$0xff]
      %s2357 = scalar_lea.vmem %s786, 3
      %v2358 = vld [vmem:[%s2357] sm:$0x1]
      %v2360 = vperm.slane %v2358, 0
      %2362 = vmatpush.msra.mxu0 0.0
      %2363 = vmatpush.msra.mxu0 0.0
      %2364 = vmatpush.msra.mxu0 0.0
      %2365 = vmatpush.msra.mxu0 0.0
      %2366 = vmatpush.msra.mxu0 0.0
      %2367 = vmatpush.msra.mxu0 0.0
      %2368 = vmatpush.msra.mxu0 0.0
      %2369 = vmatpush.msra.mxu0 0.0
      %2370 = vmatpush.msra.mxu0 0.0
      %2371 = vmatpush.msra.mxu0 0.0
      %2372 = vmatpush.msra.mxu0 0.0
      %2373 = vmatpush.msra.mxu0 0.0
      %2374 = vmatpush.msra.mxu0 %v2356
      %2375 = vmatpush.msra.mxu0 %v2355
      %2376 = vmatpush.msra.mxu0 %v2354
      %2377 = vmatpush.msra.mxu0 %v2353
      %2378 = vmatmul.f32.gmra.mxu0 %v873
      %v2379 = vpop.f32.mrf.mxu0
      %v2380 = vadd.f32 %v2360, %v2379
      %2381 = vmatmul.f32.gmra.mxu0 %v876
      %v2382 = vpop.f32.mrf.mxu0
      %v2383 = vadd.f32 %v2360, %v2382
      %2384 = vmatmul.f32.gmra.mxu0 %v879
      %v2385 = vpop.f32.mrf.mxu0
      %v2386 = vadd.f32 %v2360, %v2385
      %2387 = vmatmul.f32.gmra.mxu0 %v882
      %v2388 = vpop.f32.mrf.mxu0
      %v2389 = vadd.f32 %v2360, %v2388
      %2390 = vmatmul.f32.gmra.mxu0 %v885
      %v2391 = vpop.f32.mrf.mxu0
      %v2392 = vadd.f32 %v2360, %v2391
      %2393 = vmatmul.f32.gmra.mxu0 %v888
      %v2394 = vpop.f32.mrf.mxu0
      %v2395 = vadd.f32 %v2360, %v2394
      %2396 = vmatmul.f32.gmra.mxu0 %v891
      %v2397 = vpop.f32.mrf.mxu0
      %v2398 = vadd.f32 %v2360, %v2397
      %2399 = vmatmul.f32.gmra.mxu0 %v894
      %v2400 = vpop.f32.mrf.mxu0
      %v2401 = vadd.f32 %v2360, %v2400
      %2402 = vdwg.mxu0
      %s2403 = scalar_lea.vmem %s778, 96
      %v2404 = vld [vmem:[%s2403] sm:$0xff]
      %v2405 = vld [vmem:[%s2403 + $0x8] sm:$0xff]
      %v2406 = vld [vmem:[%s2403 + $0x10] sm:$0xff]
      %v2407 = vld [vmem:[%s2403 + $0x18] sm:$0xff]
      %s2408 = scalar_lea.vmem %s790, 3
      %v2409 = vld [vmem:[%s2408] sm:$0x1]
      %v2411 = vperm.slane %v2409, 0
      %2413 = vmatpush.msra.mxu0 0.0
      %2414 = vmatpush.msra.mxu0 0.0
      %2415 = vmatpush.msra.mxu0 0.0
      %2416 = vmatpush.msra.mxu0 0.0
      %2417 = vmatpush.msra.mxu0 0.0
      %2418 = vmatpush.msra.mxu0 0.0
      %2419 = vmatpush.msra.mxu0 0.0
      %2420 = vmatpush.msra.mxu0 0.0
      %2421 = vmatpush.msra.mxu0 0.0
      %2422 = vmatpush.msra.mxu0 0.0
      %2423 = vmatpush.msra.mxu0 0.0
      %2424 = vmatpush.msra.mxu0 0.0
      %2425 = vmatpush.msra.mxu0 %v2407
      %2426 = vmatpush.msra.mxu0 %v2406
      %2427 = vmatpush.msra.mxu0 %v2405
      %2428 = vmatpush.msra.mxu0 %v2404
      %2429 = vmatmul.f32.gmra.mxu0 %v873
      %v2430 = vpop.f32.mrf.mxu0
      %v2431 = vadd.f32 %v2411, %v2430
      %2432 = vmatmul.f32.gmra.mxu0 %v876
      %v2433 = vpop.f32.mrf.mxu0
      %v2434 = vadd.f32 %v2411, %v2433
      %2435 = vmatmul.f32.gmra.mxu0 %v879
      %v2436 = vpop.f32.mrf.mxu0
      %v2437 = vadd.f32 %v2411, %v2436
      %2438 = vmatmul.f32.gmra.mxu0 %v882
      %v2439 = vpop.f32.mrf.mxu0
      %v2440 = vadd.f32 %v2411, %v2439
      %2441 = vmatmul.f32.gmra.mxu0 %v885
      %v2442 = vpop.f32.mrf.mxu0
      %v2443 = vadd.f32 %v2411, %v2442
      %2444 = vmatmul.f32.gmra.mxu0 %v888
      %v2445 = vpop.f32.mrf.mxu0
      %v2446 = vadd.f32 %v2411, %v2445
      %2447 = vmatmul.f32.gmra.mxu0 %v891
      %v2448 = vpop.f32.mrf.mxu0
      %v2449 = vadd.f32 %v2411, %v2448
      %2450 = vmatmul.f32.gmra.mxu0 %v894
      %v2451 = vpop.f32.mrf.mxu0
      %v2452 = vadd.f32 %v2411, %v2451
      %2453 = vdwg.mxu0
      %v2455 = vsel %vm1035, %v2329, 0
      %v2458 = vsel %vm1035, %v2332, 0
      %v2461 = vsel %vm1035, %v2335, 0
      %v2464 = vsel %vm1035, %v2338, 0
      %v2467 = vsel %vm1035, %v2341, 0
      %v2470 = vsel %vm1035, %v2344, 0
      %v2473 = vsel %vm1035, %v2347, 0
      %v2476 = vsel %vm1035, %v2350, 0
      %v2479 = vsel %vm1035, %v2380, 0
      %v2482 = vsel %vm1035, %v2383, 0
      %v2485 = vsel %vm1035, %v2386, 0
      %v2488 = vsel %vm1035, %v2389, 0
      %v2491 = vsel %vm1035, %v2392, 0
      %v2494 = vsel %vm1035, %v2395, 0
      %v2497 = vsel %vm1035, %v2398, 0
      %v2500 = vsel %vm1035, %v2401, 0
      %2502 = vmatpush.xpose.msra.mxu0 0.0
      %2503 = vmatpush.xpose.msra.mxu0 0.0
      %2504 = vmatpush.xpose.msra.mxu0 0.0
      %2505 = vmatpush.xpose.msra.mxu0 0.0
      %2506 = vmatpush.xpose.msra.mxu0 0.0
      %2507 = vmatpush.xpose.msra.mxu0 0.0
      %2508 = vmatpush.xpose.msra.mxu0 0.0
      %2509 = vmatpush.xpose.msra.mxu0 0.0
      %2510 = vmatpush.xpose.msra.mxu0 %v2500
      %2511 = vmatpush.xpose.msra.mxu0 %v2497
      %2512 = vmatpush.xpose.msra.mxu0 %v2494
      %2513 = vmatpush.xpose.msra.mxu0 %v2491
      %2514 = vmatpush.xpose.msra.mxu0 %v2488
      %2515 = vmatpush.xpose.msra.mxu0 %v2485
      %2516 = vmatpush.xpose.msra.mxu0 %v2482
      %2517 = vmatpush.xpose.msra.mxu0 %v2479
      %2518 = vmatmul.f32.gmra.mxu0 %v2455
      %v2519 = vpop.f32.mrf.mxu0
      %v2520 = vadd.f32 0.0, %v2519
      %2521 = vmatmul.f32.gmra.mxu0 %v2458
      %v2522 = vpop.f32.mrf.mxu0
      %v2523 = vadd.f32 0.0, %v2522
      %2524 = vmatmul.f32.gmra.mxu0 %v2461
      %v2525 = vpop.f32.mrf.mxu0
      %v2526 = vadd.f32 0.0, %v2525
      %2527 = vmatmul.f32.gmra.mxu0 %v2464
      %v2528 = vpop.f32.mrf.mxu0
      %v2529 = vadd.f32 0.0, %v2528
      %2530 = vmatmul.f32.gmra.mxu0 %v2467
      %v2531 = vpop.f32.mrf.mxu0
      %v2532 = vadd.f32 0.0, %v2531
      %2533 = vmatmul.f32.gmra.mxu0 %v2470
      %v2534 = vpop.f32.mrf.mxu0
      %v2535 = vadd.f32 0.0, %v2534
      %2536 = vmatmul.f32.gmra.mxu0 %v2473
      %v2537 = vpop.f32.mrf.mxu0
      %v2538 = vadd.f32 0.0, %v2537
      %2539 = vmatmul.f32.gmra.mxu0 %v2476
      %v2540 = vpop.f32.mrf.mxu0
      %v2541 = vadd.f32 0.0, %v2540
      %2542 = vdwg.mxu0
      %v2543 = vmul.f32 %v2520, 0.35355338
      %v2544 = vmul.f32 %v2523, 0.35355338
      %v2545 = vmul.f32 %v2526, 0.35355338
      %v2546 = vmul.f32 %v2529, 0.35355338
      %v2547 = vmul.f32 %v2532, 0.35355338
      %v2548 = vmul.f32 %v2535, 0.35355338
      %v2549 = vmul.f32 %v2538, 0.35355338
      %v2550 = vmul.f32 %v2541, 0.35355338
      %v2551 = vsel %vm1133, %v2543, -inf
      %2552 = vmax.xlane.f32.xlu0 %v2551
      %v2553 = vpop.xlane.xlu0 %2552
      %v2554 = vsel %vm1133, %v2544, -inf
      %2555 = vmax.xlane.f32.xlu0 %v2554
      %v2556 = vpop.xlane.xlu0 %2555
      %v2557 = vsel %vm1133, %v2545, -inf
      %2558 = vmax.xlane.f32.xlu0 %v2557
      %v2559 = vpop.xlane.xlu0 %2558
      %v2560 = vsel %vm1133, %v2546, -inf
      %2561 = vmax.xlane.f32.xlu0 %v2560
      %v2562 = vpop.xlane.xlu0 %2561
      %v2563 = vsel %vm1133, %v2547, -inf
      %2564 = vmax.xlane.f32.xlu0 %v2563
      %v2565 = vpop.xlane.xlu0 %2564
      %v2566 = vsel %vm1133, %v2548, -inf
      %2567 = vmax.xlane.f32.xlu0 %v2566
      %v2568 = vpop.xlane.xlu0 %2567
      %v2569 = vsel %vm1133, %v2549, -inf
      %2570 = vmax.xlane.f32.xlu0 %v2569
      %v2571 = vpop.xlane.xlu0 %2570
      %v2572 = vsel %vm1133, %v2550, -inf
      %2573 = vmax.xlane.f32.xlu0 %v2572
      %v2574 = vpop.xlane.xlu0 %2573
      %v2575 = vsub.f32 %v2543, %v2553
      %v2576 = vsub.f32 %v2544, %v2556
      %v2577 = vsub.f32 %v2545, %v2559
      %v2578 = vsub.f32 %v2546, %v2562
      %v2579 = vsub.f32 %v2547, %v2565
      %v2580 = vsub.f32 %v2548, %v2568
      %v2581 = vsub.f32 %v2549, %v2571
      %v2582 = vsub.f32 %v2550, %v2574
      %v2583 = vmul.f32 %v2575, 1.442695
      %v2584 = vpow.pop %v2583
      %v2585 = vmul.f32 %v2576, 1.442695
      %v2586 = vpow.pop %v2585
      %v2587 = vmul.f32 %v2577, 1.442695
      %v2588 = vpow.pop %v2587
      %v2589 = vmul.f32 %v2578, 1.442695
      %v2590 = vpow.pop %v2589
      %v2591 = vmul.f32 %v2579, 1.442695
      %v2592 = vpow.pop %v2591
      %v2593 = vmul.f32 %v2580, 1.442695
      %v2594 = vpow.pop %v2593
      %v2595 = vmul.f32 %v2581, 1.442695
      %v2596 = vpow.pop %v2595
      %v2597 = vmul.f32 %v2582, 1.442695
      %v2598 = vpow.pop %v2597
      %v2599 = vsel %vm1133, %v2584, 0.0
      %2600 = vadd.xlane.f32.xlu0 %v2599
      %v2601 = vpop.xlane.xlu0 %2600
      %v2602 = vsel %vm1133, %v2586, 0.0
      %2603 = vadd.xlane.f32.xlu0 %v2602
      %v2604 = vpop.xlane.xlu0 %2603
      %v2605 = vsel %vm1133, %v2588, 0.0
      %2606 = vadd.xlane.f32.xlu0 %v2605
      %v2607 = vpop.xlane.xlu0 %2606
      %v2608 = vsel %vm1133, %v2590, 0.0
      %2609 = vadd.xlane.f32.xlu0 %v2608
      %v2610 = vpop.xlane.xlu0 %2609
      %v2611 = vsel %vm1133, %v2592, 0.0
      %2612 = vadd.xlane.f32.xlu0 %v2611
      %v2613 = vpop.xlane.xlu0 %2612
      %v2614 = vsel %vm1133, %v2594, 0.0
      %2615 = vadd.xlane.f32.xlu0 %v2614
      %v2616 = vpop.xlane.xlu0 %2615
      %v2617 = vsel %vm1133, %v2596, 0.0
      %2618 = vadd.xlane.f32.xlu0 %v2617
      %v2619 = vpop.xlane.xlu0 %2618
      %v2620 = vsel %vm1133, %v2598, 0.0
      %2621 = vadd.xlane.f32.xlu0 %v2620
      %v2622 = vpop.xlane.xlu0 %2621
      %v2623 = vrcp.pop %v2601
      %v2624 = vrcp.pop %v2604
      %v2625 = vrcp.pop %v2607
      %v2626 = vrcp.pop %v2610
      %v2627 = vrcp.pop %v2613
      %v2628 = vrcp.pop %v2616
      %v2629 = vrcp.pop %v2619
      %v2630 = vrcp.pop %v2622
      %v2631 = vmul.f32 %v2584, %v2623
      %v2632 = vmul.f32 %v2586, %v2624
      %v2633 = vmul.f32 %v2588, %v2625
      %v2634 = vmul.f32 %v2590, %v2626
      %v2635 = vmul.f32 %v2592, %v2627
      %v2636 = vmul.f32 %v2594, %v2628
      %v2637 = vmul.f32 %v2596, %v2629
      %v2638 = vmul.f32 %v2598, %v2630
      %v2640 = vsel %vm1133, %v2631, 0
      %v2643 = vsel %vm1133, %v2632, 0
      %v2646 = vsel %vm1133, %v2633, 0
      %v2649 = vsel %vm1133, %v2634, 0
      %v2652 = vsel %vm1133, %v2635, 0
      %v2655 = vsel %vm1133, %v2636, 0
      %v2658 = vsel %vm1133, %v2637, 0
      %v2661 = vsel %vm1133, %v2638, 0
      %2663 = vmatpush.msra.mxu0 0.0
      %2664 = vmatpush.msra.mxu0 0.0
      %2665 = vmatpush.msra.mxu0 0.0
      %2666 = vmatpush.msra.mxu0 0.0
      %2667 = vmatpush.msra.mxu0 0.0
      %2668 = vmatpush.msra.mxu0 0.0
      %2669 = vmatpush.msra.mxu0 0.0
      %2670 = vmatpush.msra.mxu0 0.0
      %2671 = vmatpush.msra.mxu0 %v2452
      %2672 = vmatpush.msra.mxu0 %v2449
      %2673 = vmatpush.msra.mxu0 %v2446
      %2674 = vmatpush.msra.mxu0 %v2443
      %2675 = vmatpush.msra.mxu0 %v2440
      %2676 = vmatpush.msra.mxu0 %v2437
      %2677 = vmatpush.msra.mxu0 %v2434
      %2678 = vmatpush.msra.mxu0 %v2431
      %2679 = vmatmul.f32.gmra.mxu0 %v2640
      %v2680 = vpop.f32.mrf.mxu0
      %v2681 = vadd.f32 0.0, %v2680
      %2682 = vmatmul.f32.gmra.mxu0 %v2643
      %v2683 = vpop.f32.mrf.mxu0
      %v2684 = vadd.f32 0.0, %v2683
      %2685 = vmatmul.f32.gmra.mxu0 %v2646
      %v2686 = vpop.f32.mrf.mxu0
      %v2687 = vadd.f32 0.0, %v2686
      %2688 = vmatmul.f32.gmra.mxu0 %v2649
      %v2689 = vpop.f32.mrf.mxu0
      %v2690 = vadd.f32 0.0, %v2689
      %2691 = vmatmul.f32.gmra.mxu0 %v2652
      %v2692 = vpop.f32.mrf.mxu0
      %v2693 = vadd.f32 0.0, %v2692
      %2694 = vmatmul.f32.gmra.mxu0 %v2655
      %v2695 = vpop.f32.mrf.mxu0
      %v2696 = vadd.f32 0.0, %v2695
      %2697 = vmatmul.f32.gmra.mxu0 %v2658
      %v2698 = vpop.f32.mrf.mxu0
      %v2699 = vadd.f32 0.0, %v2698
      %2700 = vmatmul.f32.gmra.mxu0 %v2661
      %v2701 = vpop.f32.mrf.mxu0
      %v2702 = vadd.f32 0.0, %v2701
      %2703 = vdwg.mxu0
      %s2704 = scalar_lea.vmem %s795, 24
      %v2705 = vld [vmem:[%s2704] sm:$0xff]
      %v2707 = vsel %vm1035, %v2681, 0
      %v2710 = vsel %vm1035, %v2684, 0
      %v2713 = vsel %vm1035, %v2687, 0
      %v2716 = vsel %vm1035, %v2690, 0
      %v2719 = vsel %vm1035, %v2693, 0
      %v2722 = vsel %vm1035, %v2696, 0
      %v2725 = vsel %vm1035, %v2699, 0
      %v2728 = vsel %vm1035, %v2702, 0
      %2730 = vmatpush.msra.mxu0 0.0
      %2731 = vmatpush.msra.mxu0 0.0
      %2732 = vmatpush.msra.mxu0 0.0
      %2733 = vmatpush.msra.mxu0 0.0
      %2734 = vmatpush.msra.mxu0 0.0
      %2735 = vmatpush.msra.mxu0 0.0
      %2736 = vmatpush.msra.mxu0 0.0
      %2737 = vmatpush.msra.mxu0 0.0
      %2738 = vmatpush.msra.mxu0 0.0
      %2739 = vmatpush.msra.mxu0 0.0
      %2740 = vmatpush.msra.mxu0 0.0
      %2741 = vmatpush.msra.mxu0 0.0
      %2742 = vmatpush.msra.mxu0 0.0
      %2743 = vmatpush.msra.mxu0 0.0
      %2744 = vmatpush.msra.mxu0 0.0
      %2745 = vmatpush.msra.mxu0 %v2705
      %2746 = vmatmul.f32.gmra.mxu0 %v2707
      %v2747 = vpop.f32.mrf.mxu0
      %v2748 = vadd.f32 0.0, %v2747
      %2749 = vmatmul.f32.gmra.mxu0 %v2710
      %v2750 = vpop.f32.mrf.mxu0
      %v2751 = vadd.f32 0.0, %v2750
      %2752 = vmatmul.f32.gmra.mxu0 %v2713
      %v2753 = vpop.f32.mrf.mxu0
      %v2754 = vadd.f32 0.0, %v2753
      %2755 = vmatmul.f32.gmra.mxu0 %v2716
      %v2756 = vpop.f32.mrf.mxu0
      %v2757 = vadd.f32 0.0, %v2756
      %2758 = vmatmul.f32.gmra.mxu0 %v2719
      %v2759 = vpop.f32.mrf.mxu0
      %v2760 = vadd.f32 0.0, %v2759
      %2761 = vmatmul.f32.gmra.mxu0 %v2722
      %v2762 = vpop.f32.mrf.mxu0
      %v2763 = vadd.f32 0.0, %v2762
      %2764 = vmatmul.f32.gmra.mxu0 %v2725
      %v2765 = vpop.f32.mrf.mxu0
      %v2766 = vadd.f32 0.0, %v2765
      %2767 = vmatmul.f32.gmra.mxu0 %v2728
      %v2768 = vpop.f32.mrf.mxu0
      %v2769 = vadd.f32 0.0, %v2768
      %2770 = vdwg.mxu0
      %v2771 = vadd.f32 %v2293, %v2748
      %v2772 = vadd.f32 %v2294, %v2751
      %v2773 = vadd.f32 %v2295, %v2754
      %v2774 = vadd.f32 %v2296, %v2757
      %v2775 = vadd.f32 %v2297, %v2760
      %v2776 = vadd.f32 %v2298, %v2763
      %v2777 = vadd.f32 %v2299, %v2766
      %v2778 = vadd.f32 %v2300, %v2769
      %v2779 = vld [vmem:[%s798] sm:$0x1]
      %v2781 = vperm.slane %v2779, 0
      %v2783 = vadd.f32 %v2771, %v2781
      %v2784 = vadd.f32 %v2772, %v2781
      %v2785 = vadd.f32 %v2773, %v2781
      %v2786 = vadd.f32 %v2774, %v2781
      %v2787 = vadd.f32 %v2775, %v2781
      %v2788 = vadd.f32 %v2776, %v2781
      %v2789 = vadd.f32 %v2777, %v2781
      %v2790 = vadd.f32 %v2778, %v2781
      %v2791 = vadd.f32 %v855, %v2783
      %v2792 = vadd.f32 %v856, %v2784
      %v2793 = vadd.f32 %v857, %v2785
      %v2794 = vadd.f32 %v858, %v2786
      %v2795 = vadd.f32 %v859, %v2787
      %v2796 = vadd.f32 %v860, %v2788
      %v2797 = vadd.f32 %v861, %v2789
      %v2798 = vadd.f32 %v862, %v2790
      %v2799 = vld [vmem:[%s801] sm:$0x1]
      %v2800 = vld [vmem:[%s804] sm:$0x1]
      %v2801 = vsel %vm871, %v2791, 0.0
      %2802 = vadd.xlane.f32.xlu0 %v2801
      %v2803 = vpop.xlane.xlu0 %2802
      %v2804 = vsel %vm871, %v2792, 0.0
      %2805 = vadd.xlane.f32.xlu0 %v2804
      %v2806 = vpop.xlane.xlu0 %2805
      %v2807 = vsel %vm871, %v2793, 0.0
      %2808 = vadd.xlane.f32.xlu0 %v2807
      %v2809 = vpop.xlane.xlu0 %2808
      %v2810 = vsel %vm871, %v2794, 0.0
      %2811 = vadd.xlane.f32.xlu0 %v2810
      %v2812 = vpop.xlane.xlu0 %2811
      %v2813 = vsel %vm871, %v2795, 0.0
      %2814 = vadd.xlane.f32.xlu0 %v2813
      %v2815 = vpop.xlane.xlu0 %2814
      %v2816 = vsel %vm871, %v2796, 0.0
      %2817 = vadd.xlane.f32.xlu0 %v2816
      %v2818 = vpop.xlane.xlu0 %2817
      %v2819 = vsel %vm871, %v2797, 0.0
      %2820 = vadd.xlane.f32.xlu0 %v2819
      %v2821 = vpop.xlane.xlu0 %2820
      %v2822 = vsel %vm871, %v2798, 0.0
      %2823 = vadd.xlane.f32.xlu0 %v2822
      %v2824 = vpop.xlane.xlu0 %2823
      %v2825 = vrcp.pop 32.0
      %v2826 = vmul.f32 32.0, %v2825
      %v2827 = vsub.f32 1.0, %v2826
      %v2828 = vmul.f32 %v2825, %v2827
      %v2829 = vadd.f32 %v2825, %v2828
      %vm2830 = vweird.f32 %v2825
      %v2831 = vsel %vm2830, %v2825, %v2829
      %v2832 = vmul.f32 %v2803, %v2831
      %v2833 = vmul.f32 %v2806, %v2831
      %v2834 = vmul.f32 %v2809, %v2831
      %v2835 = vmul.f32 %v2812, %v2831
      %v2836 = vmul.f32 %v2815, %v2831
      %v2837 = vmul.f32 %v2818, %v2831
      %v2838 = vmul.f32 %v2821, %v2831
      %v2839 = vmul.f32 %v2824, %v2831
      %v2840 = vsub.f32 %v2791, %v2832
      %v2841 = vsub.f32 %v2792, %v2833
      %v2842 = vsub.f32 %v2793, %v2834
      %v2843 = vsub.f32 %v2794, %v2835
      %v2844 = vsub.f32 %v2795, %v2836
      %v2845 = vsub.f32 %v2796, %v2837
      %v2846 = vsub.f32 %v2797, %v2838
      %v2847 = vsub.f32 %v2798, %v2839
      %v2848 = vmul.f32 %v2840, %v2840
      %v2849 = vmul.f32 %v2841, %v2841
      %v2850 = vmul.f32 %v2842, %v2842
      %v2851 = vmul.f32 %v2843, %v2843
      %v2852 = vmul.f32 %v2844, %v2844
      %v2853 = vmul.f32 %v2845, %v2845
      %v2854 = vmul.f32 %v2846, %v2846
      %v2855 = vmul.f32 %v2847, %v2847
      %v2856 = vsel %vm871, %v2848, 0.0
      %2857 = vadd.xlane.f32.xlu0 %v2856
      %v2858 = vpop.xlane.xlu0 %2857
      %v2859 = vsel %vm871, %v2849, 0.0
      %2860 = vadd.xlane.f32.xlu0 %v2859
      %v2861 = vpop.xlane.xlu0 %2860
      %v2862 = vsel %vm871, %v2850, 0.0
      %2863 = vadd.xlane.f32.xlu0 %v2862
      %v2864 = vpop.xlane.xlu0 %2863
      %v2865 = vsel %vm871, %v2851, 0.0
      %2866 = vadd.xlane.f32.xlu0 %v2865
      %v2867 = vpop.xlane.xlu0 %2866
      %v2868 = vsel %vm871, %v2852, 0.0
      %2869 = vadd.xlane.f32.xlu0 %v2868
      %v2870 = vpop.xlane.xlu0 %2869
      %v2871 = vsel %vm871, %v2853, 0.0
      %2872 = vadd.xlane.f32.xlu0 %v2871
      %v2873 = vpop.xlane.xlu0 %2872
      %v2874 = vsel %vm871, %v2854, 0.0
      %2875 = vadd.xlane.f32.xlu0 %v2874
      %v2876 = vpop.xlane.xlu0 %2875
      %v2877 = vsel %vm871, %v2855, 0.0
      %2878 = vadd.xlane.f32.xlu0 %v2877
      %v2879 = vpop.xlane.xlu0 %2878
      %v2880 = vmul.f32 %v2858, %v2831
      %v2881 = vmul.f32 %v2861, %v2831
      %v2882 = vmul.f32 %v2864, %v2831
      %v2883 = vmul.f32 %v2867, %v2831
      %v2884 = vmul.f32 %v2870, %v2831
      %v2885 = vmul.f32 %v2873, %v2831
      %v2886 = vmul.f32 %v2876, %v2831
      %v2887 = vmul.f32 %v2879, %v2831
      %v2888 = vadd.f32 %v2880, 1e-05
      %v2889 = vadd.f32 %v2881, 1e-05
      %v2890 = vadd.f32 %v2882, 1e-05
      %v2891 = vadd.f32 %v2883, 1e-05
      %v2892 = vadd.f32 %v2884, 1e-05
      %v2893 = vadd.f32 %v2885, 1e-05
      %v2894 = vadd.f32 %v2886, 1e-05
      %v2895 = vadd.f32 %v2887, 1e-05
      %v2896 = vrsqrt.pop %v2888
      %v2897 = vmul.f32 %v2896, %v2888
      %v2898 = vmul.f32 %v2897, %v2896
      %v2899 = vmul.f32 0.5, %v2898
      %v2900 = vsub.f32 1.5, %v2899
      %v2901 = vmul.f32 %v2896, %v2900
      %vm2902 = vweird.f32 %v2888
      %vm2903 = vweird.f32 %v2896
      %vm2904 = vmor %vm2902, %vm2903
      %v2905 = vsel %vm2904, %v2896, %v2901
      %v2906 = vrsqrt.pop %v2889
      %v2907 = vmul.f32 %v2906, %v2889
      %v2908 = vmul.f32 %v2907, %v2906
      %v2909 = vmul.f32 0.5, %v2908
      %v2910 = vsub.f32 1.5, %v2909
      %v2911 = vmul.f32 %v2906, %v2910
      %vm2912 = vweird.f32 %v2889
      %vm2913 = vweird.f32 %v2906
      %vm2914 = vmor %vm2912, %vm2913
      %v2915 = vsel %vm2914, %v2906, %v2911
      %v2916 = vrsqrt.pop %v2890
      %v2917 = vmul.f32 %v2916, %v2890
      %v2918 = vmul.f32 %v2917, %v2916
      %v2919 = vmul.f32 0.5, %v2918
      %v2920 = vsub.f32 1.5, %v2919
      %v2921 = vmul.f32 %v2916, %v2920
      %vm2922 = vweird.f32 %v2890
      %vm2923 = vweird.f32 %v2916
      %vm2924 = vmor %vm2922, %vm2923
      %v2925 = vsel %vm2924, %v2916, %v2921
      %v2926 = vrsqrt.pop %v2891
      %v2927 = vmul.f32 %v2926, %v2891
      %v2928 = vmul.f32 %v2927, %v2926
      %v2929 = vmul.f32 0.5, %v2928
      %v2930 = vsub.f32 1.5, %v2929
      %v2931 = vmul.f32 %v2926, %v2930
      %vm2932 = vweird.f32 %v2891
      %vm2933 = vweird.f32 %v2926
      %vm2934 = vmor %vm2932, %vm2933
      %v2935 = vsel %vm2934, %v2926, %v2931
      %v2936 = vrsqrt.pop %v2892
      %v2937 = vmul.f32 %v2936, %v2892
      %v2938 = vmul.f32 %v2937, %v2936
      %v2939 = vmul.f32 0.5, %v2938
      %v2940 = vsub.f32 1.5, %v2939
      %v2941 = vmul.f32 %v2936, %v2940
      %vm2942 = vweird.f32 %v2892
      %vm2943 = vweird.f32 %v2936
      %vm2944 = vmor %vm2942, %vm2943
      %v2945 = vsel %vm2944, %v2936, %v2941
      %v2946 = vrsqrt.pop %v2893
      %v2947 = vmul.f32 %v2946, %v2893
      %v2948 = vmul.f32 %v2947, %v2946
      %v2949 = vmul.f32 0.5, %v2948
      %v2950 = vsub.f32 1.5, %v2949
      %v2951 = vmul.f32 %v2946, %v2950
      %vm2952 = vweird.f32 %v2893
      %vm2953 = vweird.f32 %v2946
      %vm2954 = vmor %vm2952, %vm2953
      %v2955 = vsel %vm2954, %v2946, %v2951
      %v2956 = vrsqrt.pop %v2894
      %v2957 = vmul.f32 %v2956, %v2894
      %v2958 = vmul.f32 %v2957, %v2956
      %v2959 = vmul.f32 0.5, %v2958
      %v2960 = vsub.f32 1.5, %v2959
      %v2961 = vmul.f32 %v2956, %v2960
      %vm2962 = vweird.f32 %v2894
      %vm2963 = vweird.f32 %v2956
      %vm2964 = vmor %vm2962, %vm2963
      %v2965 = vsel %vm2964, %v2956, %v2961
      %v2966 = vrsqrt.pop %v2895
      %v2967 = vmul.f32 %v2966, %v2895
      %v2968 = vmul.f32 %v2967, %v2966
      %v2969 = vmul.f32 0.5, %v2968
      %v2970 = vsub.f32 1.5, %v2969
      %v2971 = vmul.f32 %v2966, %v2970
      %vm2972 = vweird.f32 %v2895
      %vm2973 = vweird.f32 %v2966
      %vm2974 = vmor %vm2972, %vm2973
      %v2975 = vsel %vm2974, %v2966, %v2971
      %v2976 = vmul.f32 %v2840, %v2905
      %v2977 = vmul.f32 %v2841, %v2915
      %v2978 = vmul.f32 %v2842, %v2925
      %v2979 = vmul.f32 %v2843, %v2935
      %v2980 = vmul.f32 %v2844, %v2945
      %v2981 = vmul.f32 %v2845, %v2955
      %v2982 = vmul.f32 %v2846, %v2965
      %v2983 = vmul.f32 %v2847, %v2975
      %v2985 = vperm.slane %v2799, 0
      %v2987 = vmul.f32 %v2976, %v2985
      %v2988 = vmul.f32 %v2977, %v2985
      %v2989 = vmul.f32 %v2978, %v2985
      %v2990 = vmul.f32 %v2979, %v2985
      %v2991 = vmul.f32 %v2980, %v2985
      %v2992 = vmul.f32 %v2981, %v2985
      %v2993 = vmul.f32 %v2982, %v2985
      %v2994 = vmul.f32 %v2983, %v2985
      %v2996 = vperm.slane %v2800, 0
      %v2998 = vadd.f32 %v2987, %v2996
      %v2999 = vadd.f32 %v2988, %v2996
      %v3000 = vadd.f32 %v2989, %v2996
      %v3001 = vadd.f32 %v2990, %v2996
      %v3002 = vadd.f32 %v2991, %v2996
      %v3003 = vadd.f32 %v2992, %v2996
      %v3004 = vadd.f32 %v2993, %v2996
      %v3005 = vadd.f32 %v2994, %v2996
      %v3006 = vpack.c.bf16 %v2999, %v2998
      %v3007 = vpack.c.bf16 %v3001, %v3000
      %v3008 = vpack.c.bf16 %v3003, %v3002
      %v3009 = vpack.c.bf16 %v3005, %v3004
      %v3010 = vld [vmem:[%s809] sm:$0xff]
      %v3011 = vld [vmem:[%s809 + $0x8] sm:$0xff]
      %v3012 = vld [vmem:[%s809 + $0x10] sm:$0xff]
      %v3013 = vld [vmem:[%s809 + $0x18] sm:$0xff]
      %v3014 = vld [vmem:[%s809 + $0x20] sm:$0xff]
      %v3015 = vld [vmem:[%s809 + $0x28] sm:$0xff]
      %v3016 = vld [vmem:[%s809 + $0x30] sm:$0xff]
      %v3017 = vld [vmem:[%s809 + $0x38] sm:$0xff]
      %v3018 = vld [vmem:[%s809 + $0x40] sm:$0xff]
      %v3019 = vld [vmem:[%s809 + $0x48] sm:$0xff]
      %v3020 = vld [vmem:[%s809 + $0x50] sm:$0xff]
      %v3021 = vld [vmem:[%s809 + $0x58] sm:$0xff]
      %v3022 = vld [vmem:[%s809 + $0x60] sm:$0xff]
      %v3023 = vld [vmem:[%s809 + $0x68] sm:$0xff]
      %v3024 = vld [vmem:[%s809 + $0x70] sm:$0xff]
      %v3025 = vld [vmem:[%s809 + $0x78] sm:$0xff]
      %v3026 = vld [vmem:[%s813] sm:$0xff]
      %v3028 = vperm.slane %v3026, 0
      %v3029 = vperm.slane %v3026, 1
      %v3030 = vperm.slane %v3026, 2
      %v3031 = vperm.slane %v3026, 3
      %v3032 = vperm.slane %v3026, 4
      %v3033 = vperm.slane %v3026, 5
      %v3034 = vperm.slane %v3026, 6
      %v3035 = vperm.slane %v3026, 7
      %v3060 = vunpack.c.l.b16 %v3010
      %v3061 = vunpack.c.h.b16 %v3010
      %v3062 = vunpack.c.l.b16 %v3011
      %v3063 = vunpack.c.h.b16 %v3011
      %v3064 = vunpack.c.l.b16 %v3012
      %v3065 = vunpack.c.h.b16 %v3012
      %v3066 = vunpack.c.l.b16 %v3013
      %v3067 = vunpack.c.h.b16 %v3013
      %v3068 = vunpack.c.l.b16 %v3014
      %v3069 = vunpack.c.h.b16 %v3014
      %v3070 = vunpack.c.l.b16 %v3015
      %v3071 = vunpack.c.h.b16 %v3015
      %v3072 = vunpack.c.l.b16 %v3016
      %v3073 = vunpack.c.h.b16 %v3016
      %v3074 = vunpack.c.l.b16 %v3017
      %v3075 = vunpack.c.h.b16 %v3017
      %v3076 = vunpack.c.l.b16 %v3018
      %v3077 = vunpack.c.h.b16 %v3018
      %v3078 = vunpack.c.l.b16 %v3019
      %v3079 = vunpack.c.h.b16 %v3019
      %v3080 = vunpack.c.l.b16 %v3020
      %v3081 = vunpack.c.h.b16 %v3020
      %v3082 = vunpack.c.l.b16 %v3021
      %v3083 = vunpack.c.h.b16 %v3021
      %v3084 = vunpack.c.l.b16 %v3022
      %v3085 = vunpack.c.h.b16 %v3022
      %v3086 = vunpack.c.l.b16 %v3023
      %v3087 = vunpack.c.h.b16 %v3023
      %v3088 = vunpack.c.l.b16 %v3024
      %v3089 = vunpack.c.h.b16 %v3024
      %v3090 = vunpack.c.l.b16 %v3025
      %v3091 = vunpack.c.h.b16 %v3025
      %v3092 = vpack.c.b16 %v3068, %v3060
      %v3093 = vpack.c.b16 %v3069, %v3061
      %v3094 = vpack.c.b16 %v3070, %v3062
      %v3095 = vpack.c.b16 %v3071, %v3063
      %v3096 = vpack.c.b16 %v3072, %v3064
      %v3097 = vpack.c.b16 %v3073, %v3065
      %v3098 = vpack.c.b16 %v3074, %v3066
      %v3099 = vpack.c.b16 %v3075, %v3067
      %v3100 = vpack.c.b16 %v3084, %v3076
      %v3101 = vpack.c.b16 %v3085, %v3077
      %v3102 = vpack.c.b16 %v3086, %v3078
      %v3103 = vpack.c.b16 %v3087, %v3079
      %v3104 = vpack.c.b16 %v3088, %v3080
      %v3105 = vpack.c.b16 %v3089, %v3081
      %v3106 = vpack.c.b16 %v3090, %v3082
      %v3107 = vpack.c.b16 %v3091, %v3083
      %v3125 = vsel %vm871, %v3006, 0
      %v3128 = vsel %vm871, %v3007, 0
      %v3131 = vsel %vm871, %v3008, 0
      %v3134 = vsel %vm871, %v3009, 0
      %3136 = vmatpush.bf16.msra.mxu0 0
      %3137 = vmatpush.bf16.msra.mxu0 0
      %3138 = vmatpush.bf16.msra.mxu0 0
      %3139 = vmatpush.bf16.msra.mxu0 0
      %3140 = vmatpush.bf16.msra.mxu0 0
      %3141 = vmatpush.bf16.msra.mxu0 0
      %3142 = vmatpush.bf16.msra.mxu0 %v3100
      %3143 = vmatpush.bf16.msra.mxu0 %v3092
      %3144 = vmatmul.bf16.gmra.mxu0 %v3125
      %v3145 = vpop.f32.mrf.mxu0
      %v3146 = vadd.f32 %v3028, %v3145
      %v3147 = vpop.f32.mrf.mxu0
      %v3148 = vadd.f32 %v3028, %v3147
      %3149 = vmatmul.bf16.gmra.mxu0 %v3128
      %v3150 = vpop.f32.mrf.mxu0
      %v3151 = vadd.f32 %v3028, %v3150
      %v3152 = vpop.f32.mrf.mxu0
      %v3153 = vadd.f32 %v3028, %v3152
      %3154 = vmatmul.bf16.gmra.mxu0 %v3131
      %v3155 = vpop.f32.mrf.mxu0
      %v3156 = vadd.f32 %v3028, %v3155
      %v3157 = vpop.f32.mrf.mxu0
      %v3158 = vadd.f32 %v3028, %v3157
      %3159 = vmatmul.bf16.gmra.mxu0 %v3134
      %v3160 = vpop.f32.mrf.mxu0
      %v3161 = vadd.f32 %v3028, %v3160
      %v3162 = vpop.f32.mrf.mxu0
      %v3163 = vadd.f32 %v3028, %v3162
      %3164 = vdwg.mxu0
      %3165 = vmatpush.bf16.msra.mxu0 0
      %3166 = vmatpush.bf16.msra.mxu0 0
      %3167 = vmatpush.bf16.msra.mxu0 0
      %3168 = vmatpush.bf16.msra.mxu0 0
      %3169 = vmatpush.bf16.msra.mxu0 0
      %3170 = vmatpush.bf16.msra.mxu0 0
      %3171 = vmatpush.bf16.msra.mxu0 %v3101
      %3172 = vmatpush.bf16.msra.mxu0 %v3093
      %3173 = vmatmul.bf16.gmra.mxu0 %v3125
      %v3174 = vpop.f32.mrf.mxu0
      %v3175 = vadd.f32 %v3029, %v3174
      %v3176 = vpop.f32.mrf.mxu0
      %v3177 = vadd.f32 %v3029, %v3176
      %3178 = vmatmul.bf16.gmra.mxu0 %v3128
      %v3179 = vpop.f32.mrf.mxu0
      %v3180 = vadd.f32 %v3029, %v3179
      %v3181 = vpop.f32.mrf.mxu0
      %v3182 = vadd.f32 %v3029, %v3181
      %3183 = vmatmul.bf16.gmra.mxu0 %v3131
      %v3184 = vpop.f32.mrf.mxu0
      %v3185 = vadd.f32 %v3029, %v3184
      %v3186 = vpop.f32.mrf.mxu0
      %v3187 = vadd.f32 %v3029, %v3186
      %3188 = vmatmul.bf16.gmra.mxu0 %v3134
      %v3189 = vpop.f32.mrf.mxu0
      %v3190 = vadd.f32 %v3029, %v3189
      %v3191 = vpop.f32.mrf.mxu0
      %v3192 = vadd.f32 %v3029, %v3191
      %3193 = vdwg.mxu0
      %3194 = vmatpush.bf16.msra.mxu0 0
      %3195 = vmatpush.bf16.msra.mxu0 0
      %3196 = vmatpush.bf16.msra.mxu0 0
      %3197 = vmatpush.bf16.msra.mxu0 0
      %3198 = vmatpush.bf16.msra.mxu0 0
      %3199 = vmatpush.bf16.msra.mxu0 0
      %3200 = vmatpush.bf16.msra.mxu0 %v3102
      %3201 = vmatpush.bf16.msra.mxu0 %v3094
      %3202 = vmatmul.bf16.gmra.mxu0 %v3125
      %v3203 = vpop.f32.mrf.mxu0
      %v3204 = vadd.f32 %v3030, %v3203
      %v3205 = vpop.f32.mrf.mxu0
      %v3206 = vadd.f32 %v3030, %v3205
      %3207 = vmatmul.bf16.gmra.mxu0 %v3128
      %v3208 = vpop.f32.mrf.mxu0
      %v3209 = vadd.f32 %v3030, %v3208
      %v3210 = vpop.f32.mrf.mxu0
      %v3211 = vadd.f32 %v3030, %v3210
      %3212 = vmatmul.bf16.gmra.mxu0 %v3131
      %v3213 = vpop.f32.mrf.mxu0
      %v3214 = vadd.f32 %v3030, %v3213
      %v3215 = vpop.f32.mrf.mxu0
      %v3216 = vadd.f32 %v3030, %v3215
      %3217 = vmatmul.bf16.gmra.mxu0 %v3134
      %v3218 = vpop.f32.mrf.mxu0
      %v3219 = vadd.f32 %v3030, %v3218
      %v3220 = vpop.f32.mrf.mxu0
      %v3221 = vadd.f32 %v3030, %v3220
      %3222 = vdwg.mxu0
      %3223 = vmatpush.bf16.msra.mxu0 0
      %3224 = vmatpush.bf16.msra.mxu0 0
      %3225 = vmatpush.bf16.msra.mxu0 0
      %3226 = vmatpush.bf16.msra.mxu0 0
      %3227 = vmatpush.bf16.msra.mxu0 0
      %3228 = vmatpush.bf16.msra.mxu0 0
      %3229 = vmatpush.bf16.msra.mxu0 %v3103
      %3230 = vmatpush.bf16.msra.mxu0 %v3095
      %3231 = vmatmul.bf16.gmra.mxu0 %v3125
      %v3232 = vpop.f32.mrf.mxu0
      %v3233 = vadd.f32 %v3031, %v3232
      %v3234 = vpop.f32.mrf.mxu0
      %v3235 = vadd.f32 %v3031, %v3234
      %3236 = vmatmul.bf16.gmra.mxu0 %v3128
      %v3237 = vpop.f32.mrf.mxu0
      %v3238 = vadd.f32 %v3031, %v3237
      %v3239 = vpop.f32.mrf.mxu0
      %v3240 = vadd.f32 %v3031, %v3239
      %3241 = vmatmul.bf16.gmra.mxu0 %v3131
      %v3242 = vpop.f32.mrf.mxu0
      %v3243 = vadd.f32 %v3031, %v3242
      %v3244 = vpop.f32.mrf.mxu0
      %v3245 = vadd.f32 %v3031, %v3244
      %3246 = vmatmul.bf16.gmra.mxu0 %v3134
      %v3247 = vpop.f32.mrf.mxu0
      %v3248 = vadd.f32 %v3031, %v3247
      %v3249 = vpop.f32.mrf.mxu0
      %v3250 = vadd.f32 %v3031, %v3249
      %3251 = vdwg.mxu0
      %3252 = vmatpush.bf16.msra.mxu0 0
      %3253 = vmatpush.bf16.msra.mxu0 0
      %3254 = vmatpush.bf16.msra.mxu0 0
      %3255 = vmatpush.bf16.msra.mxu0 0
      %3256 = vmatpush.bf16.msra.mxu0 0
      %3257 = vmatpush.bf16.msra.mxu0 0
      %3258 = vmatpush.bf16.msra.mxu0 %v3104
      %3259 = vmatpush.bf16.msra.mxu0 %v3096
      %3260 = vmatmul.bf16.gmra.mxu0 %v3125
      %v3261 = vpop.f32.mrf.mxu0
      %v3262 = vadd.f32 %v3032, %v3261
      %v3263 = vpop.f32.mrf.mxu0
      %v3264 = vadd.f32 %v3032, %v3263
      %3265 = vmatmul.bf16.gmra.mxu0 %v3128
      %v3266 = vpop.f32.mrf.mxu0
      %v3267 = vadd.f32 %v3032, %v3266
      %v3268 = vpop.f32.mrf.mxu0
      %v3269 = vadd.f32 %v3032, %v3268
      %3270 = vmatmul.bf16.gmra.mxu0 %v3131
      %v3271 = vpop.f32.mrf.mxu0
      %v3272 = vadd.f32 %v3032, %v3271
      %v3273 = vpop.f32.mrf.mxu0
      %v3274 = vadd.f32 %v3032, %v3273
      %3275 = vmatmul.bf16.gmra.mxu0 %v3134
      %v3276 = vpop.f32.mrf.mxu0
      %v3277 = vadd.f32 %v3032, %v3276
      %v3278 = vpop.f32.mrf.mxu0
      %v3279 = vadd.f32 %v3032, %v3278
      %3280 = vdwg.mxu0
      %3281 = vmatpush.bf16.msra.mxu0 0
      %3282 = vmatpush.bf16.msra.mxu0 0
      %3283 = vmatpush.bf16.msra.mxu0 0
      %3284 = vmatpush.bf16.msra.mxu0 0
      %3285 = vmatpush.bf16.msra.mxu0 0
      %3286 = vmatpush.bf16.msra.mxu0 0
      %3287 = vmatpush.bf16.msra.mxu0 %v3105
      %3288 = vmatpush.bf16.msra.mxu0 %v3097
      %3289 = vmatmul.bf16.gmra.mxu0 %v3125
      %v3290 = vpop.f32.mrf.mxu0
      %v3291 = vadd.f32 %v3033, %v3290
      %v3292 = vpop.f32.mrf.mxu0
      %v3293 = vadd.f32 %v3033, %v3292
      %3294 = vmatmul.bf16.gmra.mxu0 %v3128
      %v3295 = vpop.f32.mrf.mxu0
      %v3296 = vadd.f32 %v3033, %v3295
      %v3297 = vpop.f32.mrf.mxu0
      %v3298 = vadd.f32 %v3033, %v3297
      %3299 = vmatmul.bf16.gmra.mxu0 %v3131
      %v3300 = vpop.f32.mrf.mxu0
      %v3301 = vadd.f32 %v3033, %v3300
      %v3302 = vpop.f32.mrf.mxu0
      %v3303 = vadd.f32 %v3033, %v3302
      %3304 = vmatmul.bf16.gmra.mxu0 %v3134
      %v3305 = vpop.f32.mrf.mxu0
      %v3306 = vadd.f32 %v3033, %v3305
      %v3307 = vpop.f32.mrf.mxu0
      %v3308 = vadd.f32 %v3033, %v3307
      %3309 = vdwg.mxu0
      %3310 = vmatpush.bf16.msra.mxu0 0
      %3311 = vmatpush.bf16.msra.mxu0 0
      %3312 = vmatpush.bf16.msra.mxu0 0
      %3313 = vmatpush.bf16.msra.mxu0 0
      %3314 = vmatpush.bf16.msra.mxu0 0
      %3315 = vmatpush.bf16.msra.mxu0 0
      %3316 = vmatpush.bf16.msra.mxu0 %v3106
      %3317 = vmatpush.bf16.msra.mxu0 %v3098
      %3318 = vmatmul.bf16.gmra.mxu0 %v3125
      %v3319 = vpop.f32.mrf.mxu0
      %v3320 = vadd.f32 %v3034, %v3319
      %v3321 = vpop.f32.mrf.mxu0
      %v3322 = vadd.f32 %v3034, %v3321
      %3323 = vmatmul.bf16.gmra.mxu0 %v3128
      %v3324 = vpop.f32.mrf.mxu0
      %v3325 = vadd.f32 %v3034, %v3324
      %v3326 = vpop.f32.mrf.mxu0
      %v3327 = vadd.f32 %v3034, %v3326
      %3328 = vmatmul.bf16.gmra.mxu0 %v3131
      %v3329 = vpop.f32.mrf.mxu0
      %v3330 = vadd.f32 %v3034, %v3329
      %v3331 = vpop.f32.mrf.mxu0
      %v3332 = vadd.f32 %v3034, %v3331
      %3333 = vmatmul.bf16.gmra.mxu0 %v3134
      %v3334 = vpop.f32.mrf.mxu0
      %v3335 = vadd.f32 %v3034, %v3334
      %v3336 = vpop.f32.mrf.mxu0
      %v3337 = vadd.f32 %v3034, %v3336
      %3338 = vdwg.mxu0
      %3339 = vmatpush.bf16.msra.mxu0 0
      %3340 = vmatpush.bf16.msra.mxu0 0
      %3341 = vmatpush.bf16.msra.mxu0 0
      %3342 = vmatpush.bf16.msra.mxu0 0
      %3343 = vmatpush.bf16.msra.mxu0 0
      %3344 = vmatpush.bf16.msra.mxu0 0
      %3345 = vmatpush.bf16.msra.mxu0 %v3107
      %3346 = vmatpush.bf16.msra.mxu0 %v3099
      %3347 = vmatmul.bf16.gmra.mxu0 %v3125
      %v3348 = vpop.f32.mrf.mxu0
      %v3349 = vadd.f32 %v3035, %v3348
      %v3350 = vpop.f32.mrf.mxu0
      %v3351 = vadd.f32 %v3035, %v3350
      %3352 = vmatmul.bf16.gmra.mxu0 %v3128
      %v3353 = vpop.f32.mrf.mxu0
      %v3354 = vadd.f32 %v3035, %v3353
      %v3355 = vpop.f32.mrf.mxu0
      %v3356 = vadd.f32 %v3035, %v3355
      %3357 = vmatmul.bf16.gmra.mxu0 %v3131
      %v3358 = vpop.f32.mrf.mxu0
      %v3359 = vadd.f32 %v3035, %v3358
      %v3360 = vpop.f32.mrf.mxu0
      %v3361 = vadd.f32 %v3035, %v3360
      %3362 = vmatmul.bf16.gmra.mxu0 %v3134
      %v3363 = vpop.f32.mrf.mxu0
      %v3364 = vadd.f32 %v3035, %v3363
      %v3365 = vpop.f32.mrf.mxu0
      %v3366 = vadd.f32 %v3035, %v3365
      %3367 = vdwg.mxu0
      %v3368 = vmax.f32 %v3146, 0.0
      %v3369 = vmax.f32 %v3175, 0.0
      %v3370 = vmax.f32 %v3204, 0.0
      %v3371 = vmax.f32 %v3233, 0.0
      %v3372 = vmax.f32 %v3262, 0.0
      %v3373 = vmax.f32 %v3291, 0.0
      %v3374 = vmax.f32 %v3320, 0.0
      %v3375 = vmax.f32 %v3349, 0.0
      %v3376 = vmax.f32 %v3148, 0.0
      %v3377 = vmax.f32 %v3177, 0.0
      %v3378 = vmax.f32 %v3206, 0.0
      %v3379 = vmax.f32 %v3235, 0.0
      %v3380 = vmax.f32 %v3264, 0.0
      %v3381 = vmax.f32 %v3293, 0.0
      %v3382 = vmax.f32 %v3322, 0.0
      %v3383 = vmax.f32 %v3351, 0.0
      %v3384 = vmax.f32 %v3151, 0.0
      %v3385 = vmax.f32 %v3180, 0.0
      %v3386 = vmax.f32 %v3209, 0.0
      %v3387 = vmax.f32 %v3238, 0.0
      %v3388 = vmax.f32 %v3267, 0.0
      %v3389 = vmax.f32 %v3296, 0.0
      %v3390 = vmax.f32 %v3325, 0.0
      %v3391 = vmax.f32 %v3354, 0.0
      %v3392 = vmax.f32 %v3153, 0.0
      %v3393 = vmax.f32 %v3182, 0.0
      %v3394 = vmax.f32 %v3211, 0.0
      %v3395 = vmax.f32 %v3240, 0.0
      %v3396 = vmax.f32 %v3269, 0.0
      %v3397 = vmax.f32 %v3298, 0.0
      %v3398 = vmax.f32 %v3327, 0.0
      %v3399 = vmax.f32 %v3356, 0.0
      %v3400 = vmax.f32 %v3156, 0.0
      %v3401 = vmax.f32 %v3185, 0.0
      %v3402 = vmax.f32 %v3214, 0.0
      %v3403 = vmax.f32 %v3243, 0.0
      %v3404 = vmax.f32 %v3272, 0.0
      %v3405 = vmax.f32 %v3301, 0.0
      %v3406 = vmax.f32 %v3330, 0.0
      %v3407 = vmax.f32 %v3359, 0.0
      %v3408 = vmax.f32 %v3158, 0.0
      %v3409 = vmax.f32 %v3187, 0.0
      %v3410 = vmax.f32 %v3216, 0.0
      %v3411 = vmax.f32 %v3245, 0.0
      %v3412 = vmax.f32 %v3274, 0.0
      %v3413 = vmax.f32 %v3303, 0.0
      %v3414 = vmax.f32 %v3332, 0.0
      %v3415 = vmax.f32 %v3361, 0.0
      %v3416 = vmax.f32 %v3161, 0.0
      %v3417 = vmax.f32 %v3190, 0.0
      %v3418 = vmax.f32 %v3219, 0.0
      %v3419 = vmax.f32 %v3248, 0.0
      %v3420 = vmax.f32 %v3277, 0.0
      %v3421 = vmax.f32 %v3306, 0.0
      %v3422 = vmax.f32 %v3335, 0.0
      %v3423 = vmax.f32 %v3364, 0.0
      %v3424 = vmax.f32 %v3163, 0.0
      %v3425 = vmax.f32 %v3192, 0.0
      %v3426 = vmax.f32 %v3221, 0.0
      %v3427 = vmax.f32 %v3250, 0.0
      %v3428 = vmax.f32 %v3279, 0.0
      %v3429 = vmax.f32 %v3308, 0.0
      %v3430 = vmax.f32 %v3337, 0.0
      %v3431 = vmax.f32 %v3366, 0.0
      %v3432 = vpack.c.bf16 %v3376, %v3368
      %v3433 = vpack.c.bf16 %v3377, %v3369
      %v3434 = vpack.c.bf16 %v3378, %v3370
      %v3435 = vpack.c.bf16 %v3379, %v3371
      %v3436 = vpack.c.bf16 %v3380, %v3372
      %v3437 = vpack.c.bf16 %v3381, %v3373
      %v3438 = vpack.c.bf16 %v3382, %v3374
      %v3439 = vpack.c.bf16 %v3383, %v3375
      %v3440 = vpack.c.bf16 %v3392, %v3384
      %v3441 = vpack.c.bf16 %v3393, %v3385
      %v3442 = vpack.c.bf16 %v3394, %v3386
      %v3443 = vpack.c.bf16 %v3395, %v3387
      %v3444 = vpack.c.bf16 %v3396, %v3388
      %v3445 = vpack.c.bf16 %v3397, %v3389
      %v3446 = vpack.c.bf16 %v3398, %v3390
      %v3447 = vpack.c.bf16 %v3399, %v3391
      %v3448 = vpack.c.bf16 %v3408, %v3400
      %v3449 = vpack.c.bf16 %v3409, %v3401
      %v3450 = vpack.c.bf16 %v3410, %v3402
      %v3451 = vpack.c.bf16 %v3411, %v3403
      %v3452 = vpack.c.bf16 %v3412, %v3404
      %v3453 = vpack.c.bf16 %v3413, %v3405
      %v3454 = vpack.c.bf16 %v3414, %v3406
      %v3455 = vpack.c.bf16 %v3415, %v3407
      %v3456 = vpack.c.bf16 %v3424, %v3416
      %v3457 = vpack.c.bf16 %v3425, %v3417
      %v3458 = vpack.c.bf16 %v3426, %v3418
      %v3459 = vpack.c.bf16 %v3427, %v3419
      %v3460 = vpack.c.bf16 %v3428, %v3420
      %v3461 = vpack.c.bf16 %v3429, %v3421
      %v3462 = vpack.c.bf16 %v3430, %v3422
      %v3463 = vpack.c.bf16 %v3431, %v3423
      %v3464 = vld [vmem:[%s818] sm:$0xf]
      %v3465 = vld [vmem:[%s818 + $0x4] sm:$0xf]
      %v3466 = vld [vmem:[%s818 + $0x8] sm:$0xf]
      %v3467 = vld [vmem:[%s818 + $0xc] sm:$0xf]
      %v3468 = vld [vmem:[%s818 + $0x10] sm:$0xf]
      %v3469 = vld [vmem:[%s818 + $0x14] sm:$0xf]
      %v3470 = vld [vmem:[%s818 + $0x18] sm:$0xf]
      %v3471 = vld [vmem:[%s818 + $0x1c] sm:$0xf]
      %v3472 = vld [vmem:[%s818 + $0x20] sm:$0xf]
      %v3473 = vld [vmem:[%s818 + $0x24] sm:$0xf]
      %v3474 = vld [vmem:[%s818 + $0x28] sm:$0xf]
      %v3475 = vld [vmem:[%s818 + $0x2c] sm:$0xf]
      %v3476 = vld [vmem:[%s818 + $0x30] sm:$0xf]
      %v3477 = vld [vmem:[%s818 + $0x34] sm:$0xf]
      %v3478 = vld [vmem:[%s818 + $0x38] sm:$0xf]
      %v3479 = vld [vmem:[%s818 + $0x3c] sm:$0xf]
      %v3480 = vld [vmem:[%s818 + $0x40] sm:$0xf]
      %v3481 = vld [vmem:[%s818 + $0x44] sm:$0xf]
      %v3482 = vld [vmem:[%s818 + $0x48] sm:$0xf]
      %v3483 = vld [vmem:[%s818 + $0x4c] sm:$0xf]
      %v3484 = vld [vmem:[%s818 + $0x50] sm:$0xf]
      %v3485 = vld [vmem:[%s818 + $0x54] sm:$0xf]
      %v3486 = vld [vmem:[%s818 + $0x58] sm:$0xf]
      %v3487 = vld [vmem:[%s818 + $0x5c] sm:$0xf]
      %v3488 = vld [vmem:[%s818 + $0x60] sm:$0xf]
      %v3489 = vld [vmem:[%s818 + $0x64] sm:$0xf]
      %v3490 = vld [vmem:[%s818 + $0x68] sm:$0xf]
      %v3491 = vld [vmem:[%s818 + $0x6c] sm:$0xf]
      %v3492 = vld [vmem:[%s818 + $0x70] sm:$0xf]
      %v3493 = vld [vmem:[%s818 + $0x74] sm:$0xf]
      %v3494 = vld [vmem:[%s818 + $0x78] sm:$0xf]
      %v3495 = vld [vmem:[%s818 + $0x7c] sm:$0xf]
      %v3496 = vld [vmem:[%s818 + $0x80] sm:$0xf]
      %v3497 = vld [vmem:[%s818 + $0x84] sm:$0xf]
      %v3498 = vld [vmem:[%s818 + $0x88] sm:$0xf]
      %v3499 = vld [vmem:[%s818 + $0x8c] sm:$0xf]
      %v3500 = vld [vmem:[%s818 + $0x90] sm:$0xf]
      %v3501 = vld [vmem:[%s818 + $0x94] sm:$0xf]
      %v3502 = vld [vmem:[%s818 + $0x98] sm:$0xf]
      %v3503 = vld [vmem:[%s818 + $0x9c] sm:$0xf]
      %v3504 = vld [vmem:[%s818 + $0xa0] sm:$0xf]
      %v3505 = vld [vmem:[%s818 + $0xa4] sm:$0xf]
      %v3506 = vld [vmem:[%s818 + $0xa8] sm:$0xf]
      %v3507 = vld [vmem:[%s818 + $0xac] sm:$0xf]
      %v3508 = vld [vmem:[%s818 + $0xb0] sm:$0xf]
      %v3509 = vld [vmem:[%s818 + $0xb4] sm:$0xf]
      %v3510 = vld [vmem:[%s818 + $0xb8] sm:$0xf]
      %v3511 = vld [vmem:[%s818 + $0xbc] sm:$0xf]
      %v3512 = vld [vmem:[%s818 + $0xc0] sm:$0xf]
      %v3513 = vld [vmem:[%s818 + $0xc4] sm:$0xf]
      %v3514 = vld [vmem:[%s818 + $0xc8] sm:$0xf]
      %v3515 = vld [vmem:[%s818 + $0xcc] sm:$0xf]
      %v3516 = vld [vmem:[%s818 + $0xd0] sm:$0xf]
      %v3517 = vld [vmem:[%s818 + $0xd4] sm:$0xf]
      %v3518 = vld [vmem:[%s818 + $0xd8] sm:$0xf]
      %v3519 = vld [vmem:[%s818 + $0xdc] sm:$0xf]
      %v3520 = vld [vmem:[%s818 + $0xe0] sm:$0xf]
      %v3521 = vld [vmem:[%s818 + $0xe4] sm:$0xf]
      %v3522 = vld [vmem:[%s818 + $0xe8] sm:$0xf]
      %v3523 = vld [vmem:[%s818 + $0xec] sm:$0xf]
      %v3524 = vld [vmem:[%s818 + $0xf0] sm:$0xf]
      %v3525 = vld [vmem:[%s818 + $0xf4] sm:$0xf]
      %v3526 = vld [vmem:[%s818 + $0xf8] sm:$0xf]
      %v3527 = vld [vmem:[%s818 + $0xfc] sm:$0xf]
      %v3528 = vld [vmem:[%s818 + $0x100] sm:$0xf]
      %v3529 = vld [vmem:[%s818 + $0x104] sm:$0xf]
      %v3530 = vld [vmem:[%s818 + $0x108] sm:$0xf]
      %v3531 = vld [vmem:[%s818 + $0x10c] sm:$0xf]
      %v3532 = vld [vmem:[%s818 + $0x110] sm:$0xf]
      %v3533 = vld [vmem:[%s818 + $0x114] sm:$0xf]
      %v3534 = vld [vmem:[%s818 + $0x118] sm:$0xf]
      %v3535 = vld [vmem:[%s818 + $0x11c] sm:$0xf]
      %v3536 = vld [vmem:[%s818 + $0x120] sm:$0xf]
      %v3537 = vld [vmem:[%s818 + $0x124] sm:$0xf]
      %v3538 = vld [vmem:[%s818 + $0x128] sm:$0xf]
      %v3539 = vld [vmem:[%s818 + $0x12c] sm:$0xf]
      %v3540 = vld [vmem:[%s818 + $0x130] sm:$0xf]
      %v3541 = vld [vmem:[%s818 + $0x134] sm:$0xf]
      %v3542 = vld [vmem:[%s818 + $0x138] sm:$0xf]
      %v3543 = vld [vmem:[%s818 + $0x13c] sm:$0xf]
      %v3544 = vld [vmem:[%s818 + $0x140] sm:$0xf]
      %v3545 = vld [vmem:[%s818 + $0x144] sm:$0xf]
      %v3546 = vld [vmem:[%s818 + $0x148] sm:$0xf]
      %v3547 = vld [vmem:[%s818 + $0x14c] sm:$0xf]
      %v3548 = vld [vmem:[%s818 + $0x150] sm:$0xf]
      %v3549 = vld [vmem:[%s818 + $0x154] sm:$0xf]
      %v3550 = vld [vmem:[%s818 + $0x158] sm:$0xf]
      %v3551 = vld [vmem:[%s818 + $0x15c] sm:$0xf]
      %v3552 = vld [vmem:[%s818 + $0x160] sm:$0xf]
      %v3553 = vld [vmem:[%s818 + $0x164] sm:$0xf]
      %v3554 = vld [vmem:[%s818 + $0x168] sm:$0xf]
      %v3555 = vld [vmem:[%s818 + $0x16c] sm:$0xf]
      %v3556 = vld [vmem:[%s818 + $0x170] sm:$0xf]
      %v3557 = vld [vmem:[%s818 + $0x174] sm:$0xf]
      %v3558 = vld [vmem:[%s818 + $0x178] sm:$0xf]
      %v3559 = vld [vmem:[%s818 + $0x17c] sm:$0xf]
      %v3560 = vld [vmem:[%s818 + $0x180] sm:$0xf]
      %v3561 = vld [vmem:[%s818 + $0x184] sm:$0xf]
      %v3562 = vld [vmem:[%s818 + $0x188] sm:$0xf]
      %v3563 = vld [vmem:[%s818 + $0x18c] sm:$0xf]
      %v3564 = vld [vmem:[%s818 + $0x190] sm:$0xf]
      %v3565 = vld [vmem:[%s818 + $0x194] sm:$0xf]
      %v3566 = vld [vmem:[%s818 + $0x198] sm:$0xf]
      %v3567 = vld [vmem:[%s818 + $0x19c] sm:$0xf]
      %v3568 = vld [vmem:[%s818 + $0x1a0] sm:$0xf]
      %v3569 = vld [vmem:[%s818 + $0x1a4] sm:$0xf]
      %v3570 = vld [vmem:[%s818 + $0x1a8] sm:$0xf]
      %v3571 = vld [vmem:[%s818 + $0x1ac] sm:$0xf]
      %v3572 = vld [vmem:[%s818 + $0x1b0] sm:$0xf]
      %v3573 = vld [vmem:[%s818 + $0x1b4] sm:$0xf]
      %v3574 = vld [vmem:[%s818 + $0x1b8] sm:$0xf]
      %v3575 = vld [vmem:[%s818 + $0x1bc] sm:$0xf]
      %v3576 = vld [vmem:[%s818 + $0x1c0] sm:$0xf]
      %v3577 = vld [vmem:[%s818 + $0x1c4] sm:$0xf]
      %v3578 = vld [vmem:[%s818 + $0x1c8] sm:$0xf]
      %v3579 = vld [vmem:[%s818 + $0x1cc] sm:$0xf]
      %v3580 = vld [vmem:[%s818 + $0x1d0] sm:$0xf]
      %v3581 = vld [vmem:[%s818 + $0x1d4] sm:$0xf]
      %v3582 = vld [vmem:[%s818 + $0x1d8] sm:$0xf]
      %v3583 = vld [vmem:[%s818 + $0x1dc] sm:$0xf]
      %v3584 = vld [vmem:[%s818 + $0x1e0] sm:$0xf]
      %v3585 = vld [vmem:[%s818 + $0x1e4] sm:$0xf]
      %v3586 = vld [vmem:[%s818 + $0x1e8] sm:$0xf]
      %v3587 = vld [vmem:[%s818 + $0x1ec] sm:$0xf]
      %v3588 = vld [vmem:[%s818 + $0x1f0] sm:$0xf]
      %v3589 = vld [vmem:[%s818 + $0x1f4] sm:$0xf]
      %v3590 = vld [vmem:[%s818 + $0x1f8] sm:$0xf]
      %v3591 = vld [vmem:[%s818 + $0x1fc] sm:$0xf]
      %v3592 = vld [vmem:[%s821] sm:$0x1]
      %v3594 = vperm.slane %v3592, 0
      %v3724 = vunpack.c.l.b16 %v3464
      %v3725 = vunpack.c.l.b16 %v3465
      %v3726 = vunpack.c.l.b16 %v3466
      %v3727 = vunpack.c.l.b16 %v3467
      %v3728 = vunpack.c.l.b16 %v3468
      %v3729 = vunpack.c.l.b16 %v3469
      %v3730 = vunpack.c.l.b16 %v3470
      %v3731 = vunpack.c.l.b16 %v3471
      %v3732 = vunpack.c.l.b16 %v3472
      %v3733 = vunpack.c.l.b16 %v3473
      %v3734 = vunpack.c.l.b16 %v3474
      %v3735 = vunpack.c.l.b16 %v3475
      %v3736 = vunpack.c.l.b16 %v3476
      %v3737 = vunpack.c.l.b16 %v3477
      %v3738 = vunpack.c.l.b16 %v3478
      %v3739 = vunpack.c.l.b16 %v3479
      %v3740 = vunpack.c.l.b16 %v3480
      %v3741 = vunpack.c.l.b16 %v3481
      %v3742 = vunpack.c.l.b16 %v3482
      %v3743 = vunpack.c.l.b16 %v3483
      %v3744 = vunpack.c.l.b16 %v3484
      %v3745 = vunpack.c.l.b16 %v3485
      %v3746 = vunpack.c.l.b16 %v3486
      %v3747 = vunpack.c.l.b16 %v3487
      %v3748 = vunpack.c.l.b16 %v3488
      %v3749 = vunpack.c.l.b16 %v3489
      %v3750 = vunpack.c.l.b16 %v3490
      %v3751 = vunpack.c.l.b16 %v3491
      %v3752 = vunpack.c.l.b16 %v3492
      %v3753 = vunpack.c.l.b16 %v3493
      %v3754 = vunpack.c.l.b16 %v3494
      %v3755 = vunpack.c.l.b16 %v3495
      %v3756 = vunpack.c.l.b16 %v3496
      %v3757 = vunpack.c.l.b16 %v3497
      %v3758 = vunpack.c.l.b16 %v3498
      %v3759 = vunpack.c.l.b16 %v3499
      %v3760 = vunpack.c.l.b16 %v3500
      %v3761 = vunpack.c.l.b16 %v3501
      %v3762 = vunpack.c.l.b16 %v3502
      %v3763 = vunpack.c.l.b16 %v3503
      %v3764 = vunpack.c.l.b16 %v3504
      %v3765 = vunpack.c.l.b16 %v3505
      %v3766 = vunpack.c.l.b16 %v3506
      %v3767 = vunpack.c.l.b16 %v3507
      %v3768 = vunpack.c.l.b16 %v3508
      %v3769 = vunpack.c.l.b16 %v3509
      %v3770 = vunpack.c.l.b16 %v3510
      %v3771 = vunpack.c.l.b16 %v3511
      %v3772 = vunpack.c.l.b16 %v3512
      %v3773 = vunpack.c.l.b16 %v3513
      %v3774 = vunpack.c.l.b16 %v3514
      %v3775 = vunpack.c.l.b16 %v3515
      %v3776 = vunpack.c.l.b16 %v3516
      %v3777 = vunpack.c.l.b16 %v3517
      %v3778 = vunpack.c.l.b16 %v3518
      %v3779 = vunpack.c.l.b16 %v3519
      %v3780 = vunpack.c.l.b16 %v3520
      %v3781 = vunpack.c.l.b16 %v3521
      %v3782 = vunpack.c.l.b16 %v3522
      %v3783 = vunpack.c.l.b16 %v3523
      %v3784 = vunpack.c.l.b16 %v3524
      %v3785 = vunpack.c.l.b16 %v3525
      %v3786 = vunpack.c.l.b16 %v3526
      %v3787 = vunpack.c.l.b16 %v3527
      %v3788 = vunpack.c.l.b16 %v3528
      %v3789 = vunpack.c.l.b16 %v3529
      %v3790 = vunpack.c.l.b16 %v3530
      %v3791 = vunpack.c.l.b16 %v3531
      %v3792 = vunpack.c.l.b16 %v3532
      %v3793 = vunpack.c.l.b16 %v3533
      %v3794 = vunpack.c.l.b16 %v3534
      %v3795 = vunpack.c.l.b16 %v3535
      %v3796 = vunpack.c.l.b16 %v3536
      %v3797 = vunpack.c.l.b16 %v3537
      %v3798 = vunpack.c.l.b16 %v3538
      %v3799 = vunpack.c.l.b16 %v3539
      %v3800 = vunpack.c.l.b16 %v3540
      %v3801 = vunpack.c.l.b16 %v3541
      %v3802 = vunpack.c.l.b16 %v3542
      %v3803 = vunpack.c.l.b16 %v3543
      %v3804 = vunpack.c.l.b16 %v3544
      %v3805 = vunpack.c.l.b16 %v3545
      %v3806 = vunpack.c.l.b16 %v3546
      %v3807 = vunpack.c.l.b16 %v3547
      %v3808 = vunpack.c.l.b16 %v3548
      %v3809 = vunpack.c.l.b16 %v3549
      %v3810 = vunpack.c.l.b16 %v3550
      %v3811 = vunpack.c.l.b16 %v3551
      %v3812 = vunpack.c.l.b16 %v3552
      %v3813 = vunpack.c.l.b16 %v3553
      %v3814 = vunpack.c.l.b16 %v3554
      %v3815 = vunpack.c.l.b16 %v3555
      %v3816 = vunpack.c.l.b16 %v3556
      %v3817 = vunpack.c.l.b16 %v3557
      %v3818 = vunpack.c.l.b16 %v3558
      %v3819 = vunpack.c.l.b16 %v3559
      %v3820 = vunpack.c.l.b16 %v3560
      %v3821 = vunpack.c.l.b16 %v3561
      %v3822 = vunpack.c.l.b16 %v3562
      %v3823 = vunpack.c.l.b16 %v3563
      %v3824 = vunpack.c.l.b16 %v3564
      %v3825 = vunpack.c.l.b16 %v3565
      %v3826 = vunpack.c.l.b16 %v3566
      %v3827 = vunpack.c.l.b16 %v3567
      %v3828 = vunpack.c.l.b16 %v3568
      %v3829 = vunpack.c.l.b16 %v3569
      %v3830 = vunpack.c.l.b16 %v3570
      %v3831 = vunpack.c.l.b16 %v3571
      %v3832 = vunpack.c.l.b16 %v3572
      %v3833 = vunpack.c.l.b16 %v3573
      %v3834 = vunpack.c.l.b16 %v3574
      %v3835 = vunpack.c.l.b16 %v3575
      %v3836 = vunpack.c.l.b16 %v3576
      %v3837 = vunpack.c.l.b16 %v3577
      %v3838 = vunpack.c.l.b16 %v3578
      %v3839 = vunpack.c.l.b16 %v3579
      %v3840 = vunpack.c.l.b16 %v3580
      %v3841 = vunpack.c.l.b16 %v3581
      %v3842 = vunpack.c.l.b16 %v3582
      %v3843 = vunpack.c.l.b16 %v3583
      %v3844 = vunpack.c.l.b16 %v3584
      %v3845 = vunpack.c.l.b16 %v3585
      %v3846 = vunpack.c.l.b16 %v3586
      %v3847 = vunpack.c.l.b16 %v3587
      %v3848 = vunpack.c.l.b16 %v3588
      %v3849 = vunpack.c.l.b16 %v3589
      %v3850 = vunpack.c.l.b16 %v3590
      %v3851 = vunpack.c.l.b16 %v3591
      %v3852 = vpack.c.b16 %v3725, %v3724
      %v3853 = vpack.c.b16 %v3727, %v3726
      %v3854 = vpack.c.b16 %v3729, %v3728
      %v3855 = vpack.c.b16 %v3731, %v3730
      %v3856 = vpack.c.b16 %v3733, %v3732
      %v3857 = vpack.c.b16 %v3735, %v3734
      %v3858 = vpack.c.b16 %v3737, %v3736
      %v3859 = vpack.c.b16 %v3739, %v3738
      %v3860 = vpack.c.b16 %v3741, %v3740
      %v3861 = vpack.c.b16 %v3743, %v3742
      %v3862 = vpack.c.b16 %v3745, %v3744
      %v3863 = vpack.c.b16 %v3747, %v3746
      %v3864 = vpack.c.b16 %v3749, %v3748
      %v3865 = vpack.c.b16 %v3751, %v3750
      %v3866 = vpack.c.b16 %v3753, %v3752
      %v3867 = vpack.c.b16 %v3755, %v3754
      %v3868 = vpack.c.b16 %v3757, %v3756
      %v3869 = vpack.c.b16 %v3759, %v3758
      %v3870 = vpack.c.b16 %v3761, %v3760
      %v3871 = vpack.c.b16 %v3763, %v3762
      %v3872 = vpack.c.b16 %v3765, %v3764
      %v3873 = vpack.c.b16 %v3767, %v3766
      %v3874 = vpack.c.b16 %v3769, %v3768
      %v3875 = vpack.c.b16 %v3771, %v3770
      %v3876 = vpack.c.b16 %v3773, %v3772
      %v3877 = vpack.c.b16 %v3775, %v3774
      %v3878 = vpack.c.b16 %v3777, %v3776
      %v3879 = vpack.c.b16 %v3779, %v3778
      %v3880 = vpack.c.b16 %v3781, %v3780
      %v3881 = vpack.c.b16 %v3783, %v3782
      %v3882 = vpack.c.b16 %v3785, %v3784
      %v3883 = vpack.c.b16 %v3787, %v3786
      %v3884 = vpack.c.b16 %v3789, %v3788
      %v3885 = vpack.c.b16 %v3791, %v3790
      %v3886 = vpack.c.b16 %v3793, %v3792
      %v3887 = vpack.c.b16 %v3795, %v3794
      %v3888 = vpack.c.b16 %v3797, %v3796
      %v3889 = vpack.c.b16 %v3799, %v3798
      %v3890 = vpack.c.b16 %v3801, %v3800
      %v3891 = vpack.c.b16 %v3803, %v3802
      %v3892 = vpack.c.b16 %v3805, %v3804
      %v3893 = vpack.c.b16 %v3807, %v3806
      %v3894 = vpack.c.b16 %v3809, %v3808
      %v3895 = vpack.c.b16 %v3811, %v3810
      %v3896 = vpack.c.b16 %v3813, %v3812
      %v3897 = vpack.c.b16 %v3815, %v3814
      %v3898 = vpack.c.b16 %v3817, %v3816
      %v3899 = vpack.c.b16 %v3819, %v3818
      %v3900 = vpack.c.b16 %v3821, %v3820
      %v3901 = vpack.c.b16 %v3823, %v3822
      %v3902 = vpack.c.b16 %v3825, %v3824
      %v3903 = vpack.c.b16 %v3827, %v3826
      %v3904 = vpack.c.b16 %v3829, %v3828
      %v3905 = vpack.c.b16 %v3831, %v3830
      %v3906 = vpack.c.b16 %v3833, %v3832
      %v3907 = vpack.c.b16 %v3835, %v3834
      %v3908 = vpack.c.b16 %v3837, %v3836
      %v3909 = vpack.c.b16 %v3839, %v3838
      %v3910 = vpack.c.b16 %v3841, %v3840
      %v3911 = vpack.c.b16 %v3843, %v3842
      %v3912 = vpack.c.b16 %v3845, %v3844
      %v3913 = vpack.c.b16 %v3847, %v3846
      %v3914 = vpack.c.b16 %v3849, %v3848
      %v3915 = vpack.c.b16 %v3851, %v3850
      %3980 = vmatpush.bf16.msra.mxu0 %v3859
      %3981 = vmatpush.bf16.msra.mxu0 %v3858
      %3982 = vmatpush.bf16.msra.mxu0 %v3857
      %3983 = vmatpush.bf16.msra.mxu0 %v3856
      %3984 = vmatpush.bf16.msra.mxu0 %v3855
      %3985 = vmatpush.bf16.msra.mxu0 %v3854
      %3986 = vmatpush.bf16.msra.mxu0 %v3853
      %3987 = vmatpush.bf16.msra.mxu0 %v3852
      %3988 = vmatmul.bf16.gmra.mxu0 %v3432
      %v3989 = vpop.f32.mrf.mxu0
      %v3990 = vadd.f32 %v3594, %v3989
      %v3991 = vpop.f32.mrf.mxu0
      %v3992 = vadd.f32 %v3594, %v3991
      %3993 = vmatmul.bf16.gmra.mxu0 %v3440
      %v3994 = vpop.f32.mrf.mxu0
      %v3995 = vadd.f32 %v3594, %v3994
      %v3996 = vpop.f32.mrf.mxu0
      %v3997 = vadd.f32 %v3594, %v3996
      %3998 = vmatmul.bf16.gmra.mxu0 %v3448
      %v3999 = vpop.f32.mrf.mxu0
      %v4000 = vadd.f32 %v3594, %v3999
      %v4001 = vpop.f32.mrf.mxu0
      %v4002 = vadd.f32 %v3594, %v4001
      %4003 = vmatmul.bf16.gmra.mxu0 %v3456
      %v4004 = vpop.f32.mrf.mxu0
      %v4005 = vadd.f32 %v3594, %v4004
      %v4006 = vpop.f32.mrf.mxu0
      %v4007 = vadd.f32 %v3594, %v4006
      %4008 = vdwg.mxu0
      %4009 = vmatpush.bf16.msra.mxu0 %v3867
      %4010 = vmatpush.bf16.msra.mxu0 %v3866
      %4011 = vmatpush.bf16.msra.mxu0 %v3865
      %4012 = vmatpush.bf16.msra.mxu0 %v3864
      %4013 = vmatpush.bf16.msra.mxu0 %v3863
      %4014 = vmatpush.bf16.msra.mxu0 %v3862
      %4015 = vmatpush.bf16.msra.mxu0 %v3861
      %4016 = vmatpush.bf16.msra.mxu0 %v3860
      %4017 = vmatmul.bf16.gmra.mxu0 %v3433
      %v4018 = vpop.f32.mrf.mxu0
      %v4019 = vadd.f32 %v3990, %v4018
      %v4020 = vpop.f32.mrf.mxu0
      %v4021 = vadd.f32 %v3992, %v4020
      %4022 = vmatmul.bf16.gmra.mxu0 %v3441
      %v4023 = vpop.f32.mrf.mxu0
      %v4024 = vadd.f32 %v3995, %v4023
      %v4025 = vpop.f32.mrf.mxu0
      %v4026 = vadd.f32 %v3997, %v4025
      %4027 = vmatmul.bf16.gmra.mxu0 %v3449
      %v4028 = vpop.f32.mrf.mxu0
      %v4029 = vadd.f32 %v4000, %v4028
      %v4030 = vpop.f32.mrf.mxu0
      %v4031 = vadd.f32 %v4002, %v4030
      %4032 = vmatmul.bf16.gmra.mxu0 %v3457
      %v4033 = vpop.f32.mrf.mxu0
      %v4034 = vadd.f32 %v4005, %v4033
      %v4035 = vpop.f32.mrf.mxu0
      %v4036 = vadd.f32 %v4007, %v4035
      %4037 = vdwg.mxu0
      %4038 = vmatpush.bf16.msra.mxu0 %v3875
      %4039 = vmatpush.bf16.msra.mxu0 %v3874
      %4040 = vmatpush.bf16.msra.mxu0 %v3873
      %4041 = vmatpush.bf16.msra.mxu0 %v3872
      %4042 = vmatpush.bf16.msra.mxu0 %v3871
      %4043 = vmatpush.bf16.msra.mxu0 %v3870
      %4044 = vmatpush.bf16.msra.mxu0 %v3869
      %4045 = vmatpush.bf16.msra.mxu0 %v3868
      %4046 = vmatmul.bf16.gmra.mxu0 %v3434
      %v4047 = vpop.f32.mrf.mxu0
      %v4048 = vadd.f32 %v4019, %v4047
      %v4049 = vpop.f32.mrf.mxu0
      %v4050 = vadd.f32 %v4021, %v4049
      %4051 = vmatmul.bf16.gmra.mxu0 %v3442
      %v4052 = vpop.f32.mrf.mxu0
      %v4053 = vadd.f32 %v4024, %v4052
      %v4054 = vpop.f32.mrf.mxu0
      %v4055 = vadd.f32 %v4026, %v4054
      %4056 = vmatmul.bf16.gmra.mxu0 %v3450
      %v4057 = vpop.f32.mrf.mxu0
      %v4058 = vadd.f32 %v4029, %v4057
      %v4059 = vpop.f32.mrf.mxu0
      %v4060 = vadd.f32 %v4031, %v4059
      %4061 = vmatmul.bf16.gmra.mxu0 %v3458
      %v4062 = vpop.f32.mrf.mxu0
      %v4063 = vadd.f32 %v4034, %v4062
      %v4064 = vpop.f32.mrf.mxu0
      %v4065 = vadd.f32 %v4036, %v4064
      %4066 = vdwg.mxu0
      %4067 = vmatpush.bf16.msra.mxu0 %v3883
      %4068 = vmatpush.bf16.msra.mxu0 %v3882
      %4069 = vmatpush.bf16.msra.mxu0 %v3881
      %4070 = vmatpush.bf16.msra.mxu0 %v3880
      %4071 = vmatpush.bf16.msra.mxu0 %v3879
      %4072 = vmatpush.bf16.msra.mxu0 %v3878
      %4073 = vmatpush.bf16.msra.mxu0 %v3877
      %4074 = vmatpush.bf16.msra.mxu0 %v3876
      %4075 = vmatmul.bf16.gmra.mxu0 %v3435
      %v4076 = vpop.f32.mrf.mxu0
      %v4077 = vadd.f32 %v4048, %v4076
      %v4078 = vpop.f32.mrf.mxu0
      %v4079 = vadd.f32 %v4050, %v4078
      %4080 = vmatmul.bf16.gmra.mxu0 %v3443
      %v4081 = vpop.f32.mrf.mxu0
      %v4082 = vadd.f32 %v4053, %v4081
      %v4083 = vpop.f32.mrf.mxu0
      %v4084 = vadd.f32 %v4055, %v4083
      %4085 = vmatmul.bf16.gmra.mxu0 %v3451
      %v4086 = vpop.f32.mrf.mxu0
      %v4087 = vadd.f32 %v4058, %v4086
      %v4088 = vpop.f32.mrf.mxu0
      %v4089 = vadd.f32 %v4060, %v4088
      %4090 = vmatmul.bf16.gmra.mxu0 %v3459
      %v4091 = vpop.f32.mrf.mxu0
      %v4092 = vadd.f32 %v4063, %v4091
      %v4093 = vpop.f32.mrf.mxu0
      %v4094 = vadd.f32 %v4065, %v4093
      %4095 = vdwg.mxu0
      %4096 = vmatpush.bf16.msra.mxu0 %v3891
      %4097 = vmatpush.bf16.msra.mxu0 %v3890
      %4098 = vmatpush.bf16.msra.mxu0 %v3889
      %4099 = vmatpush.bf16.msra.mxu0 %v3888
      %4100 = vmatpush.bf16.msra.mxu0 %v3887
      %4101 = vmatpush.bf16.msra.mxu0 %v3886
      %4102 = vmatpush.bf16.msra.mxu0 %v3885
      %4103 = vmatpush.bf16.msra.mxu0 %v3884
      %4104 = vmatmul.bf16.gmra.mxu0 %v3436
      %v4105 = vpop.f32.mrf.mxu0
      %v4106 = vadd.f32 %v4077, %v4105
      %v4107 = vpop.f32.mrf.mxu0
      %v4108 = vadd.f32 %v4079, %v4107
      %4109 = vmatmul.bf16.gmra.mxu0 %v3444
      %v4110 = vpop.f32.mrf.mxu0
      %v4111 = vadd.f32 %v4082, %v4110
      %v4112 = vpop.f32.mrf.mxu0
      %v4113 = vadd.f32 %v4084, %v4112
      %4114 = vmatmul.bf16.gmra.mxu0 %v3452
      %v4115 = vpop.f32.mrf.mxu0
      %v4116 = vadd.f32 %v4087, %v4115
      %v4117 = vpop.f32.mrf.mxu0
      %v4118 = vadd.f32 %v4089, %v4117
      %4119 = vmatmul.bf16.gmra.mxu0 %v3460
      %v4120 = vpop.f32.mrf.mxu0
      %v4121 = vadd.f32 %v4092, %v4120
      %v4122 = vpop.f32.mrf.mxu0
      %v4123 = vadd.f32 %v4094, %v4122
      %4124 = vdwg.mxu0
      %4125 = vmatpush.bf16.msra.mxu0 %v3899
      %4126 = vmatpush.bf16.msra.mxu0 %v3898
      %4127 = vmatpush.bf16.msra.mxu0 %v3897
      %4128 = vmatpush.bf16.msra.mxu0 %v3896
      %4129 = vmatpush.bf16.msra.mxu0 %v3895
      %4130 = vmatpush.bf16.msra.mxu0 %v3894
      %4131 = vmatpush.bf16.msra.mxu0 %v3893
      %4132 = vmatpush.bf16.msra.mxu0 %v3892
      %4133 = vmatmul.bf16.gmra.mxu0 %v3437
      %v4134 = vpop.f32.mrf.mxu0
      %v4135 = vadd.f32 %v4106, %v4134
      %v4136 = vpop.f32.mrf.mxu0
      %v4137 = vadd.f32 %v4108, %v4136
      %4138 = vmatmul.bf16.gmra.mxu0 %v3445
      %v4139 = vpop.f32.mrf.mxu0
      %v4140 = vadd.f32 %v4111, %v4139
      %v4141 = vpop.f32.mrf.mxu0
      %v4142 = vadd.f32 %v4113, %v4141
      %4143 = vmatmul.bf16.gmra.mxu0 %v3453
      %v4144 = vpop.f32.mrf.mxu0
      %v4145 = vadd.f32 %v4116, %v4144
      %v4146 = vpop.f32.mrf.mxu0
      %v4147 = vadd.f32 %v4118, %v4146
      %4148 = vmatmul.bf16.gmra.mxu0 %v3461
      %v4149 = vpop.f32.mrf.mxu0
      %v4150 = vadd.f32 %v4121, %v4149
      %v4151 = vpop.f32.mrf.mxu0
      %v4152 = vadd.f32 %v4123, %v4151
      %4153 = vdwg.mxu0
      %4154 = vmatpush.bf16.msra.mxu0 %v3907
      %4155 = vmatpush.bf16.msra.mxu0 %v3906
      %4156 = vmatpush.bf16.msra.mxu0 %v3905
      %4157 = vmatpush.bf16.msra.mxu0 %v3904
      %4158 = vmatpush.bf16.msra.mxu0 %v3903
      %4159 = vmatpush.bf16.msra.mxu0 %v3902
      %4160 = vmatpush.bf16.msra.mxu0 %v3901
      %4161 = vmatpush.bf16.msra.mxu0 %v3900
      %4162 = vmatmul.bf16.gmra.mxu0 %v3438
      %v4163 = vpop.f32.mrf.mxu0
      %v4164 = vadd.f32 %v4135, %v4163
      %v4165 = vpop.f32.mrf.mxu0
      %v4166 = vadd.f32 %v4137, %v4165
      %4167 = vmatmul.bf16.gmra.mxu0 %v3446
      %v4168 = vpop.f32.mrf.mxu0
      %v4169 = vadd.f32 %v4140, %v4168
      %v4170 = vpop.f32.mrf.mxu0
      %v4171 = vadd.f32 %v4142, %v4170
      %4172 = vmatmul.bf16.gmra.mxu0 %v3454
      %v4173 = vpop.f32.mrf.mxu0
      %v4174 = vadd.f32 %v4145, %v4173
      %v4175 = vpop.f32.mrf.mxu0
      %v4176 = vadd.f32 %v4147, %v4175
      %4177 = vmatmul.bf16.gmra.mxu0 %v3462
      %v4178 = vpop.f32.mrf.mxu0
      %v4179 = vadd.f32 %v4150, %v4178
      %v4180 = vpop.f32.mrf.mxu0
      %v4181 = vadd.f32 %v4152, %v4180
      %4182 = vdwg.mxu0
      %4183 = vmatpush.bf16.msra.mxu0 %v3915
      %4184 = vmatpush.bf16.msra.mxu0 %v3914
      %4185 = vmatpush.bf16.msra.mxu0 %v3913
      %4186 = vmatpush.bf16.msra.mxu0 %v3912
      %4187 = vmatpush.bf16.msra.mxu0 %v3911
      %4188 = vmatpush.bf16.msra.mxu0 %v3910
      %4189 = vmatpush.bf16.msra.mxu0 %v3909
      %4190 = vmatpush.bf16.msra.mxu0 %v3908
      %4191 = vmatmul.bf16.gmra.mxu0 %v3439
      %v4192 = vpop.f32.mrf.mxu0
      %v4193 = vadd.f32 %v4164, %v4192
      %v4194 = vpop.f32.mrf.mxu0
      %v4195 = vadd.f32 %v4166, %v4194
      %4196 = vmatmul.bf16.gmra.mxu0 %v3447
      %v4197 = vpop.f32.mrf.mxu0
      %v4198 = vadd.f32 %v4169, %v4197
      %v4199 = vpop.f32.mrf.mxu0
      %v4200 = vadd.f32 %v4171, %v4199
      %4201 = vmatmul.bf16.gmra.mxu0 %v3455
      %v4202 = vpop.f32.mrf.mxu0
      %v4203 = vadd.f32 %v4174, %v4202
      %v4204 = vpop.f32.mrf.mxu0
      %v4205 = vadd.f32 %v4176, %v4204
      %4206 = vmatmul.bf16.gmra.mxu0 %v3463
      %v4207 = vpop.f32.mrf.mxu0
      %v4208 = vadd.f32 %v4179, %v4207
      %v4209 = vpop.f32.mrf.mxu0
      %v4210 = vadd.f32 %v4181, %v4209
      %4211 = vdwg.mxu0
      %v4212 = vadd.f32 %v2998, %v4193
      %v4213 = vadd.f32 %v2999, %v4195
      %v4214 = vadd.f32 %v3000, %v4198
      %v4215 = vadd.f32 %v3001, %v4200
      %v4216 = vadd.f32 %v3002, %v4203
      %v4217 = vadd.f32 %v3003, %v4205
      %v4218 = vadd.f32 %v3004, %v4208
      %v4219 = vadd.f32 %v3005, %v4210
      %v4220 = vld [vmem:[%s824] sm:$0x1]
      %v4221 = vld [vmem:[%s827] sm:$0x1]
      %v4222 = vsel %vm871, %v4212, 0.0
      %4223 = vadd.xlane.f32.xlu0 %v4222
      %v4224 = vpop.xlane.xlu0 %4223
      %v4225 = vsel %vm871, %v4213, 0.0
      %4226 = vadd.xlane.f32.xlu0 %v4225
      %v4227 = vpop.xlane.xlu0 %4226
      %v4228 = vsel %vm871, %v4214, 0.0
      %4229 = vadd.xlane.f32.xlu0 %v4228
      %v4230 = vpop.xlane.xlu0 %4229
      %v4231 = vsel %vm871, %v4215, 0.0
      %4232 = vadd.xlane.f32.xlu0 %v4231
      %v4233 = vpop.xlane.xlu0 %4232
      %v4234 = vsel %vm871, %v4216, 0.0
      %4235 = vadd.xlane.f32.xlu0 %v4234
      %v4236 = vpop.xlane.xlu0 %4235
      %v4237 = vsel %vm871, %v4217, 0.0
      %4238 = vadd.xlane.f32.xlu0 %v4237
      %v4239 = vpop.xlane.xlu0 %4238
      %v4240 = vsel %vm871, %v4218, 0.0
      %4241 = vadd.xlane.f32.xlu0 %v4240
      %v4242 = vpop.xlane.xlu0 %4241
      %v4243 = vsel %vm871, %v4219, 0.0
      %4244 = vadd.xlane.f32.xlu0 %v4243
      %v4245 = vpop.xlane.xlu0 %4244
      %v4246 = vmul.f32 %v4224, %v2831
      %v4247 = vmul.f32 %v4227, %v2831
      %v4248 = vmul.f32 %v4230, %v2831
      %v4249 = vmul.f32 %v4233, %v2831
      %v4250 = vmul.f32 %v4236, %v2831
      %v4251 = vmul.f32 %v4239, %v2831
      %v4252 = vmul.f32 %v4242, %v2831
      %v4253 = vmul.f32 %v4245, %v2831
      %v4254 = vsub.f32 %v4212, %v4246
      %v4255 = vsub.f32 %v4213, %v4247
      %v4256 = vsub.f32 %v4214, %v4248
      %v4257 = vsub.f32 %v4215, %v4249
      %v4258 = vsub.f32 %v4216, %v4250
      %v4259 = vsub.f32 %v4217, %v4251
      %v4260 = vsub.f32 %v4218, %v4252
      %v4261 = vsub.f32 %v4219, %v4253
      %v4262 = vmul.f32 %v4254, %v4254
      %v4263 = vmul.f32 %v4255, %v4255
      %v4264 = vmul.f32 %v4256, %v4256
      %v4265 = vmul.f32 %v4257, %v4257
      %v4266 = vmul.f32 %v4258, %v4258
      %v4267 = vmul.f32 %v4259, %v4259
      %v4268 = vmul.f32 %v4260, %v4260
      %v4269 = vmul.f32 %v4261, %v4261
      %v4270 = vsel %vm871, %v4262, 0.0
      %4271 = vadd.xlane.f32.xlu0 %v4270
      %v4272 = vpop.xlane.xlu0 %4271
      %v4273 = vsel %vm871, %v4263, 0.0
      %4274 = vadd.xlane.f32.xlu0 %v4273
      %v4275 = vpop.xlane.xlu0 %4274
      %v4276 = vsel %vm871, %v4264, 0.0
      %4277 = vadd.xlane.f32.xlu0 %v4276
      %v4278 = vpop.xlane.xlu0 %4277
      %v4279 = vsel %vm871, %v4265, 0.0
      %4280 = vadd.xlane.f32.xlu0 %v4279
      %v4281 = vpop.xlane.xlu0 %4280
      %v4282 = vsel %vm871, %v4266, 0.0
      %4283 = vadd.xlane.f32.xlu0 %v4282
      %v4284 = vpop.xlane.xlu0 %4283
      %v4285 = vsel %vm871, %v4267, 0.0
      %4286 = vadd.xlane.f32.xlu0 %v4285
      %v4287 = vpop.xlane.xlu0 %4286
      %v4288 = vsel %vm871, %v4268, 0.0
      %4289 = vadd.xlane.f32.xlu0 %v4288
      %v4290 = vpop.xlane.xlu0 %4289
      %v4291 = vsel %vm871, %v4269, 0.0
      %4292 = vadd.xlane.f32.xlu0 %v4291
      %v4293 = vpop.xlane.xlu0 %4292
      %v4294 = vmul.f32 %v4272, %v2831
      %v4295 = vmul.f32 %v4275, %v2831
      %v4296 = vmul.f32 %v4278, %v2831
      %v4297 = vmul.f32 %v4281, %v2831
      %v4298 = vmul.f32 %v4284, %v2831
      %v4299 = vmul.f32 %v4287, %v2831
      %v4300 = vmul.f32 %v4290, %v2831
      %v4301 = vmul.f32 %v4293, %v2831
      %v4302 = vadd.f32 %v4294, 1e-05
      %v4303 = vadd.f32 %v4295, 1e-05
      %v4304 = vadd.f32 %v4296, 1e-05
      %v4305 = vadd.f32 %v4297, 1e-05
      %v4306 = vadd.f32 %v4298, 1e-05
      %v4307 = vadd.f32 %v4299, 1e-05
      %v4308 = vadd.f32 %v4300, 1e-05
      %v4309 = vadd.f32 %v4301, 1e-05
      %v4310 = vrsqrt.pop %v4302
      %v4311 = vmul.f32 %v4310, %v4302
      %v4312 = vmul.f32 %v4311, %v4310
      %v4313 = vmul.f32 0.5, %v4312
      %v4314 = vsub.f32 1.5, %v4313
      %v4315 = vmul.f32 %v4310, %v4314
      %vm4316 = vweird.f32 %v4302
      %vm4317 = vweird.f32 %v4310
      %vm4318 = vmor %vm4316, %vm4317
      %v4319 = vsel %vm4318, %v4310, %v4315
      %v4320 = vrsqrt.pop %v4303
      %v4321 = vmul.f32 %v4320, %v4303
      %v4322 = vmul.f32 %v4321, %v4320
      %v4323 = vmul.f32 0.5, %v4322
      %v4324 = vsub.f32 1.5, %v4323
      %v4325 = vmul.f32 %v4320, %v4324
      %vm4326 = vweird.f32 %v4303
      %vm4327 = vweird.f32 %v4320
      %vm4328 = vmor %vm4326, %vm4327
      %v4329 = vsel %vm4328, %v4320, %v4325
      %v4330 = vrsqrt.pop %v4304
      %v4331 = vmul.f32 %v4330, %v4304
      %v4332 = vmul.f32 %v4331, %v4330
      %v4333 = vmul.f32 0.5, %v4332
      %v4334 = vsub.f32 1.5, %v4333
      %v4335 = vmul.f32 %v4330, %v4334
      %vm4336 = vweird.f32 %v4304
      %vm4337 = vweird.f32 %v4330
      %vm4338 = vmor %vm4336, %vm4337
      %v4339 = vsel %vm4338, %v4330, %v4335
      %v4340 = vrsqrt.pop %v4305
      %v4341 = vmul.f32 %v4340, %v4305
      %v4342 = vmul.f32 %v4341, %v4340
      %v4343 = vmul.f32 0.5, %v4342
      %v4344 = vsub.f32 1.5, %v4343
      %v4345 = vmul.f32 %v4340, %v4344
      %vm4346 = vweird.f32 %v4305
      %vm4347 = vweird.f32 %v4340
      %vm4348 = vmor %vm4346, %vm4347
      %v4349 = vsel %vm4348, %v4340, %v4345
      %v4350 = vrsqrt.pop %v4306
      %v4351 = vmul.f32 %v4350, %v4306
      %v4352 = vmul.f32 %v4351, %v4350
      %v4353 = vmul.f32 0.5, %v4352
      %v4354 = vsub.f32 1.5, %v4353
      %v4355 = vmul.f32 %v4350, %v4354
      %vm4356 = vweird.f32 %v4306
      %vm4357 = vweird.f32 %v4350
      %vm4358 = vmor %vm4356, %vm4357
      %v4359 = vsel %vm4358, %v4350, %v4355
      %v4360 = vrsqrt.pop %v4307
      %v4361 = vmul.f32 %v4360, %v4307
      %v4362 = vmul.f32 %v4361, %v4360
      %v4363 = vmul.f32 0.5, %v4362
      %v4364 = vsub.f32 1.5, %v4363
      %v4365 = vmul.f32 %v4360, %v4364
      %vm4366 = vweird.f32 %v4307
      %vm4367 = vweird.f32 %v4360
      %vm4368 = vmor %vm4366, %vm4367
      %v4369 = vsel %vm4368, %v4360, %v4365
      %v4370 = vrsqrt.pop %v4308
      %v4371 = vmul.f32 %v4370, %v4308
      %v4372 = vmul.f32 %v4371, %v4370
      %v4373 = vmul.f32 0.5, %v4372
      %v4374 = vsub.f32 1.5, %v4373
      %v4375 = vmul.f32 %v4370, %v4374
      %vm4376 = vweird.f32 %v4308
      %vm4377 = vweird.f32 %v4370
      %vm4378 = vmor %vm4376, %vm4377
      %v4379 = vsel %vm4378, %v4370, %v4375
      %v4380 = vrsqrt.pop %v4309
      %v4381 = vmul.f32 %v4380, %v4309
      %v4382 = vmul.f32 %v4381, %v4380
      %v4383 = vmul.f32 0.5, %v4382
      %v4384 = vsub.f32 1.5, %v4383
      %v4385 = vmul.f32 %v4380, %v4384
      %vm4386 = vweird.f32 %v4309
      %vm4387 = vweird.f32 %v4380
      %vm4388 = vmor %vm4386, %vm4387
      %v4389 = vsel %vm4388, %v4380, %v4385
      %v4390 = vmul.f32 %v4254, %v4319
      %v4391 = vmul.f32 %v4255, %v4329
      %v4392 = vmul.f32 %v4256, %v4339
      %v4393 = vmul.f32 %v4257, %v4349
      %v4394 = vmul.f32 %v4258, %v4359
      %v4395 = vmul.f32 %v4259, %v4369
      %v4396 = vmul.f32 %v4260, %v4379
      %v4397 = vmul.f32 %v4261, %v4389
      %v4399 = vperm.slane %v4220, 0
      %v4401 = vmul.f32 %v4390, %v4399
      %v4402 = vmul.f32 %v4391, %v4399
      %v4403 = vmul.f32 %v4392, %v4399
      %v4404 = vmul.f32 %v4393, %v4399
      %v4405 = vmul.f32 %v4394, %v4399
      %v4406 = vmul.f32 %v4395, %v4399
      %v4407 = vmul.f32 %v4396, %v4399
      %v4408 = vmul.f32 %v4397, %v4399
      %v4410 = vperm.slane %v4221, 0
      %v4412 = vadd.f32 %v4401, %v4410
      %v4413 = vadd.f32 %v4402, %v4410
      %v4414 = vadd.f32 %v4403, %v4410
      %v4415 = vadd.f32 %v4404, %v4410
      %v4416 = vadd.f32 %v4405, %v4410
      %v4417 = vadd.f32 %v4406, %v4410
      %v4418 = vadd.f32 %v4407, %v4410
      %v4419 = vadd.f32 %v4408, %v4410
      %4420 = vst.msk [vmem:[%s832] sm:$0xff] %vm871, %v4412
      %4421 = vst.msk [vmem:[%s832 + $0x8] sm:$0xff] %vm871, %v4413
      %4422 = vst.msk [vmem:[%s832 + $0x10] sm:$0xff] %vm871, %v4414
      %4423 = vst.msk [vmem:[%s832 + $0x18] sm:$0xff] %vm871, %v4415
      %4424 = vst.msk [vmem:[%s832 + $0x20] sm:$0xff] %vm871, %v4416
      %4425 = vst.msk [vmem:[%s832 + $0x28] sm:$0xff] %vm871, %v4417
      %4426 = vst.msk [vmem:[%s832 + $0x30] sm:$0xff] %vm871, %v4418
      %4427 = vst.msk [vmem:[%s832 + $0x38] sm:$0xff] %vm871, %v4419
      %p4428 = scmp.lt.s32.totalorder %s32, 1
      %s4429 = scalar_select %p4428, %s32, 1
      %s4430 = smul.addr %s4429, 8
      %s4431 = smul.addr %s4430, 8
      %s4432 = scalar_lea.vmem %s17, %s4431
      // Predicated region
      $region93: #{adabins_forward.5} parent=87 // pred_check
        %p4433 = pneg %p500
      $region94: #{adabins_forward.5} parent=87 // pred_check_branch
        %4435 = sbr.rel (%p4433) target = $region96
      $region95: #{adabins_forward.5} parent=87 // pred_region
        _
      $region96: #{adabins_forward.5} parent=87 // pred_fallthru
        _
    $region88: #{adabins_forward.5} parent=5 // pred_fallthru
      _
    %p4436 = scmp.le.s32.totalorder 2, %s23
    // Predicated region
    $region97: #{adabins_forward.5} parent=5 // pred_check
      %p4437 = pneg %p4436
    $region98: #{adabins_forward.5} parent=5 // pred_check_branch
      %4439 = sbr.rel (%p4437) target = $region100
    $region99: #{adabins_forward.5} parent=5 // pred_region
      %s4440 = ssub.s32 %s23, 2
      // Predicated region
      $region101: #{adabins_forward.5} parent=99 // pred_check
        %p4441 = pneg %p506
      $region102: #{adabins_forward.5} parent=99 // pred_check_branch
        %4443 = sbr.rel (%p4441) target = $region104
      $region103: #{adabins_forward.5} parent=99 // pred_region
        %p4444 = scmp.lt.s32.totalorder %s34, 1
        %s4445 = scalar_select %p4444, %s34, 1
        %s4446 = smul.addr %s4445, 8
        %s4447 = smul.addr %s4446, 8
        %s4448 = scalar_lea.vmem %s17, %s4447
      $region104: #{adabins_forward.5} parent=99 // pred_fallthru
        _
    $region100: #{adabins_forward.5} parent=5 // pred_fallthru
      _
  $region6: #{adabins_forward.5} parent=0 // loop_footer
    %s27 = sadd.s32 1, %s23
  $region7: #{adabins_forward.5} parent=0 // loop_footer_branch
    %22 = sbr.rel target = $region3
  $region8: #{adabins_forward.5} parent=0 // loop_exit
    _

// kernel: adabins_forward.7
$region0: #{adabins_forward.7}
  #allocation0 [shape = 'u32[]', space=smem, size = 0x4, offset = 0x4, fixed_abs, tag = 'smem constant byte address 0x4 - core index']
  #allocation1 [shape = 'u32[72,128]{1,0:T(1,128)}', space=vmem, size = 0x9000, scoped, tag = 'internal scratch']
  %s0 = inlined_call_operand.vmem [shape: f32[2,72,256], index: 0, kind: input, shape index: {}]
  %s1 = inlined_call_operand.vmem [shape: f32[32,72], index: 1, kind: input, shape index: {}]
  %s2 = inlined_call_operand.vmem [shape: f32[32,1], index: 2, kind: input, shape index: {}]
  %s3 = inlined_call_operand.vmem [shape: f32[2,8,32], index: 3, kind: input, shape index: {}]
  %s4 = inlined_call_operand.vmem [shape: f32[16,8], index: 4, kind: input, shape index: {}]
  %s5 = inlined_call_operand.vmem [shape: f32[16,1], index: 5, kind: input, shape index: {}]
  %s6 = inlined_call_operand.vmem [shape: f32[2,16,1], index: 6, kind: input, shape index: {}]
  %s7 = inlined_call_operand.vmem [shape: f32[2,1,256], index: 7, kind: output, shape index: {}]
  %s8 = sld [smem:[#allocation0]]
  $region61: #{adabins_forward.7} parent=0
    _
  %s10 = ssub.s32 1, %s8
  %s11 = scalar_select 0, %s10, %s8
  loop: start=0, step=1, limit=4
  $region2: #{adabins_forward.7} parent=0 // loop_pre_header
    _
  $region3: #{adabins_forward.7} parent=0 // loop_header
    %s13 = sphi 0, %s17
    %p14 = scmp.ge.s32.totalorder %s13, 4
    %s23 = sphi 0, %s25
    %s26 = sphi 0, %s23
    %s27 = sphi 0, %s26
    %s43 = sphi 0, %s27
    %s47 = sphi 0, %s47
    %s49 = sphi 0, %s47
    %s50 = sphi 0, %s49
    %s64 = sphi 0, %s50
    %s68 = sphi 0, %s68
    %s70 = sphi 0, %s68
    %s71 = sphi 0, %s70
    %s85 = sphi 0, %s71
    %s91 = sphi 0, %s93
    %s94 = sphi 0, %s91
    %s95 = sphi 0, %s94
    %s111 = sphi 0, %s95
    %s115 = sphi 0, %s115
    %s117 = sphi 0, %s115
    %s118 = sphi 0, %s117
    %s132 = sphi 0, %s118
    %s136 = sphi 0, %s136
    %s138 = sphi 0, %s136
    %s139 = sphi 0, %s138
    %s153 = sphi 0, %s139
    %s159 = sphi 0, %s161
    %s162 = sphi 0, %s159
    %s163 = sphi 0, %s162
    %s179 = sphi 0, %s163
    %s185 = sphi 0, %s187
    %s188 = sphi 0, %s185
    %s189 = sphi 0, %s188
    %s205 = sphi 0, %s189
  $region4: #{adabins_forward.7} parent=0 // loop_header_branch
    %16 = sbr.rel (%p14) target = $region8
  $region5: #{adabins_forward.7} parent=0 // loop_body
    %s18 = ssub.s32 %s13, 1
    %s19 = ssub.s32 %s13, 2
    %s20 = sadd.s32 %s13, 1
    %s21 = ssub.s32 %s13, %s20
    %p22 = scmp.eq.s32.totalorder %s21, 0
    %s24 = sadd.s32 %s23, 1
    %s25 = scalar_select %p22, %s23, %s24
    %p28 = pneg %p22
    %p29 = scmp.eq.s32.totalorder %s13, 1
    %p30 = por %p28, %p29
    %p31 = scmp.ne.s32.totalorder %s23, %s26
    %p32 = scmp.eq.s32.totalorder %s13, 0
    %p33 = por %p31, %p32
    %p34 = scmp.ne.s32.totalorder %s23, %s26
    %p35 = scmp.eq.s32.totalorder %s18, 1
    %p36 = por %p34, %p35
    %p37 = scmp.ne.s32.totalorder %s26, %s27
    %p38 = scmp.eq.s32.totalorder %s18, 0
    %p39 = por %p37, %p38
    %p40 = scmp.ne.s32.totalorder %s26, %s27
    %p41 = scmp.eq.s32.totalorder %s19, 1
    %p42 = por %p40, %p41
    %p44 = scmp.ne.s32.totalorder %s27, %s43
    %p45 = scmp.eq.s32.totalorder %s19, 0
    %p46 = por %p44, %p45
    %s48 = sadd.s32 %s47, 1
    %p51 = scmp.eq.s32.totalorder %s13, 1
    %p52 = scmp.ne.s32.totalorder %s47, %s49
    %p53 = scmp.eq.s32.totalorder %s13, 0
    %p54 = por %p52, %p53
    %p55 = scmp.ne.s32.totalorder %s47, %s49
    %p56 = scmp.eq.s32.totalorder %s18, 1
    %p57 = por %p55, %p56
    %p58 = scmp.ne.s32.totalorder %s49, %s50
    %p59 = scmp.eq.s32.totalorder %s18, 0
    %p60 = por %p58, %p59
    %p61 = scmp.ne.s32.totalorder %s49, %s50
    %p62 = scmp.eq.s32.totalorder %s19, 1
    %p63 = por %p61, %p62
    %p65 = scmp.ne.s32.totalorder %s50, %s64
    %p66 = scmp.eq.s32.totalorder %s19, 0
    %p67 = por %p65, %p66
    %s69 = sadd.s32 %s68, 1
    %p72 = scmp.eq.s32.totalorder %s13, 1
    %p73 = scmp.ne.s32.totalorder %s68, %s70
    %p74 = scmp.eq.s32.totalorder %s13, 0
    %p75 = por %p73, %p74
    %p76 = scmp.ne.s32.totalorder %s68, %s70
    %p77 = scmp.eq.s32.totalorder %s18, 1
    %p78 = por %p76, %p77
    %p79 = scmp.ne.s32.totalorder %s70, %s71
    %p80 = scmp.eq.s32.totalorder %s18, 0
    %p81 = por %p79, %p80
    %p82 = scmp.ne.s32.totalorder %s70, %s71
    %p83 = scmp.eq.s32.totalorder %s19, 1
    %p84 = por %p82, %p83
    %p86 = scmp.ne.s32.totalorder %s71, %s85
    %p87 = scmp.eq.s32.totalorder %s19, 0
    %p88 = por %p86, %p87
    %s89 = ssub.s32 %s13, %s20
    %p90 = scmp.eq.s32.totalorder %s89, 0
    %s92 = sadd.s32 %s91, 1
    %s93 = scalar_select %p90, %s91, %s92
    %p96 = pneg %p90
    %p97 = scmp.eq.s32.totalorder %s13, 1
    %p98 = por %p96, %p97
    %p99 = scmp.ne.s32.totalorder %s91, %s94
    %p100 = scmp.eq.s32.totalorder %s13, 0
    %p101 = por %p99, %p100
    %p102 = scmp.ne.s32.totalorder %s91, %s94
    %p103 = scmp.eq.s32.totalorder %s18, 1
    %p104 = por %p102, %p103
    %p105 = scmp.ne.s32.totalorder %s94, %s95
    %p106 = scmp.eq.s32.totalorder %s18, 0
    %p107 = por %p105, %p106
    %p108 = scmp.ne.s32.totalorder %s94, %s95
    %p109 = scmp.eq.s32.totalorder %s19, 1
    %p110 = por %p108, %p109
    %p112 = scmp.ne.s32.totalorder %s95, %s111
    %p113 = scmp.eq.s32.totalorder %s19, 0
    %p114 = por %p112, %p113
    %s116 = sadd.s32 %s115, 1
    %p119 = scmp.eq.s32.totalorder %s13, 1
    %p120 = scmp.ne.s32.totalorder %s115, %s117
    %p121 = scmp.eq.s32.totalorder %s13, 0
    %p122 = por %p120, %p121
    %p123 = scmp.ne.s32.totalorder %s115, %s117
    %p124 = scmp.eq.s32.totalorder %s18, 1
    %p125 = por %p123, %p124
    %p126 = scmp.ne.s32.totalorder %s117, %s118
    %p127 = scmp.eq.s32.totalorder %s18, 0
    %p128 = por %p126, %p127
    %p129 = scmp.ne.s32.totalorder %s117, %s118
    %p130 = scmp.eq.s32.totalorder %s19, 1
    %p131 = por %p129, %p130
    %p133 = scmp.ne.s32.totalorder %s118, %s132
    %p134 = scmp.eq.s32.totalorder %s19, 0
    %p135 = por %p133, %p134
    %s137 = sadd.s32 %s136, 1
    %p140 = scmp.eq.s32.totalorder %s13, 1
    %p141 = scmp.ne.s32.totalorder %s136, %s138
    %p142 = scmp.eq.s32.totalorder %s13, 0
    %p143 = por %p141, %p142
    %p144 = scmp.ne.s32.totalorder %s136, %s138
    %p145 = scmp.eq.s32.totalorder %s18, 1
    %p146 = por %p144, %p145
    %p147 = scmp.ne.s32.totalorder %s138, %s139
    %p148 = scmp.eq.s32.totalorder %s18, 0
    %p149 = por %p147, %p148
    %p150 = scmp.ne.s32.totalorder %s138, %s139
    %p151 = scmp.eq.s32.totalorder %s19, 1
    %p152 = por %p150, %p151
    %p154 = scmp.ne.s32.totalorder %s139, %s153
    %p155 = scmp.eq.s32.totalorder %s19, 0
    %p156 = por %p154, %p155
    %s157 = ssub.s32 %s13, %s20
    %p158 = scmp.eq.s32.totalorder %s157, 0
    %s160 = sadd.s32 %s159, 1
    %s161 = scalar_select %p158, %s159, %s160
    %p164 = pneg %p158
    %p165 = scmp.eq.s32.totalorder %s13, 1
    %p166 = por %p164, %p165
    %p167 = scmp.ne.s32.totalorder %s159, %s162
    %p168 = scmp.eq.s32.totalorder %s13, 0
    %p169 = por %p167, %p168
    %p170 = scmp.ne.s32.totalorder %s159, %s162
    %p171 = scmp.eq.s32.totalorder %s18, 1
    %p172 = por %p170, %p171
    %p173 = scmp.ne.s32.totalorder %s162, %s163
    %p174 = scmp.eq.s32.totalorder %s18, 0
    %p175 = por %p173, %p174
    %p176 = scmp.ne.s32.totalorder %s162, %s163
    %p177 = scmp.eq.s32.totalorder %s19, 1
    %p178 = por %p176, %p177
    %p180 = scmp.ne.s32.totalorder %s163, %s179
    %p181 = scmp.eq.s32.totalorder %s19, 0
    %p182 = por %p180, %p181
    %s183 = ssub.s32 %s13, %s20
    %p184 = scmp.eq.s32.totalorder %s183, 0
    %s186 = sadd.s32 %s185, 1
    %s187 = scalar_select %p184, %s185, %s186
    %p190 = pneg %p184
    %p191 = scmp.eq.s32.totalorder %s13, 1
    %p192 = por %p190, %p191
    %p193 = scmp.ne.s32.totalorder %s185, %s188
    %p194 = scmp.eq.s32.totalorder %s13, 0
    %p195 = por %p193, %p194
    %p196 = scmp.ne.s32.totalorder %s185, %s188
    %p197 = scmp.eq.s32.totalorder %s18, 1
    %p198 = por %p196, %p197
    %p199 = scmp.ne.s32.totalorder %s188, %s189
    %p200 = scmp.eq.s32.totalorder %s18, 0
    %p201 = por %p199, %p200
    %p202 = scmp.ne.s32.totalorder %s188, %s189
    %p203 = scmp.eq.s32.totalorder %s19, 1
    %p204 = por %p202, %p203
    %p206 = scmp.ne.s32.totalorder %s189, %s205
    %p207 = scmp.eq.s32.totalorder %s19, 0
    %p208 = por %p206, %p207
    %p209 = scmp.le.s32.totalorder 1, %s13
    %p210 = scmp.lt.s32.totalorder %s13, 3
    %p211 = pnand %p209, %p210
    %p212 = pneg %p211
    // Predicated region
    $region9: #{adabins_forward.7} parent=5 // pred_check
      _
    $region10: #{adabins_forward.7} parent=5 // pred_check_branch
      %214 = sbr.rel (%p211) target = $region12
    $region11: #{adabins_forward.7} parent=5 // pred_region
      %s215 = ssub.s32 %s13, 1
      // Predicated region
      $region13: #{adabins_forward.7} parent=11 // pred_check
        %p216 = pneg %p60
      $region14: #{adabins_forward.7} parent=11 // pred_check_branch
        %218 = sbr.rel (%p216) target = $region16
      $region15: #{adabins_forward.7} parent=11 // pred_region
        _
      $region16: #{adabins_forward.7} parent=11 // pred_fallthru
        _
      // Predicated region
      $region17: #{adabins_forward.7} parent=11 // pred_check
        %p219 = pneg %p81
      $region18: #{adabins_forward.7} parent=11 // pred_check_branch
        %221 = sbr.rel (%p219) target = $region20
      $region19: #{adabins_forward.7} parent=11 // pred_region
        _
      $region20: #{adabins_forward.7} parent=11 // pred_fallthru
        _
      // Predicated region
      $region21: #{adabins_forward.7} parent=11 // pred_check
        %p222 = pneg %p128
      $region22: #{adabins_forward.7} parent=11 // pred_check_branch
        %224 = sbr.rel (%p222) target = $region24
      $region23: #{adabins_forward.7} parent=11 // pred_region
        _
      $region24: #{adabins_forward.7} parent=11 // pred_fallthru
        _
      // Predicated region
      $region25: #{adabins_forward.7} parent=11 // pred_check
        %p225 = pneg %p149
      $region26: #{adabins_forward.7} parent=11 // pred_check_branch
        %227 = sbr.rel (%p225) target = $region28
      $region27: #{adabins_forward.7} parent=11 // pred_region
        _
      $region28: #{adabins_forward.7} parent=11 // pred_fallthru
        _
    $region12: #{adabins_forward.7} parent=5 // pred_fallthru
      _
    %p228 = scmp.lt.s32.totalorder %s13, 2
    // Predicated region
    $region29: #{adabins_forward.7} parent=5 // pred_check
      %p229 = pneg %p228
    $region30: #{adabins_forward.7} parent=5 // pred_check_branch
      %231 = sbr.rel (%p229) target = $region32
    $region31: #{adabins_forward.7} parent=5 // pred_region
      // Predicated region
      $region33: #{adabins_forward.7} parent=31 // pred_check
        %p232 = pneg %p33
      $region34: #{adabins_forward.7} parent=31 // pred_check_branch
        %234 = sbr.rel (%p232) target = $region36
      $region35: #{adabins_forward.7} parent=31 // pred_region
        %p235 = scmp.lt.s32.totalorder %s13, 1
        %s236 = scalar_select %p235, %s13, 1
        %s237 = smul.addr %s236, 18
        %s238 = smul.addr %s237, 8
        %s239 = scalar_lea.vmem %s0, %s238
      $region36: #{adabins_forward.7} parent=31 // pred_fallthru
        _
      // Predicated region
      $region37: #{adabins_forward.7} parent=31 // pred_check
        %p240 = pneg %p101
      $region38: #{adabins_forward.7} parent=31 // pred_check_branch
        %242 = sbr.rel (%p240) target = $region40
      $region39: #{adabins_forward.7} parent=31 // pred_region
        %p243 = scmp.lt.s32.totalorder %s13, 1
        %s244 = scalar_select %p243, %s13, 1
        %s245 = smul.addr %s244, 8
        %s246 = scalar_lea.vmem %s3, %s245
      $region40: #{adabins_forward.7} parent=31 // pred_fallthru
        _
      // Predicated region
      $region41: #{adabins_forward.7} parent=31 // pred_check
        %p247 = pneg %p169
      $region42: #{adabins_forward.7} parent=31 // pred_check_branch
        %249 = sbr.rel (%p247) target = $region44
      $region43: #{adabins_forward.7} parent=31 // pred_region
        %p250 = scmp.lt.s32.totalorder %s13, 1
        %s251 = scalar_select %p250, %s13, 1
        %s252 = smul.addr %s251, 2
        %s253 = smul.addr %s252, 8
        %s254 = scalar_lea.vmem %s6, %s253
      $region44: #{adabins_forward.7} parent=31 // pred_fallthru
        _
    $region32: #{adabins_forward.7} parent=5 // pred_fallthru
      _
    %p255 = scmp.le.s32.totalorder 1, %s13
    %p256 = scmp.lt.s32.totalorder %s13, 3
    %p257 = pnand %p255, %p256
    %p258 = pneg %p257
    // Predicated region
    $region45: #{adabins_forward.7} parent=5 // pred_check
      _
    $region46: #{adabins_forward.7} parent=5 // pred_check_branch
      %260 = sbr.rel (%p257) target = $region48
    $region47: #{adabins_forward.7} parent=5 // pred_region
      %s261 = ssub.s32 %s13, 1
      %p262 = scmp.lt.s32.totalorder %s18, 1
      %s263 = scalar_select %p262, %s18, 1
      %s264 = smul.addr %s263, 18
      %s265 = smul.addr %s264, 8
      %s266 = scalar_lea.vmem %s0, %s265
      %p267 = pneg %p39
      %p268 = pneg %p36
      %p269 = pneg %p60
      %p270 = pneg %p57
      %p271 = pneg %p81
      %p272 = pneg %p78
      %p273 = scmp.lt.s32.totalorder %s18, 1
      %s274 = scalar_select %p273, %s18, 1
      %s275 = smul.addr %s274, 8
      %s276 = scalar_lea.vmem %s3, %s275
      %p277 = pneg %p107
      %p278 = pneg %p104
      %p279 = pneg %p128
      %p280 = pneg %p125
      %p281 = pneg %p149
      %p282 = pneg %p146
      %p283 = scmp.lt.s32.totalorder %s18, 1
      %s284 = scalar_select %p283, %s18, 1
      %s285 = smul.addr %s284, 2
      %s286 = smul.addr %s285, 8
      %s287 = scalar_lea.vmem %s6, %s286
      %p288 = pneg %p175
      %p289 = pneg %p172
      %p290 = pneg %p201
      %p291 = pneg %p198
      %p292 = scmp.lt.s32.totalorder %s18, 1
      %s293 = scalar_select %p292, %s18, 1
      %s294 = smul.addr %s293, 2
      %s295 = scalar_lea.vmem %s7, %s294
      %p296 = scmp.lt.s32.totalorder %s18, 1
      %s297 = scalar_select %p296, %s18, 1
      %s298 = smul.addr %s297, 18
      %s299 = smul.addr %s298, 8
      %s300 = scalar_lea.vmem %s0, %s299
      %p301 = scmp.lt.s32.totalorder %s18, 1
      %s302 = scalar_select %p301, %s18, 1
      %s303 = smul.addr %s302, 8
      %s304 = scalar_lea.vmem %s3, %s303
      %p305 = scmp.lt.s32.totalorder %s18, 1
      %s306 = scalar_select %p305, %s18, 1
      %s307 = smul.addr %s306, 2
      %s308 = smul.addr %s307, 8
      %s309 = scalar_lea.vmem %s6, %s308
      %p310 = scmp.lt.s32.totalorder %s18, 1
      %s311 = scalar_select %p310, %s18, 1
      %s312 = smul.addr %s311, 2
      %s313 = scalar_lea.vmem %s7, %s312
      %v314 = vld [vmem:[%s1] sm:$0xff]
      %v315 = vld [vmem:[%s1 + $0x8] sm:$0xff]
      %v316 = vld [vmem:[%s1 + $0x10] sm:$0xff]
      %v317 = vld [vmem:[%s1 + $0x18] sm:$0xff]
      %v318 = vld [vmem:[%s300] sm:$0xff]
      %v319 = vld [vmem:[%s300 + $0x8] sm:$0xff]
      %v320 = vld [vmem:[%s300 + $0x10] sm:$0xff]
      %v321 = vld [vmem:[%s300 + $0x18] sm:$0xff]
      %v322 = vld [vmem:[%s300 + $0x20] sm:$0xff]
      %v323 = vld [vmem:[%s300 + $0x28] sm:$0xff]
      %v324 = vld [vmem:[%s300 + $0x30] sm:$0xff]
      %v325 = vld [vmem:[%s300 + $0x38] sm:$0xff]
      %v326 = vld [vmem:[%s300 + $0x40] sm:$0xff]
      %v327 = vld [vmem:[%s300 + $0x48] sm:$0xff]
      %v328 = vld [vmem:[%s300 + $0x50] sm:$0xff]
      %v329 = vld [vmem:[%s300 + $0x58] sm:$0xff]
      %v330 = vld [vmem:[%s300 + $0x60] sm:$0xff]
      %v331 = vld [vmem:[%s300 + $0x68] sm:$0xff]
      %v332 = vld [vmem:[%s300 + $0x70] sm:$0xff]
      %v333 = vld [vmem:[%s300 + $0x78] sm:$0xff]
      %v334 = vld [vmem:[%s300 + $0x80] sm:$0xff]
      %v335 = vld [vmem:[%s300 + $0x88] sm:$0xff]
      %v336 = vld [vmem:[%s2] sm:$0xff]
      %v337 = vld [vmem:[%s2 + $0x8] sm:$0xff]
      %v338 = vld [vmem:[%s2 + $0x10] sm:$0xff]
      %v339 = vld [vmem:[%s2 + $0x18] sm:$0xff]
      %341 = vset.pattern.permute.xlu0 0
      %342 = vperm.xlu0 %341, %v336
      %v343 = vpop.permute.xlu0 %342
      %346 = vset.pattern.permute.xlu0 0
      %347 = vperm.xlu0 %346, %v337
      %v348 = vpop.permute.xlu0 %347
      %351 = vset.pattern.permute.xlu0 0
      %352 = vperm.xlu0 %351, %v338
      %v353 = vpop.permute.xlu0 %352
      %356 = vset.pattern.permute.xlu0 0
      %357 = vperm.xlu0 %356, %v339
      %v358 = vpop.permute.xlu0 %357
      %vm360 = vcmask 588800
      %v362 = vsel %vm360, %v314, 0
      %v365 = vsel %vm360, %v315, 0
      %v368 = vsel %vm360, %v316, 0
      %v371 = vsel %vm360, %v317, 0
      %373 = vmatpush.msra.mxu0 0.0
      %374 = vmatpush.msra.mxu0 0.0
      %375 = vmatpush.msra.mxu0 0.0
      %376 = vmatpush.msra.mxu0 0.0
      %377 = vmatpush.msra.mxu0 0.0
      %378 = vmatpush.msra.mxu0 0.0
      %379 = vmatpush.msra.mxu0 0.0
      %380 = vmatpush.msra.mxu0 %v334
      %381 = vmatpush.msra.mxu0 %v332
      %382 = vmatpush.msra.mxu0 %v330
      %383 = vmatpush.msra.mxu0 %v328
      %384 = vmatpush.msra.mxu0 %v326
      %385 = vmatpush.msra.mxu0 %v324
      %386 = vmatpush.msra.mxu0 %v322
      %387 = vmatpush.msra.mxu0 %v320
      %388 = vmatpush.msra.mxu0 %v318
      %389 = vmatmul.f32.gmra.mxu0 %v362
      %v390 = vpop.f32.mrf.mxu0
      %v391 = vadd.f32 %v343, %v390
      %392 = vmatmul.f32.gmra.mxu0 %v365
      %v393 = vpop.f32.mrf.mxu0
      %v394 = vadd.f32 %v348, %v393
      %395 = vmatmul.f32.gmra.mxu0 %v368
      %v396 = vpop.f32.mrf.mxu0
      %v397 = vadd.f32 %v353, %v396
      %398 = vmatmul.f32.gmra.mxu0 %v371
      %v399 = vpop.f32.mrf.mxu0
      %v400 = vadd.f32 %v358, %v399
      %401 = vdwg.mxu0
      %402 = vmatpush.msra.mxu0 0.0
      %403 = vmatpush.msra.mxu0 0.0
      %404 = vmatpush.msra.mxu0 0.0
      %405 = vmatpush.msra.mxu0 0.0
      %406 = vmatpush.msra.mxu0 0.0
      %407 = vmatpush.msra.mxu0 0.0
      %408 = vmatpush.msra.mxu0 0.0
      %409 = vmatpush.msra.mxu0 %v335
      %410 = vmatpush.msra.mxu0 %v333
      %411 = vmatpush.msra.mxu0 %v331
      %412 = vmatpush.msra.mxu0 %v329
      %413 = vmatpush.msra.mxu0 %v327
      %414 = vmatpush.msra.mxu0 %v325
      %415 = vmatpush.msra.mxu0 %v323
      %416 = vmatpush.msra.mxu0 %v321
      %417 = vmatpush.msra.mxu0 %v319
      %418 = vmatmul.f32.gmra.mxu0 %v362
      %v419 = vpop.f32.mrf.mxu0
      %v420 = vadd.f32 %v343, %v419
      %421 = vmatmul.f32.gmra.mxu0 %v365
      %v422 = vpop.f32.mrf.mxu0
      %v423 = vadd.f32 %v348, %v422
      %424 = vmatmul.f32.gmra.mxu0 %v368
      %v425 = vpop.f32.mrf.mxu0
      %v426 = vadd.f32 %v353, %v425
      %427 = vmatmul.f32.gmra.mxu0 %v371
      %v428 = vpop.f32.mrf.mxu0
      %v429 = vadd.f32 %v358, %v428
      %430 = vdwg.mxu0
      %v431 = vld [vmem:[%s304] sm:$0xff]
      %vm432 = vcmask 261120
      %v434 = vsel %vm432, %v431, 0
      %436 = vmatpush.msra.mxu0 0.0
      %437 = vmatpush.msra.mxu0 0.0
      %438 = vmatpush.msra.mxu0 0.0
      %439 = vmatpush.msra.mxu0 0.0
      %440 = vmatpush.msra.mxu0 0.0
      %441 = vmatpush.msra.mxu0 0.0
      %442 = vmatpush.msra.mxu0 0.0
      %443 = vmatpush.msra.mxu0 0.0
      %444 = vmatpush.msra.mxu0 0.0
      %445 = vmatpush.msra.mxu0 0.0
      %446 = vmatpush.msra.mxu0 0.0
      %447 = vmatpush.msra.mxu0 0.0
      %448 = vmatpush.msra.mxu0 %v400
      %449 = vmatpush.msra.mxu0 %v397
      %450 = vmatpush.msra.mxu0 %v394
      %451 = vmatpush.msra.mxu0 %v391
      %452 = vmatmul.f32.gmra.mxu0 %v434
      %v453 = vpop.f32.mrf.mxu0
      %v454 = vadd.f32 0.0, %v453
      %455 = vdwg.mxu0
      %456 = vmatpush.msra.mxu0 0.0
      %457 = vmatpush.msra.mxu0 0.0
      %458 = vmatpush.msra.mxu0 0.0
      %459 = vmatpush.msra.mxu0 0.0
      %460 = vmatpush.msra.mxu0 0.0
      %461 = vmatpush.msra.mxu0 0.0
      %462 = vmatpush.msra.mxu0 0.0
      %463 = vmatpush.msra.mxu0 0.0
      %464 = vmatpush.msra.mxu0 0.0
      %465 = vmatpush.msra.mxu0 0.0
      %466 = vmatpush.msra.mxu0 0.0
      %467 = vmatpush.msra.mxu0 0.0
      %468 = vmatpush.msra.mxu0 %v429
      %469 = vmatpush.msra.mxu0 %v426
      %470 = vmatpush.msra.mxu0 %v423
      %471 = vmatpush.msra.mxu0 %v420
      %472 = vmatmul.f32.gmra.mxu0 %v434
      %v473 = vpop.f32.mrf.mxu0
      %v474 = vadd.f32 0.0, %v473
      %475 = vdwg.mxu0
      %v476 = vld [vmem:[%s4] sm:$0xff]
      %v477 = vld [vmem:[%s4 + $0x8] sm:$0xff]
      %v478 = vld [vmem:[%s5] sm:$0xff]
      %v479 = vld [vmem:[%s5 + $0x8] sm:$0xff]
      %481 = vset.pattern.permute.xlu0 0
      %482 = vperm.xlu0 %481, %v478
      %v483 = vpop.permute.xlu0 %482
      %486 = vset.pattern.permute.xlu0 0
      %487 = vperm.xlu0 %486, %v479
      %v488 = vpop.permute.xlu0 %487
      %vm490 = vcmask 64512
      %v492 = vsel %vm490, %v476, 0
      %v495 = vsel %vm490, %v477, 0
      %497 = vmatpush.msra.mxu0 0.0
      %498 = vmatpush.msra.mxu0 0.0
      %499 = vmatpush.msra.mxu0 0.0
      %500 = vmatpush.msra.mxu0 0.0
      %501 = vmatpush.msra.mxu0 0.0
      %502 = vmatpush.msra.mxu0 0.0
      %503 = vmatpush.msra.mxu0 0.0
      %504 = vmatpush.msra.mxu0 0.0
      %505 = vmatpush.msra.mxu0 0.0
      %506 = vmatpush.msra.mxu0 0.0
      %507 = vmatpush.msra.mxu0 0.0
      %508 = vmatpush.msra.mxu0 0.0
      %509 = vmatpush.msra.mxu0 0.0
      %510 = vmatpush.msra.mxu0 0.0
      %511 = vmatpush.msra.mxu0 0.0
      %512 = vmatpush.msra.mxu0 %v454
      %513 = vmatmul.f32.gmra.mxu0 %v492
      %v514 = vpop.f32.mrf.mxu0
      %v515 = vadd.f32 %v483, %v514
      %516 = vmatmul.f32.gmra.mxu0 %v495
      %v517 = vpop.f32.mrf.mxu0
      %v518 = vadd.f32 %v488, %v517
      %519 = vdwg.mxu0
      %520 = vmatpush.msra.mxu0 0.0
      %521 = vmatpush.msra.mxu0 0.0
      %522 = vmatpush.msra.mxu0 0.0
      %523 = vmatpush.msra.mxu0 0.0
      %524 = vmatpush.msra.mxu0 0.0
      %525 = vmatpush.msra.mxu0 0.0
      %526 = vmatpush.msra.mxu0 0.0
      %527 = vmatpush.msra.mxu0 0.0
      %528 = vmatpush.msra.mxu0 0.0
      %529 = vmatpush.msra.mxu0 0.0
      %530 = vmatpush.msra.mxu0 0.0
      %531 = vmatpush.msra.mxu0 0.0
      %532 = vmatpush.msra.mxu0 0.0
      %533 = vmatpush.msra.mxu0 0.0
      %534 = vmatpush.msra.mxu0 0.0
      %535 = vmatpush.msra.mxu0 %v474
      %536 = vmatmul.f32.gmra.mxu0 %v492
      %v537 = vpop.f32.mrf.mxu0
      %v538 = vadd.f32 %v483, %v537
      %539 = vmatmul.f32.gmra.mxu0 %v495
      %v540 = vpop.f32.mrf.mxu0
      %v541 = vadd.f32 %v488, %v540
      %542 = vdwg.mxu0
      %v543 = vmax.f32 %v515, %v518
      %v544 = vrot.slane %v543, 4
      %v545 = vmax.f32 %v543, %v544
      %v546 = vrot.slane %v545, 2
      %v547 = vmax.f32 %v545, %v546
      %v548 = vrot.slane %v547, 1
      %v549 = vmax.f32 %v547, %v548
      %v550 = vmax.f32 %v538, %v541
      %v551 = vrot.slane %v550, 4
      %v552 = vmax.f32 %v550, %v551
      %v553 = vrot.slane %v552, 2
      %v554 = vmax.f32 %v552, %v553
      %v555 = vrot.slane %v554, 1
      %v556 = vmax.f32 %v554, %v555
      %v557 = vsub.f32 %v515, %v549
      %v558 = vsub.f32 %v538, %v556
      %v559 = vsub.f32 %v518, %v549
      %v560 = vsub.f32 %v541, %v556
      %v561 = vmul.f32 %v557, 1.442695
      %v562 = vpow.pop %v561
      %v563 = vmul.f32 %v558, 1.442695
      %v564 = vpow.pop %v563
      %v565 = vmul.f32 %v559, 1.442695
      %v566 = vpow.pop %v565
      %v567 = vmul.f32 %v560, 1.442695
      %v568 = vpow.pop %v567
      %v569 = vadd.f32 %v562, %v566
      %v570 = vrot.slane %v569, 4
      %v571 = vadd.f32 %v569, %v570
      %v572 = vrot.slane %v571, 2
      %v573 = vadd.f32 %v571, %v572
      %v574 = vrot.slane %v573, 1
      %v575 = vadd.f32 %v573, %v574
      %v576 = vadd.f32 %v564, %v568
      %v577 = vrot.slane %v576, 4
      %v578 = vadd.f32 %v576, %v577
      %v579 = vrot.slane %v578, 2
      %v580 = vadd.f32 %v578, %v579
      %v581 = vrot.slane %v580, 1
      %v582 = vadd.f32 %v580, %v581
      %v583 = vrcp.pop %v575
      %v584 = vrcp.pop %v582
      %v585 = vmul.f32 %v562, %v583
      %v586 = vmul.f32 %v564, %v584
      %v587 = vmul.f32 %v566, %v583
      %v588 = vmul.f32 %v568, %v584
      %v589 = vld [vmem:[%s309] sm:$0xff]
      %v590 = vld [vmem:[%s309 + $0x8] sm:$0xff]
      %592 = vset.pattern.permute.xlu0 0
      %593 = vperm.xlu0 %592, %v589
      %v594 = vpop.permute.xlu0 %593
      %597 = vset.pattern.permute.xlu0 0
      %598 = vperm.xlu0 %597, %v590
      %v599 = vpop.permute.xlu0 %598
      %v601 = vmul.f32 %v585, %v594
      %v602 = vmul.f32 %v586, %v594
      %v603 = vmul.f32 %v587, %v599
      %v604 = vmul.f32 %v588, %v599
      %v605 = vadd.f32 %v601, %v603
      %v606 = vrot.slane %v605, 4
      %v607 = vadd.f32 %v605, %v606
      %v608 = vrot.slane %v607, 2
      %v609 = vadd.f32 %v607, %v608
      %v610 = vrot.slane %v609, 1
      %v611 = vadd.f32 %v609, %v610
      %v612 = vadd.f32 %v602, %v604
      %v613 = vrot.slane %v612, 4
      %v614 = vadd.f32 %v612, %v613
      %v615 = vrot.slane %v614, 2
      %v616 = vadd.f32 %v614, %v615
      %v617 = vrot.slane %v616, 1
      %v618 = vadd.f32 %v616, %v617
      %v621 = vrot.slane %v618, 7
      %vm622 = vcmask 1040384
      %v623 = vsel %vm622, %v611, %v621
      %v625 = vlaneseq
      %vm626 = vcmp.ge.s32.totalorder %v625, 0
      %vm627 = vcmp.lt.s32.totalorder %v625, 256
      %vm628 = vmand %vm626, %vm627
      %629 = vst.msk [vmem:[%s313] sm:$0x3] %vm628, %v623
      %p630 = scmp.lt.s32.totalorder %s18, 1
      %s631 = scalar_select %p630, %s18, 1
      %s632 = smul.addr %s631, 2
      %s633 = scalar_lea.vmem %s7, %s632
      // Predicated region
      $region49: #{adabins_forward.7} parent=47 // pred_check
        %p634 = pneg %p198
      $region50: #{adabins_forward.7} parent=47 // pred_check_branch
        %636 = sbr.rel (%p634) target = $region52
      $region51: #{adabins_forward.7} parent=47 // pred_region
        _
      $region52: #{adabins_forward.7} parent=47 // pred_fallthru
        _
    $region48: #{adabins_forward.7} parent=5 // pred_fallthru
      _
    %p637 = scmp.le.s32.totalorder 2, %s13
    // Predicated region
    $region53: #{adabins_forward.7} parent=5 // pred_check
      %p638 = pneg %p637
    $region54: #{adabins_forward.7} parent=5 // pred_check_branch
      %640 = sbr.rel (%p638) target = $region56
    $region55: #{adabins_forward.7} parent=5 // pred_region
      %s641 = ssub.s32 %s13, 2
      // Predicated region
      $region57: #{adabins_forward.7} parent=55 // pred_check
        %p642 = pneg %p204
      $region58: #{adabins_forward.7} parent=55 // pred_check_branch
        %644 = sbr.rel (%p642) target = $region60
      $region59: #{adabins_forward.7} parent=55 // pred_region
        %p645 = scmp.lt.s32.totalorder %s19, 1
        %s646 = scalar_select %p645, %s19, 1
        %s647 = smul.addr %s646, 2
        %s648 = scalar_lea.vmem %s7, %s647
      $region60: #{adabins_forward.7} parent=55 // pred_fallthru
        _
    $region56: #{adabins_forward.7} parent=5 // pred_fallthru
      _
  $region6: #{adabins_forward.7} parent=0 // loop_footer
    %s17 = sadd.s32 1, %s13
  $region7: #{adabins_forward.7} parent=0 // loop_footer_branch
    %12 = sbr.rel target = $region3
  $region8: #{adabins_forward.7} parent=0 // loop_exit
    _

</llo_original>
